<compile_context>
chip_gen: v7x
topology: tpu7x:2x2x1
jax: 0.10.0
libtpu: 0.0.40
codegen_flags: <defaults>
</compile_context>

<pallas_src>
import jax
import jax.numpy as jnp
from jax.experimental import pallas as pl
from jax.experimental.pallas import tpu as pltpu

F32 = jnp.float32

_P = 4    # full-res spatial halo (even; covers k=7 -> pad 3 and maxpool pad 1)
_H1 = 3   # halo for the stride-1 depthwise convs (k up to 7 -> pad 3)


# --------------------------- BN folding / packing ----------------------------

def _fold_bn(w, bn):
    """Fold inference BatchNorm into a (cin, cout) 1x1 weight; return (w', bias)."""
    scale, bias = bn                       # each (1, cout)
    return w * scale, bias.reshape(-1)


def _pack_params(params, wh):
    """Pack every weight into 3 arrays (review item: fewer, larger operands).

    Returns:
      dw_taps (sum_k2, wh*c_max) lane-tiled depthwise tap rows
      pw_w    (n_pw, Kmax, Nmax) block-diagonal (kron(I_wh, W)) folded-BN 1x1 weights
      pw_b    (n_pw, Nmax)       lane-tiled folded-BN biases
      meta    static dict (row offsets / indices / true extents)
      c_hp, hp_zero_per_call     stride-1 pad-buffer geometry
    """
    pw_entries = [('c1x1', params['conv1x1_w'], params['conv1x1_bn']),
                  ('c0r', params['c0r_w'], params['c0r_bn']),
                  ('c4r', params['c4r_w'], params['c4r_bn'])]
    for bname in ('bs0', 'bs1', 'bs2l', 'bs2r', 'bs3', 'bs4'):
        b = params[bname]
        pw_entries.append((bname + '.pw1', b['pw1'], b['bn1']))
        pw_entries.append((bname + '.pw2', b['pw2'], b['bn2']))

    blocks, biases, pw_meta = [], [], {}
    eye = jnp.eye(wh, dtype=F32)
    for idx, (name, w, bn) in enumerate(pw_entries):
        wf, bias = _fold_bn(w, bn)
        cin_, cout_ = wf.shape
        blocks.append(jnp.kron(eye, wf))            # (wh*cin_, wh*cout_)
        biases.append(jnp.tile(bias, wh))           # (wh*cout_,)
        pw_meta[name] = (idx, wh * cin_, wh * cout_)
    kmax = max(b.shape[0] for b in blocks)
    nmax = max(b.shape[1] for b in blocks)
    pw_w = jnp.stack([jnp.pad(b, ((0, kmax - b.shape[0]), (0, nmax - b.shape[1])))
                      for b in blocks])
    pw_b = jnp.stack([jnp.pad(v, (0, nmax - v.shape[0])) for v in biases])

    dw_entries = []
    for bname in ('bs0', 'bs1', 'bs2l', 'bs2r', 'bs3', 'bs4'):
        b = params[bname]
        dw_entries.append((bname + '.dw1', b['dw1']))
        dw_entries.append((bname + '.dw2', b['dw2']))
    lane_max = max(wh * w.shape[2] for _, w in dw_entries)
    rows, dw_meta, row0 = [], {}, 0
    for name, w in dw_entries:
        k, _, c = w.shape
        tiled = jnp.tile(w.reshape(k * k, c), (1, wh))        # (k*k, wh*c)
        rows.append(jnp.pad(tiled, ((0, 0), (0, lane_max - wh * c))))
        dw_meta[name] = (row0, k, c)
        row0 += k * k
    dw_taps = jnp.concatenate(rows, axis=0)

    # convs that use the stride-1 pad buffer: every '.dw2' plus bs3.dw1
    s1_names = [n for n in dw_meta if n.endswith('.dw2')] + ['bs3.dw1']
    s1_cs = {dw_meta[n][2] for n in s1_names}
    c_hp = max(s1_cs)
    hp_zero_per_call = len(s1_cs) > 1    # all equal here -> zero hp once per step

    meta = dict(pw=pw_meta, dw=dw_meta)
    return dw_taps, pw_w, pw_b, meta, c_hp, hp_zero_per_call


# ------------------------------- fused kernel --------------------------------

def _make_kernel(meta, dims):
    hh, wh = dims['hh'], dims['wh']
    hq, wq = dims['hq'], dims['wq']
    i0 = _P // 2
    cin, co_r = dims['cin'], dims['co_r']
    hp_zero_per_call = dims['hp_zero_per_call']

    def pw(x2d, pw_ref, pb_ref, name):
        """1x1 conv + folded BN as a block-diagonal GEMM in the lane-dense layout."""
        idx, kdim, ndim = meta['pw'][name]
        w = pw_ref[idx, :kdim, :ndim]
        b = pb_ref[idx:idx + 1, :ndim]
        return jnp.dot(x2d, w, preferred_element_type=jnp.float32) + b

    def dw_s2(ps_ref, taps_ref, name):
        """Stride-2 depthwise conv over a phase-split, _P-halo-padded buffer."""
        row0, k, c = meta['dw'][name]
        off = _P - k // 2
        acc, t = None, 0
        for i in range(k):
            for j in range(k):
                ii, jj = i + off, j + off
                ph = (ii % 2) * 2 + (jj % 2)
                a, b = ii // 2, jj // 2
                x = ps_ref[ph, 0, a:a + hh, b * c:(b + wh) * c]
                term = x * taps_ref[row0 + t:row0 + t + 1, :wh * c]
                acc = term if acc is None else acc + term
                t += 1
        return acc

    def maxpool_s2(ps_ref, c):
        """3x3 stride-2 max pool (pad 1) over a phase-split, -inf-halo buffer."""
        off = _P - 1
        acc = None
        for i in range(3):
            for j in range(3):
                ii, jj = i + off, j + off
                ph = (ii % 2) * 2 + (jj % 2)
                a, b = ii // 2, jj // 2
                x = ps_ref[ph, 0, a:a + hh, b * c:(b + wh) * c]
                acc = x if acc is None else jnp.maximum(acc, x)
        return acc

    def dw_s1(hp_ref, x, taps_ref, name):
        """Stride-1 depthwise conv at half resolution via the shared pad buffer.
        The halo is zeroed once per grid step; only the interior is written here."""
        row0, k, c = meta['dw'][name]
        p = k // 2
        if hp_zero_per_call:
            hp_ref[...] = jnp.zeros_like(hp_ref)
        hp_ref[0, _H1:_H1 + hh, _H1 * c:(_H1 + wh) * c] = x
        acc, t = None, 0
        for i in range(k):
            for j in range(k):
                r0 = _H1 - p + i
                l0 = (_H1 - p + j) * c
                xs = hp_ref[0, r0:r0 + hh, l0:l0 + wh * c]
                term = xs * taps_ref[row0 + t:row0 + t + 1, :wh * c]
                acc = term if acc is None else acc + term
                t += 1
        return acc

    def branch_s2(ps_relu_ref, hp_ref, taps_ref, pw_ref, pb_ref, bname):
        y = dw_s2(ps_relu_ref, taps_ref, bname + '.dw1')
        y = pw(y, pw_ref, pb_ref, bname + '.pw1')
        y = jnp.maximum(y, 0.0)
        y = dw_s1(hp_ref, y, taps_ref, bname + '.dw2')
        return pw(y, pw_ref, pb_ref, bname + '.pw2')

    def branch_s1(x, hp_ref, taps_ref, pw_ref, pb_ref, bname):
        y = dw_s1(hp_ref, jnp.maximum(x, 0.0), taps_ref, bname + '.dw1')
        y = pw(y, pw_ref, pb_ref, bname + '.pw1')
        y = jnp.maximum(y, 0.0)
        y = dw_s1(hp_ref, y, taps_ref, bname + '.dw2')
        return pw(y, pw_ref, pb_ref, bname + '.pw2')

    def kernel(x_ref, taps_ref, pw_ref, pb_ref, o_ref,
               xl_relu, xr_relu, xr_raw, hp_ref):
        # relu(x_left): phase-split, halo -inf -> 0.  Applied exactly once.
        xl_relu[...] = jnp.maximum(x_ref[...], 0.0)

        # x_right buffers: initialise only the halo ring (-inf for the raw copy
        # used by max pooling, 0 for the relu'd copy used by the depthwise convs).
        for ref, fill in ((xr_raw, -jnp.inf), (xr_relu, 0.0)):
            ref[:, :, 0:i0, :] = jnp.full((4, 1, i0, wq * co_r), fill, F32)
            ref[:, :, i0 + hh:hq, :] = jnp.full((4, 1, hq - i0 - hh, wq * co_r), fill, F32)
            ref[:, :, i0:i0 + hh, 0:i0 * co_r] = jnp.full((4, 1, hh, i0 * co_r), fill, F32)
            ref[:, :, i0:i0 + hh, (i0 + wh) * co_r:wq * co_r] = jnp.full(
                (4, 1, hh, (wq - i0 - wh) * co_r), fill, F32)

        # Zero the stride-1 depthwise pad buffer ONCE per step.
        if not hp_zero_per_call:
            hp_ref[...] = jnp.zeros_like(hp_ref)

        # x_right = ReluConvBn-1x1(x_left): ONE GEMM over the 4 stacked phases.
        xin = jnp.concatenate(
            [xl_relu[phn, 0, i0:i0 + hh, i0 * cin:(i0 + wh) * cin] for phn in range(4)],
            axis=0)                                            # (4*hh, wh*cin)
        xr = pw(xin, pw_ref, pb_ref, 'c1x1')                   # (4*hh, wh*co_r)
        for phn in range(4):
            blk = xr[phn * hh:(phn + 1) * hh]
            xr_raw[phn, 0, i0:i0 + hh, i0 * co_r:(i0 + wh) * co_r] = blk
            xr_relu[phn, 0, i0:i0 + hh, i0 * co_r:(i0 + wh) * co_r] = jnp.maximum(blk, 0.0)

        # comb_iter_0: BS(x_left, k5, s2, stem) + (maxpool(x_left) -> 1x1 -> BN)
        c0 = (branch_s2(xl_relu, hp_ref, taps_ref, pw_ref, pb_ref, 'bs0')
              + pw(maxpool_s2(x_ref, cin), pw_ref, pb_ref, 'c0r'))

        # maxpool(x_right): computed once, reused by comb_iter_1 / comb_iter_3.
        mp_r = maxpool_s2(xr_raw, co_r)

        # comb_iter_1: BS(x_right, k7, s2) + maxpool(x_right)
        c1 = branch_s2(xr_relu, hp_ref, taps_ref, pw_ref, pb_ref, 'bs1') + mp_r

        # comb_iter_2: BS(x_right, k5, s2) + BS(x_right, k3, s2)
        c2 = (branch_s2(xr_relu, hp_ref, taps_ref, pw_ref, pb_ref, 'bs2l')
              + branch_s2(xr_relu, hp_ref, taps_ref, pw_ref, pb_ref, 'bs2r'))

        # comb_iter_3: BS(c2, k3, s1) + maxpool(x_right)
        c3 = branch_s1(c2, hp_ref, taps_ref, pw_ref, pb_ref, 'bs3') + mp_r

        # comb_iter_4: BS(x_left, k3, s2, stem) + ReluConvBn-1x1 stride-2 of x_right
        # (stride-2 1x1 == even/even phase interior, i.e. rows [0, hh) of xr).
        c4r = pw(jnp.maximum(xr[0:hh], 0.0), pw_ref, pb_ref, 'c4r')
        c4 = branch_s2(xl_relu, hp_ref, taps_ref, pw_ref, pb_ref, 'bs4') + c4r

        # Lane-dense output slab: a single contiguous (hh, wh*(co_l+4*co_r)) store.
        out = jnp.concatenate([c0, c1, c2, c3, c4], axis=-1)
        o_ref[...] = out.reshape((1,) + out.shape)

    return kernel


# ------------------------------ public forward --------------------------------

def cell_stem0_forward(x_nchw, params):
    x = jnp.transpose(x_nchw, (0, 2, 3, 1)).astype(F32)          # NCHW -> NHWC
    n, h, w, cin = x.shape
    assert h % 2 == 0 and w % 2 == 0
    assert params['conv1x1_w'].shape[0] == cin and params['c0r_w'].shape[0] == cin

    hh, wh = h // 2, w // 2
    hq, wq = hh + _P, wh + _P
    co_l = params['c0r_w'].shape[1]
    co_r = params['conv1x1_w'].shape[1]

    dw_taps, pw_w, pw_b, meta, c_hp, hp_per_call = _pack_params(params, wh)

    # Phase-split, halo-padded, LANE-DENSE input:
    #   xps[2p+q, n, a, b*cin + c] = xpad[n, 2a+p, 2b+q, c]   (halo = -inf)
    # Pure re-layout of the padded input; -inf is the identity for max pooling
    # and becomes the zero conv padding after the in-kernel ReLU.
    # TODO(synk): fold this relayout into the kernel's input DMA (strided reads).
    xpad = jnp.pad(x, ((0, 0), (_P, _P), (_P, _P), (0, 0)),
                   constant_values=-jnp.inf)
    xps = xpad.reshape(n, hq, 2, wq, 2, cin).transpose(2, 4, 0, 1, 3, 5)
    xps = xps.reshape(4, n, hq, wq * cin)

    dims = dict(hh=hh, wh=wh, hq=hq, wq=wq, cin=cin, co_r=co_r,
                hp_zero_per_call=hp_per_call)
    kernel = _make_kernel(meta, dims)

    lane_out = wh * (co_l + 4 * co_r)

    out = pl.pallas_call(
        kernel,
        out_shape=jax.ShapeDtypeStruct((n, hh, lane_out), F32),
        grid=(n,),
        in_specs=[
            pl.BlockSpec((4, 1, hq, wq * cin), lambda b: (0, b, 0, 0)),
            pl.BlockSpec(dw_taps.shape, lambda b: (0, 0)),
            pl.BlockSpec(pw_w.shape, lambda b: (0, 0, 0)),
            pl.BlockSpec(pw_b.shape, lambda b: (0, 0)),
        ],
        out_specs=pl.BlockSpec((1, hh, lane_out), lambda b: (b, 0, 0)),
        scratch_shapes=[
            pltpu.VMEM((4, 1, hq, wq * cin), F32),    # relu(x_left), phase-split
            pltpu.VMEM((4, 1, hq, wq * co_r), F32),   # relu(x_right), zero halo
            pltpu.VMEM((4, 1, hq, wq * co_r), F32),   # raw x_right, -inf halo
            pltpu.VMEM((1, hh + 2 * _H1, (wh + 2 * _H1) * c_hp), F32),  # s1 dw pad
        ],
        compiler_params=pltpu.CompilerParams(
            dimension_semantics=("parallel",),        # batch sharded across cores
            vmem_limit_bytes=32 * 1024 * 1024),
    )(xps, dw_taps, pw_w, pw_b)

    # Unpack the lane-dense [branch][w][ch] output into the NCHW channel concat.
    segs, off = [], 0
    for co in (co_l, co_r, co_r, co_r, co_r):
        segs.append(out[:, :, off:off + wh * co].reshape(n, hh, wh, co))
        off += wh * co
    y = jnp.concatenate(segs, axis=-1)
    return jnp.transpose(y, (0, 3, 1, 2))             # NHWC -> NCHW


# --------------------------- parameter initialisation --------------------------

def _init_bn(key, c):
    k1, k2, k3, k4 = jax.random.split(key, 4)
    gamma = 1.0 + 0.1 * jax.random.normal(k1, (c,), F32)
    beta = 0.1 * jax.random.normal(k2, (c,), F32)
    mean = 0.1 * jax.random.normal(k3, (c,), F32)
    var = jnp.abs(1.0 + 0.1 * jax.random.normal(k4, (c,), F32))
    scale = gamma / jnp.sqrt(var + 1e-3)       # BatchNorm eps = 0.001 (PNASNet)
    bias = beta - mean * scale
    return scale.reshape(1, c), bias.reshape(1, c)


def _init_bs(key, cin, cout, k, stem):
    mid = cout if stem else cin
    ks = jax.random.split(key, 6)
    return dict(
        dw1=0.1 * jax.random.normal(ks[0], (k, k, cin), F32),
        pw1=0.1 * jax.random.normal(ks[1], (cin, mid), F32),
        bn1=_init_bn(ks[2], mid),
        dw2=0.1 * jax.random.normal(ks[3], (k, k, mid), F32),
        pw2=0.1 * jax.random.normal(ks[4], (mid, cout), F32),
        bn2=_init_bn(ks[5], cout),
    )


def init_cell_stem0_params(key, in_left, out_left, in_right, out_right):
    ks = jax.random.split(key, 12)
    return dict(
        conv1x1_w=0.1 * jax.random.normal(ks[0], (in_right, out_right), F32),
        conv1x1_bn=_init_bn(ks[1], out_right),
        bs0=_init_bs(ks[2], in_left, out_left, 5, True),
        c0r_w=0.1 * jax.random.normal(ks[3], (in_left, out_left), F32),
        c0r_bn=_init_bn(ks[4], out_left),
        bs1=_init_bs(ks[5], out_right, out_right, 7, False),
        bs2l=_init_bs(ks[6], out_right, out_right, 5, False),
        bs2r=_init_bs(ks[7], out_right, out_right, 3, False),
        bs3=_init_bs(ks[8], out_right, out_right, 3, False),
        bs4=_init_bs(ks[9], in_right, out_right, 3, True),
        c4r_w=0.1 * jax.random.normal(ks[10], (out_right, out_right), F32),
        c4r_bn=_init_bn(ks[11], out_right),
    )


# -------------------------- pure-XLA reference check --------------------------

def _ref_forward(x_nchw, params):
    """Plain-XLA f32 reference (no Pallas, no dot ops) for numerical checking."""
    x = jnp.transpose(x_nchw, (0, 2, 3, 1)).astype(F32)

    def pw_bn(v, w, bn):
        wf, b = _fold_bn(w, bn)
        cin_, cout_ = wf.shape
        acc = jnp.zeros(v.shape[:-1] + (cout_,), F32)
        for ci in range(cin_):
            acc = acc + v[..., ci:ci + 1] * wf[ci].reshape(1, 1, 1, -1)
        return acc + b.reshape(1, 1, 1, -1)

    def dw(v, w, stride):
        k = w.shape[0]
        p = k // 2
        n_, hh, wh, c = v.shape
        vp = jnp.pad(v, ((0, 0), (p, p), (p, p), (0, 0)))
        ho = (hh + 2 * p - k) // stride + 1
        wo = (wh + 2 * p - k) // stride + 1
        acc = jnp.zeros((n_, ho, wo, c), F32)
        for i in range(k):
            for j in range(k):
                acc = acc + vp[:, i:i + stride * ho:stride,
                               j:j + stride * wo:stride, :] * w[i, j, :]
        return acc

    def maxpool(v):
        return jax.lax.reduce_window(
            v, -jnp.inf, jax.lax.max, (1, 3, 3, 1), (1, 2, 2, 1),
            [(0, 0), (1, 1), (1, 1), (0, 0)])

    def branch_sep(v, b, stride):
        y = dw(jnp.maximum(v, 0.0), b['dw1'], stride)
        y = pw_bn(y, b['pw1'], b['bn1'])
        y = dw(jnp.maximum(y, 0.0), b['dw2'], 1)
        return pw_bn(y, b['pw2'], b['bn2'])

    x_right = pw_bn(jnp.maximum(x, 0.0), params['conv1x1_w'], params['conv1x1_bn'])
    c0 = (branch_sep(x, params['bs0'], 2)
          + pw_bn(maxpool(x), params['c0r_w'], params['c0r_bn']))
    mp_r = maxpool(x_right)
    c1 = branch_sep(x_right, params['bs1'], 2) + mp_r
    c2 = (branch_sep(x_right, params['bs2l'], 2)
          + branch_sep(x_right, params['bs2r'], 2))
    c3 = branch_sep(c2, params['bs3'], 1) + mp_r
    c4 = (branch_sep(x, params['bs4'], 2)
          + pw_bn(jnp.maximum(x_right, 0.0)[:, ::2, ::2, :],
                  params['c4r_w'], params['c4r_bn']))
    out = jnp.concatenate([c0, c1, c2, c3, c4], axis=-1)
    return jnp.transpose(out, (0, 3, 1, 2))


if __name__ == "__main__":
    key = jax.random.PRNGKey(0)
    kx, kparam = jax.random.split(key)

    in_channels_left = in_channels_right = 8
    out_channels_left = out_channels_right = 8
    N, H, W = 2, 16, 16

    x = jax.random.normal(kx, (N, in_channels_left, H, W), F32)
    params = init_cell_stem0_params(kparam, in_channels_left, out_channels_left,
                                    in_channels_right, out_channels_right)

    fwd = jax.jit(cell_stem0_forward)
    y = fwd(x, params)
    jax.block_until_ready(y)

    expected = (N, out_channels_left + 4 * out_channels_right, H // 2, W // 2)
    assert y.shape == expected, (y.shape, expected)
    assert bool(jnp.all(jnp.isfinite(y)))

    # Numerical cross-check against the pure-f32 XLA reference.  Tolerance covers
    # accumulation-order differences and any reduced-pass behaviour of the MXU's
    # f32 block-diagonal matmuls; structural bugs would be orders of magnitude larger.
    y_ref = _ref_forward(x, params)
    max_err = float(jnp.max(jnp.abs(y - y_ref)))
    assert max_err < 5e-3, max_err

    print("KERNEL_OK")
</pallas_src>

<mosaic_0001>
module attributes {stable_mosaic.version = 11 : i64} {
  func.func @kernel(%arg0: i32, %arg1: memref<4x1x12x96xf32, #tpu.memory_space<vmem>>, %arg2: memref<252x64xf32, #tpu.memory_space<vmem>>, %arg3: memref<15x64x64xf32, #tpu.memory_space<vmem>>, %arg4: memref<15x64xf32, #tpu.memory_space<vmem>>, %arg5: memref<1x8x320xf32, #tpu.memory_space<vmem>>, %arg6: memref<4x1x12x96xf32, #tpu.memory_space<vmem>>, %arg7: memref<4x1x12x96xf32, #tpu.memory_space<vmem>>, %arg8: memref<4x1x12x96xf32, #tpu.memory_space<vmem>>, %arg9: memref<1x14x112xf32, #tpu.memory_space<vmem>>) attributes {dimension_semantics = [#tpu.dimension_semantics<parallel>], iteration_bounds = array<i64: 2>, scalar_prefetch = 0 : i64, scratch_operands = 4 : i64, tpu.core_type = #tpu.core_type<tc>, window_params = [{transform_indices = @transform_0, window_bounds = array<i64: 4, 1, 12, 96>}, {pipeline_mode = #tpu.pipeline_mode<synchronous>, transform_indices = @transform_1, window_bounds = array<i64: 252, 64>}, {pipeline_mode = #tpu.pipeline_mode<synchronous>, transform_indices = @transform_2, window_bounds = array<i64: 15, 64, 64>}, {pipeline_mode = #tpu.pipeline_mode<synchronous>, transform_indices = @transform_3, window_bounds = array<i64: 15, 64>}, {transform_indices = @transform_4, window_bounds = array<i64: 1, 8, 320>}]} {
    %c0 = arith.constant 0 : index
    %c0_0 = arith.constant 0 : index
    %c0_1 = arith.constant 0 : index
    %c0_2 = arith.constant 0 : index
    %0 = vector.load %arg1[%c0, %c0_0, %c0_1, %c0_2] : memref<4x1x12x96xf32, #tpu.memory_space<vmem>>, vector<4x1x12x96xf32>
    %cst = arith.constant 0.000000e+00 : f32
    %1 = vector.broadcast %cst : f32 to vector<4x1x12x96xf32>
    %2 = arith.maximumf %0, %1 : vector<4x1x12x96xf32>
    %c0_3 = arith.constant 0 : index
    %c0_4 = arith.constant 0 : index
    %c0_5 = arith.constant 0 : index
    %c0_6 = arith.constant 0 : index
    %3 = vector.load %arg6[%c0_3, %c0_4, %c0_5, %c0_6] : memref<4x1x12x96xf32, #tpu.memory_space<vmem>>, vector<4x1x12x96xf32>
    tpu.vector_store %arg6[%c0_3, %c0_4, %c0_5, %c0_6], %2 {strides = array<i32>} : memref<4x1x12x96xf32, #tpu.memory_space<vmem>>, vector<4x1x12x96xf32>,
    %cst_7 = arith.constant 0xFF800000 : f32
    %4 = vector.broadcast %cst_7 : f32 to vector<4x1x2x96xf32>
    %c0_8 = arith.constant 0 : index
    %c0_9 = arith.constant 0 : index
    %c0_10 = arith.constant 0 : index
    %c0_11 = arith.constant 0 : index
    %5 = vector.load %arg8[%c0_8, %c0_9, %c0_10, %c0_11] : memref<4x1x12x96xf32, #tpu.memory_space<vmem>>, vector<4x1x2x96xf32>
    tpu.vector_store %arg8[%c0_8, %c0_9, %c0_10, %c0_11], %4 {strides = array<i32>} : memref<4x1x12x96xf32, #tpu.memory_space<vmem>>, vector<4x1x2x96xf32>,
    %cst_12 = arith.constant 0xFF800000 : f32
    %6 = vector.broadcast %cst_12 : f32 to vector<4x1x2x96xf32>
    %c0_13 = arith.constant 0 : index
    %c0_14 = arith.constant 0 : index
    %c10 = arith.constant 10 : index
    %c0_15 = arith.constant 0 : index
    %7 = vector.load %arg8[%c0_13, %c0_14, %c10, %c0_15] : memref<4x1x12x96xf32, #tpu.memory_space<vmem>>, vector<4x1x2x96xf32>
    tpu.vector_store %arg8[%c0_13, %c0_14, %c10, %c0_15], %6 {strides = array<i32>} : memref<4x1x12x96xf32, #tpu.memory_space<vmem>>, vector<4x1x2x96xf32>,
    %cst_16 = arith.constant 0xFF800000 : f32
    %8 = vector.broadcast %cst_16 : f32 to vector<4x1x8x16xf32>
    %c0_17 = arith.constant 0 : index
    %c0_18 = arith.constant 0 : index
    %c2 = arith.constant 2 : index
    %c0_19 = arith.constant 0 : index
    %9 = vector.load %arg8[%c0_17, %c0_18, %c2, %c0_19] : memref<4x1x12x96xf32, #tpu.memory_space<vmem>>, vector<4x1x8x16xf32>
    tpu.vector_store %arg8[%c0_17, %c0_18, %c2, %c0_19], %8 {strides = array<i32>} : memref<4x1x12x96xf32, #tpu.memory_space<vmem>>, vector<4x1x8x16xf32>,
    %cst_20 = arith.constant 0xFF800000 : f32
    %10 = vector.broadcast %cst_20 : f32 to vector<4x1x8x16xf32>
    %c0_21 = arith.constant 0 : index
    %c0_22 = arith.constant 0 : index
    %c2_23 = arith.constant 2 : index
    %c80 = arith.constant 80 : index
    %11 = vector.load %arg8[%c0_21, %c0_22, %c2_23, %c80] : memref<4x1x12x96xf32, #tpu.memory_space<vmem>>, vector<4x1x8x16xf32>
    tpu.vector_store %arg8[%c0_21, %c0_22, %c2_23, %c80], %10 {strides = array<i32>} : memref<4x1x12x96xf32, #tpu.memory_space<vmem>>, vector<4x1x8x16xf32>,
    %cst_24 = arith.constant 0.000000e+00 : f32
    %12 = vector.broadcast %cst_24 : f32 to vector<4x1x2x96xf32>
    %c0_25 = arith.constant 0 : index
    %c0_26 = arith.constant 0 : index
    %c0_27 = arith.constant 0 : index
    %c0_28 = arith.constant 0 : index
    %13 = vector.load %arg7[%c0_25, %c0_26, %c0_27, %c0_28] : memref<4x1x12x96xf32, #tpu.memory_space<vmem>>, vector<4x1x2x96xf32>
    tpu.vector_store %arg7[%c0_25, %c0_26, %c0_27, %c0_28], %12 {strides = array<i32>} : memref<4x1x12x96xf32, #tpu.memory_space<vmem>>, vector<4x1x2x96xf32>,
    %cst_29 = arith.constant 0.000000e+00 : f32
    %14 = vector.broadcast %cst_29 : f32 to vector<4x1x2x96xf32>
    %c0_30 = arith.constant 0 : index
    %c0_31 = arith.constant 0 : index
    %c10_32 = arith.constant 10 : index
    %c0_33 = arith.constant 0 : index
    %15 = vector.load %arg7[%c0_30, %c0_31, %c10_32, %c0_33] : memref<4x1x12x96xf32, #tpu.memory_space<vmem>>, vector<4x1x2x96xf32>
    tpu.vector_store %arg7[%c0_30, %c0_31, %c10_32, %c0_33], %14 {strides = array<i32>} : memref<4x1x12x96xf32, #tpu.memory_space<vmem>>, vector<4x1x2x96xf32>,
    %cst_34 = arith.constant 0.000000e+00 : f32
    %16 = vector.broadcast %cst_34 : f32 to vector<4x1x8x16xf32>
    %c0_35 = arith.constant 0 : index
    %c0_36 = arith.constant 0 : index
    %c2_37 = arith.constant 2 : index
    %c0_38 = arith.constant 0 : index
    %17 = vector.load %arg7[%c0_35, %c0_36, %c2_37, %c0_38] : memref<4x1x12x96xf32, #tpu.memory_space<vmem>>, vector<4x1x8x16xf32>
    tpu.vector_store %arg7[%c0_35, %c0_36, %c2_37, %c0_38], %16 {strides = array<i32>} : memref<4x1x12x96xf32, #tpu.memory_space<vmem>>, vector<4x1x8x16xf32>,
    %cst_39 = arith.constant 0.000000e+00 : f32
    %18 = vector.broadcast %cst_39 : f32 to vector<4x1x8x16xf32>
    %c0_40 = arith.constant 0 : index
    %c0_41 = arith.constant 0 : index
    %c2_42 = arith.constant 2 : index
    %c80_43 = arith.constant 80 : index
    %19 = vector.load %arg7[%c0_40, %c0_41, %c2_42, %c80_43] : memref<4x1x12x96xf32, #tpu.memory_space<vmem>>, vector<4x1x8x16xf32>
    tpu.vector_store %arg7[%c0_40, %c0_41, %c2_42, %c80_43], %18 {strides = array<i32>} : memref<4x1x12x96xf32, #tpu.memory_space<vmem>>, vector<4x1x8x16xf32>,
    %cst_44 = arith.constant 0.000000e+00 : f32
    %20 = vector.broadcast %cst_44 : f32 to vector<1x14x112xf32>
    %c0_45 = arith.constant 0 : index
    %c0_46 = arith.constant 0 : index
    %c0_47 = arith.constant 0 : index
    %21 = vector.load %arg9[%c0_45, %c0_46, %c0_47] : memref<1x14x112xf32, #tpu.memory_space<vmem>>, vector<1x14x112xf32>
    tpu.vector_store %arg9[%c0_45, %c0_46, %c0_47], %20 {strides = array<i32>} : memref<1x14x112xf32, #tpu.memory_space<vmem>>, vector<1x14x112xf32>,
    %c0_48 = arith.constant 0 : index
    %c0_49 = arith.constant 0 : index
    %c2_50 = arith.constant 2 : index
    %c16 = arith.constant 16 : index
    %22 = vector.load %arg6[%c0_48, %c0_49, %c2_50, %c16] : memref<4x1x12x96xf32, #tpu.memory_space<vmem>>, vector<1x1x8x64xf32>
    %23 = vector.shape_cast %22 : vector<1x1x8x64xf32> to vector<8x64xf32>
    %c1 = arith.constant 1 : index
    %c0_51 = arith.constant 0 : index
    %c2_52 = arith.constant 2 : index
    %c16_53 = arith.constant 16 : index
    %24 = vector.load %arg6[%c1, %c0_51, %c2_52, %c16_53] : memref<4x1x12x96xf32, #tpu.memory_space<vmem>>, vector<1x1x8x64xf32>
    %25 = vector.shape_cast %24 : vector<1x1x8x64xf32> to vector<8x64xf32>
    %c2_54 = arith.constant 2 : index
    %c0_55 = arith.constant 0 : index
    %c2_56 = arith.constant 2 : index
    %c16_57 = arith.constant 16 : index
    %26 = vector.load %arg6[%c2_54, %c0_55, %c2_56, %c16_57] : memref<4x1x12x96xf32, #tpu.memory_space<vmem>>, vector<1x1x8x64xf32>
    %27 = vector.shape_cast %26 : vector<1x1x8x64xf32> to vector<8x64xf32>
    %c3 = arith.constant 3 : index
    %c0_58 = arith.constant 0 : index
    %c2_59 = arith.constant 2 : index
    %c16_60 = arith.constant 16 : index
    %28 = vector.load %arg6[%c3, %c0_58, %c2_59, %c16_60] : memref<4x1x12x96xf32, #tpu.memory_space<vmem>>, vector<1x1x8x64xf32>
    %29 = vector.shape_cast %28 : vector<1x1x8x64xf32> to vector<8x64xf32>
    %30 = tpu.concatenate %23, %25, %27, %29 in 0 : vector<8x64xf32>, vector<8x64xf32>, vector<8x64xf32>, vector<8x64xf32> -> vector<32x64xf32>
    %c0_61 = arith.constant 0 : index
    %c0_62 = arith.constant 0 : index
    %c0_63 = arith.constant 0 : index
    %31 = vector.load %arg3[%c0_61, %c0_62, %c0_63] : memref<15x64x64xf32, #tpu.memory_space<vmem>>, vector<1x64x64xf32>
    %32 = vector.shape_cast %31 : vector<1x64x64xf32> to vector<64x64xf32>
    %c0_64 = arith.constant 0 : index
    %c0_65 = arith.constant 0 : index
    %33 = vector.load %arg4[%c0_64, %c0_65] : memref<15x64xf32, #tpu.memory_space<vmem>>, vector<1x64xf32>
    %cst_66 = arith.constant dense<0.000000e+00> : vector<32x64xf32>
    %34 = tpu.matmul %30, %32, %cst_66 {dimension_numbers = #tpu.dot_dimension_numbers<[1], [0], [0], [1], [0, 0, 1, 1], [], []>} : vector<32x64xf32>, vector<64x64xf32>, vector<32x64xf32> -> vector<32x64xf32>
    %35 = vector.broadcast %33 : vector<1x64xf32> to vector<32x64xf32>
    %36 = arith.addf %34, %35 : vector<32x64xf32>
    %37 = vector.extract_strided_slice %36 {offsets = [0, 0], sizes = [8, 64], strides = [1, 1]} : vector<32x64xf32> to vector<8x64xf32>
    %c0_67 = arith.constant 0 : index
    %c0_68 = arith.constant 0 : index
    %c2_69 = arith.constant 2 : index
    %c16_70 = arith.constant 16 : index
    %38 = vector.load %arg8[%c0_67, %c0_68, %c2_69, %c16_70] : memref<4x1x12x96xf32, #tpu.memory_space<vmem>>, vector<1x1x8x64xf32>
    %39 = vector.shape_cast %38 : vector<1x1x8x64xf32> to vector<8x64xf32>
    %40 = vector.shape_cast %37 : vector<8x64xf32> to vector<1x1x8x64xf32>
    tpu.vector_store %arg8[%c0_67, %c0_68, %c2_69, %c16_70], %40 {strides = array<i32>} : memref<4x1x12x96xf32, #tpu.memory_space<vmem>>, vector<1x1x8x64xf32>,
    %cst_71 = arith.constant 0.000000e+00 : f32
    %41 = vector.broadcast %cst_71 : f32 to vector<8x64xf32>
    %42 = arith.maximumf %37, %41 : vector<8x64xf32>
    %c0_72 = arith.constant 0 : index
    %c0_73 = arith.constant 0 : index
    %c2_74 = arith.constant 2 : index
    %c16_75 = arith.constant 16 : index
    %43 = vector.load %arg7[%c0_72, %c0_73, %c2_74, %c16_75] : memref<4x1x12x96xf32, #tpu.memory_space<vmem>>, vector<1x1x8x64xf32>
    %44 = vector.shape_cast %43 : vector<1x1x8x64xf32> to vector<8x64xf32>
    %45 = vector.shape_cast %42 : vector<8x64xf32> to vector<1x1x8x64xf32>
    tpu.vector_store %arg7[%c0_72, %c0_73, %c2_74, %c16_75], %45 {strides = array<i32>} : memref<4x1x12x96xf32, #tpu.memory_space<vmem>>, vector<1x1x8x64xf32>,
    %46 = vector.extract_strided_slice %36 {offsets = [8, 0], sizes = [8, 64], strides = [1, 1]} : vector<32x64xf32> to vector<8x64xf32>
    %c1_76 = arith.constant 1 : index
    %c0_77 = arith.constant 0 : index
    %c2_78 = arith.constant 2 : index
    %c16_79 = arith.constant 16 : index
    %47 = vector.load %arg8[%c1_76, %c0_77, %c2_78, %c16_79] : memref<4x1x12x96xf32, #tpu.memory_space<vmem>>, vector<1x1x8x64xf32>
    %48 = vector.shape_cast %47 : vector<1x1x8x64xf32> to vector<8x64xf32>
    %49 = vector.shape_cast %46 : vector<8x64xf32> to vector<1x1x8x64xf32>
    tpu.vector_store %arg8[%c1_76, %c0_77, %c2_78, %c16_79], %49 {strides = array<i32>} : memref<4x1x12x96xf32, #tpu.memory_space<vmem>>, vector<1x1x8x64xf32>,
    %cst_80 = arith.constant 0.000000e+00 : f32
    %50 = vector.broadcast %cst_80 : f32 to vector<8x64xf32>
    %51 = arith.maximumf %46, %50 : vector<8x64xf32>
    %c1_81 = arith.constant 1 : index
    %c0_82 = arith.constant 0 : index
    %c2_83 = arith.constant 2 : index
    %c16_84 = arith.constant 16 : index
    %52 = vector.load %arg7[%c1_81, %c0_82, %c2_83, %c16_84] : memref<4x1x12x96xf32, #tpu.memory_space<vmem>>, vector<1x1x8x64xf32>
    %53 = vector.shape_cast %52 : vector<1x1x8x64xf32> to vector<8x64xf32>
    %54 = vector.shape_cast %51 : vector<8x64xf32> to vector<1x1x8x64xf32>
    tpu.vector_store %arg7[%c1_81, %c0_82, %c2_83, %c16_84], %54 {strides = array<i32>} : memref<4x1x12x96xf32, #tpu.memory_space<vmem>>, vector<1x1x8x64xf32>,
    %55 = vector.extract_strided_slice %36 {offsets = [16, 0], sizes = [8, 64], strides = [1, 1]} : vector<32x64xf32> to vector<8x64xf32>
    %c2_85 = arith.constant 2 : index
    %c0_86 = arith.constant 0 : index
    %c2_87 = arith.constant 2 : index
    %c16_88 = arith.constant 16 : index
    %56 = vector.load %arg8[%c2_85, %c0_86, %c2_87, %c16_88] : memref<4x1x12x96xf32, #tpu.memory_space<vmem>>, vector<1x1x8x64xf32>
    %57 = vector.shape_cast %56 : vector<1x1x8x64xf32> to vector<8x64xf32>
    %58 = vector.shape_cast %55 : vector<8x64xf32> to vector<1x1x8x64xf32>
    tpu.vector_store %arg8[%c2_85, %c0_86, %c2_87, %c16_88], %58 {strides = array<i32>} : memref<4x1x12x96xf32, #tpu.memory_space<vmem>>, vector<1x1x8x64xf32>,
    %cst_89 = arith.constant 0.000000e+00 : f32
    %59 = vector.broadcast %cst_89 : f32 to vector<8x64xf32>
    %60 = arith.maximumf %55, %59 : vector<8x64xf32>
    %c2_90 = arith.constant 2 : index
    %c0_91 = arith.constant 0 : index
    %c2_92 = arith.constant 2 : index
    %c16_93 = arith.constant 16 : index
    %61 = vector.load %arg7[%c2_90, %c0_91, %c2_92, %c16_93] : memref<4x1x12x96xf32, #tpu.memory_space<vmem>>, vector<1x1x8x64xf32>
    %62 = vector.shape_cast %61 : vector<1x1x8x64xf32> to vector<8x64xf32>
    %63 = vector.shape_cast %60 : vector<8x64xf32> to vector<1x1x8x64xf32>
    tpu.vector_store %arg7[%c2_90, %c0_91, %c2_92, %c16_93], %63 {strides = array<i32>} : memref<4x1x12x96xf32, #tpu.memory_space<vmem>>, vector<1x1x8x64xf32>,
    %64 = vector.extract_strided_slice %36 {offsets = [24, 0], sizes = [8, 64], strides = [1, 1]} : vector<32x64xf32> to vector<8x64xf32>
    %c3_94 = arith.constant 3 : index
    %c0_95 = arith.constant 0 : index
    %c2_96 = arith.constant 2 : index
    %c16_97 = arith.constant 16 : index
    %65 = vector.load %arg8[%c3_94, %c0_95, %c2_96, %c16_97] : memref<4x1x12x96xf32, #tpu.memory_space<vmem>>, vector<1x1x8x64xf32>
    %66 = vector.shape_cast %65 : vector<1x1x8x64xf32> to vector<8x64xf32>
    %67 = vector.shape_cast %64 : vector<8x64xf32> to vector<1x1x8x64xf32>
    tpu.vector_store %arg8[%c3_94, %c0_95, %c2_96, %c16_97], %67 {strides = array<i32>} : memref<4x1x12x96xf32, #tpu.memory_space<vmem>>, vector<1x1x8x64xf32>,
    %cst_98 = arith.constant 0.000000e+00 : f32
    %68 = vector.broadcast %cst_98 : f32 to vector<8x64xf32>
    %69 = arith.maximumf %64, %68 : vector<8x64xf32>
    %c3_99 = arith.constant 3 : index
    %c0_100 = arith.constant 0 : index
    %c2_101 = arith.constant 2 : index
    %c16_102 = arith.constant 16 : index
    %70 = vector.load %arg7[%c3_99, %c0_100, %c2_101, %c16_102] : memref<4x1x12x96xf32, #tpu.memory_space<vmem>>, vector<1x1x8x64xf32>
    %71 = vector.shape_cast %70 : vector<1x1x8x64xf32> to vector<8x64xf32>
    %72 = vector.shape_cast %69 : vector<8x64xf32> to vector<1x1x8x64xf32>
    tpu.vector_store %arg7[%c3_99, %c0_100, %c2_101, %c16_102], %72 {strides = array<i32>} : memref<4x1x12x96xf32, #tpu.memory_space<vmem>>, vector<1x1x8x64xf32>,
    %c0_103 = arith.constant 0 : index
    %c0_104 = arith.constant 0 : index
    %c1_105 = arith.constant 1 : index
    %c8 = arith.constant 8 : index
    %73 = vector.load %arg6[%c0_103, %c0_104, %c1_105, %c8] : memref<4x1x12x96xf32, #tpu.memory_space<vmem>>, vector<1x1x8x64xf32>
    %74 = vector.shape_cast %73 : vector<1x1x8x64xf32> to vector<8x64xf32>
    %c0_106 = arith.constant 0 : index
    %c0_107 = arith.constant 0 : index
    %75 = vector.load %arg2[%c0_106, %c0_107] : memref<252x64xf32, #tpu.memory_space<vmem>>, vector<1x64xf32>
    %76 = vector.broadcast %75 : vector<1x64xf32> to vector<8x64xf32>
    %77 = arith.mulf %74, %76 : vector<8x64xf32>
    %c1_108 = arith.constant 1 : index
    %c0_109 = arith.constant 0 : index
    %c1_110 = arith.constant 1 : index
    %c8_111 = arith.constant 8 : index
    %78 = vector.load %arg6[%c1_108, %c0_109, %c1_110, %c8_111] : memref<4x1x12x96xf32, #tpu.memory_space<vmem>>, vector<1x1x8x64xf32>
    %79 = vector.shape_cast %78 : vector<1x1x8x64xf32> to vector<8x64xf32>
    %c1_112 = arith.constant 1 : index
    %c0_113 = arith.constant 0 : index
    %80 = vector.load %arg2[%c1_112, %c0_113] : memref<252x64xf32, #tpu.memory_space<vmem>>, vector<1x64xf32>
    %81 = vector.broadcast %80 : vector<1x64xf32> to vector<8x64xf32>
    %82 = arith.mulf %79, %81 : vector<8x64xf32>
    %83 = arith.addf %77, %82 : vector<8x64xf32>
    %c0_114 = arith.constant 0 : index
    %c0_115 = arith.constant 0 : index
    %c1_116 = arith.constant 1 : index
    %c16_117 = arith.constant 16 : index
    %84 = vector.load %arg6[%c0_114, %c0_115, %c1_116, %c16_117] : memref<4x1x12x96xf32, #tpu.memory_space<vmem>>, vector<1x1x8x64xf32>
    %85 = vector.shape_cast %84 : vector<1x1x8x64xf32> to vector<8x64xf32>
    %c2_118 = arith.constant 2 : index
    %c0_119 = arith.constant 0 : index
    %86 = vector.load %arg2[%c2_118, %c0_119] : memref<252x64xf32, #tpu.memory_space<vmem>>, vector<1x64xf32>
    %87 = vector.broadcast %86 : vector<1x64xf32> to vector<8x64xf32>
    %88 = arith.mulf %85, %87 : vector<8x64xf32>
    %89 = arith.addf %83, %88 : vector<8x64xf32>
    %c1_120 = arith.constant 1 : index
    %c0_121 = arith.constant 0 : index
    %c1_122 = arith.constant 1 : index
    %c16_123 = arith.constant 16 : index
    %90 = vector.load %arg6[%c1_120, %c0_121, %c1_122, %c16_123] : memref<4x1x12x96xf32, #tpu.memory_space<vmem>>, vector<1x1x8x64xf32>
    %91 = vector.shape_cast %90 : vector<1x1x8x64xf32> to vector<8x64xf32>
    %c3_124 = arith.constant 3 : index
    %c0_125 = arith.constant 0 : index
    %92 = vector.load %arg2[%c3_124, %c0_125] : memref<252x64xf32, #tpu.memory_space<vmem>>, vector<1x64xf32>
    %93 = vector.broadcast %92 : vector<1x64xf32> to vector<8x64xf32>
    %94 = arith.mulf %91, %93 : vector<8x64xf32>
    %95 = arith.addf %89, %94 : vector<8x64xf32>
    %c0_126 = arith.constant 0 : index
    %c0_127 = arith.constant 0 : index
    %c1_128 = arith.constant 1 : index
    %c24 = arith.constant 24 : index
    %96 = vector.load %arg6[%c0_126, %c0_127, %c1_128, %c24] : memref<4x1x12x96xf32, #tpu.memory_space<vmem>>, vector<1x1x8x64xf32>
    %97 = vector.shape_cast %96 : vector<1x1x8x64xf32> to vector<8x64xf32>
    %c4 = arith.constant 4 : index
    %c0_129 = arith.constant 0 : index
    %98 = vector.load %arg2[%c4, %c0_129] : memref<252x64xf32, #tpu.memory_space<vmem>>, vector<1x64xf32>
    %99 = vector.broadcast %98 : vector<1x64xf32> to vector<8x64xf32>
    %100 = arith.mulf %97, %99 : vector<8x64xf32>
    %101 = arith.addf %95, %100 : vector<8x64xf32>
    %c2_130 = arith.constant 2 : index
    %c0_131 = arith.constant 0 : index
    %c1_132 = arith.constant 1 : index
    %c8_133 = arith.constant 8 : index
    %102 = vector.load %arg6[%c2_130, %c0_131, %c1_132, %c8_133] : memref<4x1x12x96xf32, #tpu.memory_space<vmem>>, vector<1x1x8x64xf32>
    %103 = vector.shape_cast %102 : vector<1x1x8x64xf32> to vector<8x64xf32>
    %c5 = arith.constant 5 : index
    %c0_134 = arith.constant 0 : index
    %104 = vector.load %arg2[%c5, %c0_134] : memref<252x64xf32, #tpu.memory_space<vmem>>, vector<1x64xf32>
    %105 = vector.broadcast %104 : vector<1x64xf32> to vector<8x64xf32>
    %106 = arith.mulf %103, %105 : vector<8x64xf32>
    %107 = arith.addf %101, %106 : vector<8x64xf32>
    %c3_135 = arith.constant 3 : index
    %c0_136 = arith.constant 0 : index
    %c1_137 = arith.constant 1 : index
    %c8_138 = arith.constant 8 : index
    %108 = vector.load %arg6[%c3_135, %c0_136, %c1_137, %c8_138] : memref<4x1x12x96xf32, #tpu.memory_space<vmem>>, vector<1x1x8x64xf32>
    %109 = vector.shape_cast %108 : vector<1x1x8x64xf32> to vector<8x64xf32>
    %c6 = arith.constant 6 : index
    %c0_139 = arith.constant 0 : index
    %110 = vector.load %arg2[%c6, %c0_139] : memref<252x64xf32, #tpu.memory_space<vmem>>, vector<1x64xf32>
    %111 = vector.broadcast %110 : vector<1x64xf32> to vector<8x64xf32>
    %112 = arith.mulf %109, %111 : vector<8x64xf32>
    %113 = arith.addf %107, %112 : vector<8x64xf32>
    %c2_140 = arith.constant 2 : index
    %c0_141 = arith.constant 0 : index
    %c1_142 = arith.constant 1 : index
    %c16_143 = arith.constant 16 : index
    %114 = vector.load %arg6[%c2_140, %c0_141, %c1_142, %c16_143] : memref<4x1x12x96xf32, #tpu.memory_space<vmem>>, vector<1x1x8x64xf32>
    %115 = vector.shape_cast %114 : vector<1x1x8x64xf32> to vector<8x64xf32>
    %c7 = arith.constant 7 : index
    %c0_144 = arith.constant 0 : index
    %116 = vector.load %arg2[%c7, %c0_144] : memref<252x64xf32, #tpu.memory_space<vmem>>, vector<1x64xf32>
    %117 = vector.broadcast %116 : vector<1x64xf32> to vector<8x64xf32>
    %118 = arith.mulf %115, %117 : vector<8x64xf32>
    %119 = arith.addf %113, %118 : vector<8x64xf32>
    %c3_145 = arith.constant 3 : index
    %c0_146 = arith.constant 0 : index
    %c1_147 = arith.constant 1 : index
    %c16_148 = arith.constant 16 : index
    %120 = vector.load %arg6[%c3_145, %c0_146, %c1_147, %c16_148] : memref<4x1x12x96xf32, #tpu.memory_space<vmem>>, vector<1x1x8x64xf32>
    %121 = vector.shape_cast %120 : vector<1x1x8x64xf32> to vector<8x64xf32>
    %c8_149 = arith.constant 8 : index
    %c0_150 = arith.constant 0 : index
    %122 = vector.load %arg2[%c8_149, %c0_150] : memref<252x64xf32, #tpu.memory_space<vmem>>, vector<1x64xf32>
    %123 = vector.broadcast %122 : vector<1x64xf32> to vector<8x64xf32>
    %124 = arith.mulf %121, %123 : vector<8x64xf32>
    %125 = arith.addf %119, %124 : vector<8x64xf32>
    %c2_151 = arith.constant 2 : index
    %c0_152 = arith.constant 0 : index
    %c1_153 = arith.constant 1 : index
    %c24_154 = arith.constant 24 : index
    %126 = vector.load %arg6[%c2_151, %c0_152, %c1_153, %c24_154] : memref<4x1x12x96xf32, #tpu.memory_space<vmem>>, vector<1x1x8x64xf32>
    %127 = vector.shape_cast %126 : vector<1x1x8x64xf32> to vector<8x64xf32>
    %c9 = arith.constant 9 : index
    %c0_155 = arith.constant 0 : index
    %128 = vector.load %arg2[%c9, %c0_155] : memref<252x64xf32, #tpu.memory_space<vmem>>, vector<1x64xf32>
    %129 = vector.broadcast %128 : vector<1x64xf32> to vector<8x64xf32>
    %130 = arith.mulf %127, %129 : vector<8x64xf32>
    %131 = arith.addf %125, %130 : vector<8x64xf32>
    %c0_156 = arith.constant 0 : index
    %c0_157 = arith.constant 0 : index
    %c2_158 = arith.constant 2 : index
    %c8_159 = arith.constant 8 : index
    %132 = vector.load %arg6[%c0_156, %c0_157, %c2_158, %c8_159] : memref<4x1x12x96xf32, #tpu.memory_space<vmem>>, vector<1x1x8x64xf32>
    %133 = vector.shape_cast %132 : vector<1x1x8x64xf32> to vector<8x64xf32>
    %c10_160 = arith.constant 10 : index
    %c0_161 = arith.constant 0 : index
    %134 = vector.load %arg2[%c10_160, %c0_161] : memref<252x64xf32, #tpu.memory_space<vmem>>, vector<1x64xf32>
    %135 = vector.broadcast %134 : vector<1x64xf32> to vector<8x64xf32>
    %136 = arith.mulf %133, %135 : vector<8x64xf32>
    %137 = arith.addf %131, %136 : vector<8x64xf32>
    %c1_162 = arith.constant 1 : index
    %c0_163 = arith.constant 0 : index
    %c2_164 = arith.constant 2 : index
    %c8_165 = arith.constant 8 : index
    %138 = vector.load %arg6[%c1_162, %c0_163, %c2_164, %c8_165] : memref<4x1x12x96xf32, #tpu.memory_space<vmem>>, vector<1x1x8x64xf32>
    %139 = vector.shape_cast %138 : vector<1x1x8x64xf32> to vector<8x64xf32>
    %c11 = arith.constant 11 : index
    %c0_166 = arith.constant 0 : index
    %140 = vector.load %arg2[%c11, %c0_166] : memref<252x64xf32, #tpu.memory_space<vmem>>, vector<1x64xf32>
    %141 = vector.broadcast %140 : vector<1x64xf32> to vector<8x64xf32>
    %142 = arith.mulf %139, %141 : vector<8x64xf32>
    %143 = arith.addf %137, %142 : vector<8x64xf32>
    %c0_167 = arith.constant 0 : index
    %c0_168 = arith.constant 0 : index
    %c2_169 = arith.constant 2 : index
    %c16_170 = arith.constant 16 : index
    %144 = vector.load %arg6[%c0_167, %c0_168, %c2_169, %c16_170] : memref<4x1x12x96xf32, #tpu.memory_space<vmem>>, vector<1x1x8x64xf32>
    %145 = vector.shape_cast %144 : vector<1x1x8x64xf32> to vector<8x64xf32>
    %c12 = arith.constant 12 : index
    %c0_171 = arith.constant 0 : index
    %146 = vector.load %arg2[%c12, %c0_171] : memref<252x64xf32, #tpu.memory_space<vmem>>, vector<1x64xf32>
    %147 = vector.broadcast %146 : vector<1x64xf32> to vector<8x64xf32>
    %148 = arith.mulf %145, %147 : vector<8x64xf32>
    %149 = arith.addf %143, %148 : vector<8x64xf32>
    %c1_172 = arith.constant 1 : index
    %c0_173 = arith.constant 0 : index
    %c2_174 = arith.constant 2 : index
    %c16_175 = arith.constant 16 : index
    %150 = vector.load %arg6[%c1_172, %c0_173, %c2_174, %c16_175] : memref<4x1x12x96xf32, #tpu.memory_space<vmem>>, vector<1x1x8x64xf32>
    %151 = vector.shape_cast %150 : vector<1x1x8x64xf32> to vector<8x64xf32>
    %c13 = arith.constant 13 : index
    %c0_176 = arith.constant 0 : index
    %152 = vector.load %arg2[%c13, %c0_176] : memref<252x64xf32, #tpu.memory_space<vmem>>, vector<1x64xf32>
    %153 = vector.broadcast %152 : vector<1x64xf32> to vector<8x64xf32>
    %154 = arith.mulf %151, %153 : vector<8x64xf32>
    %155 = arith.addf %149, %154 : vector<8x64xf32>
    %c0_177 = arith.constant 0 : index
    %c0_178 = arith.constant 0 : index
    %c2_179 = arith.constant 2 : index
    %c24_180 = arith.constant 24 : index
    %156 = vector.load %arg6[%c0_177, %c0_178, %c2_179, %c24_180] : memref<4x1x12x96xf32, #tpu.memory_space<vmem>>, vector<1x1x8x64xf32>
    %157 = vector.shape_cast %156 : vector<1x1x8x64xf32> to vector<8x64xf32>
    %c14 = arith.constant 14 : index
    %c0_181 = arith.constant 0 : index
    %158 = vector.load %arg2[%c14, %c0_181] : memref<252x64xf32, #tpu.memory_space<vmem>>, vector<1x64xf32>
    %159 = vector.broadcast %158 : vector<1x64xf32> to vector<8x64xf32>
    %160 = arith.mulf %157, %159 : vector<8x64xf32>
    %161 = arith.addf %155, %160 : vector<8x64xf32>
    %c2_182 = arith.constant 2 : index
    %c0_183 = arith.constant 0 : index
    %c2_184 = arith.constant 2 : index
    %c8_185 = arith.constant 8 : index
    %162 = vector.load %arg6[%c2_182, %c0_183, %c2_184, %c8_185] : memref<4x1x12x96xf32, #tpu.memory_space<vmem>>, vector<1x1x8x64xf32>
    %163 = vector.shape_cast %162 : vector<1x1x8x64xf32> to vector<8x64xf32>
    %c15 = arith.constant 15 : index
    %c0_186 = arith.constant 0 : index
    %164 = vector.load %arg2[%c15, %c0_186] : memref<252x64xf32, #tpu.memory_space<vmem>>, vector<1x64xf32>
    %165 = vector.broadcast %164 : vector<1x64xf32> to vector<8x64xf32>
    %166 = arith.mulf %163, %165 : vector<8x64xf32>
    %167 = arith.addf %161, %166 : vector<8x64xf32>
    %c3_187 = arith.constant 3 : index
    %c0_188 = arith.constant 0 : index
    %c2_189 = arith.constant 2 : index
    %c8_190 = arith.constant 8 : index
    %168 = vector.load %arg6[%c3_187, %c0_188, %c2_189, %c8_190] : memref<4x1x12x96xf32, #tpu.memory_space<vmem>>, vector<1x1x8x64xf32>
    %169 = vector.shape_cast %168 : vector<1x1x8x64xf32> to vector<8x64xf32>
    %c16_191 = arith.constant 16 : index
    %c0_192 = arith.constant 0 : index
    %170 = vector.load %arg2[%c16_191, %c0_192] : memref<252x64xf32, #tpu.memory_space<vmem>>, vector<1x64xf32>
    %171 = vector.broadcast %170 : vector<1x64xf32> to vector<8x64xf32>
    %172 = arith.mulf %169, %171 : vector<8x64xf32>
    %173 = arith.addf %167, %172 : vector<8x64xf32>
    %c2_193 = arith.constant 2 : index
    %c0_194 = arith.constant 0 : index
    %c2_195 = arith.constant 2 : index
    %c16_196 = arith.constant 16 : index
    %174 = vector.load %arg6[%c2_193, %c0_194, %c2_195, %c16_196] : memref<4x1x12x96xf32, #tpu.memory_space<vmem>>, vector<1x1x8x64xf32>
    %175 = vector.shape_cast %174 : vector<1x1x8x64xf32> to vector<8x64xf32>
    %c17 = arith.constant 17 : index
    %c0_197 = arith.constant 0 : index
    %176 = vector.load %arg2[%c17, %c0_197] : memref<252x64xf32, #tpu.memory_space<vmem>>, vector<1x64xf32>
    %177 = vector.broadcast %176 : vector<1x64xf32> to vector<8x64xf32>
    %178 = arith.mulf %175, %177 : vector<8x64xf32>
    %179 = arith.addf %173, %178 : vector<8x64xf32>
    %c3_198 = arith.constant 3 : index
    %c0_199 = arith.constant 0 : index
    %c2_200 = arith.constant 2 : index
    %c16_201 = arith.constant 16 : index
    %180 = vector.load %arg6[%c3_198, %c0_199, %c2_200, %c16_201] : memref<4x1x12x96xf32, #tpu.memory_space<vmem>>, vector<1x1x8x64xf32>
    %181 = vector.shape_cast %180 : vector<1x1x8x64xf32> to vector<8x64xf32>
    %c18 = arith.constant 18 : index
    %c0_202 = arith.constant 0 : index
    %182 = vector.load %arg2[%c18, %c0_202] : memref<252x64xf32, #tpu.memory_space<vmem>>, vector<1x64xf32>
    %183 = vector.broadcast %182 : vector<1x64xf32> to vector<8x64xf32>
    %184 = arith.mulf %181, %183 : vector<8x64xf32>
    %185 = arith.addf %179, %184 : vector<8x64xf32>
    %c2_203 = arith.constant 2 : index
    %c0_204 = arith.constant 0 : index
    %c2_205 = arith.constant 2 : index
    %c24_206 = arith.constant 24 : index
    %186 = vector.load %arg6[%c2_203, %c0_204, %c2_205, %c24_206] : memref<4x1x12x96xf32, #tpu.memory_space<vmem>>, vector<1x1x8x64xf32>
    %187 = vector.shape_cast %186 : vector<1x1x8x64xf32> to vector<8x64xf32>
    %c19 = arith.constant 19 : index
    %c0_207 = arith.constant 0 : index
    %188 = vector.load %arg2[%c19, %c0_207] : memref<252x64xf32, #tpu.memory_space<vmem>>, vector<1x64xf32>
    %189 = vector.broadcast %188 : vector<1x64xf32> to vector<8x64xf32>
    %190 = arith.mulf %187, %189 : vector<8x64xf32>
    %191 = arith.addf %185, %190 : vector<8x64xf32>
    %c0_208 = arith.constant 0 : index
    %c0_209 = arith.constant 0 : index
    %c3_210 = arith.constant 3 : index
    %c8_211 = arith.constant 8 : index
    %192 = vector.load %arg6[%c0_208, %c0_209, %c3_210, %c8_211] : memref<4x1x12x96xf32, #tpu.memory_space<vmem>>, vector<1x1x8x64xf32>
    %193 = vector.shape_cast %192 : vector<1x1x8x64xf32> to vector<8x64xf32>
    %c20 = arith.constant 20 : index
    %c0_212 = arith.constant 0 : index
    %194 = vector.load %arg2[%c20, %c0_212] : memref<252x64xf32, #tpu.memory_space<vmem>>, vector<1x64xf32>
    %195 = vector.broadcast %194 : vector<1x64xf32> to vector<8x64xf32>
    %196 = arith.mulf %193, %195 : vector<8x64xf32>
    %197 = arith.addf %191, %196 : vector<8x64xf32>
    %c1_213 = arith.constant 1 : index
    %c0_214 = arith.constant 0 : index
    %c3_215 = arith.constant 3 : index
    %c8_216 = arith.constant 8 : index
    %198 = vector.load %arg6[%c1_213, %c0_214, %c3_215, %c8_216] : memref<4x1x12x96xf32, #tpu.memory_space<vmem>>, vector<1x1x8x64xf32>
    %199 = vector.shape_cast %198 : vector<1x1x8x64xf32> to vector<8x64xf32>
    %c21 = arith.constant 21 : index
    %c0_217 = arith.constant 0 : index
    %200 = vector.load %arg2[%c21, %c0_217] : memref<252x64xf32, #tpu.memory_space<vmem>>, vector<1x64xf32>
    %201 = vector.broadcast %200 : vector<1x64xf32> to vector<8x64xf32>
    %202 = arith.mulf %199, %201 : vector<8x64xf32>
    %203 = arith.addf %197, %202 : vector<8x64xf32>
    %c0_218 = arith.constant 0 : index
    %c0_219 = arith.constant 0 : index
    %c3_220 = arith.constant 3 : index
    %c16_221 = arith.constant 16 : index
    %204 = vector.load %arg6[%c0_218, %c0_219, %c3_220, %c16_221] : memref<4x1x12x96xf32, #tpu.memory_space<vmem>>, vector<1x1x8x64xf32>
    %205 = vector.shape_cast %204 : vector<1x1x8x64xf32> to vector<8x64xf32>
    %c22 = arith.constant 22 : index
    %c0_222 = arith.constant 0 : index
    %206 = vector.load %arg2[%c22, %c0_222] : memref<252x64xf32, #tpu.memory_space<vmem>>, vector<1x64xf32>
    %207 = vector.broadcast %206 : vector<1x64xf32> to vector<8x64xf32>
    %208 = arith.mulf %205, %207 : vector<8x64xf32>
    %209 = arith.addf %203, %208 : vector<8x64xf32>
    %c1_223 = arith.constant 1 : index
    %c0_224 = arith.constant 0 : index
    %c3_225 = arith.constant 3 : index
    %c16_226 = arith.constant 16 : index
    %210 = vector.load %arg6[%c1_223, %c0_224, %c3_225, %c16_226] : memref<4x1x12x96xf32, #tpu.memory_space<vmem>>, vector<1x1x8x64xf32>
    %211 = vector.shape_cast %210 : vector<1x1x8x64xf32> to vector<8x64xf32>
    %c23 = arith.constant 23 : index
    %c0_227 = arith.constant 0 : index
    %212 = vector.load %arg2[%c23, %c0_227] : memref<252x64xf32, #tpu.memory_space<vmem>>, vector<1x64xf32>
    %213 = vector.broadcast %212 : vector<1x64xf32> to vector<8x64xf32>
    %214 = arith.mulf %211, %213 : vector<8x64xf32>
    %215 = arith.addf %209, %214 : vector<8x64xf32>
    %c0_228 = arith.constant 0 : index
    %c0_229 = arith.constant 0 : index
    %c3_230 = arith.constant 3 : index
    %c24_231 = arith.constant 24 : index
    %216 = vector.load %arg6[%c0_228, %c0_229, %c3_230, %c24_231] : memref<4x1x12x96xf32, #tpu.memory_space<vmem>>, vector<1x1x8x64xf32>
    %217 = vector.shape_cast %216 : vector<1x1x8x64xf32> to vector<8x64xf32>
    %c24_232 = arith.constant 24 : index
    %c0_233 = arith.constant 0 : index
    %218 = vector.load %arg2[%c24_232, %c0_233] : memref<252x64xf32, #tpu.memory_space<vmem>>, vector<1x64xf32>
    %219 = vector.broadcast %218 : vector<1x64xf32> to vector<8x64xf32>
    %220 = arith.mulf %217, %219 : vector<8x64xf32>
    %221 = arith.addf %215, %220 : vector<8x64xf32>
    %c3_234 = arith.constant 3 : index
    %c0_235 = arith.constant 0 : index
    %c0_236 = arith.constant 0 : index
    %222 = vector.load %arg3[%c3_234, %c0_235, %c0_236] : memref<15x64x64xf32, #tpu.memory_space<vmem>>, vector<1x64x64xf32>
    %223 = vector.shape_cast %222 : vector<1x64x64xf32> to vector<64x64xf32>
    %c3_237 = arith.constant 3 : index
    %c0_238 = arith.constant 0 : index
    %224 = vector.load %arg4[%c3_237, %c0_238] : memref<15x64xf32, #tpu.memory_space<vmem>>, vector<1x64xf32>
    %cst_239 = arith.constant dense<0.000000e+00> : vector<8x64xf32>
    %225 = tpu.matmul %221, %223, %cst_239 {dimension_numbers = #tpu.dot_dimension_numbers<[1], [0], [0], [1], [0, 0, 1, 1], [], []>} : vector<8x64xf32>, vector<64x64xf32>, vector<8x64xf32> -> vector<8x64xf32>
    %226 = vector.broadcast %224 : vector<1x64xf32> to vector<8x64xf32>
    %227 = arith.addf %225, %226 : vector<8x64xf32>
    %cst_240 = arith.constant 0.000000e+00 : f32
    %228 = vector.broadcast %cst_240 : f32 to vector<8x64xf32>
    %229 = arith.maximumf %227, %228 : vector<8x64xf32>
    %c0_241 = arith.constant 0 : index
    %c3_242 = arith.constant 3 : index
    %c24_243 = arith.constant 24 : index
    %230 = vector.load %arg9[%c0_241, %c3_242, %c24_243] : memref<1x14x112xf32, #tpu.memory_space<vmem>>, vector<1x8x64xf32>
    %231 = vector.shape_cast %230 : vector<1x8x64xf32> to vector<8x64xf32>
    %232 = vector.shape_cast %229 : vector<8x64xf32> to vector<1x8x64xf32>
    tpu.vector_store %arg9[%c0_241, %c3_242, %c24_243], %232 {strides = array<i32>} : memref<1x14x112xf32, #tpu.memory_space<vmem>>, vector<1x8x64xf32>,
    %c0_244 = arith.constant 0 : index
    %c1_245 = arith.constant 1 : index
    %c8_246 = arith.constant 8 : index
    %233 = vector.load %arg9[%c0_244, %c1_245, %c8_246] : memref<1x14x112xf32, #tpu.memory_space<vmem>>, vector<1x8x64xf32>
    %234 = vector.shape_cast %233 : vector<1x8x64xf32> to vector<8x64xf32>
    %c25 = arith.constant 25 : index
    %c0_247 = arith.constant 0 : index
    %235 = vector.load %arg2[%c25, %c0_247] : memref<252x64xf32, #tpu.memory_space<vmem>>, vector<1x64xf32>
    %236 = vector.broadcast %235 : vector<1x64xf32> to vector<8x64xf32>
    %237 = arith.mulf %234, %236 : vector<8x64xf32>
    %c0_248 = arith.constant 0 : index
    %c1_249 = arith.constant 1 : index
    %c16_250 = arith.constant 16 : index
    %238 = vector.load %arg9[%c0_248, %c1_249, %c16_250] : memref<1x14x112xf32, #tpu.memory_space<vmem>>, vector<1x8x64xf32>
    %239 = vector.shape_cast %238 : vector<1x8x64xf32> to vector<8x64xf32>
    %c26 = arith.constant 26 : index
    %c0_251 = arith.constant 0 : index
    %240 = vector.load %arg2[%c26, %c0_251] : memref<252x64xf32, #tpu.memory_space<vmem>>, vector<1x64xf32>
    %241 = vector.broadcast %240 : vector<1x64xf32> to vector<8x64xf32>
    %242 = arith.mulf %239, %241 : vector<8x64xf32>
    %243 = arith.addf %237, %242 : vector<8x64xf32>
    %c0_252 = arith.constant 0 : index
    %c1_253 = arith.constant 1 : index
    %c24_254 = arith.constant 24 : index
    %244 = vector.load %arg9[%c0_252, %c1_253, %c24_254] : memref<1x14x112xf32, #tpu.memory_space<vmem>>, vector<1x8x64xf32>
    %245 = vector.shape_cast %244 : vector<1x8x64xf32> to vector<8x64xf32>
    %c27 = arith.constant 27 : index
    %c0_255 = arith.constant 0 : index
    %246 = vector.load %arg2[%c27, %c0_255] : memref<252x64xf32, #tpu.memory_space<vmem>>, vector<1x64xf32>
    %247 = vector.broadcast %246 : vector<1x64xf32> to vector<8x64xf32>
    %248 = arith.mulf %245, %247 : vector<8x64xf32>
    %249 = arith.addf %243, %248 : vector<8x64xf32>
    %c0_256 = arith.constant 0 : index
    %c1_257 = arith.constant 1 : index
    %c32 = arith.constant 32 : index
    %250 = vector.load %arg9[%c0_256, %c1_257, %c32] : memref<1x14x112xf32, #tpu.memory_space<vmem>>, vector<1x8x64xf32>
    %251 = vector.shape_cast %250 : vector<1x8x64xf32> to vector<8x64xf32>
    %c28 = arith.constant 28 : index
    %c0_258 = arith.constant 0 : index
    %252 = vector.load %arg2[%c28, %c0_258] : memref<252x64xf32, #tpu.memory_space<vmem>>, vector<1x64xf32>
    %253 = vector.broadcast %252 : vector<1x64xf32> to vector<8x64xf32>
    %254 = arith.mulf %251, %253 : vector<8x64xf32>
    %255 = arith.addf %249, %254 : vector<8x64xf32>
    %c0_259 = arith.constant 0 : index
    %c1_260 = arith.constant 1 : index
    %c40 = arith.constant 40 : index
    %256 = vector.load %arg9[%c0_259, %c1_260, %c40] : memref<1x14x112xf32, #tpu.memory_space<vmem>>, vector<1x8x64xf32>
    %257 = vector.shape_cast %256 : vector<1x8x64xf32> to vector<8x64xf32>
    %c29 = arith.constant 29 : index
    %c0_261 = arith.constant 0 : index
    %258 = vector.load %arg2[%c29, %c0_261] : memref<252x64xf32, #tpu.memory_space<vmem>>, vector<1x64xf32>
    %259 = vector.broadcast %258 : vector<1x64xf32> to vector<8x64xf32>
    %260 = arith.mulf %257, %259 : vector<8x64xf32>
    %261 = arith.addf %255, %260 : vector<8x64xf32>
    %c0_262 = arith.constant 0 : index
    %c2_263 = arith.constant 2 : index
    %c8_264 = arith.constant 8 : index
    %262 = vector.load %arg9[%c0_262, %c2_263, %c8_264] : memref<1x14x112xf32, #tpu.memory_space<vmem>>, vector<1x8x64xf32>
    %263 = vector.shape_cast %262 : vector<1x8x64xf32> to vector<8x64xf32>
    %c30 = arith.constant 30 : index
    %c0_265 = arith.constant 0 : index
    %264 = vector.load %arg2[%c30, %c0_265] : memref<252x64xf32, #tpu.memory_space<vmem>>, vector<1x64xf32>
    %265 = vector.broadcast %264 : vector<1x64xf32> to vector<8x64xf32>
    %266 = arith.mulf %263, %265 : vector<8x64xf32>
    %267 = arith.addf %261, %266 : vector<8x64xf32>
    %c0_266 = arith.constant 0 : index
    %c2_267 = arith.constant 2 : index
    %c16_268 = arith.constant 16 : index
    %268 = vector.load %arg9[%c0_266, %c2_267, %c16_268] : memref<1x14x112xf32, #tpu.memory_space<vmem>>, vector<1x8x64xf32>
    %269 = vector.shape_cast %268 : vector<1x8x64xf32> to vector<8x64xf32>
    %c31 = arith.constant 31 : index
    %c0_269 = arith.constant 0 : index
    %270 = vector.load %arg2[%c31, %c0_269] : memref<252x64xf32, #tpu.memory_space<vmem>>, vector<1x64xf32>
    %271 = vector.broadcast %270 : vector<1x64xf32> to vector<8x64xf32>
    %272 = arith.mulf %269, %271 : vector<8x64xf32>
    %273 = arith.addf %267, %272 : vector<8x64xf32>
    %c0_270 = arith.constant 0 : index
    %c2_271 = arith.constant 2 : index
    %c24_272 = arith.constant 24 : index
    %274 = vector.load %arg9[%c0_270, %c2_271, %c24_272] : memref<1x14x112xf32, #tpu.memory_space<vmem>>, vector<1x8x64xf32>
    %275 = vector.shape_cast %274 : vector<1x8x64xf32> to vector<8x64xf32>
    %c32_273 = arith.constant 32 : index
    %c0_274 = arith.constant 0 : index
    %276 = vector.load %arg2[%c32_273, %c0_274] : memref<252x64xf32, #tpu.memory_space<vmem>>, vector<1x64xf32>
    %277 = vector.broadcast %276 : vector<1x64xf32> to vector<8x64xf32>
    %278 = arith.mulf %275, %277 : vector<8x64xf32>
    %279 = arith.addf %273, %278 : vector<8x64xf32>
    %c0_275 = arith.constant 0 : index
    %c2_276 = arith.constant 2 : index
    %c32_277 = arith.constant 32 : index
    %280 = vector.load %arg9[%c0_275, %c2_276, %c32_277] : memref<1x14x112xf32, #tpu.memory_space<vmem>>, vector<1x8x64xf32>
    %281 = vector.shape_cast %280 : vector<1x8x64xf32> to vector<8x64xf32>
    %c33 = arith.constant 33 : index
    %c0_278 = arith.constant 0 : index
    %282 = vector.load %arg2[%c33, %c0_278] : memref<252x64xf32, #tpu.memory_space<vmem>>, vector<1x64xf32>
    %283 = vector.broadcast %282 : vector<1x64xf32> to vector<8x64xf32>
    %284 = arith.mulf %281, %283 : vector<8x64xf32>
    %285 = arith.addf %279, %284 : vector<8x64xf32>
    %c0_279 = arith.constant 0 : index
    %c2_280 = arith.constant 2 : index
    %c40_281 = arith.constant 40 : index
    %286 = vector.load %arg9[%c0_279, %c2_280, %c40_281] : memref<1x14x112xf32, #tpu.memory_space<vmem>>, vector<1x8x64xf32>
    %287 = vector.shape_cast %286 : vector<1x8x64xf32> to vector<8x64xf32>
    %c34 = arith.constant 34 : index
    %c0_282 = arith.constant 0 : index
    %288 = vector.load %arg2[%c34, %c0_282] : memref<252x64xf32, #tpu.memory_space<vmem>>, vector<1x64xf32>
    %289 = vector.broadcast %288 : vector<1x64xf32> to vector<8x64xf32>
    %290 = arith.mulf %287, %289 : vector<8x64xf32>
    %291 = arith.addf %285, %290 : vector<8x64xf32>
    %c0_283 = arith.constant 0 : index
    %c3_284 = arith.constant 3 : index
    %c8_285 = arith.constant 8 : index
    %292 = vector.load %arg9[%c0_283, %c3_284, %c8_285] : memref<1x14x112xf32, #tpu.memory_space<vmem>>, vector<1x8x64xf32>
    %293 = vector.shape_cast %292 : vector<1x8x64xf32> to vector<8x64xf32>
    %c35 = arith.constant 35 : index
    %c0_286 = arith.constant 0 : index
    %294 = vector.load %arg2[%c35, %c0_286] : memref<252x64xf32, #tpu.memory_space<vmem>>, vector<1x64xf32>
    %295 = vector.broadcast %294 : vector<1x64xf32> to vector<8x64xf32>
    %296 = arith.mulf %293, %295 : vector<8x64xf32>
    %297 = arith.addf %291, %296 : vector<8x64xf32>
    %c0_287 = arith.constant 0 : index
    %c3_288 = arith.constant 3 : index
    %c16_289 = arith.constant 16 : index
    %298 = vector.load %arg9[%c0_287, %c3_288, %c16_289] : memref<1x14x112xf32, #tpu.memory_space<vmem>>, vector<1x8x64xf32>
    %299 = vector.shape_cast %298 : vector<1x8x64xf32> to vector<8x64xf32>
    %c36 = arith.constant 36 : index
    %c0_290 = arith.constant 0 : index
    %300 = vector.load %arg2[%c36, %c0_290] : memref<252x64xf32, #tpu.memory_space<vmem>>, vector<1x64xf32>
    %301 = vector.broadcast %300 : vector<1x64xf32> to vector<8x64xf32>
    %302 = arith.mulf %299, %301 : vector<8x64xf32>
    %303 = arith.addf %297, %302 : vector<8x64xf32>
    %c0_291 = arith.constant 0 : index
    %c3_292 = arith.constant 3 : index
    %c24_293 = arith.constant 24 : index
    %304 = vector.load %arg9[%c0_291, %c3_292, %c24_293] : memref<1x14x112xf32, #tpu.memory_space<vmem>>, vector<1x8x64xf32>
    %305 = vector.shape_cast %304 : vector<1x8x64xf32> to vector<8x64xf32>
    %c37 = arith.constant 37 : index
    %c0_294 = arith.constant 0 : index
    %306 = vector.load %arg2[%c37, %c0_294] : memref<252x64xf32, #tpu.memory_space<vmem>>, vector<1x64xf32>
    %307 = vector.broadcast %306 : vector<1x64xf32> to vector<8x64xf32>
    %308 = arith.mulf %305, %307 : vector<8x64xf32>
    %309 = arith.addf %303, %308 : vector<8x64xf32>
    %c0_295 = arith.constant 0 : index
    %c3_296 = arith.constant 3 : index
    %c32_297 = arith.constant 32 : index
    %310 = vector.load %arg9[%c0_295, %c3_296, %c32_297] : memref<1x14x112xf32, #tpu.memory_space<vmem>>, vector<1x8x64xf32>
    %311 = vector.shape_cast %310 : vector<1x8x64xf32> to vector<8x64xf32>
    %c38 = arith.constant 38 : index
    %c0_298 = arith.constant 0 : index
    %312 = vector.load %arg2[%c38, %c0_298] : memref<252x64xf32, #tpu.memory_space<vmem>>, vector<1x64xf32>
    %313 = vector.broadcast %312 : vector<1x64xf32> to vector<8x64xf32>
    %314 = arith.mulf %311, %313 : vector<8x64xf32>
    %315 = arith.addf %309, %314 : vector<8x64xf32>
    %c0_299 = arith.constant 0 : index
    %c3_300 = arith.constant 3 : index
    %c40_301 = arith.constant 40 : index
    %316 = vector.load %arg9[%c0_299, %c3_300, %c40_301] : memref<1x14x112xf32, #tpu.memory_space<vmem>>, vector<1x8x64xf32>
    %317 = vector.shape_cast %316 : vector<1x8x64xf32> to vector<8x64xf32>
    %c39 = arith.constant 39 : index
    %c0_302 = arith.constant 0 : index
    %318 = vector.load %arg2[%c39, %c0_302] : memref<252x64xf32, #tpu.memory_space<vmem>>, vector<1x64xf32>
    %319 = vector.broadcast %318 : vector<1x64xf32> to vector<8x64xf32>
    %320 = arith.mulf %317, %319 : vector<8x64xf32>
    %321 = arith.addf %315, %320 : vector<8x64xf32>
    %c0_303 = arith.constant 0 : index
    %c4_304 = arith.constant 4 : index
    %c8_305 = arith.constant 8 : index
    %322 = vector.load %arg9[%c0_303, %c4_304, %c8_305] : memref<1x14x112xf32, #tpu.memory_space<vmem>>, vector<1x8x64xf32>
    %323 = vector.shape_cast %322 : vector<1x8x64xf32> to vector<8x64xf32>
    %c40_306 = arith.constant 40 : index
    %c0_307 = arith.constant 0 : index
    %324 = vector.load %arg2[%c40_306, %c0_307] : memref<252x64xf32, #tpu.memory_space<vmem>>, vector<1x64xf32>
    %325 = vector.broadcast %324 : vector<1x64xf32> to vector<8x64xf32>
    %326 = arith.mulf %323, %325 : vector<8x64xf32>
    %327 = arith.addf %321, %326 : vector<8x64xf32>
    %c0_308 = arith.constant 0 : index
    %c4_309 = arith.constant 4 : index
    %c16_310 = arith.constant 16 : index
    %328 = vector.load %arg9[%c0_308, %c4_309, %c16_310] : memref<1x14x112xf32, #tpu.memory_space<vmem>>, vector<1x8x64xf32>
    %329 = vector.shape_cast %328 : vector<1x8x64xf32> to vector<8x64xf32>
    %c41 = arith.constant 41 : index
    %c0_311 = arith.constant 0 : index
    %330 = vector.load %arg2[%c41, %c0_311] : memref<252x64xf32, #tpu.memory_space<vmem>>, vector<1x64xf32>
    %331 = vector.broadcast %330 : vector<1x64xf32> to vector<8x64xf32>
    %332 = arith.mulf %329, %331 : vector<8x64xf32>
    %333 = arith.addf %327, %332 : vector<8x64xf32>
    %c0_312 = arith.constant 0 : index
    %c4_313 = arith.constant 4 : index
    %c24_314 = arith.constant 24 : index
    %334 = vector.load %arg9[%c0_312, %c4_313, %c24_314] : memref<1x14x112xf32, #tpu.memory_space<vmem>>, vector<1x8x64xf32>
    %335 = vector.shape_cast %334 : vector<1x8x64xf32> to vector<8x64xf32>
    %c42 = arith.constant 42 : index
    %c0_315 = arith.constant 0 : index
    %336 = vector.load %arg2[%c42, %c0_315] : memref<252x64xf32, #tpu.memory_space<vmem>>, vector<1x64xf32>
    %337 = vector.broadcast %336 : vector<1x64xf32> to vector<8x64xf32>
    %338 = arith.mulf %335, %337 : vector<8x64xf32>
    %339 = arith.addf %333, %338 : vector<8x64xf32>
    %c0_316 = arith.constant 0 : index
    %c4_317 = arith.constant 4 : index
    %c32_318 = arith.constant 32 : index
    %340 = vector.load %arg9[%c0_316, %c4_317, %c32_318] : memref<1x14x112xf32, #tpu.memory_space<vmem>>, vector<1x8x64xf32>
    %341 = vector.shape_cast %340 : vector<1x8x64xf32> to vector<8x64xf32>
    %c43 = arith.constant 43 : index
    %c0_319 = arith.constant 0 : index
    %342 = vector.load %arg2[%c43, %c0_319] : memref<252x64xf32, #tpu.memory_space<vmem>>, vector<1x64xf32>
    %343 = vector.broadcast %342 : vector<1x64xf32> to vector<8x64xf32>
    %344 = arith.mulf %341, %343 : vector<8x64xf32>
    %345 = arith.addf %339, %344 : vector<8x64xf32>
    %c0_320 = arith.constant 0 : index
    %c4_321 = arith.constant 4 : index
    %c40_322 = arith.constant 40 : index
    %346 = vector.load %arg9[%c0_320, %c4_321, %c40_322] : memref<1x14x112xf32, #tpu.memory_space<vmem>>, vector<1x8x64xf32>
    %347 = vector.shape_cast %346 : vector<1x8x64xf32> to vector<8x64xf32>
    %c44 = arith.constant 44 : index
    %c0_323 = arith.constant 0 : index
    %348 = vector.load %arg2[%c44, %c0_323] : memref<252x64xf32, #tpu.memory_space<vmem>>, vector<1x64xf32>
    %349 = vector.broadcast %348 : vector<1x64xf32> to vector<8x64xf32>
    %350 = arith.mulf %347, %349 : vector<8x64xf32>
    %351 = arith.addf %345, %350 : vector<8x64xf32>
    %c0_324 = arith.constant 0 : index
    %c5_325 = arith.constant 5 : index
    %c8_326 = arith.constant 8 : index
    %352 = vector.load %arg9[%c0_324, %c5_325, %c8_326] : memref<1x14x112xf32, #tpu.memory_space<vmem>>, vector<1x8x64xf32>
    %353 = vector.shape_cast %352 : vector<1x8x64xf32> to vector<8x64xf32>
    %c45 = arith.constant 45 : index
    %c0_327 = arith.constant 0 : index
    %354 = vector.load %arg2[%c45, %c0_327] : memref<252x64xf32, #tpu.memory_space<vmem>>, vector<1x64xf32>
    %355 = vector.broadcast %354 : vector<1x64xf32> to vector<8x64xf32>
    %356 = arith.mulf %353, %355 : vector<8x64xf32>
    %357 = arith.addf %351, %356 : vector<8x64xf32>
    %c0_328 = arith.constant 0 : index
    %c5_329 = arith.constant 5 : index
    %c16_330 = arith.constant 16 : index
    %358 = vector.load %arg9[%c0_328, %c5_329, %c16_330] : memref<1x14x112xf32, #tpu.memory_space<vmem>>, vector<1x8x64xf32>
    %359 = vector.shape_cast %358 : vector<1x8x64xf32> to vector<8x64xf32>
    %c46 = arith.constant 46 : index
    %c0_331 = arith.constant 0 : index
    %360 = vector.load %arg2[%c46, %c0_331] : memref<252x64xf32, #tpu.memory_space<vmem>>, vector<1x64xf32>
    %361 = vector.broadcast %360 : vector<1x64xf32> to vector<8x64xf32>
    %362 = arith.mulf %359, %361 : vector<8x64xf32>
    %363 = arith.addf %357, %362 : vector<8x64xf32>
    %c0_332 = arith.constant 0 : index
    %c5_333 = arith.constant 5 : index
    %c24_334 = arith.constant 24 : index
    %364 = vector.load %arg9[%c0_332, %c5_333, %c24_334] : memref<1x14x112xf32, #tpu.memory_space<vmem>>, vector<1x8x64xf32>
    %365 = vector.shape_cast %364 : vector<1x8x64xf32> to vector<8x64xf32>
    %c47 = arith.constant 47 : index
    %c0_335 = arith.constant 0 : index
    %366 = vector.load %arg2[%c47, %c0_335] : memref<252x64xf32, #tpu.memory_space<vmem>>, vector<1x64xf32>
    %367 = vector.broadcast %366 : vector<1x64xf32> to vector<8x64xf32>
    %368 = arith.mulf %365, %367 : vector<8x64xf32>
    %369 = arith.addf %363, %368 : vector<8x64xf32>
    %c0_336 = arith.constant 0 : index
    %c5_337 = arith.constant 5 : index
    %c32_338 = arith.constant 32 : index
    %370 = vector.load %arg9[%c0_336, %c5_337, %c32_338] : memref<1x14x112xf32, #tpu.memory_space<vmem>>, vector<1x8x64xf32>
    %371 = vector.shape_cast %370 : vector<1x8x64xf32> to vector<8x64xf32>
    %c48 = arith.constant 48 : index
    %c0_339 = arith.constant 0 : index
    %372 = vector.load %arg2[%c48, %c0_339] : memref<252x64xf32, #tpu.memory_space<vmem>>, vector<1x64xf32>
    %373 = vector.broadcast %372 : vector<1x64xf32> to vector<8x64xf32>
    %374 = arith.mulf %371, %373 : vector<8x64xf32>
    %375 = arith.addf %369, %374 : vector<8x64xf32>
    %c0_340 = arith.constant 0 : index
    %c5_341 = arith.constant 5 : index
    %c40_342 = arith.constant 40 : index
    %376 = vector.load %arg9[%c0_340, %c5_341, %c40_342] : memref<1x14x112xf32, #tpu.memory_space<vmem>>, vector<1x8x64xf32>
    %377 = vector.shape_cast %376 : vector<1x8x64xf32> to vector<8x64xf32>
    %c49 = arith.constant 49 : index
    %c0_343 = arith.constant 0 : index
    %378 = vector.load %arg2[%c49, %c0_343] : memref<252x64xf32, #tpu.memory_space<vmem>>, vector<1x64xf32>
    %379 = vector.broadcast %378 : vector<1x64xf32> to vector<8x64xf32>
    %380 = arith.mulf %377, %379 : vector<8x64xf32>
    %381 = arith.addf %375, %380 : vector<8x64xf32>
    %c4_344 = arith.constant 4 : index
    %c0_345 = arith.constant 0 : index
    %c0_346 = arith.constant 0 : index
    %382 = vector.load %arg3[%c4_344, %c0_345, %c0_346] : memref<15x64x64xf32, #tpu.memory_space<vmem>>, vector<1x64x64xf32>
    %383 = vector.shape_cast %382 : vector<1x64x64xf32> to vector<64x64xf32>
    %c4_347 = arith.constant 4 : index
    %c0_348 = arith.constant 0 : index
    %384 = vector.load %arg4[%c4_347, %c0_348] : memref<15x64xf32, #tpu.memory_space<vmem>>, vector<1x64xf32>
    %cst_349 = arith.constant dense<0.000000e+00> : vector<8x64xf32>
    %385 = tpu.matmul %381, %383, %cst_349 {dimension_numbers = #tpu.dot_dimension_numbers<[1], [0], [0], [1], [0, 0, 1, 1], [], []>} : vector<8x64xf32>, vector<64x64xf32>, vector<8x64xf32> -> vector<8x64xf32>
    %386 = vector.broadcast %384 : vector<1x64xf32> to vector<8x64xf32>
    %387 = arith.addf %385, %386 : vector<8x64xf32>
    %c3_350 = arith.constant 3 : index
    %c0_351 = arith.constant 0 : index
    %c1_352 = arith.constant 1 : index
    %c8_353 = arith.constant 8 : index
    %388 = vector.load %arg1[%c3_350, %c0_351, %c1_352, %c8_353] : memref<4x1x12x96xf32, #tpu.memory_space<vmem>>, vector<1x1x8x64xf32>
    %389 = vector.shape_cast %388 : vector<1x1x8x64xf32> to vector<8x64xf32>
    %c2_354 = arith.constant 2 : index
    %c0_355 = arith.constant 0 : index
    %c1_356 = arith.constant 1 : index
    %c16_357 = arith.constant 16 : index
    %390 = vector.load %arg1[%c2_354, %c0_355, %c1_356, %c16_357] : memref<4x1x12x96xf32, #tpu.memory_space<vmem>>, vector<1x1x8x64xf32>
    %391 = vector.shape_cast %390 : vector<1x1x8x64xf32> to vector<8x64xf32>
    %392 = arith.maximumf %389, %391 : vector<8x64xf32>
    %c3_358 = arith.constant 3 : index
    %c0_359 = arith.constant 0 : index
    %c1_360 = arith.constant 1 : index
    %c16_361 = arith.constant 16 : index
    %393 = vector.load %arg1[%c3_358, %c0_359, %c1_360, %c16_361] : memref<4x1x12x96xf32, #tpu.memory_space<vmem>>, vector<1x1x8x64xf32>
    %394 = vector.shape_cast %393 : vector<1x1x8x64xf32> to vector<8x64xf32>
    %395 = arith.maximumf %392, %394 : vector<8x64xf32>
    %c1_362 = arith.constant 1 : index
    %c0_363 = arith.constant 0 : index
    %c2_364 = arith.constant 2 : index
    %c8_365 = arith.constant 8 : index
    %396 = vector.load %arg1[%c1_362, %c0_363, %c2_364, %c8_365] : memref<4x1x12x96xf32, #tpu.memory_space<vmem>>, vector<1x1x8x64xf32>
    %397 = vector.shape_cast %396 : vector<1x1x8x64xf32> to vector<8x64xf32>
    %398 = arith.maximumf %395, %397 : vector<8x64xf32>
    %c0_366 = arith.constant 0 : index
    %c0_367 = arith.constant 0 : index
    %c2_368 = arith.constant 2 : index
    %c16_369 = arith.constant 16 : index
    %399 = vector.load %arg1[%c0_366, %c0_367, %c2_368, %c16_369] : memref<4x1x12x96xf32, #tpu.memory_space<vmem>>, vector<1x1x8x64xf32>
    %400 = vector.shape_cast %399 : vector<1x1x8x64xf32> to vector<8x64xf32>
    %401 = arith.maximumf %398, %400 : vector<8x64xf32>
    %c1_370 = arith.constant 1 : index
    %c0_371 = arith.constant 0 : index
    %c2_372 = arith.constant 2 : index
    %c16_373 = arith.constant 16 : index
    %402 = vector.load %arg1[%c1_370, %c0_371, %c2_372, %c16_373] : memref<4x1x12x96xf32, #tpu.memory_space<vmem>>, vector<1x1x8x64xf32>
    %403 = vector.shape_cast %402 : vector<1x1x8x64xf32> to vector<8x64xf32>
    %404 = arith.maximumf %401, %403 : vector<8x64xf32>
    %c3_374 = arith.constant 3 : index
    %c0_375 = arith.constant 0 : index
    %c2_376 = arith.constant 2 : index
    %c8_377 = arith.constant 8 : index
    %405 = vector.load %arg1[%c3_374, %c0_375, %c2_376, %c8_377] : memref<4x1x12x96xf32, #tpu.memory_space<vmem>>, vector<1x1x8x64xf32>
    %406 = vector.shape_cast %405 : vector<1x1x8x64xf32> to vector<8x64xf32>
    %407 = arith.maximumf %404, %406 : vector<8x64xf32>
    %c2_378 = arith.constant 2 : index
    %c0_379 = arith.constant 0 : index
    %c2_380 = arith.constant 2 : index
    %c16_381 = arith.constant 16 : index
    %408 = vector.load %arg1[%c2_378, %c0_379, %c2_380, %c16_381] : memref<4x1x12x96xf32, #tpu.memory_space<vmem>>, vector<1x1x8x64xf32>
    %409 = vector.shape_cast %408 : vector<1x1x8x64xf32> to vector<8x64xf32>
    %410 = arith.maximumf %407, %409 : vector<8x64xf32>
    %c3_382 = arith.constant 3 : index
    %c0_383 = arith.constant 0 : index
    %c2_384 = arith.constant 2 : index
    %c16_385 = arith.constant 16 : index
    %411 = vector.load %arg1[%c3_382, %c0_383, %c2_384, %c16_385] : memref<4x1x12x96xf32, #tpu.memory_space<vmem>>, vector<1x1x8x64xf32>
    %412 = vector.shape_cast %411 : vector<1x1x8x64xf32> to vector<8x64xf32>
    %413 = arith.maximumf %410, %412 : vector<8x64xf32>
    %c1_386 = arith.constant 1 : index
    %c0_387 = arith.constant 0 : index
    %c0_388 = arith.constant 0 : index
    %414 = vector.load %arg3[%c1_386, %c0_387, %c0_388] : memref<15x64x64xf32, #tpu.memory_space<vmem>>, vector<1x64x64xf32>
    %415 = vector.shape_cast %414 : vector<1x64x64xf32> to vector<64x64xf32>
    %c1_389 = arith.constant 1 : index
    %c0_390 = arith.constant 0 : index
    %416 = vector.load %arg4[%c1_389, %c0_390] : memref<15x64xf32, #tpu.memory_space<vmem>>, vector<1x64xf32>
    %cst_391 = arith.constant dense<0.000000e+00> : vector<8x64xf32>
    %417 = tpu.matmul %413, %415, %cst_391 {dimension_numbers = #tpu.dot_dimension_numbers<[1], [0], [0], [1], [0, 0, 1, 1], [], []>} : vector<8x64xf32>, vector<64x64xf32>, vector<8x64xf32> -> vector<8x64xf32>
    %418 = vector.broadcast %416 : vector<1x64xf32> to vector<8x64xf32>
    %419 = arith.addf %417, %418 : vector<8x64xf32>
    %420 = arith.addf %387, %419 : vector<8x64xf32>
    %c3_392 = arith.constant 3 : index
    %c0_393 = arith.constant 0 : index
    %c1_394 = arith.constant 1 : index
    %c8_395 = arith.constant 8 : index
    %421 = vector.load %arg8[%c3_392, %c0_393, %c1_394, %c8_395] : memref<4x1x12x96xf32, #tpu.memory_space<vmem>>, vector<1x1x8x64xf32>
    %422 = vector.shape_cast %421 : vector<1x1x8x64xf32> to vector<8x64xf32>
    %c2_396 = arith.constant 2 : index
    %c0_397 = arith.constant 0 : index
    %c1_398 = arith.constant 1 : index
    %c16_399 = arith.constant 16 : index
    %423 = vector.load %arg8[%c2_396, %c0_397, %c1_398, %c16_399] : memref<4x1x12x96xf32, #tpu.memory_space<vmem>>, vector<1x1x8x64xf32>
    %424 = vector.shape_cast %423 : vector<1x1x8x64xf32> to vector<8x64xf32>
    %425 = arith.maximumf %422, %424 : vector<8x64xf32>
    %c3_400 = arith.constant 3 : index
    %c0_401 = arith.constant 0 : index
    %c1_402 = arith.constant 1 : index
    %c16_403 = arith.constant 16 : index
    %426 = vector.load %arg8[%c3_400, %c0_401, %c1_402, %c16_403] : memref<4x1x12x96xf32, #tpu.memory_space<vmem>>, vector<1x1x8x64xf32>
    %427 = vector.shape_cast %426 : vector<1x1x8x64xf32> to vector<8x64xf32>
    %428 = arith.maximumf %425, %427 : vector<8x64xf32>
    %c1_404 = arith.constant 1 : index
    %c0_405 = arith.constant 0 : index
    %c2_406 = arith.constant 2 : index
    %c8_407 = arith.constant 8 : index
    %429 = vector.load %arg8[%c1_404, %c0_405, %c2_406, %c8_407] : memref<4x1x12x96xf32, #tpu.memory_space<vmem>>, vector<1x1x8x64xf32>
    %430 = vector.shape_cast %429 : vector<1x1x8x64xf32> to vector<8x64xf32>
    %431 = arith.maximumf %428, %430 : vector<8x64xf32>
    %c0_408 = arith.constant 0 : index
    %c0_409 = arith.constant 0 : index
    %c2_410 = arith.constant 2 : index
    %c16_411 = arith.constant 16 : index
    %432 = vector.load %arg8[%c0_408, %c0_409, %c2_410, %c16_411] : memref<4x1x12x96xf32, #tpu.memory_space<vmem>>, vector<1x1x8x64xf32>
    %433 = vector.shape_cast %432 : vector<1x1x8x64xf32> to vector<8x64xf32>
    %434 = arith.maximumf %431, %433 : vector<8x64xf32>
    %c1_412 = arith.constant 1 : index
    %c0_413 = arith.constant 0 : index
    %c2_414 = arith.constant 2 : index
    %c16_415 = arith.constant 16 : index
    %435 = vector.load %arg8[%c1_412, %c0_413, %c2_414, %c16_415] : memref<4x1x12x96xf32, #tpu.memory_space<vmem>>, vector<1x1x8x64xf32>
    %436 = vector.shape_cast %435 : vector<1x1x8x64xf32> to vector<8x64xf32>
    %437 = arith.maximumf %434, %436 : vector<8x64xf32>
    %c3_416 = arith.constant 3 : index
    %c0_417 = arith.constant 0 : index
    %c2_418 = arith.constant 2 : index
    %c8_419 = arith.constant 8 : index
    %438 = vector.load %arg8[%c3_416, %c0_417, %c2_418, %c8_419] : memref<4x1x12x96xf32, #tpu.memory_space<vmem>>, vector<1x1x8x64xf32>
    %439 = vector.shape_cast %438 : vector<1x1x8x64xf32> to vector<8x64xf32>
    %440 = arith.maximumf %437, %439 : vector<8x64xf32>
    %c2_420 = arith.constant 2 : index
    %c0_421 = arith.constant 0 : index
    %c2_422 = arith.constant 2 : index
    %c16_423 = arith.constant 16 : index
    %441 = vector.load %arg8[%c2_420, %c0_421, %c2_422, %c16_423] : memref<4x1x12x96xf32, #tpu.memory_space<vmem>>, vector<1x1x8x64xf32>
    %442 = vector.shape_cast %441 : vector<1x1x8x64xf32> to vector<8x64xf32>
    %443 = arith.maximumf %440, %442 : vector<8x64xf32>
    %c3_424 = arith.constant 3 : index
    %c0_425 = arith.constant 0 : index
    %c2_426 = arith.constant 2 : index
    %c16_427 = arith.constant 16 : index
    %444 = vector.load %arg8[%c3_424, %c0_425, %c2_426, %c16_427] : memref<4x1x12x96xf32, #tpu.memory_space<vmem>>, vector<1x1x8x64xf32>
    %445 = vector.shape_cast %444 : vector<1x1x8x64xf32> to vector<8x64xf32>
    %446 = arith.maximumf %443, %445 : vector<8x64xf32>
    %c3_428 = arith.constant 3 : index
    %c0_429 = arith.constant 0 : index
    %c0_430 = arith.constant 0 : index
    %c0_431 = arith.constant 0 : index
    %447 = vector.load %arg7[%c3_428, %c0_429, %c0_430, %c0_431] : memref<4x1x12x96xf32, #tpu.memory_space<vmem>>, vector<1x1x8x64xf32>
    %448 = vector.shape_cast %447 : vector<1x1x8x64xf32> to vector<8x64xf32>
    %c50 = arith.constant 50 : index
    %c0_432 = arith.constant 0 : index
    %449 = vector.load %arg2[%c50, %c0_432] : memref<252x64xf32, #tpu.memory_space<vmem>>, vector<1x64xf32>
    %450 = vector.broadcast %449 : vector<1x64xf32> to vector<8x64xf32>
    %451 = arith.mulf %448, %450 : vector<8x64xf32>
    %c2_433 = arith.constant 2 : index
    %c0_434 = arith.constant 0 : index
    %c0_435 = arith.constant 0 : index
    %c8_436 = arith.constant 8 : index
    %452 = vector.load %arg7[%c2_433, %c0_434, %c0_435, %c8_436] : memref<4x1x12x96xf32, #tpu.memory_space<vmem>>, vector<1x1x8x64xf32>
    %453 = vector.shape_cast %452 : vector<1x1x8x64xf32> to vector<8x64xf32>
    %c51 = arith.constant 51 : index
    %c0_437 = arith.constant 0 : index
    %454 = vector.load %arg2[%c51, %c0_437] : memref<252x64xf32, #tpu.memory_space<vmem>>, vector<1x64xf32>
    %455 = vector.broadcast %454 : vector<1x64xf32> to vector<8x64xf32>
    %456 = arith.mulf %453, %455 : vector<8x64xf32>
    %457 = arith.addf %451, %456 : vector<8x64xf32>
    %c3_438 = arith.constant 3 : index
    %c0_439 = arith.constant 0 : index
    %c0_440 = arith.constant 0 : index
    %c8_441 = arith.constant 8 : index
    %458 = vector.load %arg7[%c3_438, %c0_439, %c0_440, %c8_441] : memref<4x1x12x96xf32, #tpu.memory_space<vmem>>, vector<1x1x8x64xf32>
    %459 = vector.shape_cast %458 : vector<1x1x8x64xf32> to vector<8x64xf32>
    %c52 = arith.constant 52 : index
    %c0_442 = arith.constant 0 : index
    %460 = vector.load %arg2[%c52, %c0_442] : memref<252x64xf32, #tpu.memory_space<vmem>>, vector<1x64xf32>
    %461 = vector.broadcast %460 : vector<1x64xf32> to vector<8x64xf32>
    %462 = arith.mulf %459, %461 : vector<8x64xf32>
    %463 = arith.addf %457, %462 : vector<8x64xf32>
    %c2_443 = arith.constant 2 : index
    %c0_444 = arith.constant 0 : index
    %c0_445 = arith.constant 0 : index
    %c16_446 = arith.constant 16 : index
    %464 = vector.load %arg7[%c2_443, %c0_444, %c0_445, %c16_446] : memref<4x1x12x96xf32, #tpu.memory_space<vmem>>, vector<1x1x8x64xf32>
    %465 = vector.shape_cast %464 : vector<1x1x8x64xf32> to vector<8x64xf32>
    %c53 = arith.constant 53 : index
    %c0_447 = arith.constant 0 : index
    %466 = vector.load %arg2[%c53, %c0_447] : memref<252x64xf32, #tpu.memory_space<vmem>>, vector<1x64xf32>
    %467 = vector.broadcast %466 : vector<1x64xf32> to vector<8x64xf32>
    %468 = arith.mulf %465, %467 : vector<8x64xf32>
    %469 = arith.addf %463, %468 : vector<8x64xf32>
    %c3_448 = arith.constant 3 : index
    %c0_449 = arith.constant 0 : index
    %c0_450 = arith.constant 0 : index
    %c16_451 = arith.constant 16 : index
    %470 = vector.load %arg7[%c3_448, %c0_449, %c0_450, %c16_451] : memref<4x1x12x96xf32, #tpu.memory_space<vmem>>, vector<1x1x8x64xf32>
    %471 = vector.shape_cast %470 : vector<1x1x8x64xf32> to vector<8x64xf32>
    %c54 = arith.constant 54 : index
    %c0_452 = arith.constant 0 : index
    %472 = vector.load %arg2[%c54, %c0_452] : memref<252x64xf32, #tpu.memory_space<vmem>>, vector<1x64xf32>
    %473 = vector.broadcast %472 : vector<1x64xf32> to vector<8x64xf32>
    %474 = arith.mulf %471, %473 : vector<8x64xf32>
    %475 = arith.addf %469, %474 : vector<8x64xf32>
    %c2_453 = arith.constant 2 : index
    %c0_454 = arith.constant 0 : index
    %c0_455 = arith.constant 0 : index
    %c24_456 = arith.constant 24 : index
    %476 = vector.load %arg7[%c2_453, %c0_454, %c0_455, %c24_456] : memref<4x1x12x96xf32, #tpu.memory_space<vmem>>, vector<1x1x8x64xf32>
    %477 = vector.shape_cast %476 : vector<1x1x8x64xf32> to vector<8x64xf32>
    %c55 = arith.constant 55 : index
    %c0_457 = arith.constant 0 : index
    %478 = vector.load %arg2[%c55, %c0_457] : memref<252x64xf32, #tpu.memory_space<vmem>>, vector<1x64xf32>
    %479 = vector.broadcast %478 : vector<1x64xf32> to vector<8x64xf32>
    %480 = arith.mulf %477, %479 : vector<8x64xf32>
    %481 = arith.addf %475, %480 : vector<8x64xf32>
    %c3_458 = arith.constant 3 : index
    %c0_459 = arith.constant 0 : index
    %c0_460 = arith.constant 0 : index
    %c24_461 = arith.constant 24 : index
    %482 = vector.load %arg7[%c3_458, %c0_459, %c0_460, %c24_461] : memref<4x1x12x96xf32, #tpu.memory_space<vmem>>, vector<1x1x8x64xf32>
    %483 = vector.shape_cast %482 : vector<1x1x8x64xf32> to vector<8x64xf32>
    %c56 = arith.constant 56 : index
    %c0_462 = arith.constant 0 : index
    %484 = vector.load %arg2[%c56, %c0_462] : memref<252x64xf32, #tpu.memory_space<vmem>>, vector<1x64xf32>
    %485 = vector.broadcast %484 : vector<1x64xf32> to vector<8x64xf32>
    %486 = arith.mulf %483, %485 : vector<8x64xf32>
    %487 = arith.addf %481, %486 : vector<8x64xf32>
    %c1_463 = arith.constant 1 : index
    %c0_464 = arith.constant 0 : index
    %c1_465 = arith.constant 1 : index
    %c0_466 = arith.constant 0 : index
    %488 = vector.load %arg7[%c1_463, %c0_464, %c1_465, %c0_466] : memref<4x1x12x96xf32, #tpu.memory_space<vmem>>, vector<1x1x8x64xf32>
    %489 = vector.shape_cast %488 : vector<1x1x8x64xf32> to vector<8x64xf32>
    %c57 = arith.constant 57 : index
    %c0_467 = arith.constant 0 : index
    %490 = vector.load %arg2[%c57, %c0_467] : memref<252x64xf32, #tpu.memory_space<vmem>>, vector<1x64xf32>
    %491 = vector.broadcast %490 : vector<1x64xf32> to vector<8x64xf32>
    %492 = arith.mulf %489, %491 : vector<8x64xf32>
    %493 = arith.addf %487, %492 : vector<8x64xf32>
    %c0_468 = arith.constant 0 : index
    %c0_469 = arith.constant 0 : index
    %c1_470 = arith.constant 1 : index
    %c8_471 = arith.constant 8 : index
    %494 = vector.load %arg7[%c0_468, %c0_469, %c1_470, %c8_471] : memref<4x1x12x96xf32, #tpu.memory_space<vmem>>, vector<1x1x8x64xf32>
    %495 = vector.shape_cast %494 : vector<1x1x8x64xf32> to vector<8x64xf32>
    %c58 = arith.constant 58 : index
    %c0_472 = arith.constant 0 : index
    %496 = vector.load %arg2[%c58, %c0_472] : memref<252x64xf32, #tpu.memory_space<vmem>>, vector<1x64xf32>
    %497 = vector.broadcast %496 : vector<1x64xf32> to vector<8x64xf32>
    %498 = arith.mulf %495, %497 : vector<8x64xf32>
    %499 = arith.addf %493, %498 : vector<8x64xf32>
    %c1_473 = arith.constant 1 : index
    %c0_474 = arith.constant 0 : index
    %c1_475 = arith.constant 1 : index
    %c8_476 = arith.constant 8 : index
    %500 = vector.load %arg7[%c1_473, %c0_474, %c1_475, %c8_476] : memref<4x1x12x96xf32, #tpu.memory_space<vmem>>, vector<1x1x8x64xf32>
    %501 = vector.shape_cast %500 : vector<1x1x8x64xf32> to vector<8x64xf32>
    %c59 = arith.constant 59 : index
    %c0_477 = arith.constant 0 : index
    %502 = vector.load %arg2[%c59, %c0_477] : memref<252x64xf32, #tpu.memory_space<vmem>>, vector<1x64xf32>
    %503 = vector.broadcast %502 : vector<1x64xf32> to vector<8x64xf32>
    %504 = arith.mulf %501, %503 : vector<8x64xf32>
    %505 = arith.addf %499, %504 : vector<8x64xf32>
    %c0_478 = arith.constant 0 : index
    %c0_479 = arith.constant 0 : index
    %c1_480 = arith.constant 1 : index
    %c16_481 = arith.constant 16 : index
    %506 = vector.load %arg7[%c0_478, %c0_479, %c1_480, %c16_481] : memref<4x1x12x96xf32, #tpu.memory_space<vmem>>, vector<1x1x8x64xf32>
    %507 = vector.shape_cast %506 : vector<1x1x8x64xf32> to vector<8x64xf32>
    %c60 = arith.constant 60 : index
    %c0_482 = arith.constant 0 : index
    %508 = vector.load %arg2[%c60, %c0_482] : memref<252x64xf32, #tpu.memory_space<vmem>>, vector<1x64xf32>
    %509 = vector.broadcast %508 : vector<1x64xf32> to vector<8x64xf32>
    %510 = arith.mulf %507, %509 : vector<8x64xf32>
    %511 = arith.addf %505, %510 : vector<8x64xf32>
    %c1_483 = arith.constant 1 : index
    %c0_484 = arith.constant 0 : index
    %c1_485 = arith.constant 1 : index
    %c16_486 = arith.constant 16 : index
    %512 = vector.load %arg7[%c1_483, %c0_484, %c1_485, %c16_486] : memref<4x1x12x96xf32, #tpu.memory_space<vmem>>, vector<1x1x8x64xf32>
    %513 = vector.shape_cast %512 : vector<1x1x8x64xf32> to vector<8x64xf32>
    %c61 = arith.constant 61 : index
    %c0_487 = arith.constant 0 : index
    %514 = vector.load %arg2[%c61, %c0_487] : memref<252x64xf32, #tpu.memory_space<vmem>>, vector<1x64xf32>
    %515 = vector.broadcast %514 : vector<1x64xf32> to vector<8x64xf32>
    %516 = arith.mulf %513, %515 : vector<8x64xf32>
    %517 = arith.addf %511, %516 : vector<8x64xf32>
    %c0_488 = arith.constant 0 : index
    %c0_489 = arith.constant 0 : index
    %c1_490 = arith.constant 1 : index
    %c24_491 = arith.constant 24 : index
    %518 = vector.load %arg7[%c0_488, %c0_489, %c1_490, %c24_491] : memref<4x1x12x96xf32, #tpu.memory_space<vmem>>, vector<1x1x8x64xf32>
    %519 = vector.shape_cast %518 : vector<1x1x8x64xf32> to vector<8x64xf32>
    %c62 = arith.constant 62 : index
    %c0_492 = arith.constant 0 : index
    %520 = vector.load %arg2[%c62, %c0_492] : memref<252x64xf32, #tpu.memory_space<vmem>>, vector<1x64xf32>
    %521 = vector.broadcast %520 : vector<1x64xf32> to vector<8x64xf32>
    %522 = arith.mulf %519, %521 : vector<8x64xf32>
    %523 = arith.addf %517, %522 : vector<8x64xf32>
    %c1_493 = arith.constant 1 : index
    %c0_494 = arith.constant 0 : index
    %c1_495 = arith.constant 1 : index
    %c24_496 = arith.constant 24 : index
    %524 = vector.load %arg7[%c1_493, %c0_494, %c1_495, %c24_496] : memref<4x1x12x96xf32, #tpu.memory_space<vmem>>, vector<1x1x8x64xf32>
    %525 = vector.shape_cast %524 : vector<1x1x8x64xf32> to vector<8x64xf32>
    %c63 = arith.constant 63 : index
    %c0_497 = arith.constant 0 : index
    %526 = vector.load %arg2[%c63, %c0_497] : memref<252x64xf32, #tpu.memory_space<vmem>>, vector<1x64xf32>
    %527 = vector.broadcast %526 : vector<1x64xf32> to vector<8x64xf32>
    %528 = arith.mulf %525, %527 : vector<8x64xf32>
    %529 = arith.addf %523, %528 : vector<8x64xf32>
    %c3_498 = arith.constant 3 : index
    %c0_499 = arith.constant 0 : index
    %c1_500 = arith.constant 1 : index
    %c0_501 = arith.constant 0 : index
    %530 = vector.load %arg7[%c3_498, %c0_499, %c1_500, %c0_501] : memref<4x1x12x96xf32, #tpu.memory_space<vmem>>, vector<1x1x8x64xf32>
    %531 = vector.shape_cast %530 : vector<1x1x8x64xf32> to vector<8x64xf32>
    %c64 = arith.constant 64 : index
    %c0_502 = arith.constant 0 : index
    %532 = vector.load %arg2[%c64, %c0_502] : memref<252x64xf32, #tpu.memory_space<vmem>>, vector<1x64xf32>
    %533 = vector.broadcast %532 : vector<1x64xf32> to vector<8x64xf32>
    %534 = arith.mulf %531, %533 : vector<8x64xf32>
    %535 = arith.addf %529, %534 : vector<8x64xf32>
    %c2_503 = arith.constant 2 : index
    %c0_504 = arith.constant 0 : index
    %c1_505 = arith.constant 1 : index
    %c8_506 = arith.constant 8 : index
    %536 = vector.load %arg7[%c2_503, %c0_504, %c1_505, %c8_506] : memref<4x1x12x96xf32, #tpu.memory_space<vmem>>, vector<1x1x8x64xf32>
    %537 = vector.shape_cast %536 : vector<1x1x8x64xf32> to vector<8x64xf32>
    %c65 = arith.constant 65 : index
    %c0_507 = arith.constant 0 : index
    %538 = vector.load %arg2[%c65, %c0_507] : memref<252x64xf32, #tpu.memory_space<vmem>>, vector<1x64xf32>
    %539 = vector.broadcast %538 : vector<1x64xf32> to vector<8x64xf32>
    %540 = arith.mulf %537, %539 : vector<8x64xf32>
    %541 = arith.addf %535, %540 : vector<8x64xf32>
    %c3_508 = arith.constant 3 : index
    %c0_509 = arith.constant 0 : index
    %c1_510 = arith.constant 1 : index
    %c8_511 = arith.constant 8 : index
    %542 = vector.load %arg7[%c3_508, %c0_509, %c1_510, %c8_511] : memref<4x1x12x96xf32, #tpu.memory_space<vmem>>, vector<1x1x8x64xf32>
    %543 = vector.shape_cast %542 : vector<1x1x8x64xf32> to vector<8x64xf32>
    %c66 = arith.constant 66 : index
    %c0_512 = arith.constant 0 : index
    %544 = vector.load %arg2[%c66, %c0_512] : memref<252x64xf32, #tpu.memory_space<vmem>>, vector<1x64xf32>
    %545 = vector.broadcast %544 : vector<1x64xf32> to vector<8x64xf32>
    %546 = arith.mulf %543, %545 : vector<8x64xf32>
    %547 = arith.addf %541, %546 : vector<8x64xf32>
    %c2_513 = arith.constant 2 : index
    %c0_514 = arith.constant 0 : index
    %c1_515 = arith.constant 1 : index
    %c16_516 = arith.constant 16 : index
    %548 = vector.load %arg7[%c2_513, %c0_514, %c1_515, %c16_516] : memref<4x1x12x96xf32, #tpu.memory_space<vmem>>, vector<1x1x8x64xf32>
    %549 = vector.shape_cast %548 : vector<1x1x8x64xf32> to vector<8x64xf32>
    %c67 = arith.constant 67 : index
    %c0_517 = arith.constant 0 : index
    %550 = vector.load %arg2[%c67, %c0_517] : memref<252x64xf32, #tpu.memory_space<vmem>>, vector<1x64xf32>
    %551 = vector.broadcast %550 : vector<1x64xf32> to vector<8x64xf32>
    %552 = arith.mulf %549, %551 : vector<8x64xf32>
    %553 = arith.addf %547, %552 : vector<8x64xf32>
    %c3_518 = arith.constant 3 : index
    %c0_519 = arith.constant 0 : index
    %c1_520 = arith.constant 1 : index
    %c16_521 = arith.constant 16 : index
    %554 = vector.load %arg7[%c3_518, %c0_519, %c1_520, %c16_521] : memref<4x1x12x96xf32, #tpu.memory_space<vmem>>, vector<1x1x8x64xf32>
    %555 = vector.shape_cast %554 : vector<1x1x8x64xf32> to vector<8x64xf32>
    %c68 = arith.constant 68 : index
    %c0_522 = arith.constant 0 : index
    %556 = vector.load %arg2[%c68, %c0_522] : memref<252x64xf32, #tpu.memory_space<vmem>>, vector<1x64xf32>
    %557 = vector.broadcast %556 : vector<1x64xf32> to vector<8x64xf32>
    %558 = arith.mulf %555, %557 : vector<8x64xf32>
    %559 = arith.addf %553, %558 : vector<8x64xf32>
    %c2_523 = arith.constant 2 : index
    %c0_524 = arith.constant 0 : index
    %c1_525 = arith.constant 1 : index
    %c24_526 = arith.constant 24 : index
    %560 = vector.load %arg7[%c2_523, %c0_524, %c1_525, %c24_526] : memref<4x1x12x96xf32, #tpu.memory_space<vmem>>, vector<1x1x8x64xf32>
    %561 = vector.shape_cast %560 : vector<1x1x8x64xf32> to vector<8x64xf32>
    %c69 = arith.constant 69 : index
    %c0_527 = arith.constant 0 : index
    %562 = vector.load %arg2[%c69, %c0_527] : memref<252x64xf32, #tpu.memory_space<vmem>>, vector<1x64xf32>
    %563 = vector.broadcast %562 : vector<1x64xf32> to vector<8x64xf32>
    %564 = arith.mulf %561, %563 : vector<8x64xf32>
    %565 = arith.addf %559, %564 : vector<8x64xf32>
    %c3_528 = arith.constant 3 : index
    %c0_529 = arith.constant 0 : index
    %c1_530 = arith.constant 1 : index
    %c24_531 = arith.constant 24 : index
    %566 = vector.load %arg7[%c3_528, %c0_529, %c1_530, %c24_531] : memref<4x1x12x96xf32, #tpu.memory_space<vmem>>, vector<1x1x8x64xf32>
    %567 = vector.shape_cast %566 : vector<1x1x8x64xf32> to vector<8x64xf32>
    %c70 = arith.constant 70 : index
    %c0_532 = arith.constant 0 : index
    %568 = vector.load %arg2[%c70, %c0_532] : memref<252x64xf32, #tpu.memory_space<vmem>>, vector<1x64xf32>
    %569 = vector.broadcast %568 : vector<1x64xf32> to vector<8x64xf32>
    %570 = arith.mulf %567, %569 : vector<8x64xf32>
    %571 = arith.addf %565, %570 : vector<8x64xf32>
    %c1_533 = arith.constant 1 : index
    %c0_534 = arith.constant 0 : index
    %c2_535 = arith.constant 2 : index
    %c0_536 = arith.constant 0 : index
    %572 = vector.load %arg7[%c1_533, %c0_534, %c2_535, %c0_536] : memref<4x1x12x96xf32, #tpu.memory_space<vmem>>, vector<1x1x8x64xf32>
    %573 = vector.shape_cast %572 : vector<1x1x8x64xf32> to vector<8x64xf32>
    %c71 = arith.constant 71 : index
    %c0_537 = arith.constant 0 : index
    %574 = vector.load %arg2[%c71, %c0_537] : memref<252x64xf32, #tpu.memory_space<vmem>>, vector<1x64xf32>
    %575 = vector.broadcast %574 : vector<1x64xf32> to vector<8x64xf32>
    %576 = arith.mulf %573, %575 : vector<8x64xf32>
    %577 = arith.addf %571, %576 : vector<8x64xf32>
    %c0_538 = arith.constant 0 : index
    %c0_539 = arith.constant 0 : index
    %c2_540 = arith.constant 2 : index
    %c8_541 = arith.constant 8 : index
    %578 = vector.load %arg7[%c0_538, %c0_539, %c2_540, %c8_541] : memref<4x1x12x96xf32, #tpu.memory_space<vmem>>, vector<1x1x8x64xf32>
    %579 = vector.shape_cast %578 : vector<1x1x8x64xf32> to vector<8x64xf32>
    %c72 = arith.constant 72 : index
    %c0_542 = arith.constant 0 : index
    %580 = vector.load %arg2[%c72, %c0_542] : memref<252x64xf32, #tpu.memory_space<vmem>>, vector<1x64xf32>
    %581 = vector.broadcast %580 : vector<1x64xf32> to vector<8x64xf32>
    %582 = arith.mulf %579, %581 : vector<8x64xf32>
    %583 = arith.addf %577, %582 : vector<8x64xf32>
    %c1_543 = arith.constant 1 : index
    %c0_544 = arith.constant 0 : index
    %c2_545 = arith.constant 2 : index
    %c8_546 = arith.constant 8 : index
    %584 = vector.load %arg7[%c1_543, %c0_544, %c2_545, %c8_546] : memref<4x1x12x96xf32, #tpu.memory_space<vmem>>, vector<1x1x8x64xf32>
    %585 = vector.shape_cast %584 : vector<1x1x8x64xf32> to vector<8x64xf32>
    %c73 = arith.constant 73 : index
    %c0_547 = arith.constant 0 : index
    %586 = vector.load %arg2[%c73, %c0_547] : memref<252x64xf32, #tpu.memory_space<vmem>>, vector<1x64xf32>
    %587 = vector.broadcast %586 : vector<1x64xf32> to vector<8x64xf32>
    %588 = arith.mulf %585, %587 : vector<8x64xf32>
    %589 = arith.addf %583, %588 : vector<8x64xf32>
    %c0_548 = arith.constant 0 : index
    %c0_549 = arith.constant 0 : index
    %c2_550 = arith.constant 2 : index
    %c16_551 = arith.constant 16 : index
    %590 = vector.load %arg7[%c0_548, %c0_549, %c2_550, %c16_551] : memref<4x1x12x96xf32, #tpu.memory_space<vmem>>, vector<1x1x8x64xf32>
    %591 = vector.shape_cast %590 : vector<1x1x8x64xf32> to vector<8x64xf32>
    %c74 = arith.constant 74 : index
    %c0_552 = arith.constant 0 : index
    %592 = vector.load %arg2[%c74, %c0_552] : memref<252x64xf32, #tpu.memory_space<vmem>>, vector<1x64xf32>
    %593 = vector.broadcast %592 : vector<1x64xf32> to vector<8x64xf32>
    %594 = arith.mulf %591, %593 : vector<8x64xf32>
    %595 = arith.addf %589, %594 : vector<8x64xf32>
    %c1_553 = arith.constant 1 : index
    %c0_554 = arith.constant 0 : index
    %c2_555 = arith.constant 2 : index
    %c16_556 = arith.constant 16 : index
    %596 = vector.load %arg7[%c1_553, %c0_554, %c2_555, %c16_556] : memref<4x1x12x96xf32, #tpu.memory_space<vmem>>, vector<1x1x8x64xf32>
    %597 = vector.shape_cast %596 : vector<1x1x8x64xf32> to vector<8x64xf32>
    %c75 = arith.constant 75 : index
    %c0_557 = arith.constant 0 : index
    %598 = vector.load %arg2[%c75, %c0_557] : memref<252x64xf32, #tpu.memory_space<vmem>>, vector<1x64xf32>
    %599 = vector.broadcast %598 : vector<1x64xf32> to vector<8x64xf32>
    %600 = arith.mulf %597, %599 : vector<8x64xf32>
    %601 = arith.addf %595, %600 : vector<8x64xf32>
    %c0_558 = arith.constant 0 : index
    %c0_559 = arith.constant 0 : index
    %c2_560 = arith.constant 2 : index
    %c24_561 = arith.constant 24 : index
    %602 = vector.load %arg7[%c0_558, %c0_559, %c2_560, %c24_561] : memref<4x1x12x96xf32, #tpu.memory_space<vmem>>, vector<1x1x8x64xf32>
    %603 = vector.shape_cast %602 : vector<1x1x8x64xf32> to vector<8x64xf32>
    %c76 = arith.constant 76 : index
    %c0_562 = arith.constant 0 : index
    %604 = vector.load %arg2[%c76, %c0_562] : memref<252x64xf32, #tpu.memory_space<vmem>>, vector<1x64xf32>
    %605 = vector.broadcast %604 : vector<1x64xf32> to vector<8x64xf32>
    %606 = arith.mulf %603, %605 : vector<8x64xf32>
    %607 = arith.addf %601, %606 : vector<8x64xf32>
    %c1_563 = arith.constant 1 : index
    %c0_564 = arith.constant 0 : index
    %c2_565 = arith.constant 2 : index
    %c24_566 = arith.constant 24 : index
    %608 = vector.load %arg7[%c1_563, %c0_564, %c2_565, %c24_566] : memref<4x1x12x96xf32, #tpu.memory_space<vmem>>, vector<1x1x8x64xf32>
    %609 = vector.shape_cast %608 : vector<1x1x8x64xf32> to vector<8x64xf32>
    %c77 = arith.constant 77 : index
    %c0_567 = arith.constant 0 : index
    %610 = vector.load %arg2[%c77, %c0_567] : memref<252x64xf32, #tpu.memory_space<vmem>>, vector<1x64xf32>
    %611 = vector.broadcast %610 : vector<1x64xf32> to vector<8x64xf32>
    %612 = arith.mulf %609, %611 : vector<8x64xf32>
    %613 = arith.addf %607, %612 : vector<8x64xf32>
    %c3_568 = arith.constant 3 : index
    %c0_569 = arith.constant 0 : index
    %c2_570 = arith.constant 2 : index
    %c0_571 = arith.constant 0 : index
    %614 = vector.load %arg7[%c3_568, %c0_569, %c2_570, %c0_571] : memref<4x1x12x96xf32, #tpu.memory_space<vmem>>, vector<1x1x8x64xf32>
    %615 = vector.shape_cast %614 : vector<1x1x8x64xf32> to vector<8x64xf32>
    %c78 = arith.constant 78 : index
    %c0_572 = arith.constant 0 : index
    %616 = vector.load %arg2[%c78, %c0_572] : memref<252x64xf32, #tpu.memory_space<vmem>>, vector<1x64xf32>
    %617 = vector.broadcast %616 : vector<1x64xf32> to vector<8x64xf32>
    %618 = arith.mulf %615, %617 : vector<8x64xf32>
    %619 = arith.addf %613, %618 : vector<8x64xf32>
    %c2_573 = arith.constant 2 : index
    %c0_574 = arith.constant 0 : index
    %c2_575 = arith.constant 2 : index
    %c8_576 = arith.constant 8 : index
    %620 = vector.load %arg7[%c2_573, %c0_574, %c2_575, %c8_576] : memref<4x1x12x96xf32, #tpu.memory_space<vmem>>, vector<1x1x8x64xf32>
    %621 = vector.shape_cast %620 : vector<1x1x8x64xf32> to vector<8x64xf32>
    %c79 = arith.constant 79 : index
    %c0_577 = arith.constant 0 : index
    %622 = vector.load %arg2[%c79, %c0_577] : memref<252x64xf32, #tpu.memory_space<vmem>>, vector<1x64xf32>
    %623 = vector.broadcast %622 : vector<1x64xf32> to vector<8x64xf32>
    %624 = arith.mulf %621, %623 : vector<8x64xf32>
    %625 = arith.addf %619, %624 : vector<8x64xf32>
    %c3_578 = arith.constant 3 : index
    %c0_579 = arith.constant 0 : index
    %c2_580 = arith.constant 2 : index
    %c8_581 = arith.constant 8 : index
    %626 = vector.load %arg7[%c3_578, %c0_579, %c2_580, %c8_581] : memref<4x1x12x96xf32, #tpu.memory_space<vmem>>, vector<1x1x8x64xf32>
    %627 = vector.shape_cast %626 : vector<1x1x8x64xf32> to vector<8x64xf32>
    %c80_582 = arith.constant 80 : index
    %c0_583 = arith.constant 0 : index
    %628 = vector.load %arg2[%c80_582, %c0_583] : memref<252x64xf32, #tpu.memory_space<vmem>>, vector<1x64xf32>
    %629 = vector.broadcast %628 : vector<1x64xf32> to vector<8x64xf32>
    %630 = arith.mulf %627, %629 : vector<8x64xf32>
    %631 = arith.addf %625, %630 : vector<8x64xf32>
    %c2_584 = arith.constant 2 : index
    %c0_585 = arith.constant 0 : index
    %c2_586 = arith.constant 2 : index
    %c16_587 = arith.constant 16 : index
    %632 = vector.load %arg7[%c2_584, %c0_585, %c2_586, %c16_587] : memref<4x1x12x96xf32, #tpu.memory_space<vmem>>, vector<1x1x8x64xf32>
    %633 = vector.shape_cast %632 : vector<1x1x8x64xf32> to vector<8x64xf32>
    %c81 = arith.constant 81 : index
    %c0_588 = arith.constant 0 : index
    %634 = vector.load %arg2[%c81, %c0_588] : memref<252x64xf32, #tpu.memory_space<vmem>>, vector<1x64xf32>
    %635 = vector.broadcast %634 : vector<1x64xf32> to vector<8x64xf32>
    %636 = arith.mulf %633, %635 : vector<8x64xf32>
    %637 = arith.addf %631, %636 : vector<8x64xf32>
    %c3_589 = arith.constant 3 : index
    %c0_590 = arith.constant 0 : index
    %c2_591 = arith.constant 2 : index
    %c16_592 = arith.constant 16 : index
    %638 = vector.load %arg7[%c3_589, %c0_590, %c2_591, %c16_592] : memref<4x1x12x96xf32, #tpu.memory_space<vmem>>, vector<1x1x8x64xf32>
    %639 = vector.shape_cast %638 : vector<1x1x8x64xf32> to vector<8x64xf32>
    %c82 = arith.constant 82 : index
    %c0_593 = arith.constant 0 : index
    %640 = vector.load %arg2[%c82, %c0_593] : memref<252x64xf32, #tpu.memory_space<vmem>>, vector<1x64xf32>
    %641 = vector.broadcast %640 : vector<1x64xf32> to vector<8x64xf32>
    %642 = arith.mulf %639, %641 : vector<8x64xf32>
    %643 = arith.addf %637, %642 : vector<8x64xf32>
    %c2_594 = arith.constant 2 : index
    %c0_595 = arith.constant 0 : index
    %c2_596 = arith.constant 2 : index
    %c24_597 = arith.constant 24 : index
    %644 = vector.load %arg7[%c2_594, %c0_595, %c2_596, %c24_597] : memref<4x1x12x96xf32, #tpu.memory_space<vmem>>, vector<1x1x8x64xf32>
    %645 = vector.shape_cast %644 : vector<1x1x8x64xf32> to vector<8x64xf32>
    %c83 = arith.constant 83 : index
    %c0_598 = arith.constant 0 : index
    %646 = vector.load %arg2[%c83, %c0_598] : memref<252x64xf32, #tpu.memory_space<vmem>>, vector<1x64xf32>
    %647 = vector.broadcast %646 : vector<1x64xf32> to vector<8x64xf32>
    %648 = arith.mulf %645, %647 : vector<8x64xf32>
    %649 = arith.addf %643, %648 : vector<8x64xf32>
    %c3_599 = arith.constant 3 : index
    %c0_600 = arith.constant 0 : index
    %c2_601 = arith.constant 2 : index
    %c24_602 = arith.constant 24 : index
    %650 = vector.load %arg7[%c3_599, %c0_600, %c2_601, %c24_602] : memref<4x1x12x96xf32, #tpu.memory_space<vmem>>, vector<1x1x8x64xf32>
    %651 = vector.shape_cast %650 : vector<1x1x8x64xf32> to vector<8x64xf32>
    %c84 = arith.constant 84 : index
    %c0_603 = arith.constant 0 : index
    %652 = vector.load %arg2[%c84, %c0_603] : memref<252x64xf32, #tpu.memory_space<vmem>>, vector<1x64xf32>
    %653 = vector.broadcast %652 : vector<1x64xf32> to vector<8x64xf32>
    %654 = arith.mulf %651, %653 : vector<8x64xf32>
    %655 = arith.addf %649, %654 : vector<8x64xf32>
    %c1_604 = arith.constant 1 : index
    %c0_605 = arith.constant 0 : index
    %c3_606 = arith.constant 3 : index
    %c0_607 = arith.constant 0 : index
    %656 = vector.load %arg7[%c1_604, %c0_605, %c3_606, %c0_607] : memref<4x1x12x96xf32, #tpu.memory_space<vmem>>, vector<1x1x8x64xf32>
    %657 = vector.shape_cast %656 : vector<1x1x8x64xf32> to vector<8x64xf32>
    %c85 = arith.constant 85 : index
    %c0_608 = arith.constant 0 : index
    %658 = vector.load %arg2[%c85, %c0_608] : memref<252x64xf32, #tpu.memory_space<vmem>>, vector<1x64xf32>
    %659 = vector.broadcast %658 : vector<1x64xf32> to vector<8x64xf32>
    %660 = arith.mulf %657, %659 : vector<8x64xf32>
    %661 = arith.addf %655, %660 : vector<8x64xf32>
    %c0_609 = arith.constant 0 : index
    %c0_610 = arith.constant 0 : index
    %c3_611 = arith.constant 3 : index
    %c8_612 = arith.constant 8 : index
    %662 = vector.load %arg7[%c0_609, %c0_610, %c3_611, %c8_612] : memref<4x1x12x96xf32, #tpu.memory_space<vmem>>, vector<1x1x8x64xf32>
    %663 = vector.shape_cast %662 : vector<1x1x8x64xf32> to vector<8x64xf32>
    %c86 = arith.constant 86 : index
    %c0_613 = arith.constant 0 : index
    %664 = vector.load %arg2[%c86, %c0_613] : memref<252x64xf32, #tpu.memory_space<vmem>>, vector<1x64xf32>
    %665 = vector.broadcast %664 : vector<1x64xf32> to vector<8x64xf32>
    %666 = arith.mulf %663, %665 : vector<8x64xf32>
    %667 = arith.addf %661, %666 : vector<8x64xf32>
    %c1_614 = arith.constant 1 : index
    %c0_615 = arith.constant 0 : index
    %c3_616 = arith.constant 3 : index
    %c8_617 = arith.constant 8 : index
    %668 = vector.load %arg7[%c1_614, %c0_615, %c3_616, %c8_617] : memref<4x1x12x96xf32, #tpu.memory_space<vmem>>, vector<1x1x8x64xf32>
    %669 = vector.shape_cast %668 : vector<1x1x8x64xf32> to vector<8x64xf32>
    %c87 = arith.constant 87 : index
    %c0_618 = arith.constant 0 : index
    %670 = vector.load %arg2[%c87, %c0_618] : memref<252x64xf32, #tpu.memory_space<vmem>>, vector<1x64xf32>
    %671 = vector.broadcast %670 : vector<1x64xf32> to vector<8x64xf32>
    %672 = arith.mulf %669, %671 : vector<8x64xf32>
    %673 = arith.addf %667, %672 : vector<8x64xf32>
    %c0_619 = arith.constant 0 : index
    %c0_620 = arith.constant 0 : index
    %c3_621 = arith.constant 3 : index
    %c16_622 = arith.constant 16 : index
    %674 = vector.load %arg7[%c0_619, %c0_620, %c3_621, %c16_622] : memref<4x1x12x96xf32, #tpu.memory_space<vmem>>, vector<1x1x8x64xf32>
    %675 = vector.shape_cast %674 : vector<1x1x8x64xf32> to vector<8x64xf32>
    %c88 = arith.constant 88 : index
    %c0_623 = arith.constant 0 : index
    %676 = vector.load %arg2[%c88, %c0_623] : memref<252x64xf32, #tpu.memory_space<vmem>>, vector<1x64xf32>
    %677 = vector.broadcast %676 : vector<1x64xf32> to vector<8x64xf32>
    %678 = arith.mulf %675, %677 : vector<8x64xf32>
    %679 = arith.addf %673, %678 : vector<8x64xf32>
    %c1_624 = arith.constant 1 : index
    %c0_625 = arith.constant 0 : index
    %c3_626 = arith.constant 3 : index
    %c16_627 = arith.constant 16 : index
    %680 = vector.load %arg7[%c1_624, %c0_625, %c3_626, %c16_627] : memref<4x1x12x96xf32, #tpu.memory_space<vmem>>, vector<1x1x8x64xf32>
    %681 = vector.shape_cast %680 : vector<1x1x8x64xf32> to vector<8x64xf32>
    %c89 = arith.constant 89 : index
    %c0_628 = arith.constant 0 : index
    %682 = vector.load %arg2[%c89, %c0_628] : memref<252x64xf32, #tpu.memory_space<vmem>>, vector<1x64xf32>
    %683 = vector.broadcast %682 : vector<1x64xf32> to vector<8x64xf32>
    %684 = arith.mulf %681, %683 : vector<8x64xf32>
    %685 = arith.addf %679, %684 : vector<8x64xf32>
    %c0_629 = arith.constant 0 : index
    %c0_630 = arith.constant 0 : index
    %c3_631 = arith.constant 3 : index
    %c24_632 = arith.constant 24 : index
    %686 = vector.load %arg7[%c0_629, %c0_630, %c3_631, %c24_632] : memref<4x1x12x96xf32, #tpu.memory_space<vmem>>, vector<1x1x8x64xf32>
    %687 = vector.shape_cast %686 : vector<1x1x8x64xf32> to vector<8x64xf32>
    %c90 = arith.constant 90 : index
    %c0_633 = arith.constant 0 : index
    %688 = vector.load %arg2[%c90, %c0_633] : memref<252x64xf32, #tpu.memory_space<vmem>>, vector<1x64xf32>
    %689 = vector.broadcast %688 : vector<1x64xf32> to vector<8x64xf32>
    %690 = arith.mulf %687, %689 : vector<8x64xf32>
    %691 = arith.addf %685, %690 : vector<8x64xf32>
    %c1_634 = arith.constant 1 : index
    %c0_635 = arith.constant 0 : index
    %c3_636 = arith.constant 3 : index
    %c24_637 = arith.constant 24 : index
    %692 = vector.load %arg7[%c1_634, %c0_635, %c3_636, %c24_637] : memref<4x1x12x96xf32, #tpu.memory_space<vmem>>, vector<1x1x8x64xf32>
    %693 = vector.shape_cast %692 : vector<1x1x8x64xf32> to vector<8x64xf32>
    %c91 = arith.constant 91 : index
    %c0_638 = arith.constant 0 : index
    %694 = vector.load %arg2[%c91, %c0_638] : memref<252x64xf32, #tpu.memory_space<vmem>>, vector<1x64xf32>
    %695 = vector.broadcast %694 : vector<1x64xf32> to vector<8x64xf32>
    %696 = arith.mulf %693, %695 : vector<8x64xf32>
    %697 = arith.addf %691, %696 : vector<8x64xf32>
    %c3_639 = arith.constant 3 : index
    %c0_640 = arith.constant 0 : index
    %c3_641 = arith.constant 3 : index
    %c0_642 = arith.constant 0 : index
    %698 = vector.load %arg7[%c3_639, %c0_640, %c3_641, %c0_642] : memref<4x1x12x96xf32, #tpu.memory_space<vmem>>, vector<1x1x8x64xf32>
    %699 = vector.shape_cast %698 : vector<1x1x8x64xf32> to vector<8x64xf32>
    %c92 = arith.constant 92 : index
    %c0_643 = arith.constant 0 : index
    %700 = vector.load %arg2[%c92, %c0_643] : memref<252x64xf32, #tpu.memory_space<vmem>>, vector<1x64xf32>
    %701 = vector.broadcast %700 : vector<1x64xf32> to vector<8x64xf32>
    %702 = arith.mulf %699, %701 : vector<8x64xf32>
    %703 = arith.addf %697, %702 : vector<8x64xf32>
    %c2_644 = arith.constant 2 : index
    %c0_645 = arith.constant 0 : index
    %c3_646 = arith.constant 3 : index
    %c8_647 = arith.constant 8 : index
    %704 = vector.load %arg7[%c2_644, %c0_645, %c3_646, %c8_647] : memref<4x1x12x96xf32, #tpu.memory_space<vmem>>, vector<1x1x8x64xf32>
    %705 = vector.shape_cast %704 : vector<1x1x8x64xf32> to vector<8x64xf32>
    %c93 = arith.constant 93 : index
    %c0_648 = arith.constant 0 : index
    %706 = vector.load %arg2[%c93, %c0_648] : memref<252x64xf32, #tpu.memory_space<vmem>>, vector<1x64xf32>
    %707 = vector.broadcast %706 : vector<1x64xf32> to vector<8x64xf32>
    %708 = arith.mulf %705, %707 : vector<8x64xf32>
    %709 = arith.addf %703, %708 : vector<8x64xf32>
    %c3_649 = arith.constant 3 : index
    %c0_650 = arith.constant 0 : index
    %c3_651 = arith.constant 3 : index
    %c8_652 = arith.constant 8 : index
    %710 = vector.load %arg7[%c3_649, %c0_650, %c3_651, %c8_652] : memref<4x1x12x96xf32, #tpu.memory_space<vmem>>, vector<1x1x8x64xf32>
    %711 = vector.shape_cast %710 : vector<1x1x8x64xf32> to vector<8x64xf32>
    %c94 = arith.constant 94 : index
    %c0_653 = arith.constant 0 : index
    %712 = vector.load %arg2[%c94, %c0_653] : memref<252x64xf32, #tpu.memory_space<vmem>>, vector<1x64xf32>
    %713 = vector.broadcast %712 : vector<1x64xf32> to vector<8x64xf32>
    %714 = arith.mulf %711, %713 : vector<8x64xf32>
    %715 = arith.addf %709, %714 : vector<8x64xf32>
    %c2_654 = arith.constant 2 : index
    %c0_655 = arith.constant 0 : index
    %c3_656 = arith.constant 3 : index
    %c16_657 = arith.constant 16 : index
    %716 = vector.load %arg7[%c2_654, %c0_655, %c3_656, %c16_657] : memref<4x1x12x96xf32, #tpu.memory_space<vmem>>, vector<1x1x8x64xf32>
    %717 = vector.shape_cast %716 : vector<1x1x8x64xf32> to vector<8x64xf32>
    %c95 = arith.constant 95 : index
    %c0_658 = arith.constant 0 : index
    %718 = vector.load %arg2[%c95, %c0_658] : memref<252x64xf32, #tpu.memory_space<vmem>>, vector<1x64xf32>
    %719 = vector.broadcast %718 : vector<1x64xf32> to vector<8x64xf32>
    %720 = arith.mulf %717, %719 : vector<8x64xf32>
    %721 = arith.addf %715, %720 : vector<8x64xf32>
    %c3_659 = arith.constant 3 : index
    %c0_660 = arith.constant 0 : index
    %c3_661 = arith.constant 3 : index
    %c16_662 = arith.constant 16 : index
    %722 = vector.load %arg7[%c3_659, %c0_660, %c3_661, %c16_662] : memref<4x1x12x96xf32, #tpu.memory_space<vmem>>, vector<1x1x8x64xf32>
    %723 = vector.shape_cast %722 : vector<1x1x8x64xf32> to vector<8x64xf32>
    %c96 = arith.constant 96 : index
    %c0_663 = arith.constant 0 : index
    %724 = vector.load %arg2[%c96, %c0_663] : memref<252x64xf32, #tpu.memory_space<vmem>>, vector<1x64xf32>
    %725 = vector.broadcast %724 : vector<1x64xf32> to vector<8x64xf32>
    %726 = arith.mulf %723, %725 : vector<8x64xf32>
    %727 = arith.addf %721, %726 : vector<8x64xf32>
    %c2_664 = arith.constant 2 : index
    %c0_665 = arith.constant 0 : index
    %c3_666 = arith.constant 3 : index
    %c24_667 = arith.constant 24 : index
    %728 = vector.load %arg7[%c2_664, %c0_665, %c3_666, %c24_667] : memref<4x1x12x96xf32, #tpu.memory_space<vmem>>, vector<1x1x8x64xf32>
    %729 = vector.shape_cast %728 : vector<1x1x8x64xf32> to vector<8x64xf32>
    %c97 = arith.constant 97 : index
    %c0_668 = arith.constant 0 : index
    %730 = vector.load %arg2[%c97, %c0_668] : memref<252x64xf32, #tpu.memory_space<vmem>>, vector<1x64xf32>
    %731 = vector.broadcast %730 : vector<1x64xf32> to vector<8x64xf32>
    %732 = arith.mulf %729, %731 : vector<8x64xf32>
    %733 = arith.addf %727, %732 : vector<8x64xf32>
    %c3_669 = arith.constant 3 : index
    %c0_670 = arith.constant 0 : index
    %c3_671 = arith.constant 3 : index
    %c24_672 = arith.constant 24 : index
    %734 = vector.load %arg7[%c3_669, %c0_670, %c3_671, %c24_672] : memref<4x1x12x96xf32, #tpu.memory_space<vmem>>, vector<1x1x8x64xf32>
    %735 = vector.shape_cast %734 : vector<1x1x8x64xf32> to vector<8x64xf32>
    %c98 = arith.constant 98 : index
    %c0_673 = arith.constant 0 : index
    %736 = vector.load %arg2[%c98, %c0_673] : memref<252x64xf32, #tpu.memory_space<vmem>>, vector<1x64xf32>
    %737 = vector.broadcast %736 : vector<1x64xf32> to vector<8x64xf32>
    %738 = arith.mulf %735, %737 : vector<8x64xf32>
    %739 = arith.addf %733, %738 : vector<8x64xf32>
    %c5_674 = arith.constant 5 : index
    %c0_675 = arith.constant 0 : index
    %c0_676 = arith.constant 0 : index
    %740 = vector.load %arg3[%c5_674, %c0_675, %c0_676] : memref<15x64x64xf32, #tpu.memory_space<vmem>>, vector<1x64x64xf32>
    %741 = vector.shape_cast %740 : vector<1x64x64xf32> to vector<64x64xf32>
    %c5_677 = arith.constant 5 : index
    %c0_678 = arith.constant 0 : index
    %742 = vector.load %arg4[%c5_677, %c0_678] : memref<15x64xf32, #tpu.memory_space<vmem>>, vector<1x64xf32>
    %cst_679 = arith.constant dense<0.000000e+00> : vector<8x64xf32>
    %743 = tpu.matmul %739, %741, %cst_679 {dimension_numbers = #tpu.dot_dimension_numbers<[1], [0], [0], [1], [0, 0, 1, 1], [], []>} : vector<8x64xf32>, vector<64x64xf32>, vector<8x64xf32> -> vector<8x64xf32>
    %744 = vector.broadcast %742 : vector<1x64xf32> to vector<8x64xf32>
    %745 = arith.addf %743, %744 : vector<8x64xf32>
    %cst_680 = arith.constant 0.000000e+00 : f32
    %746 = vector.broadcast %cst_680 : f32 to vector<8x64xf32>
    %747 = arith.maximumf %745, %746 : vector<8x64xf32>
    %c0_681 = arith.constant 0 : index
    %c3_682 = arith.constant 3 : index
    %c24_683 = arith.constant 24 : index
    %748 = vector.load %arg9[%c0_681, %c3_682, %c24_683] : memref<1x14x112xf32, #tpu.memory_space<vmem>>, vector<1x8x64xf32>
    %749 = vector.shape_cast %748 : vector<1x8x64xf32> to vector<8x64xf32>
    %750 = vector.shape_cast %747 : vector<8x64xf32> to vector<1x8x64xf32>
    tpu.vector_store %arg9[%c0_681, %c3_682, %c24_683], %750 {strides = array<i32>} : memref<1x14x112xf32, #tpu.memory_space<vmem>>, vector<1x8x64xf32>,
    %c0_684 = arith.constant 0 : index
    %c0_685 = arith.constant 0 : index
    %c0_686 = arith.constant 0 : index
    %751 = vector.load %arg9[%c0_684, %c0_685, %c0_686] : memref<1x14x112xf32, #tpu.memory_space<vmem>>, vector<1x8x64xf32>
    %752 = vector.shape_cast %751 : vector<1x8x64xf32> to vector<8x64xf32>
    %c99 = arith.constant 99 : index
    %c0_687 = arith.constant 0 : index
    %753 = vector.load %arg2[%c99, %c0_687] : memref<252x64xf32, #tpu.memory_space<vmem>>, vector<1x64xf32>
    %754 = vector.broadcast %753 : vector<1x64xf32> to vector<8x64xf32>
    %755 = arith.mulf %752, %754 : vector<8x64xf32>
    %c0_688 = arith.constant 0 : index
    %c0_689 = arith.constant 0 : index
    %c8_690 = arith.constant 8 : index
    %756 = vector.load %arg9[%c0_688, %c0_689, %c8_690] : memref<1x14x112xf32, #tpu.memory_space<vmem>>, vector<1x8x64xf32>
    %757 = vector.shape_cast %756 : vector<1x8x64xf32> to vector<8x64xf32>
    %c100 = arith.constant 100 : index
    %c0_691 = arith.constant 0 : index
    %758 = vector.load %arg2[%c100, %c0_691] : memref<252x64xf32, #tpu.memory_space<vmem>>, vector<1x64xf32>
    %759 = vector.broadcast %758 : vector<1x64xf32> to vector<8x64xf32>
    %760 = arith.mulf %757, %759 : vector<8x64xf32>
    %761 = arith.addf %755, %760 : vector<8x64xf32>
    %c0_692 = arith.constant 0 : index
    %c0_693 = arith.constant 0 : index
    %c16_694 = arith.constant 16 : index
    %762 = vector.load %arg9[%c0_692, %c0_693, %c16_694] : memref<1x14x112xf32, #tpu.memory_space<vmem>>, vector<1x8x64xf32>
    %763 = vector.shape_cast %762 : vector<1x8x64xf32> to vector<8x64xf32>
    %c101 = arith.constant 101 : index
    %c0_695 = arith.constant 0 : index
    %764 = vector.load %arg2[%c101, %c0_695] : memref<252x64xf32, #tpu.memory_space<vmem>>, vector<1x64xf32>
    %765 = vector.broadcast %764 : vector<1x64xf32> to vector<8x64xf32>
    %766 = arith.mulf %763, %765 : vector<8x64xf32>
    %767 = arith.addf %761, %766 : vector<8x64xf32>
    %c0_696 = arith.constant 0 : index
    %c0_697 = arith.constant 0 : index
    %c24_698 = arith.constant 24 : index
    %768 = vector.load %arg9[%c0_696, %c0_697, %c24_698] : memref<1x14x112xf32, #tpu.memory_space<vmem>>, vector<1x8x64xf32>
    %769 = vector.shape_cast %768 : vector<1x8x64xf32> to vector<8x64xf32>
    %c102 = arith.constant 102 : index
    %c0_699 = arith.constant 0 : index
    %770 = vector.load %arg2[%c102, %c0_699] : memref<252x64xf32, #tpu.memory_space<vmem>>, vector<1x64xf32>
    %771 = vector.broadcast %770 : vector<1x64xf32> to vector<8x64xf32>
    %772 = arith.mulf %769, %771 : vector<8x64xf32>
    %773 = arith.addf %767, %772 : vector<8x64xf32>
    %c0_700 = arith.constant 0 : index
    %c0_701 = arith.constant 0 : index
    %c32_702 = arith.constant 32 : index
    %774 = vector.load %arg9[%c0_700, %c0_701, %c32_702] : memref<1x14x112xf32, #tpu.memory_space<vmem>>, vector<1x8x64xf32>
    %775 = vector.shape_cast %774 : vector<1x8x64xf32> to vector<8x64xf32>
    %c103 = arith.constant 103 : index
    %c0_703 = arith.constant 0 : index
    %776 = vector.load %arg2[%c103, %c0_703] : memref<252x64xf32, #tpu.memory_space<vmem>>, vector<1x64xf32>
    %777 = vector.broadcast %776 : vector<1x64xf32> to vector<8x64xf32>
    %778 = arith.mulf %775, %777 : vector<8x64xf32>
    %779 = arith.addf %773, %778 : vector<8x64xf32>
    %c0_704 = arith.constant 0 : index
    %c0_705 = arith.constant 0 : index
    %c40_706 = arith.constant 40 : index
    %780 = vector.load %arg9[%c0_704, %c0_705, %c40_706] : memref<1x14x112xf32, #tpu.memory_space<vmem>>, vector<1x8x64xf32>
    %781 = vector.shape_cast %780 : vector<1x8x64xf32> to vector<8x64xf32>
    %c104 = arith.constant 104 : index
    %c0_707 = arith.constant 0 : index
    %782 = vector.load %arg2[%c104, %c0_707] : memref<252x64xf32, #tpu.memory_space<vmem>>, vector<1x64xf32>
    %783 = vector.broadcast %782 : vector<1x64xf32> to vector<8x64xf32>
    %784 = arith.mulf %781, %783 : vector<8x64xf32>
    %785 = arith.addf %779, %784 : vector<8x64xf32>
    %c0_708 = arith.constant 0 : index
    %c0_709 = arith.constant 0 : index
    %c48_710 = arith.constant 48 : index
    %786 = vector.load %arg9[%c0_708, %c0_709, %c48_710] : memref<1x14x112xf32, #tpu.memory_space<vmem>>, vector<1x8x64xf32>
    %787 = vector.shape_cast %786 : vector<1x8x64xf32> to vector<8x64xf32>
    %c105 = arith.constant 105 : index
    %c0_711 = arith.constant 0 : index
    %788 = vector.load %arg2[%c105, %c0_711] : memref<252x64xf32, #tpu.memory_space<vmem>>, vector<1x64xf32>
    %789 = vector.broadcast %788 : vector<1x64xf32> to vector<8x64xf32>
    %790 = arith.mulf %787, %789 : vector<8x64xf32>
    %791 = arith.addf %785, %790 : vector<8x64xf32>
    %c0_712 = arith.constant 0 : index
    %c1_713 = arith.constant 1 : index
    %c0_714 = arith.constant 0 : index
    %792 = vector.load %arg9[%c0_712, %c1_713, %c0_714] : memref<1x14x112xf32, #tpu.memory_space<vmem>>, vector<1x8x64xf32>
    %793 = vector.shape_cast %792 : vector<1x8x64xf32> to vector<8x64xf32>
    %c106 = arith.constant 106 : index
    %c0_715 = arith.constant 0 : index
    %794 = vector.load %arg2[%c106, %c0_715] : memref<252x64xf32, #tpu.memory_space<vmem>>, vector<1x64xf32>
    %795 = vector.broadcast %794 : vector<1x64xf32> to vector<8x64xf32>
    %796 = arith.mulf %793, %795 : vector<8x64xf32>
    %797 = arith.addf %791, %796 : vector<8x64xf32>
    %c0_716 = arith.constant 0 : index
    %c1_717 = arith.constant 1 : index
    %c8_718 = arith.constant 8 : index
    %798 = vector.load %arg9[%c0_716, %c1_717, %c8_718] : memref<1x14x112xf32, #tpu.memory_space<vmem>>, vector<1x8x64xf32>
    %799 = vector.shape_cast %798 : vector<1x8x64xf32> to vector<8x64xf32>
    %c107 = arith.constant 107 : index
    %c0_719 = arith.constant 0 : index
    %800 = vector.load %arg2[%c107, %c0_719] : memref<252x64xf32, #tpu.memory_space<vmem>>, vector<1x64xf32>
    %801 = vector.broadcast %800 : vector<1x64xf32> to vector<8x64xf32>
    %802 = arith.mulf %799, %801 : vector<8x64xf32>
    %803 = arith.addf %797, %802 : vector<8x64xf32>
    %c0_720 = arith.constant 0 : index
    %c1_721 = arith.constant 1 : index
    %c16_722 = arith.constant 16 : index
    %804 = vector.load %arg9[%c0_720, %c1_721, %c16_722] : memref<1x14x112xf32, #tpu.memory_space<vmem>>, vector<1x8x64xf32>
    %805 = vector.shape_cast %804 : vector<1x8x64xf32> to vector<8x64xf32>
    %c108 = arith.constant 108 : index
    %c0_723 = arith.constant 0 : index
    %806 = vector.load %arg2[%c108, %c0_723] : memref<252x64xf32, #tpu.memory_space<vmem>>, vector<1x64xf32>
    %807 = vector.broadcast %806 : vector<1x64xf32> to vector<8x64xf32>
    %808 = arith.mulf %805, %807 : vector<8x64xf32>
    %809 = arith.addf %803, %808 : vector<8x64xf32>
    %c0_724 = arith.constant 0 : index
    %c1_725 = arith.constant 1 : index
    %c24_726 = arith.constant 24 : index
    %810 = vector.load %arg9[%c0_724, %c1_725, %c24_726] : memref<1x14x112xf32, #tpu.memory_space<vmem>>, vector<1x8x64xf32>
    %811 = vector.shape_cast %810 : vector<1x8x64xf32> to vector<8x64xf32>
    %c109 = arith.constant 109 : index
    %c0_727 = arith.constant 0 : index
    %812 = vector.load %arg2[%c109, %c0_727] : memref<252x64xf32, #tpu.memory_space<vmem>>, vector<1x64xf32>
    %813 = vector.broadcast %812 : vector<1x64xf32> to vector<8x64xf32>
    %814 = arith.mulf %811, %813 : vector<8x64xf32>
    %815 = arith.addf %809, %814 : vector<8x64xf32>
    %c0_728 = arith.constant 0 : index
    %c1_729 = arith.constant 1 : index
    %c32_730 = arith.constant 32 : index
    %816 = vector.load %arg9[%c0_728, %c1_729, %c32_730] : memref<1x14x112xf32, #tpu.memory_space<vmem>>, vector<1x8x64xf32>
    %817 = vector.shape_cast %816 : vector<1x8x64xf32> to vector<8x64xf32>
    %c110 = arith.constant 110 : index
    %c0_731 = arith.constant 0 : index
    %818 = vector.load %arg2[%c110, %c0_731] : memref<252x64xf32, #tpu.memory_space<vmem>>, vector<1x64xf32>
    %819 = vector.broadcast %818 : vector<1x64xf32> to vector<8x64xf32>
    %820 = arith.mulf %817, %819 : vector<8x64xf32>
    %821 = arith.addf %815, %820 : vector<8x64xf32>
    %c0_732 = arith.constant 0 : index
    %c1_733 = arith.constant 1 : index
    %c40_734 = arith.constant 40 : index
    %822 = vector.load %arg9[%c0_732, %c1_733, %c40_734] : memref<1x14x112xf32, #tpu.memory_space<vmem>>, vector<1x8x64xf32>
    %823 = vector.shape_cast %822 : vector<1x8x64xf32> to vector<8x64xf32>
    %c111 = arith.constant 111 : index
    %c0_735 = arith.constant 0 : index
    %824 = vector.load %arg2[%c111, %c0_735] : memref<252x64xf32, #tpu.memory_space<vmem>>, vector<1x64xf32>
    %825 = vector.broadcast %824 : vector<1x64xf32> to vector<8x64xf32>
    %826 = arith.mulf %823, %825 : vector<8x64xf32>
    %827 = arith.addf %821, %826 : vector<8x64xf32>
    %c0_736 = arith.constant 0 : index
    %c1_737 = arith.constant 1 : index
    %c48_738 = arith.constant 48 : index
    %828 = vector.load %arg9[%c0_736, %c1_737, %c48_738] : memref<1x14x112xf32, #tpu.memory_space<vmem>>, vector<1x8x64xf32>
    %829 = vector.shape_cast %828 : vector<1x8x64xf32> to vector<8x64xf32>
    %c112 = arith.constant 112 : index
    %c0_739 = arith.constant 0 : index
    %830 = vector.load %arg2[%c112, %c0_739] : memref<252x64xf32, #tpu.memory_space<vmem>>, vector<1x64xf32>
    %831 = vector.broadcast %830 : vector<1x64xf32> to vector<8x64xf32>
    %832 = arith.mulf %829, %831 : vector<8x64xf32>
    %833 = arith.addf %827, %832 : vector<8x64xf32>
    %c0_740 = arith.constant 0 : index
    %c2_741 = arith.constant 2 : index
    %c0_742 = arith.constant 0 : index
    %834 = vector.load %arg9[%c0_740, %c2_741, %c0_742] : memref<1x14x112xf32, #tpu.memory_space<vmem>>, vector<1x8x64xf32>
    %835 = vector.shape_cast %834 : vector<1x8x64xf32> to vector<8x64xf32>
    %c113 = arith.constant 113 : index
    %c0_743 = arith.constant 0 : index
    %836 = vector.load %arg2[%c113, %c0_743] : memref<252x64xf32, #tpu.memory_space<vmem>>, vector<1x64xf32>
    %837 = vector.broadcast %836 : vector<1x64xf32> to vector<8x64xf32>
    %838 = arith.mulf %835, %837 : vector<8x64xf32>
    %839 = arith.addf %833, %838 : vector<8x64xf32>
    %c0_744 = arith.constant 0 : index
    %c2_745 = arith.constant 2 : index
    %c8_746 = arith.constant 8 : index
    %840 = vector.load %arg9[%c0_744, %c2_745, %c8_746] : memref<1x14x112xf32, #tpu.memory_space<vmem>>, vector<1x8x64xf32>
    %841 = vector.shape_cast %840 : vector<1x8x64xf32> to vector<8x64xf32>
    %c114 = arith.constant 114 : index
    %c0_747 = arith.constant 0 : index
    %842 = vector.load %arg2[%c114, %c0_747] : memref<252x64xf32, #tpu.memory_space<vmem>>, vector<1x64xf32>
    %843 = vector.broadcast %842 : vector<1x64xf32> to vector<8x64xf32>
    %844 = arith.mulf %841, %843 : vector<8x64xf32>
    %845 = arith.addf %839, %844 : vector<8x64xf32>
    %c0_748 = arith.constant 0 : index
    %c2_749 = arith.constant 2 : index
    %c16_750 = arith.constant 16 : index
    %846 = vector.load %arg9[%c0_748, %c2_749, %c16_750] : memref<1x14x112xf32, #tpu.memory_space<vmem>>, vector<1x8x64xf32>
    %847 = vector.shape_cast %846 : vector<1x8x64xf32> to vector<8x64xf32>
    %c115 = arith.constant 115 : index
    %c0_751 = arith.constant 0 : index
    %848 = vector.load %arg2[%c115, %c0_751] : memref<252x64xf32, #tpu.memory_space<vmem>>, vector<1x64xf32>
    %849 = vector.broadcast %848 : vector<1x64xf32> to vector<8x64xf32>
    %850 = arith.mulf %847, %849 : vector<8x64xf32>
    %851 = arith.addf %845, %850 : vector<8x64xf32>
    %c0_752 = arith.constant 0 : index
    %c2_753 = arith.constant 2 : index
    %c24_754 = arith.constant 24 : index
    %852 = vector.load %arg9[%c0_752, %c2_753, %c24_754] : memref<1x14x112xf32, #tpu.memory_space<vmem>>, vector<1x8x64xf32>
    %853 = vector.shape_cast %852 : vector<1x8x64xf32> to vector<8x64xf32>
    %c116 = arith.constant 116 : index
    %c0_755 = arith.constant 0 : index
    %854 = vector.load %arg2[%c116, %c0_755] : memref<252x64xf32, #tpu.memory_space<vmem>>, vector<1x64xf32>
    %855 = vector.broadcast %854 : vector<1x64xf32> to vector<8x64xf32>
    %856 = arith.mulf %853, %855 : vector<8x64xf32>
    %857 = arith.addf %851, %856 : vector<8x64xf32>
    %c0_756 = arith.constant 0 : index
    %c2_757 = arith.constant 2 : index
    %c32_758 = arith.constant 32 : index
    %858 = vector.load %arg9[%c0_756, %c2_757, %c32_758] : memref<1x14x112xf32, #tpu.memory_space<vmem>>, vector<1x8x64xf32>
    %859 = vector.shape_cast %858 : vector<1x8x64xf32> to vector<8x64xf32>
    %c117 = arith.constant 117 : index
    %c0_759 = arith.constant 0 : index
    %860 = vector.load %arg2[%c117, %c0_759] : memref<252x64xf32, #tpu.memory_space<vmem>>, vector<1x64xf32>
    %861 = vector.broadcast %860 : vector<1x64xf32> to vector<8x64xf32>
    %862 = arith.mulf %859, %861 : vector<8x64xf32>
    %863 = arith.addf %857, %862 : vector<8x64xf32>
    %c0_760 = arith.constant 0 : index
    %c2_761 = arith.constant 2 : index
    %c40_762 = arith.constant 40 : index
    %864 = vector.load %arg9[%c0_760, %c2_761, %c40_762] : memref<1x14x112xf32, #tpu.memory_space<vmem>>, vector<1x8x64xf32>
    %865 = vector.shape_cast %864 : vector<1x8x64xf32> to vector<8x64xf32>
    %c118 = arith.constant 118 : index
    %c0_763 = arith.constant 0 : index
    %866 = vector.load %arg2[%c118, %c0_763] : memref<252x64xf32, #tpu.memory_space<vmem>>, vector<1x64xf32>
    %867 = vector.broadcast %866 : vector<1x64xf32> to vector<8x64xf32>
    %868 = arith.mulf %865, %867 : vector<8x64xf32>
    %869 = arith.addf %863, %868 : vector<8x64xf32>
    %c0_764 = arith.constant 0 : index
    %c2_765 = arith.constant 2 : index
    %c48_766 = arith.constant 48 : index
    %870 = vector.load %arg9[%c0_764, %c2_765, %c48_766] : memref<1x14x112xf32, #tpu.memory_space<vmem>>, vector<1x8x64xf32>
    %871 = vector.shape_cast %870 : vector<1x8x64xf32> to vector<8x64xf32>
    %c119 = arith.constant 119 : index
    %c0_767 = arith.constant 0 : index
    %872 = vector.load %arg2[%c119, %c0_767] : memref<252x64xf32, #tpu.memory_space<vmem>>, vector<1x64xf32>
    %873 = vector.broadcast %872 : vector<1x64xf32> to vector<8x64xf32>
    %874 = arith.mulf %871, %873 : vector<8x64xf32>
    %875 = arith.addf %869, %874 : vector<8x64xf32>
    %c0_768 = arith.constant 0 : index
    %c3_769 = arith.constant 3 : index
    %c0_770 = arith.constant 0 : index
    %876 = vector.load %arg9[%c0_768, %c3_769, %c0_770] : memref<1x14x112xf32, #tpu.memory_space<vmem>>, vector<1x8x64xf32>
    %877 = vector.shape_cast %876 : vector<1x8x64xf32> to vector<8x64xf32>
    %c120 = arith.constant 120 : index
    %c0_771 = arith.constant 0 : index
    %878 = vector.load %arg2[%c120, %c0_771] : memref<252x64xf32, #tpu.memory_space<vmem>>, vector<1x64xf32>
    %879 = vector.broadcast %878 : vector<1x64xf32> to vector<8x64xf32>
    %880 = arith.mulf %877, %879 : vector<8x64xf32>
    %881 = arith.addf %875, %880 : vector<8x64xf32>
    %c0_772 = arith.constant 0 : index
    %c3_773 = arith.constant 3 : index
    %c8_774 = arith.constant 8 : index
    %882 = vector.load %arg9[%c0_772, %c3_773, %c8_774] : memref<1x14x112xf32, #tpu.memory_space<vmem>>, vector<1x8x64xf32>
    %883 = vector.shape_cast %882 : vector<1x8x64xf32> to vector<8x64xf32>
    %c121 = arith.constant 121 : index
    %c0_775 = arith.constant 0 : index
    %884 = vector.load %arg2[%c121, %c0_775] : memref<252x64xf32, #tpu.memory_space<vmem>>, vector<1x64xf32>
    %885 = vector.broadcast %884 : vector<1x64xf32> to vector<8x64xf32>
    %886 = arith.mulf %883, %885 : vector<8x64xf32>
    %887 = arith.addf %881, %886 : vector<8x64xf32>
    %c0_776 = arith.constant 0 : index
    %c3_777 = arith.constant 3 : index
    %c16_778 = arith.constant 16 : index
    %888 = vector.load %arg9[%c0_776, %c3_777, %c16_778] : memref<1x14x112xf32, #tpu.memory_space<vmem>>, vector<1x8x64xf32>
    %889 = vector.shape_cast %888 : vector<1x8x64xf32> to vector<8x64xf32>
    %c122 = arith.constant 122 : index
    %c0_779 = arith.constant 0 : index
    %890 = vector.load %arg2[%c122, %c0_779] : memref<252x64xf32, #tpu.memory_space<vmem>>, vector<1x64xf32>
    %891 = vector.broadcast %890 : vector<1x64xf32> to vector<8x64xf32>
    %892 = arith.mulf %889, %891 : vector<8x64xf32>
    %893 = arith.addf %887, %892 : vector<8x64xf32>
    %c0_780 = arith.constant 0 : index
    %c3_781 = arith.constant 3 : index
    %c24_782 = arith.constant 24 : index
    %894 = vector.load %arg9[%c0_780, %c3_781, %c24_782] : memref<1x14x112xf32, #tpu.memory_space<vmem>>, vector<1x8x64xf32>
    %895 = vector.shape_cast %894 : vector<1x8x64xf32> to vector<8x64xf32>
    %c123 = arith.constant 123 : index
    %c0_783 = arith.constant 0 : index
    %896 = vector.load %arg2[%c123, %c0_783] : memref<252x64xf32, #tpu.memory_space<vmem>>, vector<1x64xf32>
    %897 = vector.broadcast %896 : vector<1x64xf32> to vector<8x64xf32>
    %898 = arith.mulf %895, %897 : vector<8x64xf32>
    %899 = arith.addf %893, %898 : vector<8x64xf32>
    %c0_784 = arith.constant 0 : index
    %c3_785 = arith.constant 3 : index
    %c32_786 = arith.constant 32 : index
    %900 = vector.load %arg9[%c0_784, %c3_785, %c32_786] : memref<1x14x112xf32, #tpu.memory_space<vmem>>, vector<1x8x64xf32>
    %901 = vector.shape_cast %900 : vector<1x8x64xf32> to vector<8x64xf32>
    %c124 = arith.constant 124 : index
    %c0_787 = arith.constant 0 : index
    %902 = vector.load %arg2[%c124, %c0_787] : memref<252x64xf32, #tpu.memory_space<vmem>>, vector<1x64xf32>
    %903 = vector.broadcast %902 : vector<1x64xf32> to vector<8x64xf32>
    %904 = arith.mulf %901, %903 : vector<8x64xf32>
    %905 = arith.addf %899, %904 : vector<8x64xf32>
    %c0_788 = arith.constant 0 : index
    %c3_789 = arith.constant 3 : index
    %c40_790 = arith.constant 40 : index
    %906 = vector.load %arg9[%c0_788, %c3_789, %c40_790] : memref<1x14x112xf32, #tpu.memory_space<vmem>>, vector<1x8x64xf32>
    %907 = vector.shape_cast %906 : vector<1x8x64xf32> to vector<8x64xf32>
    %c125 = arith.constant 125 : index
    %c0_791 = arith.constant 0 : index
    %908 = vector.load %arg2[%c125, %c0_791] : memref<252x64xf32, #tpu.memory_space<vmem>>, vector<1x64xf32>
    %909 = vector.broadcast %908 : vector<1x64xf32> to vector<8x64xf32>
    %910 = arith.mulf %907, %909 : vector<8x64xf32>
    %911 = arith.addf %905, %910 : vector<8x64xf32>
    %c0_792 = arith.constant 0 : index
    %c3_793 = arith.constant 3 : index
    %c48_794 = arith.constant 48 : index
    %912 = vector.load %arg9[%c0_792, %c3_793, %c48_794] : memref<1x14x112xf32, #tpu.memory_space<vmem>>, vector<1x8x64xf32>
    %913 = vector.shape_cast %912 : vector<1x8x64xf32> to vector<8x64xf32>
    %c126 = arith.constant 126 : index
    %c0_795 = arith.constant 0 : index
    %914 = vector.load %arg2[%c126, %c0_795] : memref<252x64xf32, #tpu.memory_space<vmem>>, vector<1x64xf32>
    %915 = vector.broadcast %914 : vector<1x64xf32> to vector<8x64xf32>
    %916 = arith.mulf %913, %915 : vector<8x64xf32>
    %917 = arith.addf %911, %916 : vector<8x64xf32>
    %c0_796 = arith.constant 0 : index
    %c4_797 = arith.constant 4 : index
    %c0_798 = arith.constant 0 : index
    %918 = vector.load %arg9[%c0_796, %c4_797, %c0_798] : memref<1x14x112xf32, #tpu.memory_space<vmem>>, vector<1x8x64xf32>
    %919 = vector.shape_cast %918 : vector<1x8x64xf32> to vector<8x64xf32>
    %c127 = arith.constant 127 : index
    %c0_799 = arith.constant 0 : index
    %920 = vector.load %arg2[%c127, %c0_799] : memref<252x64xf32, #tpu.memory_space<vmem>>, vector<1x64xf32>
    %921 = vector.broadcast %920 : vector<1x64xf32> to vector<8x64xf32>
    %922 = arith.mulf %919, %921 : vector<8x64xf32>
    %923 = arith.addf %917, %922 : vector<8x64xf32>
    %c0_800 = arith.constant 0 : index
    %c4_801 = arith.constant 4 : index
    %c8_802 = arith.constant 8 : index
    %924 = vector.load %arg9[%c0_800, %c4_801, %c8_802] : memref<1x14x112xf32, #tpu.memory_space<vmem>>, vector<1x8x64xf32>
    %925 = vector.shape_cast %924 : vector<1x8x64xf32> to vector<8x64xf32>
    %c128 = arith.constant 128 : index
    %c0_803 = arith.constant 0 : index
    %926 = vector.load %arg2[%c128, %c0_803] : memref<252x64xf32, #tpu.memory_space<vmem>>, vector<1x64xf32>
    %927 = vector.broadcast %926 : vector<1x64xf32> to vector<8x64xf32>
    %928 = arith.mulf %925, %927 : vector<8x64xf32>
    %929 = arith.addf %923, %928 : vector<8x64xf32>
    %c0_804 = arith.constant 0 : index
    %c4_805 = arith.constant 4 : index
    %c16_806 = arith.constant 16 : index
    %930 = vector.load %arg9[%c0_804, %c4_805, %c16_806] : memref<1x14x112xf32, #tpu.memory_space<vmem>>, vector<1x8x64xf32>
    %931 = vector.shape_cast %930 : vector<1x8x64xf32> to vector<8x64xf32>
    %c129 = arith.constant 129 : index
    %c0_807 = arith.constant 0 : index
    %932 = vector.load %arg2[%c129, %c0_807] : memref<252x64xf32, #tpu.memory_space<vmem>>, vector<1x64xf32>
    %933 = vector.broadcast %932 : vector<1x64xf32> to vector<8x64xf32>
    %934 = arith.mulf %931, %933 : vector<8x64xf32>
    %935 = arith.addf %929, %934 : vector<8x64xf32>
    %c0_808 = arith.constant 0 : index
    %c4_809 = arith.constant 4 : index
    %c24_810 = arith.constant 24 : index
    %936 = vector.load %arg9[%c0_808, %c4_809, %c24_810] : memref<1x14x112xf32, #tpu.memory_space<vmem>>, vector<1x8x64xf32>
    %937 = vector.shape_cast %936 : vector<1x8x64xf32> to vector<8x64xf32>
    %c130 = arith.constant 130 : index
    %c0_811 = arith.constant 0 : index
    %938 = vector.load %arg2[%c130, %c0_811] : memref<252x64xf32, #tpu.memory_space<vmem>>, vector<1x64xf32>
    %939 = vector.broadcast %938 : vector<1x64xf32> to vector<8x64xf32>
    %940 = arith.mulf %937, %939 : vector<8x64xf32>
    %941 = arith.addf %935, %940 : vector<8x64xf32>
    %c0_812 = arith.constant 0 : index
    %c4_813 = arith.constant 4 : index
    %c32_814 = arith.constant 32 : index
    %942 = vector.load %arg9[%c0_812, %c4_813, %c32_814] : memref<1x14x112xf32, #tpu.memory_space<vmem>>, vector<1x8x64xf32>
    %943 = vector.shape_cast %942 : vector<1x8x64xf32> to vector<8x64xf32>
    %c131 = arith.constant 131 : index
    %c0_815 = arith.constant 0 : index
    %944 = vector.load %arg2[%c131, %c0_815] : memref<252x64xf32, #tpu.memory_space<vmem>>, vector<1x64xf32>
    %945 = vector.broadcast %944 : vector<1x64xf32> to vector<8x64xf32>
    %946 = arith.mulf %943, %945 : vector<8x64xf32>
    %947 = arith.addf %941, %946 : vector<8x64xf32>
    %c0_816 = arith.constant 0 : index
    %c4_817 = arith.constant 4 : index
    %c40_818 = arith.constant 40 : index
    %948 = vector.load %arg9[%c0_816, %c4_817, %c40_818] : memref<1x14x112xf32, #tpu.memory_space<vmem>>, vector<1x8x64xf32>
    %949 = vector.shape_cast %948 : vector<1x8x64xf32> to vector<8x64xf32>
    %c132 = arith.constant 132 : index
    %c0_819 = arith.constant 0 : index
    %950 = vector.load %arg2[%c132, %c0_819] : memref<252x64xf32, #tpu.memory_space<vmem>>, vector<1x64xf32>
    %951 = vector.broadcast %950 : vector<1x64xf32> to vector<8x64xf32>
    %952 = arith.mulf %949, %951 : vector<8x64xf32>
    %953 = arith.addf %947, %952 : vector<8x64xf32>
    %c0_820 = arith.constant 0 : index
    %c4_821 = arith.constant 4 : index
    %c48_822 = arith.constant 48 : index
    %954 = vector.load %arg9[%c0_820, %c4_821, %c48_822] : memref<1x14x112xf32, #tpu.memory_space<vmem>>, vector<1x8x64xf32>
    %955 = vector.shape_cast %954 : vector<1x8x64xf32> to vector<8x64xf32>
    %c133 = arith.constant 133 : index
    %c0_823 = arith.constant 0 : index
    %956 = vector.load %arg2[%c133, %c0_823] : memref<252x64xf32, #tpu.memory_space<vmem>>, vector<1x64xf32>
    %957 = vector.broadcast %956 : vector<1x64xf32> to vector<8x64xf32>
    %958 = arith.mulf %955, %957 : vector<8x64xf32>
    %959 = arith.addf %953, %958 : vector<8x64xf32>
    %c0_824 = arith.constant 0 : index
    %c5_825 = arith.constant 5 : index
    %c0_826 = arith.constant 0 : index
    %960 = vector.load %arg9[%c0_824, %c5_825, %c0_826] : memref<1x14x112xf32, #tpu.memory_space<vmem>>, vector<1x8x64xf32>
    %961 = vector.shape_cast %960 : vector<1x8x64xf32> to vector<8x64xf32>
    %c134 = arith.constant 134 : index
    %c0_827 = arith.constant 0 : index
    %962 = vector.load %arg2[%c134, %c0_827] : memref<252x64xf32, #tpu.memory_space<vmem>>, vector<1x64xf32>
    %963 = vector.broadcast %962 : vector<1x64xf32> to vector<8x64xf32>
    %964 = arith.mulf %961, %963 : vector<8x64xf32>
    %965 = arith.addf %959, %964 : vector<8x64xf32>
    %c0_828 = arith.constant 0 : index
    %c5_829 = arith.constant 5 : index
    %c8_830 = arith.constant 8 : index
    %966 = vector.load %arg9[%c0_828, %c5_829, %c8_830] : memref<1x14x112xf32, #tpu.memory_space<vmem>>, vector<1x8x64xf32>
    %967 = vector.shape_cast %966 : vector<1x8x64xf32> to vector<8x64xf32>
    %c135 = arith.constant 135 : index
    %c0_831 = arith.constant 0 : index
    %968 = vector.load %arg2[%c135, %c0_831] : memref<252x64xf32, #tpu.memory_space<vmem>>, vector<1x64xf32>
    %969 = vector.broadcast %968 : vector<1x64xf32> to vector<8x64xf32>
    %970 = arith.mulf %967, %969 : vector<8x64xf32>
    %971 = arith.addf %965, %970 : vector<8x64xf32>
    %c0_832 = arith.constant 0 : index
    %c5_833 = arith.constant 5 : index
    %c16_834 = arith.constant 16 : index
    %972 = vector.load %arg9[%c0_832, %c5_833, %c16_834] : memref<1x14x112xf32, #tpu.memory_space<vmem>>, vector<1x8x64xf32>
    %973 = vector.shape_cast %972 : vector<1x8x64xf32> to vector<8x64xf32>
    %c136 = arith.constant 136 : index
    %c0_835 = arith.constant 0 : index
    %974 = vector.load %arg2[%c136, %c0_835] : memref<252x64xf32, #tpu.memory_space<vmem>>, vector<1x64xf32>
    %975 = vector.broadcast %974 : vector<1x64xf32> to vector<8x64xf32>
    %976 = arith.mulf %973, %975 : vector<8x64xf32>
    %977 = arith.addf %971, %976 : vector<8x64xf32>
    %c0_836 = arith.constant 0 : index
    %c5_837 = arith.constant 5 : index
    %c24_838 = arith.constant 24 : index
    %978 = vector.load %arg9[%c0_836, %c5_837, %c24_838] : memref<1x14x112xf32, #tpu.memory_space<vmem>>, vector<1x8x64xf32>
    %979 = vector.shape_cast %978 : vector<1x8x64xf32> to vector<8x64xf32>
    %c137 = arith.constant 137 : index
    %c0_839 = arith.constant 0 : index
    %980 = vector.load %arg2[%c137, %c0_839] : memref<252x64xf32, #tpu.memory_space<vmem>>, vector<1x64xf32>
    %981 = vector.broadcast %980 : vector<1x64xf32> to vector<8x64xf32>
    %982 = arith.mulf %979, %981 : vector<8x64xf32>
    %983 = arith.addf %977, %982 : vector<8x64xf32>
    %c0_840 = arith.constant 0 : index
    %c5_841 = arith.constant 5 : index
    %c32_842 = arith.constant 32 : index
    %984 = vector.load %arg9[%c0_840, %c5_841, %c32_842] : memref<1x14x112xf32, #tpu.memory_space<vmem>>, vector<1x8x64xf32>
    %985 = vector.shape_cast %984 : vector<1x8x64xf32> to vector<8x64xf32>
    %c138 = arith.constant 138 : index
    %c0_843 = arith.constant 0 : index
    %986 = vector.load %arg2[%c138, %c0_843] : memref<252x64xf32, #tpu.memory_space<vmem>>, vector<1x64xf32>
    %987 = vector.broadcast %986 : vector<1x64xf32> to vector<8x64xf32>
    %988 = arith.mulf %985, %987 : vector<8x64xf32>
    %989 = arith.addf %983, %988 : vector<8x64xf32>
    %c0_844 = arith.constant 0 : index
    %c5_845 = arith.constant 5 : index
    %c40_846 = arith.constant 40 : index
    %990 = vector.load %arg9[%c0_844, %c5_845, %c40_846] : memref<1x14x112xf32, #tpu.memory_space<vmem>>, vector<1x8x64xf32>
    %991 = vector.shape_cast %990 : vector<1x8x64xf32> to vector<8x64xf32>
    %c139 = arith.constant 139 : index
    %c0_847 = arith.constant 0 : index
    %992 = vector.load %arg2[%c139, %c0_847] : memref<252x64xf32, #tpu.memory_space<vmem>>, vector<1x64xf32>
    %993 = vector.broadcast %992 : vector<1x64xf32> to vector<8x64xf32>
    %994 = arith.mulf %991, %993 : vector<8x64xf32>
    %995 = arith.addf %989, %994 : vector<8x64xf32>
    %c0_848 = arith.constant 0 : index
    %c5_849 = arith.constant 5 : index
    %c48_850 = arith.constant 48 : index
    %996 = vector.load %arg9[%c0_848, %c5_849, %c48_850] : memref<1x14x112xf32, #tpu.memory_space<vmem>>, vector<1x8x64xf32>
    %997 = vector.shape_cast %996 : vector<1x8x64xf32> to vector<8x64xf32>
    %c140 = arith.constant 140 : index
    %c0_851 = arith.constant 0 : index
    %998 = vector.load %arg2[%c140, %c0_851] : memref<252x64xf32, #tpu.memory_space<vmem>>, vector<1x64xf32>
    %999 = vector.broadcast %998 : vector<1x64xf32> to vector<8x64xf32>
    %1000 = arith.mulf %997, %999 : vector<8x64xf32>
    %1001 = arith.addf %995, %1000 : vector<8x64xf32>
    %c0_852 = arith.constant 0 : index
    %c6_853 = arith.constant 6 : index
    %c0_854 = arith.constant 0 : index
    %1002 = vector.load %arg9[%c0_852, %c6_853, %c0_854] : memref<1x14x112xf32, #tpu.memory_space<vmem>>, vector<1x8x64xf32>
    %1003 = vector.shape_cast %1002 : vector<1x8x64xf32> to vector<8x64xf32>
    %c141 = arith.constant 141 : index
    %c0_855 = arith.constant 0 : index
    %1004 = vector.load %arg2[%c141, %c0_855] : memref<252x64xf32, #tpu.memory_space<vmem>>, vector<1x64xf32>
    %1005 = vector.broadcast %1004 : vector<1x64xf32> to vector<8x64xf32>
    %1006 = arith.mulf %1003, %1005 : vector<8x64xf32>
    %1007 = arith.addf %1001, %1006 : vector<8x64xf32>
    %c0_856 = arith.constant 0 : index
    %c6_857 = arith.constant 6 : index
    %c8_858 = arith.constant 8 : index
    %1008 = vector.load %arg9[%c0_856, %c6_857, %c8_858] : memref<1x14x112xf32, #tpu.memory_space<vmem>>, vector<1x8x64xf32>
    %1009 = vector.shape_cast %1008 : vector<1x8x64xf32> to vector<8x64xf32>
    %c142 = arith.constant 142 : index
    %c0_859 = arith.constant 0 : index
    %1010 = vector.load %arg2[%c142, %c0_859] : memref<252x64xf32, #tpu.memory_space<vmem>>, vector<1x64xf32>
    %1011 = vector.broadcast %1010 : vector<1x64xf32> to vector<8x64xf32>
    %1012 = arith.mulf %1009, %1011 : vector<8x64xf32>
    %1013 = arith.addf %1007, %1012 : vector<8x64xf32>
    %c0_860 = arith.constant 0 : index
    %c6_861 = arith.constant 6 : index
    %c16_862 = arith.constant 16 : index
    %1014 = vector.load %arg9[%c0_860, %c6_861, %c16_862] : memref<1x14x112xf32, #tpu.memory_space<vmem>>, vector<1x8x64xf32>
    %1015 = vector.shape_cast %1014 : vector<1x8x64xf32> to vector<8x64xf32>
    %c143 = arith.constant 143 : index
    %c0_863 = arith.constant 0 : index
    %1016 = vector.load %arg2[%c143, %c0_863] : memref<252x64xf32, #tpu.memory_space<vmem>>, vector<1x64xf32>
    %1017 = vector.broadcast %1016 : vector<1x64xf32> to vector<8x64xf32>
    %1018 = arith.mulf %1015, %1017 : vector<8x64xf32>
    %1019 = arith.addf %1013, %1018 : vector<8x64xf32>
    %c0_864 = arith.constant 0 : index
    %c6_865 = arith.constant 6 : index
    %c24_866 = arith.constant 24 : index
    %1020 = vector.load %arg9[%c0_864, %c6_865, %c24_866] : memref<1x14x112xf32, #tpu.memory_space<vmem>>, vector<1x8x64xf32>
    %1021 = vector.shape_cast %1020 : vector<1x8x64xf32> to vector<8x64xf32>
    %c144 = arith.constant 144 : index
    %c0_867 = arith.constant 0 : index
    %1022 = vector.load %arg2[%c144, %c0_867] : memref<252x64xf32, #tpu.memory_space<vmem>>, vector<1x64xf32>
    %1023 = vector.broadcast %1022 : vector<1x64xf32> to vector<8x64xf32>
    %1024 = arith.mulf %1021, %1023 : vector<8x64xf32>
    %1025 = arith.addf %1019, %1024 : vector<8x64xf32>
    %c0_868 = arith.constant 0 : index
    %c6_869 = arith.constant 6 : index
    %c32_870 = arith.constant 32 : index
    %1026 = vector.load %arg9[%c0_868, %c6_869, %c32_870] : memref<1x14x112xf32, #tpu.memory_space<vmem>>, vector<1x8x64xf32>
    %1027 = vector.shape_cast %1026 : vector<1x8x64xf32> to vector<8x64xf32>
    %c145 = arith.constant 145 : index
    %c0_871 = arith.constant 0 : index
    %1028 = vector.load %arg2[%c145, %c0_871] : memref<252x64xf32, #tpu.memory_space<vmem>>, vector<1x64xf32>
    %1029 = vector.broadcast %1028 : vector<1x64xf32> to vector<8x64xf32>
    %1030 = arith.mulf %1027, %1029 : vector<8x64xf32>
    %1031 = arith.addf %1025, %1030 : vector<8x64xf32>
    %c0_872 = arith.constant 0 : index
    %c6_873 = arith.constant 6 : index
    %c40_874 = arith.constant 40 : index
    %1032 = vector.load %arg9[%c0_872, %c6_873, %c40_874] : memref<1x14x112xf32, #tpu.memory_space<vmem>>, vector<1x8x64xf32>
    %1033 = vector.shape_cast %1032 : vector<1x8x64xf32> to vector<8x64xf32>
    %c146 = arith.constant 146 : index
    %c0_875 = arith.constant 0 : index
    %1034 = vector.load %arg2[%c146, %c0_875] : memref<252x64xf32, #tpu.memory_space<vmem>>, vector<1x64xf32>
    %1035 = vector.broadcast %1034 : vector<1x64xf32> to vector<8x64xf32>
    %1036 = arith.mulf %1033, %1035 : vector<8x64xf32>
    %1037 = arith.addf %1031, %1036 : vector<8x64xf32>
    %c0_876 = arith.constant 0 : index
    %c6_877 = arith.constant 6 : index
    %c48_878 = arith.constant 48 : index
    %1038 = vector.load %arg9[%c0_876, %c6_877, %c48_878] : memref<1x14x112xf32, #tpu.memory_space<vmem>>, vector<1x8x64xf32>
    %1039 = vector.shape_cast %1038 : vector<1x8x64xf32> to vector<8x64xf32>
    %c147 = arith.constant 147 : index
    %c0_879 = arith.constant 0 : index
    %1040 = vector.load %arg2[%c147, %c0_879] : memref<252x64xf32, #tpu.memory_space<vmem>>, vector<1x64xf32>
    %1041 = vector.broadcast %1040 : vector<1x64xf32> to vector<8x64xf32>
    %1042 = arith.mulf %1039, %1041 : vector<8x64xf32>
    %1043 = arith.addf %1037, %1042 : vector<8x64xf32>
    %c6_880 = arith.constant 6 : index
    %c0_881 = arith.constant 0 : index
    %c0_882 = arith.constant 0 : index
    %1044 = vector.load %arg3[%c6_880, %c0_881, %c0_882] : memref<15x64x64xf32, #tpu.memory_space<vmem>>, vector<1x64x64xf32>
    %1045 = vector.shape_cast %1044 : vector<1x64x64xf32> to vector<64x64xf32>
    %c6_883 = arith.constant 6 : index
    %c0_884 = arith.constant 0 : index
    %1046 = vector.load %arg4[%c6_883, %c0_884] : memref<15x64xf32, #tpu.memory_space<vmem>>, vector<1x64xf32>
    %cst_885 = arith.constant dense<0.000000e+00> : vector<8x64xf32>
    %1047 = tpu.matmul %1043, %1045, %cst_885 {dimension_numbers = #tpu.dot_dimension_numbers<[1], [0], [0], [1], [0, 0, 1, 1], [], []>} : vector<8x64xf32>, vector<64x64xf32>, vector<8x64xf32> -> vector<8x64xf32>
    %1048 = vector.broadcast %1046 : vector<1x64xf32> to vector<8x64xf32>
    %1049 = arith.addf %1047, %1048 : vector<8x64xf32>
    %1050 = arith.addf %1049, %446 : vector<8x64xf32>
    %c0_886 = arith.constant 0 : index
    %c0_887 = arith.constant 0 : index
    %c1_888 = arith.constant 1 : index
    %c8_889 = arith.constant 8 : index
    %1051 = vector.load %arg7[%c0_886, %c0_887, %c1_888, %c8_889] : memref<4x1x12x96xf32, #tpu.memory_space<vmem>>, vector<1x1x8x64xf32>
    %1052 = vector.shape_cast %1051 : vector<1x1x8x64xf32> to vector<8x64xf32>
    %c148 = arith.constant 148 : index
    %c0_890 = arith.constant 0 : index
    %1053 = vector.load %arg2[%c148, %c0_890] : memref<252x64xf32, #tpu.memory_space<vmem>>, vector<1x64xf32>
    %1054 = vector.broadcast %1053 : vector<1x64xf32> to vector<8x64xf32>
    %1055 = arith.mulf %1052, %1054 : vector<8x64xf32>
    %c1_891 = arith.constant 1 : index
    %c0_892 = arith.constant 0 : index
    %c1_893 = arith.constant 1 : index
    %c8_894 = arith.constant 8 : index
    %1056 = vector.load %arg7[%c1_891, %c0_892, %c1_893, %c8_894] : memref<4x1x12x96xf32, #tpu.memory_space<vmem>>, vector<1x1x8x64xf32>
    %1057 = vector.shape_cast %1056 : vector<1x1x8x64xf32> to vector<8x64xf32>
    %c149 = arith.constant 149 : index
    %c0_895 = arith.constant 0 : index
    %1058 = vector.load %arg2[%c149, %c0_895] : memref<252x64xf32, #tpu.memory_space<vmem>>, vector<1x64xf32>
    %1059 = vector.broadcast %1058 : vector<1x64xf32> to vector<8x64xf32>
    %1060 = arith.mulf %1057, %1059 : vector<8x64xf32>
    %1061 = arith.addf %1055, %1060 : vector<8x64xf32>
    %c0_896 = arith.constant 0 : index
    %c0_897 = arith.constant 0 : index
    %c1_898 = arith.constant 1 : index
    %c16_899 = arith.constant 16 : index
    %1062 = vector.load %arg7[%c0_896, %c0_897, %c1_898, %c16_899] : memref<4x1x12x96xf32, #tpu.memory_space<vmem>>, vector<1x1x8x64xf32>
    %1063 = vector.shape_cast %1062 : vector<1x1x8x64xf32> to vector<8x64xf32>
    %c150 = arith.constant 150 : index
    %c0_900 = arith.constant 0 : index
    %1064 = vector.load %arg2[%c150, %c0_900] : memref<252x64xf32, #tpu.memory_space<vmem>>, vector<1x64xf32>
    %1065 = vector.broadcast %1064 : vector<1x64xf32> to vector<8x64xf32>
    %1066 = arith.mulf %1063, %1065 : vector<8x64xf32>
    %1067 = arith.addf %1061, %1066 : vector<8x64xf32>
    %c1_901 = arith.constant 1 : index
    %c0_902 = arith.constant 0 : index
    %c1_903 = arith.constant 1 : index
    %c16_904 = arith.constant 16 : index
    %1068 = vector.load %arg7[%c1_901, %c0_902, %c1_903, %c16_904] : memref<4x1x12x96xf32, #tpu.memory_space<vmem>>, vector<1x1x8x64xf32>
    %1069 = vector.shape_cast %1068 : vector<1x1x8x64xf32> to vector<8x64xf32>
    %c151 = arith.constant 151 : index
    %c0_905 = arith.constant 0 : index
    %1070 = vector.load %arg2[%c151, %c0_905] : memref<252x64xf32, #tpu.memory_space<vmem>>, vector<1x64xf32>
    %1071 = vector.broadcast %1070 : vector<1x64xf32> to vector<8x64xf32>
    %1072 = arith.mulf %1069, %1071 : vector<8x64xf32>
    %1073 = arith.addf %1067, %1072 : vector<8x64xf32>
    %c0_906 = arith.constant 0 : index
    %c0_907 = arith.constant 0 : index
    %c1_908 = arith.constant 1 : index
    %c24_909 = arith.constant 24 : index
    %1074 = vector.load %arg7[%c0_906, %c0_907, %c1_908, %c24_909] : memref<4x1x12x96xf32, #tpu.memory_space<vmem>>, vector<1x1x8x64xf32>
    %1075 = vector.shape_cast %1074 : vector<1x1x8x64xf32> to vector<8x64xf32>
    %c152 = arith.constant 152 : index
    %c0_910 = arith.constant 0 : index
    %1076 = vector.load %arg2[%c152, %c0_910] : memref<252x64xf32, #tpu.memory_space<vmem>>, vector<1x64xf32>
    %1077 = vector.broadcast %1076 : vector<1x64xf32> to vector<8x64xf32>
    %1078 = arith.mulf %1075, %1077 : vector<8x64xf32>
    %1079 = arith.addf %1073, %1078 : vector<8x64xf32>
    %c2_911 = arith.constant 2 : index
    %c0_912 = arith.constant 0 : index
    %c1_913 = arith.constant 1 : index
    %c8_914 = arith.constant 8 : index
    %1080 = vector.load %arg7[%c2_911, %c0_912, %c1_913, %c8_914] : memref<4x1x12x96xf32, #tpu.memory_space<vmem>>, vector<1x1x8x64xf32>
    %1081 = vector.shape_cast %1080 : vector<1x1x8x64xf32> to vector<8x64xf32>
    %c153 = arith.constant 153 : index
    %c0_915 = arith.constant 0 : index
    %1082 = vector.load %arg2[%c153, %c0_915] : memref<252x64xf32, #tpu.memory_space<vmem>>, vector<1x64xf32>
    %1083 = vector.broadcast %1082 : vector<1x64xf32> to vector<8x64xf32>
    %1084 = arith.mulf %1081, %1083 : vector<8x64xf32>
    %1085 = arith.addf %1079, %1084 : vector<8x64xf32>
    %c3_916 = arith.constant 3 : index
    %c0_917 = arith.constant 0 : index
    %c1_918 = arith.constant 1 : index
    %c8_919 = arith.constant 8 : index
    %1086 = vector.load %arg7[%c3_916, %c0_917, %c1_918, %c8_919] : memref<4x1x12x96xf32, #tpu.memory_space<vmem>>, vector<1x1x8x64xf32>
    %1087 = vector.shape_cast %1086 : vector<1x1x8x64xf32> to vector<8x64xf32>
    %c154 = arith.constant 154 : index
    %c0_920 = arith.constant 0 : index
    %1088 = vector.load %arg2[%c154, %c0_920] : memref<252x64xf32, #tpu.memory_space<vmem>>, vector<1x64xf32>
    %1089 = vector.broadcast %1088 : vector<1x64xf32> to vector<8x64xf32>
    %1090 = arith.mulf %1087, %1089 : vector<8x64xf32>
    %1091 = arith.addf %1085, %1090 : vector<8x64xf32>
    %c2_921 = arith.constant 2 : index
    %c0_922 = arith.constant 0 : index
    %c1_923 = arith.constant 1 : index
    %c16_924 = arith.constant 16 : index
    %1092 = vector.load %arg7[%c2_921, %c0_922, %c1_923, %c16_924] : memref<4x1x12x96xf32, #tpu.memory_space<vmem>>, vector<1x1x8x64xf32>
    %1093 = vector.shape_cast %1092 : vector<1x1x8x64xf32> to vector<8x64xf32>
    %c155 = arith.constant 155 : index
    %c0_925 = arith.constant 0 : index
    %1094 = vector.load %arg2[%c155, %c0_925] : memref<252x64xf32, #tpu.memory_space<vmem>>, vector<1x64xf32>
    %1095 = vector.broadcast %1094 : vector<1x64xf32> to vector<8x64xf32>
    %1096 = arith.mulf %1093, %1095 : vector<8x64xf32>
    %1097 = arith.addf %1091, %1096 : vector<8x64xf32>
    %c3_926 = arith.constant 3 : index
    %c0_927 = arith.constant 0 : index
    %c1_928 = arith.constant 1 : index
    %c16_929 = arith.constant 16 : index
    %1098 = vector.load %arg7[%c3_926, %c0_927, %c1_928, %c16_929] : memref<4x1x12x96xf32, #tpu.memory_space<vmem>>, vector<1x1x8x64xf32>
    %1099 = vector.shape_cast %1098 : vector<1x1x8x64xf32> to vector<8x64xf32>
    %c156 = arith.constant 156 : index
    %c0_930 = arith.constant 0 : index
    %1100 = vector.load %arg2[%c156, %c0_930] : memref<252x64xf32, #tpu.memory_space<vmem>>, vector<1x64xf32>
    %1101 = vector.broadcast %1100 : vector<1x64xf32> to vector<8x64xf32>
    %1102 = arith.mulf %1099, %1101 : vector<8x64xf32>
    %1103 = arith.addf %1097, %1102 : vector<8x64xf32>
    %c2_931 = arith.constant 2 : index
    %c0_932 = arith.constant 0 : index
    %c1_933 = arith.constant 1 : index
    %c24_934 = arith.constant 24 : index
    %1104 = vector.load %arg7[%c2_931, %c0_932, %c1_933, %c24_934] : memref<4x1x12x96xf32, #tpu.memory_space<vmem>>, vector<1x1x8x64xf32>
    %1105 = vector.shape_cast %1104 : vector<1x1x8x64xf32> to vector<8x64xf32>
    %c157 = arith.constant 157 : index
    %c0_935 = arith.constant 0 : index
    %1106 = vector.load %arg2[%c157, %c0_935] : memref<252x64xf32, #tpu.memory_space<vmem>>, vector<1x64xf32>
    %1107 = vector.broadcast %1106 : vector<1x64xf32> to vector<8x64xf32>
    %1108 = arith.mulf %1105, %1107 : vector<8x64xf32>
    %1109 = arith.addf %1103, %1108 : vector<8x64xf32>
    %c0_936 = arith.constant 0 : index
    %c0_937 = arith.constant 0 : index
    %c2_938 = arith.constant 2 : index
    %c8_939 = arith.constant 8 : index
    %1110 = vector.load %arg7[%c0_936, %c0_937, %c2_938, %c8_939] : memref<4x1x12x96xf32, #tpu.memory_space<vmem>>, vector<1x1x8x64xf32>
    %1111 = vector.shape_cast %1110 : vector<1x1x8x64xf32> to vector<8x64xf32>
    %c158 = arith.constant 158 : index
    %c0_940 = arith.constant 0 : index
    %1112 = vector.load %arg2[%c158, %c0_940] : memref<252x64xf32, #tpu.memory_space<vmem>>, vector<1x64xf32>
    %1113 = vector.broadcast %1112 : vector<1x64xf32> to vector<8x64xf32>
    %1114 = arith.mulf %1111, %1113 : vector<8x64xf32>
    %1115 = arith.addf %1109, %1114 : vector<8x64xf32>
    %c1_941 = arith.constant 1 : index
    %c0_942 = arith.constant 0 : index
    %c2_943 = arith.constant 2 : index
    %c8_944 = arith.constant 8 : index
    %1116 = vector.load %arg7[%c1_941, %c0_942, %c2_943, %c8_944] : memref<4x1x12x96xf32, #tpu.memory_space<vmem>>, vector<1x1x8x64xf32>
    %1117 = vector.shape_cast %1116 : vector<1x1x8x64xf32> to vector<8x64xf32>
    %c159 = arith.constant 159 : index
    %c0_945 = arith.constant 0 : index
    %1118 = vector.load %arg2[%c159, %c0_945] : memref<252x64xf32, #tpu.memory_space<vmem>>, vector<1x64xf32>
    %1119 = vector.broadcast %1118 : vector<1x64xf32> to vector<8x64xf32>
    %1120 = arith.mulf %1117, %1119 : vector<8x64xf32>
    %1121 = arith.addf %1115, %1120 : vector<8x64xf32>
    %c0_946 = arith.constant 0 : index
    %c0_947 = arith.constant 0 : index
    %c2_948 = arith.constant 2 : index
    %c16_949 = arith.constant 16 : index
    %1122 = vector.load %arg7[%c0_946, %c0_947, %c2_948, %c16_949] : memref<4x1x12x96xf32, #tpu.memory_space<vmem>>, vector<1x1x8x64xf32>
    %1123 = vector.shape_cast %1122 : vector<1x1x8x64xf32> to vector<8x64xf32>
    %c160 = arith.constant 160 : index
    %c0_950 = arith.constant 0 : index
    %1124 = vector.load %arg2[%c160, %c0_950] : memref<252x64xf32, #tpu.memory_space<vmem>>, vector<1x64xf32>
    %1125 = vector.broadcast %1124 : vector<1x64xf32> to vector<8x64xf32>
    %1126 = arith.mulf %1123, %1125 : vector<8x64xf32>
    %1127 = arith.addf %1121, %1126 : vector<8x64xf32>
    %c1_951 = arith.constant 1 : index
    %c0_952 = arith.constant 0 : index
    %c2_953 = arith.constant 2 : index
    %c16_954 = arith.constant 16 : index
    %1128 = vector.load %arg7[%c1_951, %c0_952, %c2_953, %c16_954] : memref<4x1x12x96xf32, #tpu.memory_space<vmem>>, vector<1x1x8x64xf32>
    %1129 = vector.shape_cast %1128 : vector<1x1x8x64xf32> to vector<8x64xf32>
    %c161 = arith.constant 161 : index
    %c0_955 = arith.constant 0 : index
    %1130 = vector.load %arg2[%c161, %c0_955] : memref<252x64xf32, #tpu.memory_space<vmem>>, vector<1x64xf32>
    %1131 = vector.broadcast %1130 : vector<1x64xf32> to vector<8x64xf32>
    %1132 = arith.mulf %1129, %1131 : vector<8x64xf32>
    %1133 = arith.addf %1127, %1132 : vector<8x64xf32>
    %c0_956 = arith.constant 0 : index
    %c0_957 = arith.constant 0 : index
    %c2_958 = arith.constant 2 : index
    %c24_959 = arith.constant 24 : index
    %1134 = vector.load %arg7[%c0_956, %c0_957, %c2_958, %c24_959] : memref<4x1x12x96xf32, #tpu.memory_space<vmem>>, vector<1x1x8x64xf32>
    %1135 = vector.shape_cast %1134 : vector<1x1x8x64xf32> to vector<8x64xf32>
    %c162 = arith.constant 162 : index
    %c0_960 = arith.constant 0 : index
    %1136 = vector.load %arg2[%c162, %c0_960] : memref<252x64xf32, #tpu.memory_space<vmem>>, vector<1x64xf32>
    %1137 = vector.broadcast %1136 : vector<1x64xf32> to vector<8x64xf32>
    %1138 = arith.mulf %1135, %1137 : vector<8x64xf32>
    %1139 = arith.addf %1133, %1138 : vector<8x64xf32>
    %c2_961 = arith.constant 2 : index
    %c0_962 = arith.constant 0 : index
    %c2_963 = arith.constant 2 : index
    %c8_964 = arith.constant 8 : index
    %1140 = vector.load %arg7[%c2_961, %c0_962, %c2_963, %c8_964] : memref<4x1x12x96xf32, #tpu.memory_space<vmem>>, vector<1x1x8x64xf32>
    %1141 = vector.shape_cast %1140 : vector<1x1x8x64xf32> to vector<8x64xf32>
    %c163 = arith.constant 163 : index
    %c0_965 = arith.constant 0 : index
    %1142 = vector.load %arg2[%c163, %c0_965] : memref<252x64xf32, #tpu.memory_space<vmem>>, vector<1x64xf32>
    %1143 = vector.broadcast %1142 : vector<1x64xf32> to vector<8x64xf32>
    %1144 = arith.mulf %1141, %1143 : vector<8x64xf32>
    %1145 = arith.addf %1139, %1144 : vector<8x64xf32>
    %c3_966 = arith.constant 3 : index
    %c0_967 = arith.constant 0 : index
    %c2_968 = arith.constant 2 : index
    %c8_969 = arith.constant 8 : index
    %1146 = vector.load %arg7[%c3_966, %c0_967, %c2_968, %c8_969] : memref<4x1x12x96xf32, #tpu.memory_space<vmem>>, vector<1x1x8x64xf32>
    %1147 = vector.shape_cast %1146 : vector<1x1x8x64xf32> to vector<8x64xf32>
    %c164 = arith.constant 164 : index
    %c0_970 = arith.constant 0 : index
    %1148 = vector.load %arg2[%c164, %c0_970] : memref<252x64xf32, #tpu.memory_space<vmem>>, vector<1x64xf32>
    %1149 = vector.broadcast %1148 : vector<1x64xf32> to vector<8x64xf32>
    %1150 = arith.mulf %1147, %1149 : vector<8x64xf32>
    %1151 = arith.addf %1145, %1150 : vector<8x64xf32>
    %c2_971 = arith.constant 2 : index
    %c0_972 = arith.constant 0 : index
    %c2_973 = arith.constant 2 : index
    %c16_974 = arith.constant 16 : index
    %1152 = vector.load %arg7[%c2_971, %c0_972, %c2_973, %c16_974] : memref<4x1x12x96xf32, #tpu.memory_space<vmem>>, vector<1x1x8x64xf32>
    %1153 = vector.shape_cast %1152 : vector<1x1x8x64xf32> to vector<8x64xf32>
    %c165 = arith.constant 165 : index
    %c0_975 = arith.constant 0 : index
    %1154 = vector.load %arg2[%c165, %c0_975] : memref<252x64xf32, #tpu.memory_space<vmem>>, vector<1x64xf32>
    %1155 = vector.broadcast %1154 : vector<1x64xf32> to vector<8x64xf32>
    %1156 = arith.mulf %1153, %1155 : vector<8x64xf32>
    %1157 = arith.addf %1151, %1156 : vector<8x64xf32>
    %c3_976 = arith.constant 3 : index
    %c0_977 = arith.constant 0 : index
    %c2_978 = arith.constant 2 : index
    %c16_979 = arith.constant 16 : index
    %1158 = vector.load %arg7[%c3_976, %c0_977, %c2_978, %c16_979] : memref<4x1x12x96xf32, #tpu.memory_space<vmem>>, vector<1x1x8x64xf32>
    %1159 = vector.shape_cast %1158 : vector<1x1x8x64xf32> to vector<8x64xf32>
    %c166 = arith.constant 166 : index
    %c0_980 = arith.constant 0 : index
    %1160 = vector.load %arg2[%c166, %c0_980] : memref<252x64xf32, #tpu.memory_space<vmem>>, vector<1x64xf32>
    %1161 = vector.broadcast %1160 : vector<1x64xf32> to vector<8x64xf32>
    %1162 = arith.mulf %1159, %1161 : vector<8x64xf32>
    %1163 = arith.addf %1157, %1162 : vector<8x64xf32>
    %c2_981 = arith.constant 2 : index
    %c0_982 = arith.constant 0 : index
    %c2_983 = arith.constant 2 : index
    %c24_984 = arith.constant 24 : index
    %1164 = vector.load %arg7[%c2_981, %c0_982, %c2_983, %c24_984] : memref<4x1x12x96xf32, #tpu.memory_space<vmem>>, vector<1x1x8x64xf32>
    %1165 = vector.shape_cast %1164 : vector<1x1x8x64xf32> to vector<8x64xf32>
    %c167 = arith.constant 167 : index
    %c0_985 = arith.constant 0 : index
    %1166 = vector.load %arg2[%c167, %c0_985] : memref<252x64xf32, #tpu.memory_space<vmem>>, vector<1x64xf32>
    %1167 = vector.broadcast %1166 : vector<1x64xf32> to vector<8x64xf32>
    %1168 = arith.mulf %1165, %1167 : vector<8x64xf32>
    %1169 = arith.addf %1163, %1168 : vector<8x64xf32>
    %c0_986 = arith.constant 0 : index
    %c0_987 = arith.constant 0 : index
    %c3_988 = arith.constant 3 : index
    %c8_989 = arith.constant 8 : index
    %1170 = vector.load %arg7[%c0_986, %c0_987, %c3_988, %c8_989] : memref<4x1x12x96xf32, #tpu.memory_space<vmem>>, vector<1x1x8x64xf32>
    %1171 = vector.shape_cast %1170 : vector<1x1x8x64xf32> to vector<8x64xf32>
    %c168 = arith.constant 168 : index
    %c0_990 = arith.constant 0 : index
    %1172 = vector.load %arg2[%c168, %c0_990] : memref<252x64xf32, #tpu.memory_space<vmem>>, vector<1x64xf32>
    %1173 = vector.broadcast %1172 : vector<1x64xf32> to vector<8x64xf32>
    %1174 = arith.mulf %1171, %1173 : vector<8x64xf32>
    %1175 = arith.addf %1169, %1174 : vector<8x64xf32>
    %c1_991 = arith.constant 1 : index
    %c0_992 = arith.constant 0 : index
    %c3_993 = arith.constant 3 : index
    %c8_994 = arith.constant 8 : index
    %1176 = vector.load %arg7[%c1_991, %c0_992, %c3_993, %c8_994] : memref<4x1x12x96xf32, #tpu.memory_space<vmem>>, vector<1x1x8x64xf32>
    %1177 = vector.shape_cast %1176 : vector<1x1x8x64xf32> to vector<8x64xf32>
    %c169 = arith.constant 169 : index
    %c0_995 = arith.constant 0 : index
    %1178 = vector.load %arg2[%c169, %c0_995] : memref<252x64xf32, #tpu.memory_space<vmem>>, vector<1x64xf32>
    %1179 = vector.broadcast %1178 : vector<1x64xf32> to vector<8x64xf32>
    %1180 = arith.mulf %1177, %1179 : vector<8x64xf32>
    %1181 = arith.addf %1175, %1180 : vector<8x64xf32>
    %c0_996 = arith.constant 0 : index
    %c0_997 = arith.constant 0 : index
    %c3_998 = arith.constant 3 : index
    %c16_999 = arith.constant 16 : index
    %1182 = vector.load %arg7[%c0_996, %c0_997, %c3_998, %c16_999] : memref<4x1x12x96xf32, #tpu.memory_space<vmem>>, vector<1x1x8x64xf32>
    %1183 = vector.shape_cast %1182 : vector<1x1x8x64xf32> to vector<8x64xf32>
    %c170 = arith.constant 170 : index
    %c0_1000 = arith.constant 0 : index
    %1184 = vector.load %arg2[%c170, %c0_1000] : memref<252x64xf32, #tpu.memory_space<vmem>>, vector<1x64xf32>
    %1185 = vector.broadcast %1184 : vector<1x64xf32> to vector<8x64xf32>
    %1186 = arith.mulf %1183, %1185 : vector<8x64xf32>
    %1187 = arith.addf %1181, %1186 : vector<8x64xf32>
    %c1_1001 = arith.constant 1 : index
    %c0_1002 = arith.constant 0 : index
    %c3_1003 = arith.constant 3 : index
    %c16_1004 = arith.constant 16 : index
    %1188 = vector.load %arg7[%c1_1001, %c0_1002, %c3_1003, %c16_1004] : memref<4x1x12x96xf32, #tpu.memory_space<vmem>>, vector<1x1x8x64xf32>
    %1189 = vector.shape_cast %1188 : vector<1x1x8x64xf32> to vector<8x64xf32>
    %c171 = arith.constant 171 : index
    %c0_1005 = arith.constant 0 : index
    %1190 = vector.load %arg2[%c171, %c0_1005] : memref<252x64xf32, #tpu.memory_space<vmem>>, vector<1x64xf32>
    %1191 = vector.broadcast %1190 : vector<1x64xf32> to vector<8x64xf32>
    %1192 = arith.mulf %1189, %1191 : vector<8x64xf32>
    %1193 = arith.addf %1187, %1192 : vector<8x64xf32>
    %c0_1006 = arith.constant 0 : index
    %c0_1007 = arith.constant 0 : index
    %c3_1008 = arith.constant 3 : index
    %c24_1009 = arith.constant 24 : index
    %1194 = vector.load %arg7[%c0_1006, %c0_1007, %c3_1008, %c24_1009] : memref<4x1x12x96xf32, #tpu.memory_space<vmem>>, vector<1x1x8x64xf32>
    %1195 = vector.shape_cast %1194 : vector<1x1x8x64xf32> to vector<8x64xf32>
    %c172 = arith.constant 172 : index
    %c0_1010 = arith.constant 0 : index
    %1196 = vector.load %arg2[%c172, %c0_1010] : memref<252x64xf32, #tpu.memory_space<vmem>>, vector<1x64xf32>
    %1197 = vector.broadcast %1196 : vector<1x64xf32> to vector<8x64xf32>
    %1198 = arith.mulf %1195, %1197 : vector<8x64xf32>
    %1199 = arith.addf %1193, %1198 : vector<8x64xf32>
    %c7_1011 = arith.constant 7 : index
    %c0_1012 = arith.constant 0 : index
    %c0_1013 = arith.constant 0 : index
    %1200 = vector.load %arg3[%c7_1011, %c0_1012, %c0_1013] : memref<15x64x64xf32, #tpu.memory_space<vmem>>, vector<1x64x64xf32>
    %1201 = vector.shape_cast %1200 : vector<1x64x64xf32> to vector<64x64xf32>
    %c7_1014 = arith.constant 7 : index
    %c0_1015 = arith.constant 0 : index
    %1202 = vector.load %arg4[%c7_1014, %c0_1015] : memref<15x64xf32, #tpu.memory_space<vmem>>, vector<1x64xf32>
    %cst_1016 = arith.constant dense<0.000000e+00> : vector<8x64xf32>
    %1203 = tpu.matmul %1199, %1201, %cst_1016 {dimension_numbers = #tpu.dot_dimension_numbers<[1], [0], [0], [1], [0, 0, 1, 1], [], []>} : vector<8x64xf32>, vector<64x64xf32>, vector<8x64xf32> -> vector<8x64xf32>
    %1204 = vector.broadcast %1202 : vector<1x64xf32> to vector<8x64xf32>
    %1205 = arith.addf %1203, %1204 : vector<8x64xf32>
    %cst_1017 = arith.constant 0.000000e+00 : f32
    %1206 = vector.broadcast %cst_1017 : f32 to vector<8x64xf32>
    %1207 = arith.maximumf %1205, %1206 : vector<8x64xf32>
    %c0_1018 = arith.constant 0 : index
    %c3_1019 = arith.constant 3 : index
    %c24_1020 = arith.constant 24 : index
    %1208 = vector.load %arg9[%c0_1018, %c3_1019, %c24_1020] : memref<1x14x112xf32, #tpu.memory_space<vmem>>, vector<1x8x64xf32>
    %1209 = vector.shape_cast %1208 : vector<1x8x64xf32> to vector<8x64xf32>
    %1210 = vector.shape_cast %1207 : vector<8x64xf32> to vector<1x8x64xf32>
    tpu.vector_store %arg9[%c0_1018, %c3_1019, %c24_1020], %1210 {strides = array<i32>} : memref<1x14x112xf32, #tpu.memory_space<vmem>>, vector<1x8x64xf32>,
    %c0_1021 = arith.constant 0 : index
    %c1_1022 = arith.constant 1 : index
    %c8_1023 = arith.constant 8 : index
    %1211 = vector.load %arg9[%c0_1021, %c1_1022, %c8_1023] : memref<1x14x112xf32, #tpu.memory_space<vmem>>, vector<1x8x64xf32>
    %1212 = vector.shape_cast %1211 : vector<1x8x64xf32> to vector<8x64xf32>
    %c173 = arith.constant 173 : index
    %c0_1024 = arith.constant 0 : index
    %1213 = vector.load %arg2[%c173, %c0_1024] : memref<252x64xf32, #tpu.memory_space<vmem>>, vector<1x64xf32>
    %1214 = vector.broadcast %1213 : vector<1x64xf32> to vector<8x64xf32>
    %1215 = arith.mulf %1212, %1214 : vector<8x64xf32>
    %c0_1025 = arith.constant 0 : index
    %c1_1026 = arith.constant 1 : index
    %c16_1027 = arith.constant 16 : index
    %1216 = vector.load %arg9[%c0_1025, %c1_1026, %c16_1027] : memref<1x14x112xf32, #tpu.memory_space<vmem>>, vector<1x8x64xf32>
    %1217 = vector.shape_cast %1216 : vector<1x8x64xf32> to vector<8x64xf32>
    %c174 = arith.constant 174 : index
    %c0_1028 = arith.constant 0 : index
    %1218 = vector.load %arg2[%c174, %c0_1028] : memref<252x64xf32, #tpu.memory_space<vmem>>, vector<1x64xf32>
    %1219 = vector.broadcast %1218 : vector<1x64xf32> to vector<8x64xf32>
    %1220 = arith.mulf %1217, %1219 : vector<8x64xf32>
    %1221 = arith.addf %1215, %1220 : vector<8x64xf32>
    %c0_1029 = arith.constant 0 : index
    %c1_1030 = arith.constant 1 : index
    %c24_1031 = arith.constant 24 : index
    %1222 = vector.load %arg9[%c0_1029, %c1_1030, %c24_1031] : memref<1x14x112xf32, #tpu.memory_space<vmem>>, vector<1x8x64xf32>
    %1223 = vector.shape_cast %1222 : vector<1x8x64xf32> to vector<8x64xf32>
    %c175 = arith.constant 175 : index
    %c0_1032 = arith.constant 0 : index
    %1224 = vector.load %arg2[%c175, %c0_1032] : memref<252x64xf32, #tpu.memory_space<vmem>>, vector<1x64xf32>
    %1225 = vector.broadcast %1224 : vector<1x64xf32> to vector<8x64xf32>
    %1226 = arith.mulf %1223, %1225 : vector<8x64xf32>
    %1227 = arith.addf %1221, %1226 : vector<8x64xf32>
    %c0_1033 = arith.constant 0 : index
    %c1_1034 = arith.constant 1 : index
    %c32_1035 = arith.constant 32 : index
    %1228 = vector.load %arg9[%c0_1033, %c1_1034, %c32_1035] : memref<1x14x112xf32, #tpu.memory_space<vmem>>, vector<1x8x64xf32>
    %1229 = vector.shape_cast %1228 : vector<1x8x64xf32> to vector<8x64xf32>
    %c176 = arith.constant 176 : index
    %c0_1036 = arith.constant 0 : index
    %1230 = vector.load %arg2[%c176, %c0_1036] : memref<252x64xf32, #tpu.memory_space<vmem>>, vector<1x64xf32>
    %1231 = vector.broadcast %1230 : vector<1x64xf32> to vector<8x64xf32>
    %1232 = arith.mulf %1229, %1231 : vector<8x64xf32>
    %1233 = arith.addf %1227, %1232 : vector<8x64xf32>
    %c0_1037 = arith.constant 0 : index
    %c1_1038 = arith.constant 1 : index
    %c40_1039 = arith.constant 40 : index
    %1234 = vector.load %arg9[%c0_1037, %c1_1038, %c40_1039] : memref<1x14x112xf32, #tpu.memory_space<vmem>>, vector<1x8x64xf32>
    %1235 = vector.shape_cast %1234 : vector<1x8x64xf32> to vector<8x64xf32>
    %c177 = arith.constant 177 : index
    %c0_1040 = arith.constant 0 : index
    %1236 = vector.load %arg2[%c177, %c0_1040] : memref<252x64xf32, #tpu.memory_space<vmem>>, vector<1x64xf32>
    %1237 = vector.broadcast %1236 : vector<1x64xf32> to vector<8x64xf32>
    %1238 = arith.mulf %1235, %1237 : vector<8x64xf32>
    %1239 = arith.addf %1233, %1238 : vector<8x64xf32>
    %c0_1041 = arith.constant 0 : index
    %c2_1042 = arith.constant 2 : index
    %c8_1043 = arith.constant 8 : index
    %1240 = vector.load %arg9[%c0_1041, %c2_1042, %c8_1043] : memref<1x14x112xf32, #tpu.memory_space<vmem>>, vector<1x8x64xf32>
    %1241 = vector.shape_cast %1240 : vector<1x8x64xf32> to vector<8x64xf32>
    %c178 = arith.constant 178 : index
    %c0_1044 = arith.constant 0 : index
    %1242 = vector.load %arg2[%c178, %c0_1044] : memref<252x64xf32, #tpu.memory_space<vmem>>, vector<1x64xf32>
    %1243 = vector.broadcast %1242 : vector<1x64xf32> to vector<8x64xf32>
    %1244 = arith.mulf %1241, %1243 : vector<8x64xf32>
    %1245 = arith.addf %1239, %1244 : vector<8x64xf32>
    %c0_1045 = arith.constant 0 : index
    %c2_1046 = arith.constant 2 : index
    %c16_1047 = arith.constant 16 : index
    %1246 = vector.load %arg9[%c0_1045, %c2_1046, %c16_1047] : memref<1x14x112xf32, #tpu.memory_space<vmem>>, vector<1x8x64xf32>
    %1247 = vector.shape_cast %1246 : vector<1x8x64xf32> to vector<8x64xf32>
    %c179 = arith.constant 179 : index
    %c0_1048 = arith.constant 0 : index
    %1248 = vector.load %arg2[%c179, %c0_1048] : memref<252x64xf32, #tpu.memory_space<vmem>>, vector<1x64xf32>
    %1249 = vector.broadcast %1248 : vector<1x64xf32> to vector<8x64xf32>
    %1250 = arith.mulf %1247, %1249 : vector<8x64xf32>
    %1251 = arith.addf %1245, %1250 : vector<8x64xf32>
    %c0_1049 = arith.constant 0 : index
    %c2_1050 = arith.constant 2 : index
    %c24_1051 = arith.constant 24 : index
    %1252 = vector.load %arg9[%c0_1049, %c2_1050, %c24_1051] : memref<1x14x112xf32, #tpu.memory_space<vmem>>, vector<1x8x64xf32>
    %1253 = vector.shape_cast %1252 : vector<1x8x64xf32> to vector<8x64xf32>
    %c180 = arith.constant 180 : index
    %c0_1052 = arith.constant 0 : index
    %1254 = vector.load %arg2[%c180, %c0_1052] : memref<252x64xf32, #tpu.memory_space<vmem>>, vector<1x64xf32>
    %1255 = vector.broadcast %1254 : vector<1x64xf32> to vector<8x64xf32>
    %1256 = arith.mulf %1253, %1255 : vector<8x64xf32>
    %1257 = arith.addf %1251, %1256 : vector<8x64xf32>
    %c0_1053 = arith.constant 0 : index
    %c2_1054 = arith.constant 2 : index
    %c32_1055 = arith.constant 32 : index
    %1258 = vector.load %arg9[%c0_1053, %c2_1054, %c32_1055] : memref<1x14x112xf32, #tpu.memory_space<vmem>>, vector<1x8x64xf32>
    %1259 = vector.shape_cast %1258 : vector<1x8x64xf32> to vector<8x64xf32>
    %c181 = arith.constant 181 : index
    %c0_1056 = arith.constant 0 : index
    %1260 = vector.load %arg2[%c181, %c0_1056] : memref<252x64xf32, #tpu.memory_space<vmem>>, vector<1x64xf32>
    %1261 = vector.broadcast %1260 : vector<1x64xf32> to vector<8x64xf32>
    %1262 = arith.mulf %1259, %1261 : vector<8x64xf32>
    %1263 = arith.addf %1257, %1262 : vector<8x64xf32>
    %c0_1057 = arith.constant 0 : index
    %c2_1058 = arith.constant 2 : index
    %c40_1059 = arith.constant 40 : index
    %1264 = vector.load %arg9[%c0_1057, %c2_1058, %c40_1059] : memref<1x14x112xf32, #tpu.memory_space<vmem>>, vector<1x8x64xf32>
    %1265 = vector.shape_cast %1264 : vector<1x8x64xf32> to vector<8x64xf32>
    %c182 = arith.constant 182 : index
    %c0_1060 = arith.constant 0 : index
    %1266 = vector.load %arg2[%c182, %c0_1060] : memref<252x64xf32, #tpu.memory_space<vmem>>, vector<1x64xf32>
    %1267 = vector.broadcast %1266 : vector<1x64xf32> to vector<8x64xf32>
    %1268 = arith.mulf %1265, %1267 : vector<8x64xf32>
    %1269 = arith.addf %1263, %1268 : vector<8x64xf32>
    %c0_1061 = arith.constant 0 : index
    %c3_1062 = arith.constant 3 : index
    %c8_1063 = arith.constant 8 : index
    %1270 = vector.load %arg9[%c0_1061, %c3_1062, %c8_1063] : memref<1x14x112xf32, #tpu.memory_space<vmem>>, vector<1x8x64xf32>
    %1271 = vector.shape_cast %1270 : vector<1x8x64xf32> to vector<8x64xf32>
    %c183 = arith.constant 183 : index
    %c0_1064 = arith.constant 0 : index
    %1272 = vector.load %arg2[%c183, %c0_1064] : memref<252x64xf32, #tpu.memory_space<vmem>>, vector<1x64xf32>
    %1273 = vector.broadcast %1272 : vector<1x64xf32> to vector<8x64xf32>
    %1274 = arith.mulf %1271, %1273 : vector<8x64xf32>
    %1275 = arith.addf %1269, %1274 : vector<8x64xf32>
    %c0_1065 = arith.constant 0 : index
    %c3_1066 = arith.constant 3 : index
    %c16_1067 = arith.constant 16 : index
    %1276 = vector.load %arg9[%c0_1065, %c3_1066, %c16_1067] : memref<1x14x112xf32, #tpu.memory_space<vmem>>, vector<1x8x64xf32>
    %1277 = vector.shape_cast %1276 : vector<1x8x64xf32> to vector<8x64xf32>
    %c184 = arith.constant 184 : index
    %c0_1068 = arith.constant 0 : index
    %1278 = vector.load %arg2[%c184, %c0_1068] : memref<252x64xf32, #tpu.memory_space<vmem>>, vector<1x64xf32>
    %1279 = vector.broadcast %1278 : vector<1x64xf32> to vector<8x64xf32>
    %1280 = arith.mulf %1277, %1279 : vector<8x64xf32>
    %1281 = arith.addf %1275, %1280 : vector<8x64xf32>
    %c0_1069 = arith.constant 0 : index
    %c3_1070 = arith.constant 3 : index
    %c24_1071 = arith.constant 24 : index
    %1282 = vector.load %arg9[%c0_1069, %c3_1070, %c24_1071] : memref<1x14x112xf32, #tpu.memory_space<vmem>>, vector<1x8x64xf32>
    %1283 = vector.shape_cast %1282 : vector<1x8x64xf32> to vector<8x64xf32>
    %c185 = arith.constant 185 : index
    %c0_1072 = arith.constant 0 : index
    %1284 = vector.load %arg2[%c185, %c0_1072] : memref<252x64xf32, #tpu.memory_space<vmem>>, vector<1x64xf32>
    %1285 = vector.broadcast %1284 : vector<1x64xf32> to vector<8x64xf32>
    %1286 = arith.mulf %1283, %1285 : vector<8x64xf32>
    %1287 = arith.addf %1281, %1286 : vector<8x64xf32>
    %c0_1073 = arith.constant 0 : index
    %c3_1074 = arith.constant 3 : index
    %c32_1075 = arith.constant 32 : index
    %1288 = vector.load %arg9[%c0_1073, %c3_1074, %c32_1075] : memref<1x14x112xf32, #tpu.memory_space<vmem>>, vector<1x8x64xf32>
    %1289 = vector.shape_cast %1288 : vector<1x8x64xf32> to vector<8x64xf32>
    %c186 = arith.constant 186 : index
    %c0_1076 = arith.constant 0 : index
    %1290 = vector.load %arg2[%c186, %c0_1076] : memref<252x64xf32, #tpu.memory_space<vmem>>, vector<1x64xf32>
    %1291 = vector.broadcast %1290 : vector<1x64xf32> to vector<8x64xf32>
    %1292 = arith.mulf %1289, %1291 : vector<8x64xf32>
    %1293 = arith.addf %1287, %1292 : vector<8x64xf32>
    %c0_1077 = arith.constant 0 : index
    %c3_1078 = arith.constant 3 : index
    %c40_1079 = arith.constant 40 : index
    %1294 = vector.load %arg9[%c0_1077, %c3_1078, %c40_1079] : memref<1x14x112xf32, #tpu.memory_space<vmem>>, vector<1x8x64xf32>
    %1295 = vector.shape_cast %1294 : vector<1x8x64xf32> to vector<8x64xf32>
    %c187 = arith.constant 187 : index
    %c0_1080 = arith.constant 0 : index
    %1296 = vector.load %arg2[%c187, %c0_1080] : memref<252x64xf32, #tpu.memory_space<vmem>>, vector<1x64xf32>
    %1297 = vector.broadcast %1296 : vector<1x64xf32> to vector<8x64xf32>
    %1298 = arith.mulf %1295, %1297 : vector<8x64xf32>
    %1299 = arith.addf %1293, %1298 : vector<8x64xf32>
    %c0_1081 = arith.constant 0 : index
    %c4_1082 = arith.constant 4 : index
    %c8_1083 = arith.constant 8 : index
    %1300 = vector.load %arg9[%c0_1081, %c4_1082, %c8_1083] : memref<1x14x112xf32, #tpu.memory_space<vmem>>, vector<1x8x64xf32>
    %1301 = vector.shape_cast %1300 : vector<1x8x64xf32> to vector<8x64xf32>
    %c188 = arith.constant 188 : index
    %c0_1084 = arith.constant 0 : index
    %1302 = vector.load %arg2[%c188, %c0_1084] : memref<252x64xf32, #tpu.memory_space<vmem>>, vector<1x64xf32>
    %1303 = vector.broadcast %1302 : vector<1x64xf32> to vector<8x64xf32>
    %1304 = arith.mulf %1301, %1303 : vector<8x64xf32>
    %1305 = arith.addf %1299, %1304 : vector<8x64xf32>
    %c0_1085 = arith.constant 0 : index
    %c4_1086 = arith.constant 4 : index
    %c16_1087 = arith.constant 16 : index
    %1306 = vector.load %arg9[%c0_1085, %c4_1086, %c16_1087] : memref<1x14x112xf32, #tpu.memory_space<vmem>>, vector<1x8x64xf32>
    %1307 = vector.shape_cast %1306 : vector<1x8x64xf32> to vector<8x64xf32>
    %c189 = arith.constant 189 : index
    %c0_1088 = arith.constant 0 : index
    %1308 = vector.load %arg2[%c189, %c0_1088] : memref<252x64xf32, #tpu.memory_space<vmem>>, vector<1x64xf32>
    %1309 = vector.broadcast %1308 : vector<1x64xf32> to vector<8x64xf32>
    %1310 = arith.mulf %1307, %1309 : vector<8x64xf32>
    %1311 = arith.addf %1305, %1310 : vector<8x64xf32>
    %c0_1089 = arith.constant 0 : index
    %c4_1090 = arith.constant 4 : index
    %c24_1091 = arith.constant 24 : index
    %1312 = vector.load %arg9[%c0_1089, %c4_1090, %c24_1091] : memref<1x14x112xf32, #tpu.memory_space<vmem>>, vector<1x8x64xf32>
    %1313 = vector.shape_cast %1312 : vector<1x8x64xf32> to vector<8x64xf32>
    %c190 = arith.constant 190 : index
    %c0_1092 = arith.constant 0 : index
    %1314 = vector.load %arg2[%c190, %c0_1092] : memref<252x64xf32, #tpu.memory_space<vmem>>, vector<1x64xf32>
    %1315 = vector.broadcast %1314 : vector<1x64xf32> to vector<8x64xf32>
    %1316 = arith.mulf %1313, %1315 : vector<8x64xf32>
    %1317 = arith.addf %1311, %1316 : vector<8x64xf32>
    %c0_1093 = arith.constant 0 : index
    %c4_1094 = arith.constant 4 : index
    %c32_1095 = arith.constant 32 : index
    %1318 = vector.load %arg9[%c0_1093, %c4_1094, %c32_1095] : memref<1x14x112xf32, #tpu.memory_space<vmem>>, vector<1x8x64xf32>
    %1319 = vector.shape_cast %1318 : vector<1x8x64xf32> to vector<8x64xf32>
    %c191 = arith.constant 191 : index
    %c0_1096 = arith.constant 0 : index
    %1320 = vector.load %arg2[%c191, %c0_1096] : memref<252x64xf32, #tpu.memory_space<vmem>>, vector<1x64xf32>
    %1321 = vector.broadcast %1320 : vector<1x64xf32> to vector<8x64xf32>
    %1322 = arith.mulf %1319, %1321 : vector<8x64xf32>
    %1323 = arith.addf %1317, %1322 : vector<8x64xf32>
    %c0_1097 = arith.constant 0 : index
    %c4_1098 = arith.constant 4 : index
    %c40_1099 = arith.constant 40 : index
    %1324 = vector.load %arg9[%c0_1097, %c4_1098, %c40_1099] : memref<1x14x112xf32, #tpu.memory_space<vmem>>, vector<1x8x64xf32>
    %1325 = vector.shape_cast %1324 : vector<1x8x64xf32> to vector<8x64xf32>
    %c192 = arith.constant 192 : index
    %c0_1100 = arith.constant 0 : index
    %1326 = vector.load %arg2[%c192, %c0_1100] : memref<252x64xf32, #tpu.memory_space<vmem>>, vector<1x64xf32>
    %1327 = vector.broadcast %1326 : vector<1x64xf32> to vector<8x64xf32>
    %1328 = arith.mulf %1325, %1327 : vector<8x64xf32>
    %1329 = arith.addf %1323, %1328 : vector<8x64xf32>
    %c0_1101 = arith.constant 0 : index
    %c5_1102 = arith.constant 5 : index
    %c8_1103 = arith.constant 8 : index
    %1330 = vector.load %arg9[%c0_1101, %c5_1102, %c8_1103] : memref<1x14x112xf32, #tpu.memory_space<vmem>>, vector<1x8x64xf32>
    %1331 = vector.shape_cast %1330 : vector<1x8x64xf32> to vector<8x64xf32>
    %c193 = arith.constant 193 : index
    %c0_1104 = arith.constant 0 : index
    %1332 = vector.load %arg2[%c193, %c0_1104] : memref<252x64xf32, #tpu.memory_space<vmem>>, vector<1x64xf32>
    %1333 = vector.broadcast %1332 : vector<1x64xf32> to vector<8x64xf32>
    %1334 = arith.mulf %1331, %1333 : vector<8x64xf32>
    %1335 = arith.addf %1329, %1334 : vector<8x64xf32>
    %c0_1105 = arith.constant 0 : index
    %c5_1106 = arith.constant 5 : index
    %c16_1107 = arith.constant 16 : index
    %1336 = vector.load %arg9[%c0_1105, %c5_1106, %c16_1107] : memref<1x14x112xf32, #tpu.memory_space<vmem>>, vector<1x8x64xf32>
    %1337 = vector.shape_cast %1336 : vector<1x8x64xf32> to vector<8x64xf32>
    %c194 = arith.constant 194 : index
    %c0_1108 = arith.constant 0 : index
    %1338 = vector.load %arg2[%c194, %c0_1108] : memref<252x64xf32, #tpu.memory_space<vmem>>, vector<1x64xf32>
    %1339 = vector.broadcast %1338 : vector<1x64xf32> to vector<8x64xf32>
    %1340 = arith.mulf %1337, %1339 : vector<8x64xf32>
    %1341 = arith.addf %1335, %1340 : vector<8x64xf32>
    %c0_1109 = arith.constant 0 : index
    %c5_1110 = arith.constant 5 : index
    %c24_1111 = arith.constant 24 : index
    %1342 = vector.load %arg9[%c0_1109, %c5_1110, %c24_1111] : memref<1x14x112xf32, #tpu.memory_space<vmem>>, vector<1x8x64xf32>
    %1343 = vector.shape_cast %1342 : vector<1x8x64xf32> to vector<8x64xf32>
    %c195 = arith.constant 195 : index
    %c0_1112 = arith.constant 0 : index
    %1344 = vector.load %arg2[%c195, %c0_1112] : memref<252x64xf32, #tpu.memory_space<vmem>>, vector<1x64xf32>
    %1345 = vector.broadcast %1344 : vector<1x64xf32> to vector<8x64xf32>
    %1346 = arith.mulf %1343, %1345 : vector<8x64xf32>
    %1347 = arith.addf %1341, %1346 : vector<8x64xf32>
    %c0_1113 = arith.constant 0 : index
    %c5_1114 = arith.constant 5 : index
    %c32_1115 = arith.constant 32 : index
    %1348 = vector.load %arg9[%c0_1113, %c5_1114, %c32_1115] : memref<1x14x112xf32, #tpu.memory_space<vmem>>, vector<1x8x64xf32>
    %1349 = vector.shape_cast %1348 : vector<1x8x64xf32> to vector<8x64xf32>
    %c196 = arith.constant 196 : index
    %c0_1116 = arith.constant 0 : index
    %1350 = vector.load %arg2[%c196, %c0_1116] : memref<252x64xf32, #tpu.memory_space<vmem>>, vector<1x64xf32>
    %1351 = vector.broadcast %1350 : vector<1x64xf32> to vector<8x64xf32>
    %1352 = arith.mulf %1349, %1351 : vector<8x64xf32>
    %1353 = arith.addf %1347, %1352 : vector<8x64xf32>
    %c0_1117 = arith.constant 0 : index
    %c5_1118 = arith.constant 5 : index
    %c40_1119 = arith.constant 40 : index
    %1354 = vector.load %arg9[%c0_1117, %c5_1118, %c40_1119] : memref<1x14x112xf32, #tpu.memory_space<vmem>>, vector<1x8x64xf32>
    %1355 = vector.shape_cast %1354 : vector<1x8x64xf32> to vector<8x64xf32>
    %c197 = arith.constant 197 : index
    %c0_1120 = arith.constant 0 : index
    %1356 = vector.load %arg2[%c197, %c0_1120] : memref<252x64xf32, #tpu.memory_space<vmem>>, vector<1x64xf32>
    %1357 = vector.broadcast %1356 : vector<1x64xf32> to vector<8x64xf32>
    %1358 = arith.mulf %1355, %1357 : vector<8x64xf32>
    %1359 = arith.addf %1353, %1358 : vector<8x64xf32>
    %c8_1121 = arith.constant 8 : index
    %c0_1122 = arith.constant 0 : index
    %c0_1123 = arith.constant 0 : index
    %1360 = vector.load %arg3[%c8_1121, %c0_1122, %c0_1123] : memref<15x64x64xf32, #tpu.memory_space<vmem>>, vector<1x64x64xf32>
    %1361 = vector.shape_cast %1360 : vector<1x64x64xf32> to vector<64x64xf32>
    %c8_1124 = arith.constant 8 : index
    %c0_1125 = arith.constant 0 : index
    %1362 = vector.load %arg4[%c8_1124, %c0_1125] : memref<15x64xf32, #tpu.memory_space<vmem>>, vector<1x64xf32>
    %cst_1126 = arith.constant dense<0.000000e+00> : vector<8x64xf32>
    %1363 = tpu.matmul %1359, %1361, %cst_1126 {dimension_numbers = #tpu.dot_dimension_numbers<[1], [0], [0], [1], [0, 0, 1, 1], [], []>} : vector<8x64xf32>, vector<64x64xf32>, vector<8x64xf32> -> vector<8x64xf32>
    %1364 = vector.broadcast %1362 : vector<1x64xf32> to vector<8x64xf32>
    %1365 = arith.addf %1363, %1364 : vector<8x64xf32>
    %c3_1127 = arith.constant 3 : index
    %c0_1128 = arith.constant 0 : index
    %c1_1129 = arith.constant 1 : index
    %c8_1130 = arith.constant 8 : index
    %1366 = vector.load %arg7[%c3_1127, %c0_1128, %c1_1129, %c8_1130] : memref<4x1x12x96xf32, #tpu.memory_space<vmem>>, vector<1x1x8x64xf32>
    %1367 = vector.shape_cast %1366 : vector<1x1x8x64xf32> to vector<8x64xf32>
    %c198 = arith.constant 198 : index
    %c0_1131 = arith.constant 0 : index
    %1368 = vector.load %arg2[%c198, %c0_1131] : memref<252x64xf32, #tpu.memory_space<vmem>>, vector<1x64xf32>
    %1369 = vector.broadcast %1368 : vector<1x64xf32> to vector<8x64xf32>
    %1370 = arith.mulf %1367, %1369 : vector<8x64xf32>
    %c2_1132 = arith.constant 2 : index
    %c0_1133 = arith.constant 0 : index
    %c1_1134 = arith.constant 1 : index
    %c16_1135 = arith.constant 16 : index
    %1371 = vector.load %arg7[%c2_1132, %c0_1133, %c1_1134, %c16_1135] : memref<4x1x12x96xf32, #tpu.memory_space<vmem>>, vector<1x1x8x64xf32>
    %1372 = vector.shape_cast %1371 : vector<1x1x8x64xf32> to vector<8x64xf32>
    %c199 = arith.constant 199 : index
    %c0_1136 = arith.constant 0 : index
    %1373 = vector.load %arg2[%c199, %c0_1136] : memref<252x64xf32, #tpu.memory_space<vmem>>, vector<1x64xf32>
    %1374 = vector.broadcast %1373 : vector<1x64xf32> to vector<8x64xf32>
    %1375 = arith.mulf %1372, %1374 : vector<8x64xf32>
    %1376 = arith.addf %1370, %1375 : vector<8x64xf32>
    %c3_1137 = arith.constant 3 : index
    %c0_1138 = arith.constant 0 : index
    %c1_1139 = arith.constant 1 : index
    %c16_1140 = arith.constant 16 : index
    %1377 = vector.load %arg7[%c3_1137, %c0_1138, %c1_1139, %c16_1140] : memref<4x1x12x96xf32, #tpu.memory_space<vmem>>, vector<1x1x8x64xf32>
    %1378 = vector.shape_cast %1377 : vector<1x1x8x64xf32> to vector<8x64xf32>
    %c200 = arith.constant 200 : index
    %c0_1141 = arith.constant 0 : index
    %1379 = vector.load %arg2[%c200, %c0_1141] : memref<252x64xf32, #tpu.memory_space<vmem>>, vector<1x64xf32>
    %1380 = vector.broadcast %1379 : vector<1x64xf32> to vector<8x64xf32>
    %1381 = arith.mulf %1378, %1380 : vector<8x64xf32>
    %1382 = arith.addf %1376, %1381 : vector<8x64xf32>
    %c1_1142 = arith.constant 1 : index
    %c0_1143 = arith.constant 0 : index
    %c2_1144 = arith.constant 2 : index
    %c8_1145 = arith.constant 8 : index
    %1383 = vector.load %arg7[%c1_1142, %c0_1143, %c2_1144, %c8_1145] : memref<4x1x12x96xf32, #tpu.memory_space<vmem>>, vector<1x1x8x64xf32>
    %1384 = vector.shape_cast %1383 : vector<1x1x8x64xf32> to vector<8x64xf32>
    %c201 = arith.constant 201 : index
    %c0_1146 = arith.constant 0 : index
    %1385 = vector.load %arg2[%c201, %c0_1146] : memref<252x64xf32, #tpu.memory_space<vmem>>, vector<1x64xf32>
    %1386 = vector.broadcast %1385 : vector<1x64xf32> to vector<8x64xf32>
    %1387 = arith.mulf %1384, %1386 : vector<8x64xf32>
    %1388 = arith.addf %1382, %1387 : vector<8x64xf32>
    %c0_1147 = arith.constant 0 : index
    %c0_1148 = arith.constant 0 : index
    %c2_1149 = arith.constant 2 : index
    %c16_1150 = arith.constant 16 : index
    %1389 = vector.load %arg7[%c0_1147, %c0_1148, %c2_1149, %c16_1150] : memref<4x1x12x96xf32, #tpu.memory_space<vmem>>, vector<1x1x8x64xf32>
    %1390 = vector.shape_cast %1389 : vector<1x1x8x64xf32> to vector<8x64xf32>
    %c202 = arith.constant 202 : index
    %c0_1151 = arith.constant 0 : index
    %1391 = vector.load %arg2[%c202, %c0_1151] : memref<252x64xf32, #tpu.memory_space<vmem>>, vector<1x64xf32>
    %1392 = vector.broadcast %1391 : vector<1x64xf32> to vector<8x64xf32>
    %1393 = arith.mulf %1390, %1392 : vector<8x64xf32>
    %1394 = arith.addf %1388, %1393 : vector<8x64xf32>
    %c1_1152 = arith.constant 1 : index
    %c0_1153 = arith.constant 0 : index
    %c2_1154 = arith.constant 2 : index
    %c16_1155 = arith.constant 16 : index
    %1395 = vector.load %arg7[%c1_1152, %c0_1153, %c2_1154, %c16_1155] : memref<4x1x12x96xf32, #tpu.memory_space<vmem>>, vector<1x1x8x64xf32>
    %1396 = vector.shape_cast %1395 : vector<1x1x8x64xf32> to vector<8x64xf32>
    %c203 = arith.constant 203 : index
    %c0_1156 = arith.constant 0 : index
    %1397 = vector.load %arg2[%c203, %c0_1156] : memref<252x64xf32, #tpu.memory_space<vmem>>, vector<1x64xf32>
    %1398 = vector.broadcast %1397 : vector<1x64xf32> to vector<8x64xf32>
    %1399 = arith.mulf %1396, %1398 : vector<8x64xf32>
    %1400 = arith.addf %1394, %1399 : vector<8x64xf32>
    %c3_1157 = arith.constant 3 : index
    %c0_1158 = arith.constant 0 : index
    %c2_1159 = arith.constant 2 : index
    %c8_1160 = arith.constant 8 : index
    %1401 = vector.load %arg7[%c3_1157, %c0_1158, %c2_1159, %c8_1160] : memref<4x1x12x96xf32, #tpu.memory_space<vmem>>, vector<1x1x8x64xf32>
    %1402 = vector.shape_cast %1401 : vector<1x1x8x64xf32> to vector<8x64xf32>
    %c204 = arith.constant 204 : index
    %c0_1161 = arith.constant 0 : index
    %1403 = vector.load %arg2[%c204, %c0_1161] : memref<252x64xf32, #tpu.memory_space<vmem>>, vector<1x64xf32>
    %1404 = vector.broadcast %1403 : vector<1x64xf32> to vector<8x64xf32>
    %1405 = arith.mulf %1402, %1404 : vector<8x64xf32>
    %1406 = arith.addf %1400, %1405 : vector<8x64xf32>
    %c2_1162 = arith.constant 2 : index
    %c0_1163 = arith.constant 0 : index
    %c2_1164 = arith.constant 2 : index
    %c16_1165 = arith.constant 16 : index
    %1407 = vector.load %arg7[%c2_1162, %c0_1163, %c2_1164, %c16_1165] : memref<4x1x12x96xf32, #tpu.memory_space<vmem>>, vector<1x1x8x64xf32>
    %1408 = vector.shape_cast %1407 : vector<1x1x8x64xf32> to vector<8x64xf32>
    %c205 = arith.constant 205 : index
    %c0_1166 = arith.constant 0 : index
    %1409 = vector.load %arg2[%c205, %c0_1166] : memref<252x64xf32, #tpu.memory_space<vmem>>, vector<1x64xf32>
    %1410 = vector.broadcast %1409 : vector<1x64xf32> to vector<8x64xf32>
    %1411 = arith.mulf %1408, %1410 : vector<8x64xf32>
    %1412 = arith.addf %1406, %1411 : vector<8x64xf32>
    %c3_1167 = arith.constant 3 : index
    %c0_1168 = arith.constant 0 : index
    %c2_1169 = arith.constant 2 : index
    %c16_1170 = arith.constant 16 : index
    %1413 = vector.load %arg7[%c3_1167, %c0_1168, %c2_1169, %c16_1170] : memref<4x1x12x96xf32, #tpu.memory_space<vmem>>, vector<1x1x8x64xf32>
    %1414 = vector.shape_cast %1413 : vector<1x1x8x64xf32> to vector<8x64xf32>
    %c206 = arith.constant 206 : index
    %c0_1171 = arith.constant 0 : index
    %1415 = vector.load %arg2[%c206, %c0_1171] : memref<252x64xf32, #tpu.memory_space<vmem>>, vector<1x64xf32>
    %1416 = vector.broadcast %1415 : vector<1x64xf32> to vector<8x64xf32>
    %1417 = arith.mulf %1414, %1416 : vector<8x64xf32>
    %1418 = arith.addf %1412, %1417 : vector<8x64xf32>
    %c9_1172 = arith.constant 9 : index
    %c0_1173 = arith.constant 0 : index
    %c0_1174 = arith.constant 0 : index
    %1419 = vector.load %arg3[%c9_1172, %c0_1173, %c0_1174] : memref<15x64x64xf32, #tpu.memory_space<vmem>>, vector<1x64x64xf32>
    %1420 = vector.shape_cast %1419 : vector<1x64x64xf32> to vector<64x64xf32>
    %c9_1175 = arith.constant 9 : index
    %c0_1176 = arith.constant 0 : index
    %1421 = vector.load %arg4[%c9_1175, %c0_1176] : memref<15x64xf32, #tpu.memory_space<vmem>>, vector<1x64xf32>
    %cst_1177 = arith.constant dense<0.000000e+00> : vector<8x64xf32>
    %1422 = tpu.matmul %1418, %1420, %cst_1177 {dimension_numbers = #tpu.dot_dimension_numbers<[1], [0], [0], [1], [0, 0, 1, 1], [], []>} : vector<8x64xf32>, vector<64x64xf32>, vector<8x64xf32> -> vector<8x64xf32>
    %1423 = vector.broadcast %1421 : vector<1x64xf32> to vector<8x64xf32>
    %1424 = arith.addf %1422, %1423 : vector<8x64xf32>
    %cst_1178 = arith.constant 0.000000e+00 : f32
    %1425 = vector.broadcast %cst_1178 : f32 to vector<8x64xf32>
    %1426 = arith.maximumf %1424, %1425 : vector<8x64xf32>
    %c0_1179 = arith.constant 0 : index
    %c3_1180 = arith.constant 3 : index
    %c24_1181 = arith.constant 24 : index
    %1427 = vector.load %arg9[%c0_1179, %c3_1180, %c24_1181] : memref<1x14x112xf32, #tpu.memory_space<vmem>>, vector<1x8x64xf32>
    %1428 = vector.shape_cast %1427 : vector<1x8x64xf32> to vector<8x64xf32>
    %1429 = vector.shape_cast %1426 : vector<8x64xf32> to vector<1x8x64xf32>
    tpu.vector_store %arg9[%c0_1179, %c3_1180, %c24_1181], %1429 {strides = array<i32>} : memref<1x14x112xf32, #tpu.memory_space<vmem>>, vector<1x8x64xf32>,
    %c0_1182 = arith.constant 0 : index
    %c2_1183 = arith.constant 2 : index
    %c16_1184 = arith.constant 16 : index
    %1430 = vector.load %arg9[%c0_1182, %c2_1183, %c16_1184] : memref<1x14x112xf32, #tpu.memory_space<vmem>>, vector<1x8x64xf32>
    %1431 = vector.shape_cast %1430 : vector<1x8x64xf32> to vector<8x64xf32>
    %c207 = arith.constant 207 : index
    %c0_1185 = arith.constant 0 : index
    %1432 = vector.load %arg2[%c207, %c0_1185] : memref<252x64xf32, #tpu.memory_space<vmem>>, vector<1x64xf32>
    %1433 = vector.broadcast %1432 : vector<1x64xf32> to vector<8x64xf32>
    %1434 = arith.mulf %1431, %1433 : vector<8x64xf32>
    %c0_1186 = arith.constant 0 : index
    %c2_1187 = arith.constant 2 : index
    %c24_1188 = arith.constant 24 : index
    %1435 = vector.load %arg9[%c0_1186, %c2_1187, %c24_1188] : memref<1x14x112xf32, #tpu.memory_space<vmem>>, vector<1x8x64xf32>
    %1436 = vector.shape_cast %1435 : vector<1x8x64xf32> to vector<8x64xf32>
    %c208 = arith.constant 208 : index
    %c0_1189 = arith.constant 0 : index
    %1437 = vector.load %arg2[%c208, %c0_1189] : memref<252x64xf32, #tpu.memory_space<vmem>>, vector<1x64xf32>
    %1438 = vector.broadcast %1437 : vector<1x64xf32> to vector<8x64xf32>
    %1439 = arith.mulf %1436, %1438 : vector<8x64xf32>
    %1440 = arith.addf %1434, %1439 : vector<8x64xf32>
    %c0_1190 = arith.constant 0 : index
    %c2_1191 = arith.constant 2 : index
    %c32_1192 = arith.constant 32 : index
    %1441 = vector.load %arg9[%c0_1190, %c2_1191, %c32_1192] : memref<1x14x112xf32, #tpu.memory_space<vmem>>, vector<1x8x64xf32>
    %1442 = vector.shape_cast %1441 : vector<1x8x64xf32> to vector<8x64xf32>
    %c209 = arith.constant 209 : index
    %c0_1193 = arith.constant 0 : index
    %1443 = vector.load %arg2[%c209, %c0_1193] : memref<252x64xf32, #tpu.memory_space<vmem>>, vector<1x64xf32>
    %1444 = vector.broadcast %1443 : vector<1x64xf32> to vector<8x64xf32>
    %1445 = arith.mulf %1442, %1444 : vector<8x64xf32>
    %1446 = arith.addf %1440, %1445 : vector<8x64xf32>
    %c0_1194 = arith.constant 0 : index
    %c3_1195 = arith.constant 3 : index
    %c16_1196 = arith.constant 16 : index
    %1447 = vector.load %arg9[%c0_1194, %c3_1195, %c16_1196] : memref<1x14x112xf32, #tpu.memory_space<vmem>>, vector<1x8x64xf32>
    %1448 = vector.shape_cast %1447 : vector<1x8x64xf32> to vector<8x64xf32>
    %c210 = arith.constant 210 : index
    %c0_1197 = arith.constant 0 : index
    %1449 = vector.load %arg2[%c210, %c0_1197] : memref<252x64xf32, #tpu.memory_space<vmem>>, vector<1x64xf32>
    %1450 = vector.broadcast %1449 : vector<1x64xf32> to vector<8x64xf32>
    %1451 = arith.mulf %1448, %1450 : vector<8x64xf32>
    %1452 = arith.addf %1446, %1451 : vector<8x64xf32>
    %c0_1198 = arith.constant 0 : index
    %c3_1199 = arith.constant 3 : index
    %c24_1200 = arith.constant 24 : index
    %1453 = vector.load %arg9[%c0_1198, %c3_1199, %c24_1200] : memref<1x14x112xf32, #tpu.memory_space<vmem>>, vector<1x8x64xf32>
    %1454 = vector.shape_cast %1453 : vector<1x8x64xf32> to vector<8x64xf32>
    %c211 = arith.constant 211 : index
    %c0_1201 = arith.constant 0 : index
    %1455 = vector.load %arg2[%c211, %c0_1201] : memref<252x64xf32, #tpu.memory_space<vmem>>, vector<1x64xf32>
    %1456 = vector.broadcast %1455 : vector<1x64xf32> to vector<8x64xf32>
    %1457 = arith.mulf %1454, %1456 : vector<8x64xf32>
    %1458 = arith.addf %1452, %1457 : vector<8x64xf32>
    %c0_1202 = arith.constant 0 : index
    %c3_1203 = arith.constant 3 : index
    %c32_1204 = arith.constant 32 : index
    %1459 = vector.load %arg9[%c0_1202, %c3_1203, %c32_1204] : memref<1x14x112xf32, #tpu.memory_space<vmem>>, vector<1x8x64xf32>
    %1460 = vector.shape_cast %1459 : vector<1x8x64xf32> to vector<8x64xf32>
    %c212 = arith.constant 212 : index
    %c0_1205 = arith.constant 0 : index
    %1461 = vector.load %arg2[%c212, %c0_1205] : memref<252x64xf32, #tpu.memory_space<vmem>>, vector<1x64xf32>
    %1462 = vector.broadcast %1461 : vector<1x64xf32> to vector<8x64xf32>
    %1463 = arith.mulf %1460, %1462 : vector<8x64xf32>
    %1464 = arith.addf %1458, %1463 : vector<8x64xf32>
    %c0_1206 = arith.constant 0 : index
    %c4_1207 = arith.constant 4 : index
    %c16_1208 = arith.constant 16 : index
    %1465 = vector.load %arg9[%c0_1206, %c4_1207, %c16_1208] : memref<1x14x112xf32, #tpu.memory_space<vmem>>, vector<1x8x64xf32>
    %1466 = vector.shape_cast %1465 : vector<1x8x64xf32> to vector<8x64xf32>
    %c213 = arith.constant 213 : index
    %c0_1209 = arith.constant 0 : index
    %1467 = vector.load %arg2[%c213, %c0_1209] : memref<252x64xf32, #tpu.memory_space<vmem>>, vector<1x64xf32>
    %1468 = vector.broadcast %1467 : vector<1x64xf32> to vector<8x64xf32>
    %1469 = arith.mulf %1466, %1468 : vector<8x64xf32>
    %1470 = arith.addf %1464, %1469 : vector<8x64xf32>
    %c0_1210 = arith.constant 0 : index
    %c4_1211 = arith.constant 4 : index
    %c24_1212 = arith.constant 24 : index
    %1471 = vector.load %arg9[%c0_1210, %c4_1211, %c24_1212] : memref<1x14x112xf32, #tpu.memory_space<vmem>>, vector<1x8x64xf32>
    %1472 = vector.shape_cast %1471 : vector<1x8x64xf32> to vector<8x64xf32>
    %c214 = arith.constant 214 : index
    %c0_1213 = arith.constant 0 : index
    %1473 = vector.load %arg2[%c214, %c0_1213] : memref<252x64xf32, #tpu.memory_space<vmem>>, vector<1x64xf32>
    %1474 = vector.broadcast %1473 : vector<1x64xf32> to vector<8x64xf32>
    %1475 = arith.mulf %1472, %1474 : vector<8x64xf32>
    %1476 = arith.addf %1470, %1475 : vector<8x64xf32>
    %c0_1214 = arith.constant 0 : index
    %c4_1215 = arith.constant 4 : index
    %c32_1216 = arith.constant 32 : index
    %1477 = vector.load %arg9[%c0_1214, %c4_1215, %c32_1216] : memref<1x14x112xf32, #tpu.memory_space<vmem>>, vector<1x8x64xf32>
    %1478 = vector.shape_cast %1477 : vector<1x8x64xf32> to vector<8x64xf32>
    %c215 = arith.constant 215 : index
    %c0_1217 = arith.constant 0 : index
    %1479 = vector.load %arg2[%c215, %c0_1217] : memref<252x64xf32, #tpu.memory_space<vmem>>, vector<1x64xf32>
    %1480 = vector.broadcast %1479 : vector<1x64xf32> to vector<8x64xf32>
    %1481 = arith.mulf %1478, %1480 : vector<8x64xf32>
    %1482 = arith.addf %1476, %1481 : vector<8x64xf32>
    %c10_1218 = arith.constant 10 : index
    %c0_1219 = arith.constant 0 : index
    %c0_1220 = arith.constant 0 : index
    %1483 = vector.load %arg3[%c10_1218, %c0_1219, %c0_1220] : memref<15x64x64xf32, #tpu.memory_space<vmem>>, vector<1x64x64xf32>
    %1484 = vector.shape_cast %1483 : vector<1x64x64xf32> to vector<64x64xf32>
    %c10_1221 = arith.constant 10 : index
    %c0_1222 = arith.constant 0 : index
    %1485 = vector.load %arg4[%c10_1221, %c0_1222] : memref<15x64xf32, #tpu.memory_space<vmem>>, vector<1x64xf32>
    %cst_1223 = arith.constant dense<0.000000e+00> : vector<8x64xf32>
    %1486 = tpu.matmul %1482, %1484, %cst_1223 {dimension_numbers = #tpu.dot_dimension_numbers<[1], [0], [0], [1], [0, 0, 1, 1], [], []>} : vector<8x64xf32>, vector<64x64xf32>, vector<8x64xf32> -> vector<8x64xf32>
    %1487 = vector.broadcast %1485 : vector<1x64xf32> to vector<8x64xf32>
    %1488 = arith.addf %1486, %1487 : vector<8x64xf32>
    %1489 = arith.addf %1365, %1488 : vector<8x64xf32>
    %cst_1224 = arith.constant 0.000000e+00 : f32
    %1490 = vector.broadcast %cst_1224 : f32 to vector<8x64xf32>
    %1491 = arith.maximumf %1489, %1490 : vector<8x64xf32>
    %c0_1225 = arith.constant 0 : index
    %c3_1226 = arith.constant 3 : index
    %c24_1227 = arith.constant 24 : index
    %1492 = vector.load %arg9[%c0_1225, %c3_1226, %c24_1227] : memref<1x14x112xf32, #tpu.memory_space<vmem>>, vector<1x8x64xf32>
    %1493 = vector.shape_cast %1492 : vector<1x8x64xf32> to vector<8x64xf32>
    %1494 = vector.shape_cast %1491 : vector<8x64xf32> to vector<1x8x64xf32>
    tpu.vector_store %arg9[%c0_1225, %c3_1226, %c24_1227], %1494 {strides = array<i32>} : memref<1x14x112xf32, #tpu.memory_space<vmem>>, vector<1x8x64xf32>,
    %c0_1228 = arith.constant 0 : index
    %c2_1229 = arith.constant 2 : index
    %c16_1230 = arith.constant 16 : index
    %1495 = vector.load %arg9[%c0_1228, %c2_1229, %c16_1230] : memref<1x14x112xf32, #tpu.memory_space<vmem>>, vector<1x8x64xf32>
    %1496 = vector.shape_cast %1495 : vector<1x8x64xf32> to vector<8x64xf32>
    %c216 = arith.constant 216 : index
    %c0_1231 = arith.constant 0 : index
    %1497 = vector.load %arg2[%c216, %c0_1231] : memref<252x64xf32, #tpu.memory_space<vmem>>, vector<1x64xf32>
    %1498 = vector.broadcast %1497 : vector<1x64xf32> to vector<8x64xf32>
    %1499 = arith.mulf %1496, %1498 : vector<8x64xf32>
    %c0_1232 = arith.constant 0 : index
    %c2_1233 = arith.constant 2 : index
    %c24_1234 = arith.constant 24 : index
    %1500 = vector.load %arg9[%c0_1232, %c2_1233, %c24_1234] : memref<1x14x112xf32, #tpu.memory_space<vmem>>, vector<1x8x64xf32>
    %1501 = vector.shape_cast %1500 : vector<1x8x64xf32> to vector<8x64xf32>
    %c217 = arith.constant 217 : index
    %c0_1235 = arith.constant 0 : index
    %1502 = vector.load %arg2[%c217, %c0_1235] : memref<252x64xf32, #tpu.memory_space<vmem>>, vector<1x64xf32>
    %1503 = vector.broadcast %1502 : vector<1x64xf32> to vector<8x64xf32>
    %1504 = arith.mulf %1501, %1503 : vector<8x64xf32>
    %1505 = arith.addf %1499, %1504 : vector<8x64xf32>
    %c0_1236 = arith.constant 0 : index
    %c2_1237 = arith.constant 2 : index
    %c32_1238 = arith.constant 32 : index
    %1506 = vector.load %arg9[%c0_1236, %c2_1237, %c32_1238] : memref<1x14x112xf32, #tpu.memory_space<vmem>>, vector<1x8x64xf32>
    %1507 = vector.shape_cast %1506 : vector<1x8x64xf32> to vector<8x64xf32>
    %c218 = arith.constant 218 : index
    %c0_1239 = arith.constant 0 : index
    %1508 = vector.load %arg2[%c218, %c0_1239] : memref<252x64xf32, #tpu.memory_space<vmem>>, vector<1x64xf32>
    %1509 = vector.broadcast %1508 : vector<1x64xf32> to vector<8x64xf32>
    %1510 = arith.mulf %1507, %1509 : vector<8x64xf32>
    %1511 = arith.addf %1505, %1510 : vector<8x64xf32>
    %c0_1240 = arith.constant 0 : index
    %c3_1241 = arith.constant 3 : index
    %c16_1242 = arith.constant 16 : index
    %1512 = vector.load %arg9[%c0_1240, %c3_1241, %c16_1242] : memref<1x14x112xf32, #tpu.memory_space<vmem>>, vector<1x8x64xf32>
    %1513 = vector.shape_cast %1512 : vector<1x8x64xf32> to vector<8x64xf32>
    %c219 = arith.constant 219 : index
    %c0_1243 = arith.constant 0 : index
    %1514 = vector.load %arg2[%c219, %c0_1243] : memref<252x64xf32, #tpu.memory_space<vmem>>, vector<1x64xf32>
    %1515 = vector.broadcast %1514 : vector<1x64xf32> to vector<8x64xf32>
    %1516 = arith.mulf %1513, %1515 : vector<8x64xf32>
    %1517 = arith.addf %1511, %1516 : vector<8x64xf32>
    %c0_1244 = arith.constant 0 : index
    %c3_1245 = arith.constant 3 : index
    %c24_1246 = arith.constant 24 : index
    %1518 = vector.load %arg9[%c0_1244, %c3_1245, %c24_1246] : memref<1x14x112xf32, #tpu.memory_space<vmem>>, vector<1x8x64xf32>
    %1519 = vector.shape_cast %1518 : vector<1x8x64xf32> to vector<8x64xf32>
    %c220 = arith.constant 220 : index
    %c0_1247 = arith.constant 0 : index
    %1520 = vector.load %arg2[%c220, %c0_1247] : memref<252x64xf32, #tpu.memory_space<vmem>>, vector<1x64xf32>
    %1521 = vector.broadcast %1520 : vector<1x64xf32> to vector<8x64xf32>
    %1522 = arith.mulf %1519, %1521 : vector<8x64xf32>
    %1523 = arith.addf %1517, %1522 : vector<8x64xf32>
    %c0_1248 = arith.constant 0 : index
    %c3_1249 = arith.constant 3 : index
    %c32_1250 = arith.constant 32 : index
    %1524 = vector.load %arg9[%c0_1248, %c3_1249, %c32_1250] : memref<1x14x112xf32, #tpu.memory_space<vmem>>, vector<1x8x64xf32>
    %1525 = vector.shape_cast %1524 : vector<1x8x64xf32> to vector<8x64xf32>
    %c221 = arith.constant 221 : index
    %c0_1251 = arith.constant 0 : index
    %1526 = vector.load %arg2[%c221, %c0_1251] : memref<252x64xf32, #tpu.memory_space<vmem>>, vector<1x64xf32>
    %1527 = vector.broadcast %1526 : vector<1x64xf32> to vector<8x64xf32>
    %1528 = arith.mulf %1525, %1527 : vector<8x64xf32>
    %1529 = arith.addf %1523, %1528 : vector<8x64xf32>
    %c0_1252 = arith.constant 0 : index
    %c4_1253 = arith.constant 4 : index
    %c16_1254 = arith.constant 16 : index
    %1530 = vector.load %arg9[%c0_1252, %c4_1253, %c16_1254] : memref<1x14x112xf32, #tpu.memory_space<vmem>>, vector<1x8x64xf32>
    %1531 = vector.shape_cast %1530 : vector<1x8x64xf32> to vector<8x64xf32>
    %c222 = arith.constant 222 : index
    %c0_1255 = arith.constant 0 : index
    %1532 = vector.load %arg2[%c222, %c0_1255] : memref<252x64xf32, #tpu.memory_space<vmem>>, vector<1x64xf32>
    %1533 = vector.broadcast %1532 : vector<1x64xf32> to vector<8x64xf32>
    %1534 = arith.mulf %1531, %1533 : vector<8x64xf32>
    %1535 = arith.addf %1529, %1534 : vector<8x64xf32>
    %c0_1256 = arith.constant 0 : index
    %c4_1257 = arith.constant 4 : index
    %c24_1258 = arith.constant 24 : index
    %1536 = vector.load %arg9[%c0_1256, %c4_1257, %c24_1258] : memref<1x14x112xf32, #tpu.memory_space<vmem>>, vector<1x8x64xf32>
    %1537 = vector.shape_cast %1536 : vector<1x8x64xf32> to vector<8x64xf32>
    %c223 = arith.constant 223 : index
    %c0_1259 = arith.constant 0 : index
    %1538 = vector.load %arg2[%c223, %c0_1259] : memref<252x64xf32, #tpu.memory_space<vmem>>, vector<1x64xf32>
    %1539 = vector.broadcast %1538 : vector<1x64xf32> to vector<8x64xf32>
    %1540 = arith.mulf %1537, %1539 : vector<8x64xf32>
    %1541 = arith.addf %1535, %1540 : vector<8x64xf32>
    %c0_1260 = arith.constant 0 : index
    %c4_1261 = arith.constant 4 : index
    %c32_1262 = arith.constant 32 : index
    %1542 = vector.load %arg9[%c0_1260, %c4_1261, %c32_1262] : memref<1x14x112xf32, #tpu.memory_space<vmem>>, vector<1x8x64xf32>
    %1543 = vector.shape_cast %1542 : vector<1x8x64xf32> to vector<8x64xf32>
    %c224 = arith.constant 224 : index
    %c0_1263 = arith.constant 0 : index
    %1544 = vector.load %arg2[%c224, %c0_1263] : memref<252x64xf32, #tpu.memory_space<vmem>>, vector<1x64xf32>
    %1545 = vector.broadcast %1544 : vector<1x64xf32> to vector<8x64xf32>
    %1546 = arith.mulf %1543, %1545 : vector<8x64xf32>
    %1547 = arith.addf %1541, %1546 : vector<8x64xf32>
    %c11_1264 = arith.constant 11 : index
    %c0_1265 = arith.constant 0 : index
    %c0_1266 = arith.constant 0 : index
    %1548 = vector.load %arg3[%c11_1264, %c0_1265, %c0_1266] : memref<15x64x64xf32, #tpu.memory_space<vmem>>, vector<1x64x64xf32>
    %1549 = vector.shape_cast %1548 : vector<1x64x64xf32> to vector<64x64xf32>
    %c11_1267 = arith.constant 11 : index
    %c0_1268 = arith.constant 0 : index
    %1550 = vector.load %arg4[%c11_1267, %c0_1268] : memref<15x64xf32, #tpu.memory_space<vmem>>, vector<1x64xf32>
    %cst_1269 = arith.constant dense<0.000000e+00> : vector<8x64xf32>
    %1551 = tpu.matmul %1547, %1549, %cst_1269 {dimension_numbers = #tpu.dot_dimension_numbers<[1], [0], [0], [1], [0, 0, 1, 1], [], []>} : vector<8x64xf32>, vector<64x64xf32>, vector<8x64xf32> -> vector<8x64xf32>
    %1552 = vector.broadcast %1550 : vector<1x64xf32> to vector<8x64xf32>
    %1553 = arith.addf %1551, %1552 : vector<8x64xf32>
    %cst_1270 = arith.constant 0.000000e+00 : f32
    %1554 = vector.broadcast %cst_1270 : f32 to vector<8x64xf32>
    %1555 = arith.maximumf %1553, %1554 : vector<8x64xf32>
    %c0_1271 = arith.constant 0 : index
    %c3_1272 = arith.constant 3 : index
    %c24_1273 = arith.constant 24 : index
    %1556 = vector.load %arg9[%c0_1271, %c3_1272, %c24_1273] : memref<1x14x112xf32, #tpu.memory_space<vmem>>, vector<1x8x64xf32>
    %1557 = vector.shape_cast %1556 : vector<1x8x64xf32> to vector<8x64xf32>
    %1558 = vector.shape_cast %1555 : vector<8x64xf32> to vector<1x8x64xf32>
    tpu.vector_store %arg9[%c0_1271, %c3_1272, %c24_1273], %1558 {strides = array<i32>} : memref<1x14x112xf32, #tpu.memory_space<vmem>>, vector<1x8x64xf32>,
    %c0_1274 = arith.constant 0 : index
    %c2_1275 = arith.constant 2 : index
    %c16_1276 = arith.constant 16 : index
    %1559 = vector.load %arg9[%c0_1274, %c2_1275, %c16_1276] : memref<1x14x112xf32, #tpu.memory_space<vmem>>, vector<1x8x64xf32>
    %1560 = vector.shape_cast %1559 : vector<1x8x64xf32> to vector<8x64xf32>
    %c225 = arith.constant 225 : index
    %c0_1277 = arith.constant 0 : index
    %1561 = vector.load %arg2[%c225, %c0_1277] : memref<252x64xf32, #tpu.memory_space<vmem>>, vector<1x64xf32>
    %1562 = vector.broadcast %1561 : vector<1x64xf32> to vector<8x64xf32>
    %1563 = arith.mulf %1560, %1562 : vector<8x64xf32>
    %c0_1278 = arith.constant 0 : index
    %c2_1279 = arith.constant 2 : index
    %c24_1280 = arith.constant 24 : index
    %1564 = vector.load %arg9[%c0_1278, %c2_1279, %c24_1280] : memref<1x14x112xf32, #tpu.memory_space<vmem>>, vector<1x8x64xf32>
    %1565 = vector.shape_cast %1564 : vector<1x8x64xf32> to vector<8x64xf32>
    %c226 = arith.constant 226 : index
    %c0_1281 = arith.constant 0 : index
    %1566 = vector.load %arg2[%c226, %c0_1281] : memref<252x64xf32, #tpu.memory_space<vmem>>, vector<1x64xf32>
    %1567 = vector.broadcast %1566 : vector<1x64xf32> to vector<8x64xf32>
    %1568 = arith.mulf %1565, %1567 : vector<8x64xf32>
    %1569 = arith.addf %1563, %1568 : vector<8x64xf32>
    %c0_1282 = arith.constant 0 : index
    %c2_1283 = arith.constant 2 : index
    %c32_1284 = arith.constant 32 : index
    %1570 = vector.load %arg9[%c0_1282, %c2_1283, %c32_1284] : memref<1x14x112xf32, #tpu.memory_space<vmem>>, vector<1x8x64xf32>
    %1571 = vector.shape_cast %1570 : vector<1x8x64xf32> to vector<8x64xf32>
    %c227 = arith.constant 227 : index
    %c0_1285 = arith.constant 0 : index
    %1572 = vector.load %arg2[%c227, %c0_1285] : memref<252x64xf32, #tpu.memory_space<vmem>>, vector<1x64xf32>
    %1573 = vector.broadcast %1572 : vector<1x64xf32> to vector<8x64xf32>
    %1574 = arith.mulf %1571, %1573 : vector<8x64xf32>
    %1575 = arith.addf %1569, %1574 : vector<8x64xf32>
    %c0_1286 = arith.constant 0 : index
    %c3_1287 = arith.constant 3 : index
    %c16_1288 = arith.constant 16 : index
    %1576 = vector.load %arg9[%c0_1286, %c3_1287, %c16_1288] : memref<1x14x112xf32, #tpu.memory_space<vmem>>, vector<1x8x64xf32>
    %1577 = vector.shape_cast %1576 : vector<1x8x64xf32> to vector<8x64xf32>
    %c228 = arith.constant 228 : index
    %c0_1289 = arith.constant 0 : index
    %1578 = vector.load %arg2[%c228, %c0_1289] : memref<252x64xf32, #tpu.memory_space<vmem>>, vector<1x64xf32>
    %1579 = vector.broadcast %1578 : vector<1x64xf32> to vector<8x64xf32>
    %1580 = arith.mulf %1577, %1579 : vector<8x64xf32>
    %1581 = arith.addf %1575, %1580 : vector<8x64xf32>
    %c0_1290 = arith.constant 0 : index
    %c3_1291 = arith.constant 3 : index
    %c24_1292 = arith.constant 24 : index
    %1582 = vector.load %arg9[%c0_1290, %c3_1291, %c24_1292] : memref<1x14x112xf32, #tpu.memory_space<vmem>>, vector<1x8x64xf32>
    %1583 = vector.shape_cast %1582 : vector<1x8x64xf32> to vector<8x64xf32>
    %c229 = arith.constant 229 : index
    %c0_1293 = arith.constant 0 : index
    %1584 = vector.load %arg2[%c229, %c0_1293] : memref<252x64xf32, #tpu.memory_space<vmem>>, vector<1x64xf32>
    %1585 = vector.broadcast %1584 : vector<1x64xf32> to vector<8x64xf32>
    %1586 = arith.mulf %1583, %1585 : vector<8x64xf32>
    %1587 = arith.addf %1581, %1586 : vector<8x64xf32>
    %c0_1294 = arith.constant 0 : index
    %c3_1295 = arith.constant 3 : index
    %c32_1296 = arith.constant 32 : index
    %1588 = vector.load %arg9[%c0_1294, %c3_1295, %c32_1296] : memref<1x14x112xf32, #tpu.memory_space<vmem>>, vector<1x8x64xf32>
    %1589 = vector.shape_cast %1588 : vector<1x8x64xf32> to vector<8x64xf32>
    %c230 = arith.constant 230 : index
    %c0_1297 = arith.constant 0 : index
    %1590 = vector.load %arg2[%c230, %c0_1297] : memref<252x64xf32, #tpu.memory_space<vmem>>, vector<1x64xf32>
    %1591 = vector.broadcast %1590 : vector<1x64xf32> to vector<8x64xf32>
    %1592 = arith.mulf %1589, %1591 : vector<8x64xf32>
    %1593 = arith.addf %1587, %1592 : vector<8x64xf32>
    %c0_1298 = arith.constant 0 : index
    %c4_1299 = arith.constant 4 : index
    %c16_1300 = arith.constant 16 : index
    %1594 = vector.load %arg9[%c0_1298, %c4_1299, %c16_1300] : memref<1x14x112xf32, #tpu.memory_space<vmem>>, vector<1x8x64xf32>
    %1595 = vector.shape_cast %1594 : vector<1x8x64xf32> to vector<8x64xf32>
    %c231 = arith.constant 231 : index
    %c0_1301 = arith.constant 0 : index
    %1596 = vector.load %arg2[%c231, %c0_1301] : memref<252x64xf32, #tpu.memory_space<vmem>>, vector<1x64xf32>
    %1597 = vector.broadcast %1596 : vector<1x64xf32> to vector<8x64xf32>
    %1598 = arith.mulf %1595, %1597 : vector<8x64xf32>
    %1599 = arith.addf %1593, %1598 : vector<8x64xf32>
    %c0_1302 = arith.constant 0 : index
    %c4_1303 = arith.constant 4 : index
    %c24_1304 = arith.constant 24 : index
    %1600 = vector.load %arg9[%c0_1302, %c4_1303, %c24_1304] : memref<1x14x112xf32, #tpu.memory_space<vmem>>, vector<1x8x64xf32>
    %1601 = vector.shape_cast %1600 : vector<1x8x64xf32> to vector<8x64xf32>
    %c232 = arith.constant 232 : index
    %c0_1305 = arith.constant 0 : index
    %1602 = vector.load %arg2[%c232, %c0_1305] : memref<252x64xf32, #tpu.memory_space<vmem>>, vector<1x64xf32>
    %1603 = vector.broadcast %1602 : vector<1x64xf32> to vector<8x64xf32>
    %1604 = arith.mulf %1601, %1603 : vector<8x64xf32>
    %1605 = arith.addf %1599, %1604 : vector<8x64xf32>
    %c0_1306 = arith.constant 0 : index
    %c4_1307 = arith.constant 4 : index
    %c32_1308 = arith.constant 32 : index
    %1606 = vector.load %arg9[%c0_1306, %c4_1307, %c32_1308] : memref<1x14x112xf32, #tpu.memory_space<vmem>>, vector<1x8x64xf32>
    %1607 = vector.shape_cast %1606 : vector<1x8x64xf32> to vector<8x64xf32>
    %c233 = arith.constant 233 : index
    %c0_1309 = arith.constant 0 : index
    %1608 = vector.load %arg2[%c233, %c0_1309] : memref<252x64xf32, #tpu.memory_space<vmem>>, vector<1x64xf32>
    %1609 = vector.broadcast %1608 : vector<1x64xf32> to vector<8x64xf32>
    %1610 = arith.mulf %1607, %1609 : vector<8x64xf32>
    %1611 = arith.addf %1605, %1610 : vector<8x64xf32>
    %c12_1310 = arith.constant 12 : index
    %c0_1311 = arith.constant 0 : index
    %c0_1312 = arith.constant 0 : index
    %1612 = vector.load %arg3[%c12_1310, %c0_1311, %c0_1312] : memref<15x64x64xf32, #tpu.memory_space<vmem>>, vector<1x64x64xf32>
    %1613 = vector.shape_cast %1612 : vector<1x64x64xf32> to vector<64x64xf32>
    %c12_1313 = arith.constant 12 : index
    %c0_1314 = arith.constant 0 : index
    %1614 = vector.load %arg4[%c12_1313, %c0_1314] : memref<15x64xf32, #tpu.memory_space<vmem>>, vector<1x64xf32>
    %cst_1315 = arith.constant dense<0.000000e+00> : vector<8x64xf32>
    %1615 = tpu.matmul %1611, %1613, %cst_1315 {dimension_numbers = #tpu.dot_dimension_numbers<[1], [0], [0], [1], [0, 0, 1, 1], [], []>} : vector<8x64xf32>, vector<64x64xf32>, vector<8x64xf32> -> vector<8x64xf32>
    %1616 = vector.broadcast %1614 : vector<1x64xf32> to vector<8x64xf32>
    %1617 = arith.addf %1615, %1616 : vector<8x64xf32>
    %1618 = arith.addf %1617, %446 : vector<8x64xf32>
    %1619 = vector.extract_strided_slice %36 {offsets = [0, 0], sizes = [8, 64], strides = [1, 1]} : vector<32x64xf32> to vector<8x64xf32>
    %cst_1316 = arith.constant 0.000000e+00 : f32
    %1620 = vector.broadcast %cst_1316 : f32 to vector<8x64xf32>
    %1621 = arith.maximumf %1619, %1620 : vector<8x64xf32>
    %c2_1317 = arith.constant 2 : index
    %c0_1318 = arith.constant 0 : index
    %c0_1319 = arith.constant 0 : index
    %1622 = vector.load %arg3[%c2_1317, %c0_1318, %c0_1319] : memref<15x64x64xf32, #tpu.memory_space<vmem>>, vector<1x64x64xf32>
    %1623 = vector.shape_cast %1622 : vector<1x64x64xf32> to vector<64x64xf32>
    %c2_1320 = arith.constant 2 : index
    %c0_1321 = arith.constant 0 : index
    %1624 = vector.load %arg4[%c2_1320, %c0_1321] : memref<15x64xf32, #tpu.memory_space<vmem>>, vector<1x64xf32>
    %cst_1322 = arith.constant dense<0.000000e+00> : vector<8x64xf32>
    %1625 = tpu.matmul %1621, %1623, %cst_1322 {dimension_numbers = #tpu.dot_dimension_numbers<[1], [0], [0], [1], [0, 0, 1, 1], [], []>} : vector<8x64xf32>, vector<64x64xf32>, vector<8x64xf32> -> vector<8x64xf32>
    %1626 = vector.broadcast %1624 : vector<1x64xf32> to vector<8x64xf32>
    %1627 = arith.addf %1625, %1626 : vector<8x64xf32>
    %c3_1323 = arith.constant 3 : index
    %c0_1324 = arith.constant 0 : index
    %c1_1325 = arith.constant 1 : index
    %c8_1326 = arith.constant 8 : index
    %1628 = vector.load %arg6[%c3_1323, %c0_1324, %c1_1325, %c8_1326] : memref<4x1x12x96xf32, #tpu.memory_space<vmem>>, vector<1x1x8x64xf32>
    %1629 = vector.shape_cast %1628 : vector<1x1x8x64xf32> to vector<8x64xf32>
    %c234 = arith.constant 234 : index
    %c0_1327 = arith.constant 0 : index
    %1630 = vector.load %arg2[%c234, %c0_1327] : memref<252x64xf32, #tpu.memory_space<vmem>>, vector<1x64xf32>
    %1631 = vector.broadcast %1630 : vector<1x64xf32> to vector<8x64xf32>
    %1632 = arith.mulf %1629, %1631 : vector<8x64xf32>
    %c2_1328 = arith.constant 2 : index
    %c0_1329 = arith.constant 0 : index
    %c1_1330 = arith.constant 1 : index
    %c16_1331 = arith.constant 16 : index
    %1633 = vector.load %arg6[%c2_1328, %c0_1329, %c1_1330, %c16_1331] : memref<4x1x12x96xf32, #tpu.memory_space<vmem>>, vector<1x1x8x64xf32>
    %1634 = vector.shape_cast %1633 : vector<1x1x8x64xf32> to vector<8x64xf32>
    %c235 = arith.constant 235 : index
    %c0_1332 = arith.constant 0 : index
    %1635 = vector.load %arg2[%c235, %c0_1332] : memref<252x64xf32, #tpu.memory_space<vmem>>, vector<1x64xf32>
    %1636 = vector.broadcast %1635 : vector<1x64xf32> to vector<8x64xf32>
    %1637 = arith.mulf %1634, %1636 : vector<8x64xf32>
    %1638 = arith.addf %1632, %1637 : vector<8x64xf32>
    %c3_1333 = arith.constant 3 : index
    %c0_1334 = arith.constant 0 : index
    %c1_1335 = arith.constant 1 : index
    %c16_1336 = arith.constant 16 : index
    %1639 = vector.load %arg6[%c3_1333, %c0_1334, %c1_1335, %c16_1336] : memref<4x1x12x96xf32, #tpu.memory_space<vmem>>, vector<1x1x8x64xf32>
    %1640 = vector.shape_cast %1639 : vector<1x1x8x64xf32> to vector<8x64xf32>
    %c236 = arith.constant 236 : index
    %c0_1337 = arith.constant 0 : index
    %1641 = vector.load %arg2[%c236, %c0_1337] : memref<252x64xf32, #tpu.memory_space<vmem>>, vector<1x64xf32>
    %1642 = vector.broadcast %1641 : vector<1x64xf32> to vector<8x64xf32>
    %1643 = arith.mulf %1640, %1642 : vector<8x64xf32>
    %1644 = arith.addf %1638, %1643 : vector<8x64xf32>
    %c1_1338 = arith.constant 1 : index
    %c0_1339 = arith.constant 0 : index
    %c2_1340 = arith.constant 2 : index
    %c8_1341 = arith.constant 8 : index
    %1645 = vector.load %arg6[%c1_1338, %c0_1339, %c2_1340, %c8_1341] : memref<4x1x12x96xf32, #tpu.memory_space<vmem>>, vector<1x1x8x64xf32>
    %1646 = vector.shape_cast %1645 : vector<1x1x8x64xf32> to vector<8x64xf32>
    %c237 = arith.constant 237 : index
    %c0_1342 = arith.constant 0 : index
    %1647 = vector.load %arg2[%c237, %c0_1342] : memref<252x64xf32, #tpu.memory_space<vmem>>, vector<1x64xf32>
    %1648 = vector.broadcast %1647 : vector<1x64xf32> to vector<8x64xf32>
    %1649 = arith.mulf %1646, %1648 : vector<8x64xf32>
    %1650 = arith.addf %1644, %1649 : vector<8x64xf32>
    %c0_1343 = arith.constant 0 : index
    %c0_1344 = arith.constant 0 : index
    %c2_1345 = arith.constant 2 : index
    %c16_1346 = arith.constant 16 : index
    %1651 = vector.load %arg6[%c0_1343, %c0_1344, %c2_1345, %c16_1346] : memref<4x1x12x96xf32, #tpu.memory_space<vmem>>, vector<1x1x8x64xf32>
    %1652 = vector.shape_cast %1651 : vector<1x1x8x64xf32> to vector<8x64xf32>
    %c238 = arith.constant 238 : index
    %c0_1347 = arith.constant 0 : index
    %1653 = vector.load %arg2[%c238, %c0_1347] : memref<252x64xf32, #tpu.memory_space<vmem>>, vector<1x64xf32>
    %1654 = vector.broadcast %1653 : vector<1x64xf32> to vector<8x64xf32>
    %1655 = arith.mulf %1652, %1654 : vector<8x64xf32>
    %1656 = arith.addf %1650, %1655 : vector<8x64xf32>
    %c1_1348 = arith.constant 1 : index
    %c0_1349 = arith.constant 0 : index
    %c2_1350 = arith.constant 2 : index
    %c16_1351 = arith.constant 16 : index
    %1657 = vector.load %arg6[%c1_1348, %c0_1349, %c2_1350, %c16_1351] : memref<4x1x12x96xf32, #tpu.memory_space<vmem>>, vector<1x1x8x64xf32>
    %1658 = vector.shape_cast %1657 : vector<1x1x8x64xf32> to vector<8x64xf32>
    %c239 = arith.constant 239 : index
    %c0_1352 = arith.constant 0 : index
    %1659 = vector.load %arg2[%c239, %c0_1352] : memref<252x64xf32, #tpu.memory_space<vmem>>, vector<1x64xf32>
    %1660 = vector.broadcast %1659 : vector<1x64xf32> to vector<8x64xf32>
    %1661 = arith.mulf %1658, %1660 : vector<8x64xf32>
    %1662 = arith.addf %1656, %1661 : vector<8x64xf32>
    %c3_1353 = arith.constant 3 : index
    %c0_1354 = arith.constant 0 : index
    %c2_1355 = arith.constant 2 : index
    %c8_1356 = arith.constant 8 : index
    %1663 = vector.load %arg6[%c3_1353, %c0_1354, %c2_1355, %c8_1356] : memref<4x1x12x96xf32, #tpu.memory_space<vmem>>, vector<1x1x8x64xf32>
    %1664 = vector.shape_cast %1663 : vector<1x1x8x64xf32> to vector<8x64xf32>
    %c240 = arith.constant 240 : index
    %c0_1357 = arith.constant 0 : index
    %1665 = vector.load %arg2[%c240, %c0_1357] : memref<252x64xf32, #tpu.memory_space<vmem>>, vector<1x64xf32>
    %1666 = vector.broadcast %1665 : vector<1x64xf32> to vector<8x64xf32>
    %1667 = arith.mulf %1664, %1666 : vector<8x64xf32>
    %1668 = arith.addf %1662, %1667 : vector<8x64xf32>
    %c2_1358 = arith.constant 2 : index
    %c0_1359 = arith.constant 0 : index
    %c2_1360 = arith.constant 2 : index
    %c16_1361 = arith.constant 16 : index
    %1669 = vector.load %arg6[%c2_1358, %c0_1359, %c2_1360, %c16_1361] : memref<4x1x12x96xf32, #tpu.memory_space<vmem>>, vector<1x1x8x64xf32>
    %1670 = vector.shape_cast %1669 : vector<1x1x8x64xf32> to vector<8x64xf32>
    %c241 = arith.constant 241 : index
    %c0_1362 = arith.constant 0 : index
    %1671 = vector.load %arg2[%c241, %c0_1362] : memref<252x64xf32, #tpu.memory_space<vmem>>, vector<1x64xf32>
    %1672 = vector.broadcast %1671 : vector<1x64xf32> to vector<8x64xf32>
    %1673 = arith.mulf %1670, %1672 : vector<8x64xf32>
    %1674 = arith.addf %1668, %1673 : vector<8x64xf32>
    %c3_1363 = arith.constant 3 : index
    %c0_1364 = arith.constant 0 : index
    %c2_1365 = arith.constant 2 : index
    %c16_1366 = arith.constant 16 : index
    %1675 = vector.load %arg6[%c3_1363, %c0_1364, %c2_1365, %c16_1366] : memref<4x1x12x96xf32, #tpu.memory_space<vmem>>, vector<1x1x8x64xf32>
    %1676 = vector.shape_cast %1675 : vector<1x1x8x64xf32> to vector<8x64xf32>
    %c242 = arith.constant 242 : index
    %c0_1367 = arith.constant 0 : index
    %1677 = vector.load %arg2[%c242, %c0_1367] : memref<252x64xf32, #tpu.memory_space<vmem>>, vector<1x64xf32>
    %1678 = vector.broadcast %1677 : vector<1x64xf32> to vector<8x64xf32>
    %1679 = arith.mulf %1676, %1678 : vector<8x64xf32>
    %1680 = arith.addf %1674, %1679 : vector<8x64xf32>
    %c13_1368 = arith.constant 13 : index
    %c0_1369 = arith.constant 0 : index
    %c0_1370 = arith.constant 0 : index
    %1681 = vector.load %arg3[%c13_1368, %c0_1369, %c0_1370] : memref<15x64x64xf32, #tpu.memory_space<vmem>>, vector<1x64x64xf32>
    %1682 = vector.shape_cast %1681 : vector<1x64x64xf32> to vector<64x64xf32>
    %c13_1371 = arith.constant 13 : index
    %c0_1372 = arith.constant 0 : index
    %1683 = vector.load %arg4[%c13_1371, %c0_1372] : memref<15x64xf32, #tpu.memory_space<vmem>>, vector<1x64xf32>
    %cst_1373 = arith.constant dense<0.000000e+00> : vector<8x64xf32>
    %1684 = tpu.matmul %1680, %1682, %cst_1373 {dimension_numbers = #tpu.dot_dimension_numbers<[1], [0], [0], [1], [0, 0, 1, 1], [], []>} : vector<8x64xf32>, vector<64x64xf32>, vector<8x64xf32> -> vector<8x64xf32>
    %1685 = vector.broadcast %1683 : vector<1x64xf32> to vector<8x64xf32>
    %1686 = arith.addf %1684, %1685 : vector<8x64xf32>
    %cst_1374 = arith.constant 0.000000e+00 : f32
    %1687 = vector.broadcast %cst_1374 : f32 to vector<8x64xf32>
    %1688 = arith.maximumf %1686, %1687 : vector<8x64xf32>
    %c0_1375 = arith.constant 0 : index
    %c3_1376 = arith.constant 3 : index
    %c24_1377 = arith.constant 24 : index
    %1689 = vector.load %arg9[%c0_1375, %c3_1376, %c24_1377] : memref<1x14x112xf32, #tpu.memory_space<vmem>>, vector<1x8x64xf32>
    %1690 = vector.shape_cast %1689 : vector<1x8x64xf32> to vector<8x64xf32>
    %1691 = vector.shape_cast %1688 : vector<8x64xf32> to vector<1x8x64xf32>
    tpu.vector_store %arg9[%c0_1375, %c3_1376, %c24_1377], %1691 {strides = array<i32>} : memref<1x14x112xf32, #tpu.memory_space<vmem>>, vector<1x8x64xf32>,
    %c0_1378 = arith.constant 0 : index
    %c2_1379 = arith.constant 2 : index
    %c16_1380 = arith.constant 16 : index
    %1692 = vector.load %arg9[%c0_1378, %c2_1379, %c16_1380] : memref<1x14x112xf32, #tpu.memory_space<vmem>>, vector<1x8x64xf32>
    %1693 = vector.shape_cast %1692 : vector<1x8x64xf32> to vector<8x64xf32>
    %c243 = arith.constant 243 : index
    %c0_1381 = arith.constant 0 : index
    %1694 = vector.load %arg2[%c243, %c0_1381] : memref<252x64xf32, #tpu.memory_space<vmem>>, vector<1x64xf32>
    %1695 = vector.broadcast %1694 : vector<1x64xf32> to vector<8x64xf32>
    %1696 = arith.mulf %1693, %1695 : vector<8x64xf32>
    %c0_1382 = arith.constant 0 : index
    %c2_1383 = arith.constant 2 : index
    %c24_1384 = arith.constant 24 : index
    %1697 = vector.load %arg9[%c0_1382, %c2_1383, %c24_1384] : memref<1x14x112xf32, #tpu.memory_space<vmem>>, vector<1x8x64xf32>
    %1698 = vector.shape_cast %1697 : vector<1x8x64xf32> to vector<8x64xf32>
    %c244 = arith.constant 244 : index
    %c0_1385 = arith.constant 0 : index
    %1699 = vector.load %arg2[%c244, %c0_1385] : memref<252x64xf32, #tpu.memory_space<vmem>>, vector<1x64xf32>
    %1700 = vector.broadcast %1699 : vector<1x64xf32> to vector<8x64xf32>
    %1701 = arith.mulf %1698, %1700 : vector<8x64xf32>
    %1702 = arith.addf %1696, %1701 : vector<8x64xf32>
    %c0_1386 = arith.constant 0 : index
    %c2_1387 = arith.constant 2 : index
    %c32_1388 = arith.constant 32 : index
    %1703 = vector.load %arg9[%c0_1386, %c2_1387, %c32_1388] : memref<1x14x112xf32, #tpu.memory_space<vmem>>, vector<1x8x64xf32>
    %1704 = vector.shape_cast %1703 : vector<1x8x64xf32> to vector<8x64xf32>
    %c245 = arith.constant 245 : index
    %c0_1389 = arith.constant 0 : index
    %1705 = vector.load %arg2[%c245, %c0_1389] : memref<252x64xf32, #tpu.memory_space<vmem>>, vector<1x64xf32>
    %1706 = vector.broadcast %1705 : vector<1x64xf32> to vector<8x64xf32>
    %1707 = arith.mulf %1704, %1706 : vector<8x64xf32>
    %1708 = arith.addf %1702, %1707 : vector<8x64xf32>
    %c0_1390 = arith.constant 0 : index
    %c3_1391 = arith.constant 3 : index
    %c16_1392 = arith.constant 16 : index
    %1709 = vector.load %arg9[%c0_1390, %c3_1391, %c16_1392] : memref<1x14x112xf32, #tpu.memory_space<vmem>>, vector<1x8x64xf32>
    %1710 = vector.shape_cast %1709 : vector<1x8x64xf32> to vector<8x64xf32>
    %c246 = arith.constant 246 : index
    %c0_1393 = arith.constant 0 : index
    %1711 = vector.load %arg2[%c246, %c0_1393] : memref<252x64xf32, #tpu.memory_space<vmem>>, vector<1x64xf32>
    %1712 = vector.broadcast %1711 : vector<1x64xf32> to vector<8x64xf32>
    %1713 = arith.mulf %1710, %1712 : vector<8x64xf32>
    %1714 = arith.addf %1708, %1713 : vector<8x64xf32>
    %c0_1394 = arith.constant 0 : index
    %c3_1395 = arith.constant 3 : index
    %c24_1396 = arith.constant 24 : index
    %1715 = vector.load %arg9[%c0_1394, %c3_1395, %c24_1396] : memref<1x14x112xf32, #tpu.memory_space<vmem>>, vector<1x8x64xf32>
    %1716 = vector.shape_cast %1715 : vector<1x8x64xf32> to vector<8x64xf32>
    %c247 = arith.constant 247 : index
    %c0_1397 = arith.constant 0 : index
    %1717 = vector.load %arg2[%c247, %c0_1397] : memref<252x64xf32, #tpu.memory_space<vmem>>, vector<1x64xf32>
    %1718 = vector.broadcast %1717 : vector<1x64xf32> to vector<8x64xf32>
    %1719 = arith.mulf %1716, %1718 : vector<8x64xf32>
    %1720 = arith.addf %1714, %1719 : vector<8x64xf32>
    %c0_1398 = arith.constant 0 : index
    %c3_1399 = arith.constant 3 : index
    %c32_1400 = arith.constant 32 : index
    %1721 = vector.load %arg9[%c0_1398, %c3_1399, %c32_1400] : memref<1x14x112xf32, #tpu.memory_space<vmem>>, vector<1x8x64xf32>
    %1722 = vector.shape_cast %1721 : vector<1x8x64xf32> to vector<8x64xf32>
    %c248 = arith.constant 248 : index
    %c0_1401 = arith.constant 0 : index
    %1723 = vector.load %arg2[%c248, %c0_1401] : memref<252x64xf32, #tpu.memory_space<vmem>>, vector<1x64xf32>
    %1724 = vector.broadcast %1723 : vector<1x64xf32> to vector<8x64xf32>
    %1725 = arith.mulf %1722, %1724 : vector<8x64xf32>
    %1726 = arith.addf %1720, %1725 : vector<8x64xf32>
    %c0_1402 = arith.constant 0 : index
    %c4_1403 = arith.constant 4 : index
    %c16_1404 = arith.constant 16 : index
    %1727 = vector.load %arg9[%c0_1402, %c4_1403, %c16_1404] : memref<1x14x112xf32, #tpu.memory_space<vmem>>, vector<1x8x64xf32>
    %1728 = vector.shape_cast %1727 : vector<1x8x64xf32> to vector<8x64xf32>
    %c249 = arith.constant 249 : index
    %c0_1405 = arith.constant 0 : index
    %1729 = vector.load %arg2[%c249, %c0_1405] : memref<252x64xf32, #tpu.memory_space<vmem>>, vector<1x64xf32>
    %1730 = vector.broadcast %1729 : vector<1x64xf32> to vector<8x64xf32>
    %1731 = arith.mulf %1728, %1730 : vector<8x64xf32>
    %1732 = arith.addf %1726, %1731 : vector<8x64xf32>
    %c0_1406 = arith.constant 0 : index
    %c4_1407 = arith.constant 4 : index
    %c24_1408 = arith.constant 24 : index
    %1733 = vector.load %arg9[%c0_1406, %c4_1407, %c24_1408] : memref<1x14x112xf32, #tpu.memory_space<vmem>>, vector<1x8x64xf32>
    %1734 = vector.shape_cast %1733 : vector<1x8x64xf32> to vector<8x64xf32>
    %c250 = arith.constant 250 : index
    %c0_1409 = arith.constant 0 : index
    %1735 = vector.load %arg2[%c250, %c0_1409] : memref<252x64xf32, #tpu.memory_space<vmem>>, vector<1x64xf32>
    %1736 = vector.broadcast %1735 : vector<1x64xf32> to vector<8x64xf32>
    %1737 = arith.mulf %1734, %1736 : vector<8x64xf32>
    %1738 = arith.addf %1732, %1737 : vector<8x64xf32>
    %c0_1410 = arith.constant 0 : index
    %c4_1411 = arith.constant 4 : index
    %c32_1412 = arith.constant 32 : index
    %1739 = vector.load %arg9[%c0_1410, %c4_1411, %c32_1412] : memref<1x14x112xf32, #tpu.memory_space<vmem>>, vector<1x8x64xf32>
    %1740 = vector.shape_cast %1739 : vector<1x8x64xf32> to vector<8x64xf32>
    %c251 = arith.constant 251 : index
    %c0_1413 = arith.constant 0 : index
    %1741 = vector.load %arg2[%c251, %c0_1413] : memref<252x64xf32, #tpu.memory_space<vmem>>, vector<1x64xf32>
    %1742 = vector.broadcast %1741 : vector<1x64xf32> to vector<8x64xf32>
    %1743 = arith.mulf %1740, %1742 : vector<8x64xf32>
    %1744 = arith.addf %1738, %1743 : vector<8x64xf32>
    %c14_1414 = arith.constant 14 : index
    %c0_1415 = arith.constant 0 : index
    %c0_1416 = arith.constant 0 : index
    %1745 = vector.load %arg3[%c14_1414, %c0_1415, %c0_1416] : memref<15x64x64xf32, #tpu.memory_space<vmem>>, vector<1x64x64xf32>
    %1746 = vector.shape_cast %1745 : vector<1x64x64xf32> to vector<64x64xf32>
    %c14_1417 = arith.constant 14 : index
    %c0_1418 = arith.constant 0 : index
    %1747 = vector.load %arg4[%c14_1417, %c0_1418] : memref<15x64xf32, #tpu.memory_space<vmem>>, vector<1x64xf32>
    %cst_1419 = arith.constant dense<0.000000e+00> : vector<8x64xf32>
    %1748 = tpu.matmul %1744, %1746, %cst_1419 {dimension_numbers = #tpu.dot_dimension_numbers<[1], [0], [0], [1], [0, 0, 1, 1], [], []>} : vector<8x64xf32>, vector<64x64xf32>, vector<8x64xf32> -> vector<8x64xf32>
    %1749 = vector.broadcast %1747 : vector<1x64xf32> to vector<8x64xf32>
    %1750 = arith.addf %1748, %1749 : vector<8x64xf32>
    %1751 = arith.addf %1750, %1627 : vector<8x64xf32>
    %1752 = tpu.concatenate %420, %1050, %1489, %1618, %1751 in 1 : vector<8x64xf32>, vector<8x64xf32>, vector<8x64xf32>, vector<8x64xf32>, vector<8x64xf32> -> vector<8x320xf32>
    %1753 = vector.shape_cast %1752 : vector<8x320xf32> to vector<1x8x320xf32>
    %c0_1420 = arith.constant 0 : index
    %c0_1421 = arith.constant 0 : index
    %c0_1422 = arith.constant 0 : index
    %1754 = vector.load %arg5[%c0_1420, %c0_1421, %c0_1422] : memref<1x8x320xf32, #tpu.memory_space<vmem>>, vector<1x8x320xf32>
    tpu.vector_store %arg5[%c0_1420, %c0_1421, %c0_1422], %1753 {strides = array<i32>} : memref<1x8x320xf32, #tpu.memory_space<vmem>>, vector<1x8x320xf32>,
    return
  }
  func.func @transform_0(%arg0: i32) -> (i32, i32, i32, i32) {
    %c0_i32 = arith.constant 0 : i32
    %c0_i32_0 = arith.constant 0 : i32
    %c0_i32_1 = arith.constant 0 : i32
    %c0_i32_2 = arith.constant 0 : i32
    return %c0_i32, %arg0, %c0_i32_0, %c0_i32_1 : i32, i32, i32, i32
  }
  func.func @transform_1(%arg0: i32) -> (i32, i32) {
    %c0_i32 = arith.constant 0 : i32
    %c0_i32_0 = arith.constant 0 : i32
    %c0_i32_1 = arith.constant 0 : i32
    return %c0_i32, %c0_i32_0 : i32, i32
  }
  func.func @transform_2(%arg0: i32) -> (i32, i32, i32) {
    %c0_i32 = arith.constant 0 : i32
    %c0_i32_0 = arith.constant 0 : i32
    %c0_i32_1 = arith.constant 0 : i32
    %c0_i32_2 = arith.constant 0 : i32
    return %c0_i32, %c0_i32_0, %c0_i32_1 : i32, i32, i32
  }
  func.func @transform_3(%arg0: i32) -> (i32, i32) {
    %c0_i32 = arith.constant 0 : i32
    %c0_i32_0 = arith.constant 0 : i32
    %c0_i32_1 = arith.constant 0 : i32
    return %c0_i32, %c0_i32_0 : i32, i32
  }
  func.func @transform_4(%arg0: i32) -> (i32, i32, i32) {
    %c0_i32 = arith.constant 0 : i32
    %c0_i32_0 = arith.constant 0 : i32
    %c0_i32_1 = arith.constant 0 : i32
    return %arg0, %c0_i32, %c0_i32_0 : i32, i32, i32
  }
}

</mosaic_0001>

<llo_original>
// kernel: tile.122
$region0: #{tile.122}
  #allocation0 [shape = 's32[1]{0}', space=sflag, size = 0x4, scoped, tag = 'scoped memory for tile.122']
  %s0 = inlined_call_operand.vmem [shape: f32[8], index: 0, kind: input, shape index: {}]
  %s1 = inlined_call_operand.vmem [shape: f32[8,8], index: 1, kind: output, shape index: {}]
  // Predicated region
  $region2: #{tile.122} parent=0 // pred_check
    _
  $region3: #{tile.122} parent=0 // pred_check_branch
    %3 = sbr.rel (0) target = $region5
  $region4: #{tile.122} parent=0 // pred_region
    _
  $region5: #{tile.122} parent=0 // pred_fallthru
    _
  %v4 = vld [vmem:[%s0] ss:$0 sm:$0xff]
  %5 = vst [vmem:[%s1] sm:$0xff] %v4

// kernel: tile.215
$region0: #{tile.215}
  %s0 = inlined_call_operand.vmem [shape: f32[9,8,8], index: 0, kind: input, shape index: {}]
  %s1 = inlined_call_operand.vmem [shape: f32[9,64], index: 1, kind: output, shape index: {}]
  %v2 = vld [vmem:[%s0] ss:$8 sm:$0xf]
  %v3 = vld [vmem:[%s0] ss:$8 sm:$0xf0]
  %vm4 = vcmask 1047556
  %v5 = vsel %vm4, %v3, %v2
  %vm6 = vcmask 64512
  %7 = vst.msk [vmem:[%s1] sm:$0xff] %vm6, %v5
  %s8 = scalar_lea.vmem %s0, 64
  %v9 = vld [vmem:[%s8] sm:$0x1]
  %vm10 = vcmask 64512
  %s11 = scalar_lea.vmem %s1, 8
  %12 = vst.msk [vmem:[%s11] sm:$0x1] %vm10, %v9
  %s13 = scalar_lea.vmem %s0, 7
  %v14 = vld [vmem:[%s13] ss:$8 sm:$0xf]
  %s15 = scalar_lea.vmem %s0, 7
  %v16 = vld [vmem:[%s15] ss:$8 sm:$0xf0]
  %vm17 = vcmask 1047556
  %v18 = vsel %vm17, %v16, %v14
  %19 = vrot.lane.b32.xlu0 %v18, 56
  %v20 = vpop.permute.xlu0 %19
  %vm21 = vcmask 523712
  %22 = vst.msk [vmem:[%s1] sm:$0xff] %vm21, %v20
  %s23 = scalar_lea.vmem %s0, 71
  %v24 = vld [vmem:[%s23] sm:$0x1]
  %25 = vrot.lane.b32.xlu0 %v24, 56
  %v26 = vpop.permute.xlu0 %25
  %vm27 = vcmask 523712
  %s28 = scalar_lea.vmem %s1, 8
  %29 = vst.msk [vmem:[%s28] sm:$0x1] %vm27, %v26
  %s30 = scalar_lea.vmem %s0, 6
  %v31 = vld [vmem:[%s30] ss:$8 sm:$0xf]
  %s32 = scalar_lea.vmem %s0, 6
  %v33 = vld [vmem:[%s32] ss:$8 sm:$0xf0]
  %vm34 = vcmask 1047556
  %v35 = vsel %vm34, %v33, %v31
  %36 = vrot.lane.b32.xlu0 %v35, 48
  %v37 = vpop.permute.xlu0 %36
  %vm38 = vcmask 458112
  %39 = vst.msk [vmem:[%s1] sm:$0xff] %vm38, %v37
  %s40 = scalar_lea.vmem %s0, 70
  %v41 = vld [vmem:[%s40] sm:$0x1]
  %42 = vrot.lane.b32.xlu0 %v41, 48
  %v43 = vpop.permute.xlu0 %42
  %vm44 = vcmask 458112
  %s45 = scalar_lea.vmem %s1, 8
  %46 = vst.msk [vmem:[%s45] sm:$0x1] %vm44, %v43
  %s47 = scalar_lea.vmem %s0, 5
  %v48 = vld [vmem:[%s47] ss:$8 sm:$0xf]
  %s49 = scalar_lea.vmem %s0, 5
  %v50 = vld [vmem:[%s49] ss:$8 sm:$0xf0]
  %vm51 = vcmask 1047556
  %v52 = vsel %vm51, %v50, %v48
  %53 = vrot.lane.b32.xlu0 %v52, 40
  %v54 = vpop.permute.xlu0 %53
  %vm55 = vcmask 392512
  %56 = vst.msk [vmem:[%s1] sm:$0xff] %vm55, %v54
  %s57 = scalar_lea.vmem %s0, 69
  %v58 = vld [vmem:[%s57] sm:$0x1]
  %59 = vrot.lane.b32.xlu0 %v58, 40
  %v60 = vpop.permute.xlu0 %59
  %vm61 = vcmask 392512
  %s62 = scalar_lea.vmem %s1, 8
  %63 = vst.msk [vmem:[%s62] sm:$0x1] %vm61, %v60
  %s64 = scalar_lea.vmem %s0, 4
  %v65 = vld [vmem:[%s64] ss:$8 sm:$0xf]
  %s66 = scalar_lea.vmem %s0, 4
  %v67 = vld [vmem:[%s66] ss:$8 sm:$0xf0]
  %vm68 = vcmask 1047556
  %v69 = vsel %vm68, %v67, %v65
  %70 = vrot.lane.b32.xlu0 %v69, 32
  %v71 = vpop.permute.xlu0 %70
  %vm72 = vcmask 326912
  %73 = vst.msk [vmem:[%s1] sm:$0xff] %vm72, %v71
  %s74 = scalar_lea.vmem %s0, 68
  %v75 = vld [vmem:[%s74] sm:$0x1]
  %76 = vrot.lane.b32.xlu0 %v75, 32
  %v77 = vpop.permute.xlu0 %76
  %vm78 = vcmask 326912
  %s79 = scalar_lea.vmem %s1, 8
  %80 = vst.msk [vmem:[%s79] sm:$0x1] %vm78, %v77
  %s81 = scalar_lea.vmem %s0, 3
  %v82 = vld [vmem:[%s81] ss:$8 sm:$0xf]
  %s83 = scalar_lea.vmem %s0, 3
  %v84 = vld [vmem:[%s83] ss:$8 sm:$0xf0]
  %vm85 = vcmask 1047556
  %v86 = vsel %vm85, %v84, %v82
  %87 = vrot.lane.b32.xlu0 %v86, 24
  %v88 = vpop.permute.xlu0 %87
  %vm89 = vcmask 261312
  %90 = vst.msk [vmem:[%s1] sm:$0xff] %vm89, %v88
  %s91 = scalar_lea.vmem %s0, 67
  %v92 = vld [vmem:[%s91] sm:$0x1]
  %93 = vrot.lane.b32.xlu0 %v92, 24
  %v94 = vpop.permute.xlu0 %93
  %vm95 = vcmask 261312
  %s96 = scalar_lea.vmem %s1, 8
  %97 = vst.msk [vmem:[%s96] sm:$0x1] %vm95, %v94
  %s98 = scalar_lea.vmem %s0, 2
  %v99 = vld [vmem:[%s98] ss:$8 sm:$0xf]
  %s100 = scalar_lea.vmem %s0, 2
  %v101 = vld [vmem:[%s100] ss:$8 sm:$0xf0]
  %vm102 = vcmask 1047556
  %v103 = vsel %vm102, %v101, %v99
  %104 = vrot.lane.b32.xlu0 %v103, 16
  %v105 = vpop.permute.xlu0 %104
  %vm106 = vcmask 195712
  %107 = vst.msk [vmem:[%s1] sm:$0xff] %vm106, %v105
  %s108 = scalar_lea.vmem %s0, 66
  %v109 = vld [vmem:[%s108] sm:$0x1]
  %110 = vrot.lane.b32.xlu0 %v109, 16
  %v111 = vpop.permute.xlu0 %110
  %vm112 = vcmask 195712
  %s113 = scalar_lea.vmem %s1, 8
  %114 = vst.msk [vmem:[%s113] sm:$0x1] %vm112, %v111
  %s115 = scalar_lea.vmem %s0, 1
  %v116 = vld [vmem:[%s115] ss:$8 sm:$0xf]
  %s117 = scalar_lea.vmem %s0, 1
  %v118 = vld [vmem:[%s117] ss:$8 sm:$0xf0]
  %vm119 = vcmask 1047556
  %v120 = vsel %vm119, %v118, %v116
  %121 = vrot.lane.b32.xlu0 %v120, 8
  %v122 = vpop.permute.xlu0 %121
  %vm123 = vcmask 130112
  %124 = vst.msk [vmem:[%s1] sm:$0xff] %vm123, %v122
  %s125 = scalar_lea.vmem %s0, 65
  %v126 = vld [vmem:[%s125] sm:$0x1]
  %127 = vrot.lane.b32.xlu0 %v126, 8
  %v128 = vpop.permute.xlu0 %127
  %vm129 = vcmask 130112
  %s130 = scalar_lea.vmem %s1, 8
  %131 = vst.msk [vmem:[%s130] sm:$0x1] %vm129, %v128

// kernel: cell_stem0_forward.1
$region0: #{cell_stem0_forward.1}
  #allocation0 [shape = 'u32[]', space=smem, size = 0x4, offset = 0x4, fixed_abs, tag = 'smem constant byte address 0x4 - core index']
  #allocation1 [shape = 'u32[144,128]{1,0:T(1,128)}', space=vmem, size = 0x12000, scoped, tag = 'internal scratch']
  #allocation2 [shape = 'f32[4,1,12,96]{3,2,1,0:T(8,128)}', space=vmem, size = 0x8000, scoped, tag = 'scratch operand']
  #allocation3 [shape = 'f32[4,1,12,96]{3,2,1,0:T(8,128)}', space=vmem, size = 0x8000, scoped, tag = 'scratch operand']
  #allocation4 [shape = 'f32[4,1,12,96]{3,2,1,0:T(8,128)}', space=vmem, size = 0x8000, scoped, tag = 'scratch operand']
  #allocation5 [shape = 'f32[1,14,112]{2,1,0:T(8,128)}', space=vmem, size = 0x2000, scoped, tag = 'scratch operand']
  %s0 = inlined_call_operand.vmem [shape: f32[4,2,12,96], index: 0, kind: input, shape index: {}]
  %s1 = inlined_call_operand.vmem [shape: f32[252,64], index: 1, kind: input, shape index: {}]
  %s2 = inlined_call_operand.vmem [shape: f32[15,64,64], index: 2, kind: input, shape index: {}]
  %s3 = inlined_call_operand.vmem [shape: f32[15,64], index: 3, kind: input, shape index: {}]
  %s4 = inlined_call_operand.vmem [shape: f32[2,8,320], index: 4, kind: output, shape index: {}]
  %s5 = sld [smem:[#allocation0]]
  $region87: #{cell_stem0_forward.1} parent=0
    _
  %s7 = ssub.s32 1, %s5
  %s8 = scalar_select 0, %s7, %s5
  $region1: #{cell_stem0_forward.1} parent=0
    #allocation6 [shape = 'u8[65536]{0}', space=vmem, size = 0x10000, scoped, tag = 'input window, operand 0']
    loop: start=0, step=1, limit=4
    $region2: #{cell_stem0_forward.1} parent=1 // loop_pre_header
      _
    $region3: #{cell_stem0_forward.1} parent=1 // loop_header
      %s10 = sphi 0, %s14
      %p11 = scmp.ge.s32.totalorder %s10, 4
      %s20 = sphi 0, %s22
      %s23 = sphi 0, %s20
      %s24 = sphi 0, %s23
      %s40 = sphi 0, %s24
      %s44 = sphi 0, %s44
      %s46 = sphi 0, %s44
      %s47 = sphi 0, %s46
      %s61 = sphi 0, %s47
      %s65 = sphi 0, %s65
      %s67 = sphi 0, %s65
      %s68 = sphi 0, %s67
      %s82 = sphi 0, %s68
      %s86 = sphi 0, %s86
      %s88 = sphi 0, %s86
      %s89 = sphi 0, %s88
      %s103 = sphi 0, %s89
      %s109 = sphi 0, %s111
      %s112 = sphi 0, %s109
      %s113 = sphi 0, %s112
      %s129 = sphi 0, %s113
    $region4: #{cell_stem0_forward.1} parent=1 // loop_header_branch
      %13 = sbr.rel (%p11) target = $region8
    $region5: #{cell_stem0_forward.1} parent=1 // loop_body
      %s15 = ssub.s32 %s10, 1
      %s16 = ssub.s32 %s10, 2
      %s17 = sadd.s32 %s10, 1
      %s18 = ssub.s32 %s10, %s17
      %p19 = scmp.eq.s32.totalorder %s18, 0
      %s21 = sadd.s32 %s20, 1
      %s22 = scalar_select %p19, %s20, %s21
      %p25 = pneg %p19
      %p26 = scmp.eq.s32.totalorder %s10, 1
      %p27 = por %p25, %p26
      %p28 = scmp.ne.s32.totalorder %s20, %s23
      %p29 = scmp.eq.s32.totalorder %s10, 0
      %p30 = por %p28, %p29
      %p31 = scmp.ne.s32.totalorder %s20, %s23
      %p32 = scmp.eq.s32.totalorder %s15, 1
      %p33 = por %p31, %p32
      %p34 = scmp.ne.s32.totalorder %s23, %s24
      %p35 = scmp.eq.s32.totalorder %s15, 0
      %p36 = por %p34, %p35
      %p37 = scmp.ne.s32.totalorder %s23, %s24
      %p38 = scmp.eq.s32.totalorder %s16, 1
      %p39 = por %p37, %p38
      %p41 = scmp.ne.s32.totalorder %s24, %s40
      %p42 = scmp.eq.s32.totalorder %s16, 0
      %p43 = por %p41, %p42
      %s45 = sadd.s32 %s44, 1
      %p48 = scmp.eq.s32.totalorder %s10, 1
      %p49 = scmp.ne.s32.totalorder %s44, %s46
      %p50 = scmp.eq.s32.totalorder %s10, 0
      %p51 = por %p49, %p50
      %p52 = scmp.ne.s32.totalorder %s44, %s46
      %p53 = scmp.eq.s32.totalorder %s15, 1
      %p54 = por %p52, %p53
      %p55 = scmp.ne.s32.totalorder %s46, %s47
      %p56 = scmp.eq.s32.totalorder %s15, 0
      %p57 = por %p55, %p56
      %p58 = scmp.ne.s32.totalorder %s46, %s47
      %p59 = scmp.eq.s32.totalorder %s16, 1
      %p60 = por %p58, %p59
      %p62 = scmp.ne.s32.totalorder %s47, %s61
      %p63 = scmp.eq.s32.totalorder %s16, 0
      %p64 = por %p62, %p63
      %s66 = sadd.s32 %s65, 1
      %p69 = scmp.eq.s32.totalorder %s10, 1
      %p70 = scmp.ne.s32.totalorder %s65, %s67
      %p71 = scmp.eq.s32.totalorder %s10, 0
      %p72 = por %p70, %p71
      %p73 = scmp.ne.s32.totalorder %s65, %s67
      %p74 = scmp.eq.s32.totalorder %s15, 1
      %p75 = por %p73, %p74
      %p76 = scmp.ne.s32.totalorder %s67, %s68
      %p77 = scmp.eq.s32.totalorder %s15, 0
      %p78 = por %p76, %p77
      %p79 = scmp.ne.s32.totalorder %s67, %s68
      %p80 = scmp.eq.s32.totalorder %s16, 1
      %p81 = por %p79, %p80
      %p83 = scmp.ne.s32.totalorder %s68, %s82
      %p84 = scmp.eq.s32.totalorder %s16, 0
      %p85 = por %p83, %p84
      %s87 = sadd.s32 %s86, 1
      %p90 = scmp.eq.s32.totalorder %s10, 1
      %p91 = scmp.ne.s32.totalorder %s86, %s88
      %p92 = scmp.eq.s32.totalorder %s10, 0
      %p93 = por %p91, %p92
      %p94 = scmp.ne.s32.totalorder %s86, %s88
      %p95 = scmp.eq.s32.totalorder %s15, 1
      %p96 = por %p94, %p95
      %p97 = scmp.ne.s32.totalorder %s88, %s89
      %p98 = scmp.eq.s32.totalorder %s15, 0
      %p99 = por %p97, %p98
      %p100 = scmp.ne.s32.totalorder %s88, %s89
      %p101 = scmp.eq.s32.totalorder %s16, 1
      %p102 = por %p100, %p101
      %p104 = scmp.ne.s32.totalorder %s89, %s103
      %p105 = scmp.eq.s32.totalorder %s16, 0
      %p106 = por %p104, %p105
      %s107 = ssub.s32 %s10, %s17
      %p108 = scmp.eq.s32.totalorder %s107, 0
      %s110 = sadd.s32 %s109, 1
      %s111 = scalar_select %p108, %s109, %s110
      %p114 = pneg %p108
      %p115 = scmp.eq.s32.totalorder %s10, 1
      %p116 = por %p114, %p115
      %p117 = scmp.ne.s32.totalorder %s109, %s112
      %p118 = scmp.eq.s32.totalorder %s10, 0
      %p119 = por %p117, %p118
      %p120 = scmp.ne.s32.totalorder %s109, %s112
      %p121 = scmp.eq.s32.totalorder %s15, 1
      %p122 = por %p120, %p121
      %p123 = scmp.ne.s32.totalorder %s112, %s113
      %p124 = scmp.eq.s32.totalorder %s15, 0
      %p125 = por %p123, %p124
      %p126 = scmp.ne.s32.totalorder %s112, %s113
      %p127 = scmp.eq.s32.totalorder %s16, 1
      %p128 = por %p126, %p127
      %p130 = scmp.ne.s32.totalorder %s113, %s129
      %p131 = scmp.eq.s32.totalorder %s16, 0
      %p132 = por %p130, %p131
      %p133 = scmp.le.s32.totalorder 1, %s10
      %p134 = scmp.lt.s32.totalorder %s10, 3
      %p135 = pnand %p133, %p134
      %p136 = pneg %p135
      // Predicated region
      $region9: #{cell_stem0_forward.1} parent=5 // pred_check
        _
      $region10: #{cell_stem0_forward.1} parent=5 // pred_check_branch
        %138 = sbr.rel (%p135) target = $region12
      $region11: #{cell_stem0_forward.1} parent=5 // pred_region
        %s139 = ssub.s32 %s10, 1
        // Predicated region
        $region13: #{cell_stem0_forward.1} parent=11 // pred_check
          %p140 = pneg %p57
        $region14: #{cell_stem0_forward.1} parent=11 // pred_check_branch
          %142 = sbr.rel (%p140) target = $region16
        $region15: #{cell_stem0_forward.1} parent=11 // pred_region
          _
        $region16: #{cell_stem0_forward.1} parent=11 // pred_fallthru
          _
        // Predicated region
        $region17: #{cell_stem0_forward.1} parent=11 // pred_check
          %p143 = pneg %p78
        $region18: #{cell_stem0_forward.1} parent=11 // pred_check_branch
          %145 = sbr.rel (%p143) target = $region20
        $region19: #{cell_stem0_forward.1} parent=11 // pred_region
          _
        $region20: #{cell_stem0_forward.1} parent=11 // pred_fallthru
          _
        // Predicated region
        $region21: #{cell_stem0_forward.1} parent=11 // pred_check
          %p146 = pneg %p99
        $region22: #{cell_stem0_forward.1} parent=11 // pred_check_branch
          %148 = sbr.rel (%p146) target = $region24
        $region23: #{cell_stem0_forward.1} parent=11 // pred_region
          _
        $region24: #{cell_stem0_forward.1} parent=11 // pred_fallthru
          _
      $region12: #{cell_stem0_forward.1} parent=5 // pred_fallthru
        _
      %p149 = scmp.lt.s32.totalorder %s10, 2
      // Predicated region
      $region25: #{cell_stem0_forward.1} parent=5 // pred_check
        %p150 = pneg %p149
      $region26: #{cell_stem0_forward.1} parent=5 // pred_check_branch
        %152 = sbr.rel (%p150) target = $region28
      $region27: #{cell_stem0_forward.1} parent=5 // pred_region
        // Predicated region
        $region29: #{cell_stem0_forward.1} parent=27 // pred_check
          %p153 = pneg %p30
        $region30: #{cell_stem0_forward.1} parent=27 // pred_check_branch
          %155 = sbr.rel (%p153) target = $region32
        $region31: #{cell_stem0_forward.1} parent=27 // pred_region
          %s156 = sand.u32 %s20, 1
          %s157 = sand.u32 %s20, 1
          %s158 = smul.addr %s157, 64
          %s159 = scalar_lea.vmem [#allocation6], %s158
          %s160 = smul.addr %s10, 2
          %s161 = smul.addr %s160, 8
          %s162 = scalar_lea.vmem %s0, %s161
          // Predicated region
          $region33: #{cell_stem0_forward.1} parent=31 // pred_check
            _
          $region34: #{cell_stem0_forward.1} parent=31 // pred_check_branch
            %164 = sbr.rel (0) target = $region36
          $region35: #{cell_stem0_forward.1} parent=31 // pred_region
            // Predicated region
            $region37: #{cell_stem0_forward.1} parent=35 // pred_check
              _
            $region38: #{cell_stem0_forward.1} parent=35 // pred_check_branch
              %166 = sbr.rel (0) target = $region40
            $region39: #{cell_stem0_forward.1} parent=35 // pred_region
              // Predicated region
              $region52: #{cell_stem0_forward.1} parent=39 // pred_check
                _
              $region53: #{cell_stem0_forward.1} parent=39 // pred_check_branch
                %195 = sbr.rel (0) target = $region55
              $region54: #{cell_stem0_forward.1} parent=39 // pred_region
                loop: start=0, step=1, limit=1
                $region56: #{cell_stem0_forward.1} parent=54 // loop_pre_header
                  _
                $region57: #{cell_stem0_forward.1} parent=54 // loop_header
                  %s197 = sphi 0, %s201
                  %p198 = scmp.ge.s32.totalorder %s197, 1
                  %s202 = sphi %s162, %s162
                  %s203 = sphi %s159, %s159
                $region58: #{cell_stem0_forward.1} parent=54 // loop_header_branch
                  %200 = sbr.rel (%p198) target = $region62
                $region59: #{cell_stem0_forward.1} parent=54 // loop_body
                  %v204 = vld [vmem:[%s202] sm:$0xff]
                  %205 = vst [vmem:[%s203] sm:$0xff] %v204
                  %v206 = vld [vmem:[%s202 + $0x8] sm:$0xff]
                  %207 = vst [vmem:[%s203 + $0x8] sm:$0xff] %v206
                  %v208 = vld [vmem:[%s202 + $0x20] sm:$0xff]
                  %209 = vst [vmem:[%s203 + $0x10] sm:$0xff] %v208
                  %v210 = vld [vmem:[%s202 + $0x28] sm:$0xff]
                  %211 = vst [vmem:[%s203 + $0x18] sm:$0xff] %v210
                  %v212 = vld [vmem:[%s202 + $0x40] sm:$0xff]
                  %213 = vst [vmem:[%s203 + $0x20] sm:$0xff] %v212
                  %v214 = vld [vmem:[%s202 + $0x48] sm:$0xff]
                  %215 = vst [vmem:[%s203 + $0x28] sm:$0xff] %v214
                  %v216 = vld [vmem:[%s202 + $0x60] sm:$0xff]
                  %217 = vst [vmem:[%s203 + $0x30] sm:$0xff] %v216
                  %v218 = vld [vmem:[%s202 + $0x68] sm:$0xff]
                  %219 = vst [vmem:[%s203 + $0x38] sm:$0xff] %v218
                $region60: #{cell_stem0_forward.1} parent=54 // loop_footer
                  %s201 = sadd.s32 1, %s197
                $region61: #{cell_stem0_forward.1} parent=54 // loop_footer_branch
                  %196 = sbr.rel target = $region57
                $region62: #{cell_stem0_forward.1} parent=54 // loop_exit
                  _
              $region55: #{cell_stem0_forward.1} parent=39 // pred_fallthru
                _
              // Predicated region
              $region63: #{cell_stem0_forward.1} parent=39 // pred_check
                _
              $region64: #{cell_stem0_forward.1} parent=39 // pred_check_branch
                %221 = sbr.rel target = $region66
              $region65: #{cell_stem0_forward.1} parent=39 // pred_region
                _
              $region66: #{cell_stem0_forward.1} parent=39 // pred_fallthru
                _
            $region40: #{cell_stem0_forward.1} parent=35 // pred_fallthru
              _
            // Predicated region
            $region41: #{cell_stem0_forward.1} parent=35 // pred_check
              _
            $region42: #{cell_stem0_forward.1} parent=35 // pred_check_branch
              %168 = sbr.rel target = $region44
            $region43: #{cell_stem0_forward.1} parent=35 // pred_region
              loop: start=0, step=1, limit=1
              $region45: #{cell_stem0_forward.1} parent=43 // loop_pre_header
                _
              $region46: #{cell_stem0_forward.1} parent=43 // loop_header
                %s171 = sphi 0, %s175
                %p172 = scmp.ge.s32.totalorder %s171, 1
                %s176 = sphi %s162, %s162
                %s177 = sphi %s159, %s159
              $region47: #{cell_stem0_forward.1} parent=43 // loop_header_branch
                %174 = sbr.rel (%p172) target = $region51
              $region48: #{cell_stem0_forward.1} parent=43 // loop_body
                %v178 = vld [vmem:[%s176] sm:$0xff]
                %179 = vst [vmem:[%s177] sm:$0xff] %v178
                %v180 = vld [vmem:[%s176 + $0x8] sm:$0xff]
                %181 = vst [vmem:[%s177 + $0x8] sm:$0xff] %v180
                %v182 = vld [vmem:[%s176 + $0x20] sm:$0xff]
                %183 = vst [vmem:[%s177 + $0x10] sm:$0xff] %v182
                %v184 = vld [vmem:[%s176 + $0x28] sm:$0xff]
                %185 = vst [vmem:[%s177 + $0x18] sm:$0xff] %v184
                %v186 = vld [vmem:[%s176 + $0x40] sm:$0xff]
                %187 = vst [vmem:[%s177 + $0x20] sm:$0xff] %v186
                %v188 = vld [vmem:[%s176 + $0x48] sm:$0xff]
                %189 = vst [vmem:[%s177 + $0x28] sm:$0xff] %v188
                %v190 = vld [vmem:[%s176 + $0x60] sm:$0xff]
                %191 = vst [vmem:[%s177 + $0x30] sm:$0xff] %v190
                %v192 = vld [vmem:[%s176 + $0x68] sm:$0xff]
                %193 = vst [vmem:[%s177 + $0x38] sm:$0xff] %v192
              $region49: #{cell_stem0_forward.1} parent=43 // loop_footer
                %s175 = sadd.s32 1, %s171
              $region50: #{cell_stem0_forward.1} parent=43 // loop_footer_branch
                %170 = sbr.rel target = $region46
              $region51: #{cell_stem0_forward.1} parent=43 // loop_exit
                _
            $region44: #{cell_stem0_forward.1} parent=35 // pred_fallthru
              _
          $region36: #{cell_stem0_forward.1} parent=31 // pred_fallthru
            _
          %222 = vnop
        $region32: #{cell_stem0_forward.1} parent=27 // pred_fallthru
          _
      $region28: #{cell_stem0_forward.1} parent=5 // pred_fallthru
        _
      %p223 = scmp.le.s32.totalorder 1, %s10
      %p224 = scmp.lt.s32.totalorder %s10, 3
      %p225 = pnand %p223, %p224
      %p226 = pneg %p225
      // Predicated region
      $region67: #{cell_stem0_forward.1} parent=5 // pred_check
        _
      $region68: #{cell_stem0_forward.1} parent=5 // pred_check_branch
        %228 = sbr.rel (%p225) target = $region70
      $region69: #{cell_stem0_forward.1} parent=5 // pred_region
        %s229 = ssub.s32 %s10, 1
        %s230 = sand.u32 %s23, 1
        %s231 = sand.u32 %s23, 1
        %s232 = smul.addr %s231, 64
        %s233 = scalar_lea.vmem [#allocation6], %s232
        // Predicated region
        $region71: #{cell_stem0_forward.1} parent=69 // pred_check
          %p234 = pneg %p36
        $region72: #{cell_stem0_forward.1} parent=69 // pred_check_branch
          %236 = sbr.rel (%p234) target = $region74
        $region73: #{cell_stem0_forward.1} parent=69 // pred_region
          _
        $region74: #{cell_stem0_forward.1} parent=69 // pred_fallthru
          _
        %s237 = sand.u32 %s23, 1
        %s238 = sand.u32 %s23, 1
        %s239 = smul.addr %s238, 64
        %s240 = scalar_lea.vmem [#allocation6], %s239
        %p241 = pneg %p36
        %p242 = pneg %p33
        %p243 = pneg %p57
        %p244 = pneg %p54
        %p245 = pneg %p78
        %p246 = pneg %p75
        %p247 = pneg %p99
        %p248 = pneg %p96
        %p249 = pneg %p125
        %p250 = pneg %p122
        %p251 = scmp.lt.s32.totalorder %s15, 1
        %s252 = scalar_select %p251, %s15, 1
        %s253 = smul.addr %s252, 3
        %s254 = smul.addr %s253, 8
        %s255 = scalar_lea.vmem %s4, %s254
        %p256 = scmp.lt.s32.totalorder %s15, 1
        %s257 = scalar_select %p256, %s15, 1
        %s258 = smul.addr %s257, 3
        %s259 = smul.addr %s258, 8
        %s260 = scalar_lea.vmem %s4, %s259
        %v261 = vld [vmem:[%s233] sm:$0xff]
        %v262 = vld [vmem:[%s233 + $0x8] sm:$0xf]
        %v263 = vld [vmem:[%s233 + $0x10] sm:$0xff]
        %v264 = vld [vmem:[%s233 + $0x18] sm:$0xf]
        %v265 = vld [vmem:[%s233 + $0x20] sm:$0xff]
        %v266 = vld [vmem:[%s233 + $0x28] sm:$0xf]
        %v267 = vld [vmem:[%s233 + $0x30] sm:$0xff]
        %v268 = vld [vmem:[%s233 + $0x38] sm:$0xf]
        %v269 = vmax.f32 %v261, 0.0
        %v270 = vmax.f32 %v262, 0.0
        %v271 = vmax.f32 %v263, 0.0
        %v272 = vmax.f32 %v264, 0.0
        %v273 = vmax.f32 %v265, 0.0
        %v274 = vmax.f32 %v266, 0.0
        %v275 = vmax.f32 %v267, 0.0
        %v276 = vmax.f32 %v268, 0.0
        %vm277 = vcmask 785408
        %278 = vst.msk [vmem:[#allocation2] sm:$0xff] %vm277, %v269
        %vm279 = vcmask 781312
        %280 = vst.msk [vmem:[#allocation2 + $0x8] sm:$0xf] %vm279, %v270
        %281 = vst.msk [vmem:[#allocation2 + $0x10] sm:$0xff] %vm277, %v271
        %282 = vst.msk [vmem:[#allocation2 + $0x18] sm:$0xf] %vm279, %v272
        %283 = vst.msk [vmem:[#allocation2 + $0x20] sm:$0xff] %vm277, %v273
        %284 = vst.msk [vmem:[#allocation2 + $0x28] sm:$0xf] %vm279, %v274
        %285 = vst.msk [vmem:[#allocation2 + $0x30] sm:$0xff] %vm277, %v275
        %286 = vst.msk [vmem:[#allocation2 + $0x38] sm:$0xf] %vm279, %v276
        %vm287 = vcmask 779264
        %288 = vst.msk [vmem:[#allocation4] sm:$0x3] %vm287, -inf
        %289 = vst.msk [vmem:[#allocation4 + $0x10] sm:$0x3] %vm287, -inf
        %290 = vst.msk [vmem:[#allocation4 + $0x20] sm:$0x3] %vm287, -inf
        %291 = vst.msk [vmem:[#allocation4 + $0x30] sm:$0x3] %vm287, -inf
        %292 = vst.msk [vmem:[#allocation4 + $0xa] sm:$0x3] %vm287, -inf
        %293 = vst.msk [vmem:[#allocation4 + $0x1a] sm:$0x3] %vm287, -inf
        %294 = vst.msk [vmem:[#allocation4 + $0x2a] sm:$0x3] %vm287, -inf
        %295 = vst.msk [vmem:[#allocation4 + $0x3a] sm:$0x3] %vm287, -inf
        %vm296 = vcmask 130048
        %297 = vst.msk [vmem:[#allocation4 + $0x2] sm:$0xff] %vm296, -inf
        %298 = vst.msk [vmem:[#allocation4 + $0x12] sm:$0xff] %vm296, -inf
        %299 = vst.msk [vmem:[#allocation4 + $0x22] sm:$0xff] %vm296, -inf
        %300 = vst.msk [vmem:[#allocation4 + $0x32] sm:$0xff] %vm296, -inf
        %vm301 = vcmask 786048
        %302 = vst.msk [vmem:[#allocation4 + $0x2] sm:$0xff] %vm301, -inf
        %303 = vst.msk [vmem:[#allocation4 + $0x12] sm:$0xff] %vm301, -inf
        %304 = vst.msk [vmem:[#allocation4 + $0x22] sm:$0xff] %vm301, -inf
        %305 = vst.msk [vmem:[#allocation4 + $0x32] sm:$0xff] %vm301, -inf
        %306 = vst.msk [vmem:[#allocation3] sm:$0x3] %vm287, 0.0
        %307 = vst.msk [vmem:[#allocation3 + $0x10] sm:$0x3] %vm287, 0.0
        %308 = vst.msk [vmem:[#allocation3 + $0x20] sm:$0x3] %vm287, 0.0
        %309 = vst.msk [vmem:[#allocation3 + $0x30] sm:$0x3] %vm287, 0.0
        %310 = vst.msk [vmem:[#allocation3 + $0xa] sm:$0x3] %vm287, 0.0
        %311 = vst.msk [vmem:[#allocation3 + $0x1a] sm:$0x3] %vm287, 0.0
        %312 = vst.msk [vmem:[#allocation3 + $0x2a] sm:$0x3] %vm287, 0.0
        %313 = vst.msk [vmem:[#allocation3 + $0x3a] sm:$0x3] %vm287, 0.0
        %314 = vst.msk [vmem:[#allocation3 + $0x2] sm:$0xff] %vm296, 0.0
        %315 = vst.msk [vmem:[#allocation3 + $0x12] sm:$0xff] %vm296, 0.0
        %316 = vst.msk [vmem:[#allocation3 + $0x22] sm:$0xff] %vm296, 0.0
        %317 = vst.msk [vmem:[#allocation3 + $0x32] sm:$0xff] %vm296, 0.0
        %318 = vst.msk [vmem:[#allocation3 + $0x2] sm:$0xff] %vm301, 0.0
        %319 = vst.msk [vmem:[#allocation3 + $0x12] sm:$0xff] %vm301, 0.0
        %320 = vst.msk [vmem:[#allocation3 + $0x22] sm:$0xff] %vm301, 0.0
        %321 = vst.msk [vmem:[#allocation3 + $0x32] sm:$0xff] %vm301, 0.0
        %vm322 = vcmask 916480
        %323 = vst.msk [vmem:[#allocation5] sm:$0xff] %vm322, 0.0
        %vm324 = vcmask 914432
        %325 = vst.msk [vmem:[#allocation5 + $0x8] sm:$0x3f] %vm324, 0.0
        %v326 = vld [vmem:[#allocation2 + $0x2] sm:$0xff]
        %s327 = scalar_lea.vmem [#allocation2], 16
        %v328 = vld [vmem:[%s327 + $0x2] sm:$0xff]
        %s329 = scalar_lea.vmem [#allocation2], 32
        %v330 = vld [vmem:[%s329 + $0x2] sm:$0xff]
        %s331 = scalar_lea.vmem [#allocation2], 48
        %v332 = vld [vmem:[%s331 + $0x2] sm:$0xff]
        %v333 = vld [vmem:[%s2] sm:$0xff]
        %v334 = vld [vmem:[%s2 + $0x8] sm:$0xff]
        %v335 = vld [vmem:[%s2 + $0x10] sm:$0xff]
        %v336 = vld [vmem:[%s2 + $0x18] sm:$0xff]
        %v337 = vld [vmem:[%s2 + $0x20] sm:$0xff]
        %v338 = vld [vmem:[%s2 + $0x28] sm:$0xff]
        %v339 = vld [vmem:[%s2 + $0x30] sm:$0xff]
        %v340 = vld [vmem:[%s2 + $0x38] sm:$0xff]
        %v341 = vld [vmem:[%s3] sm:$0x1]
        %v342 = vlaneseq
        %v343 = vshrl.u32 %v342, 7
        %v344 = vsub.s32 0, %v343
        %v345 = vrot.slane %v341, %v344
        %350 = vrot.lane.b32.xlu0 %v326, 112
        %v351 = vpop.permute.xlu0 %350
        %352 = vrot.lane.b32.xlu0 %v328, 112
        %v353 = vpop.permute.xlu0 %352
        %354 = vrot.lane.b32.xlu0 %v330, 112
        %v355 = vpop.permute.xlu0 %354
        %356 = vrot.lane.b32.xlu0 %v332, 112
        %v357 = vpop.permute.xlu0 %356
        %vm358 = vcmask 523264
        %v359 = vsel %vm358, %v351, 0
        %v361 = vsel %vm358, %v353, 0
        %v363 = vsel %vm358, %v355, 0
        %v365 = vsel %vm358, %v357, 0
        %367 = vmatprep.subr.mxu0 0.0
        %368 = vmatpush1.msra.mxu0 %v333
        %369 = vmatprep.subr.mxu0 0.0
        %370 = vmatpush1.msra.mxu0 %v334
        %371 = vmatprep.subr.mxu0 0.0
        %372 = vmatpush1.msra.mxu0 %v335
        %373 = vmatprep.subr.mxu0 0.0
        %374 = vmatpush1.msra.mxu0 %v336
        %375 = vmatprep.subr.mxu0 0.0
        %376 = vmatpush1.msra.mxu0 %v337
        %377 = vmatprep.subr.mxu0 0.0
        %378 = vmatpush1.msra.mxu0 %v338
        %379 = vmatprep.subr.mxu0 0.0
        %380 = vmatpush1.msra.mxu0 %v339
        %381 = vmatprep.subr.mxu0 0.0
        %382 = vmatpush1.msra.mxu0 %v340
        %383 = vmatprep.subr.mxu0 0.0
        %384 = vmatpush1.msra.mxu0 0.0
        %385 = vmatprep.subr.mxu0 0.0
        %386 = vmatpush1.msra.mxu0 0.0
        %387 = vmatprep.subr.mxu0 0.0
        %388 = vmatpush1.msra.mxu0 0.0
        %389 = vmatprep.subr.mxu0 0.0
        %390 = vmatpush1.msra.mxu0 0.0
        %391 = vmatprep.subr.mxu0 0.0
        %392 = vmatpush1.msra.mxu0 0.0
        %393 = vmatprep.subr.mxu0 0.0
        %394 = vmatpush1.msra.mxu0 0.0
        %395 = vmatprep.subr.mxu0 0.0
        %396 = vmatpush1.msra.mxu0 0.0
        %397 = vmatprep.subr.mxu0 0.0
        %398 = vmatpush1.msra.mxu0 0.0
        %399 = vmatprep.subr.mxu0 0.0
        %400 = vmatpush1.msra.mxu0 0.0
        %401 = vmatprep.subr.mxu0 0.0
        %402 = vmatpush1.msra.mxu0 0.0
        %403 = vmatprep.subr.mxu0 0.0
        %404 = vmatpush1.msra.mxu0 0.0
        %405 = vmatprep.subr.mxu0 0.0
        %406 = vmatpush1.msra.mxu0 0.0
        %407 = vmatprep.subr.mxu0 0.0
        %408 = vmatpush1.msra.mxu0 0.0
        %409 = vmatprep.subr.mxu0 0.0
        %410 = vmatpush1.msra.mxu0 0.0
        %411 = vmatprep.subr.mxu0 0.0
        %412 = vmatpush1.msra.mxu0 0.0
        %413 = vmatprep.subr.mxu0 0.0
        %414 = vmatpush1.msra.mxu0 0.0
        %415 = vmatprep.subr.mxu0 0.0
        %416 = vmatpush1.msra.mxu0 0.0
        %417 = vmatprep.subr.mxu0 0.0
        %418 = vmatpush1.msra.mxu0 0.0
        %419 = vmatprep.subr.mxu0 0.0
        %420 = vmatpush1.msra.mxu0 0.0
        %421 = vmatprep.subr.mxu0 0.0
        %422 = vmatpush1.msra.mxu0 0.0
        %423 = vmatprep.subr.mxu0 0.0
        %424 = vmatpush1.msra.mxu0 0.0
        %425 = vmatprep.subr.mxu0 0.0
        %426 = vmatpush1.msra.mxu0 0.0
        %427 = vmatprep.subr.mxu0 0.0
        %428 = vmatpush1.msra.mxu0 0.0
        %429 = vmatprep.subr.mxu0 0.0
        %430 = vmatpush1.msra.mxu0 0.0
        %431 = vmatprep.mubr.f32.mxu0 0.0
        %432 = vmatmul.mubr.f32.gmra.mrb[0].mxu0 %v359
        %v433 = vpop.f32.mrb[0].mxu0
        %v434 = vadd.f32 %v345, %v433
        %v435 = vpop.f32.mrb[0].mxu0
        %436 = vmatprep.mubr.f32.mxu0 0.0
        %437 = vmatmul.mubr.f32.gmra.mrb[0].mxu0 %v361
        %v438 = vpop.f32.mrb[0].mxu0
        %v439 = vadd.f32 %v345, %v438
        %v440 = vpop.f32.mrb[0].mxu0
        %441 = vmatprep.mubr.f32.mxu0 0.0
        %442 = vmatmul.mubr.f32.gmra.mrb[0].mxu0 %v363
        %v443 = vpop.f32.mrb[0].mxu0
        %v444 = vadd.f32 %v345, %v443
        %v445 = vpop.f32.mrb[0].mxu0
        %446 = vmatprep.mubr.f32.mxu0 0.0
        %447 = vmatmul.mubr.f32.gmra.mrb[0].mxu0 %v365
        %v448 = vpop.f32.mrb[0].mxu0
        %v449 = vadd.f32 %v345, %v448
        %v450 = vpop.f32.mrb[0].mxu0
        %451 = vdwg.mxu0
        %453 = vrot.lane.b32.xlu0 %v434, 16
        %v454 = vpop.permute.xlu0 %453
        %vm456 = vcmask 654464
        %457 = vst.msk [vmem:[#allocation4 + $0x2] sm:$0xff] %vm456, %v454
        %v458 = vmax.f32 %v434, 0.0
        %460 = vrot.lane.b32.xlu0 %v458, 16
        %v461 = vpop.permute.xlu0 %460
        %463 = vst.msk [vmem:[#allocation3 + $0x2] sm:$0xff] %vm456, %v461
        %465 = vrot.lane.b32.xlu0 %v439, 16
        %v466 = vpop.permute.xlu0 %465
        %s468 = scalar_lea.vmem [#allocation4], 16
        %469 = vst.msk [vmem:[%s468 + $0x2] sm:$0xff] %vm456, %v466
        %v470 = vmax.f32 %v439, 0.0
        %472 = vrot.lane.b32.xlu0 %v470, 16
        %v473 = vpop.permute.xlu0 %472
        %s475 = scalar_lea.vmem [#allocation3], 16
        %476 = vst.msk [vmem:[%s475 + $0x2] sm:$0xff] %vm456, %v473
        %478 = vrot.lane.b32.xlu0 %v444, 16
        %v479 = vpop.permute.xlu0 %478
        %s481 = scalar_lea.vmem [#allocation4], 32
        %482 = vst.msk [vmem:[%s481 + $0x2] sm:$0xff] %vm456, %v479
        %v483 = vmax.f32 %v444, 0.0
        %485 = vrot.lane.b32.xlu0 %v483, 16
        %v486 = vpop.permute.xlu0 %485
        %s488 = scalar_lea.vmem [#allocation3], 32
        %489 = vst.msk [vmem:[%s488 + $0x2] sm:$0xff] %vm456, %v486
        %491 = vrot.lane.b32.xlu0 %v449, 16
        %v492 = vpop.permute.xlu0 %491
        %s494 = scalar_lea.vmem [#allocation4], 48
        %495 = vst.msk [vmem:[%s494 + $0x2] sm:$0xff] %vm456, %v492
        %v496 = vmax.f32 %v449, 0.0
        %498 = vrot.lane.b32.xlu0 %v496, 16
        %v499 = vpop.permute.xlu0 %498
        %s501 = scalar_lea.vmem [#allocation3], 48
        %502 = vst.msk [vmem:[%s501 + $0x2] sm:$0xff] %vm456, %v499
        %v503 = vld [vmem:[#allocation2 + $0x1] sm:$0xff]
        %v504 = vld [vmem:[%s1] sm:$0x1]
        %v505 = vlaneseq
        %v506 = vshrl.u32 %v505, 7
        %v507 = vsub.s32 0, %v506
        %v508 = vrot.slane %v504, %v507
        %510 = vrot.lane.b32.xlu0 %v508, 8
        %v511 = vpop.permute.xlu0 %510
        %v513 = vmul.f32 %v503, %v511
        %v514 = vld [vmem:[%s327 + $0x1] sm:$0xff]
        %v515 = vld [vmem:[%s1 + $0x1] sm:$0x1]
        %v516 = vlaneseq
        %v517 = vshrl.u32 %v516, 7
        %v518 = vsub.s32 0, %v517
        %v519 = vrot.slane %v515, %v518
        %521 = vrot.lane.b32.xlu0 %v519, 8
        %v522 = vpop.permute.xlu0 %521
        %v524 = vmul.f32 %v514, %v522
        %v525 = vadd.f32 %v513, %v524
        %v526 = vld [vmem:[%s1 + $0x2] sm:$0x1]
        %v527 = vlaneseq
        %v528 = vshrl.u32 %v527, 7
        %v529 = vsub.s32 0, %v528
        %v530 = vrot.slane %v526, %v529
        %532 = vrot.lane.b32.xlu0 %v530, 16
        %v533 = vpop.permute.xlu0 %532
        %v535 = vmul.f32 %v503, %v533
        %537 = vrot.lane.b32.xlu0 %v535, 120
        %v538 = vpop.permute.xlu0 %537
        %v540 = vadd.f32 %v525, %v538
        %v541 = vld [vmem:[%s1 + $0x3] sm:$0x1]
        %v542 = vlaneseq
        %v543 = vshrl.u32 %v542, 7
        %v544 = vsub.s32 0, %v543
        %v545 = vrot.slane %v541, %v544
        %547 = vrot.lane.b32.xlu0 %v545, 16
        %v548 = vpop.permute.xlu0 %547
        %v550 = vmul.f32 %v514, %v548
        %552 = vrot.lane.b32.xlu0 %v550, 120
        %v553 = vpop.permute.xlu0 %552
        %v555 = vadd.f32 %v540, %v553
        %v556 = vld [vmem:[%s1 + $0x4] sm:$0x1]
        %v557 = vlaneseq
        %v558 = vshrl.u32 %v557, 7
        %v559 = vsub.s32 0, %v558
        %v560 = vrot.slane %v556, %v559
        %562 = vrot.lane.b32.xlu0 %v560, 24
        %v563 = vpop.permute.xlu0 %562
        %v565 = vmul.f32 %v503, %v563
        %567 = vrot.lane.b32.xlu0 %v565, 112
        %v568 = vpop.permute.xlu0 %567
        %v570 = vadd.f32 %v555, %v568
        %v571 = vld [vmem:[%s329 + $0x1] sm:$0xff]
        %v572 = vld [vmem:[%s1 + $0x5] sm:$0x1]
        %v573 = vlaneseq
        %v574 = vshrl.u32 %v573, 7
        %v575 = vsub.s32 0, %v574
        %v576 = vrot.slane %v572, %v575
        %578 = vrot.lane.b32.xlu0 %v576, 8
        %v579 = vpop.permute.xlu0 %578
        %v581 = vmul.f32 %v571, %v579
        %v582 = vadd.f32 %v570, %v581
        %v583 = vld [vmem:[%s331 + $0x1] sm:$0xff]
        %v584 = vld [vmem:[%s1 + $0x6] sm:$0x1]
        %v585 = vlaneseq
        %v586 = vshrl.u32 %v585, 7
        %v587 = vsub.s32 0, %v586
        %v588 = vrot.slane %v584, %v587
        %590 = vrot.lane.b32.xlu0 %v588, 8
        %v591 = vpop.permute.xlu0 %590
        %v593 = vmul.f32 %v583, %v591
        %v594 = vadd.f32 %v582, %v593
        %v595 = vld [vmem:[%s1 + $0x7] sm:$0x1]
        %v596 = vlaneseq
        %v597 = vshrl.u32 %v596, 7
        %v598 = vsub.s32 0, %v597
        %v599 = vrot.slane %v595, %v598
        %601 = vrot.lane.b32.xlu0 %v599, 16
        %v602 = vpop.permute.xlu0 %601
        %v604 = vmul.f32 %v571, %v602
        %606 = vrot.lane.b32.xlu0 %v604, 120
        %v607 = vpop.permute.xlu0 %606
        %v609 = vadd.f32 %v594, %v607
        %v610 = vld [vmem:[%s1 + $0x8] sm:$0x1]
        %v611 = vlaneseq
        %v612 = vshrl.u32 %v611, 7
        %v613 = vsub.s32 0, %v612
        %v614 = vrot.slane %v610, %v613
        %616 = vrot.lane.b32.xlu0 %v614, 16
        %v617 = vpop.permute.xlu0 %616
        %v619 = vmul.f32 %v583, %v617
        %621 = vrot.lane.b32.xlu0 %v619, 120
        %v622 = vpop.permute.xlu0 %621
        %v624 = vadd.f32 %v609, %v622
        %v625 = vld [vmem:[%s1 + $0x9] sm:$0x1]
        %v626 = vlaneseq
        %v627 = vshrl.u32 %v626, 7
        %v628 = vsub.s32 0, %v627
        %v629 = vrot.slane %v625, %v628
        %631 = vrot.lane.b32.xlu0 %v629, 24
        %v632 = vpop.permute.xlu0 %631
        %v634 = vmul.f32 %v571, %v632
        %636 = vrot.lane.b32.xlu0 %v634, 112
        %v637 = vpop.permute.xlu0 %636
        %v639 = vadd.f32 %v624, %v637
        %v640 = vld [vmem:[#allocation2 + $0x2] sm:$0xff]
        %v641 = vld [vmem:[%s1 + $0xa] sm:$0x1]
        %v642 = vlaneseq
        %v643 = vshrl.u32 %v642, 7
        %v644 = vsub.s32 0, %v643
        %v645 = vrot.slane %v641, %v644
        %647 = vrot.lane.b32.xlu0 %v645, 8
        %v648 = vpop.permute.xlu0 %647
        %v650 = vmul.f32 %v640, %v648
        %v651 = vadd.f32 %v639, %v650
        %v652 = vld [vmem:[%s327 + $0x2] sm:$0xff]
        %v653 = vld [vmem:[%s1 + $0xb] sm:$0x1]
        %v654 = vlaneseq
        %v655 = vshrl.u32 %v654, 7
        %v656 = vsub.s32 0, %v655
        %v657 = vrot.slane %v653, %v656
        %659 = vrot.lane.b32.xlu0 %v657, 8
        %v660 = vpop.permute.xlu0 %659
        %v662 = vmul.f32 %v652, %v660
        %v663 = vadd.f32 %v651, %v662
        %v664 = vld [vmem:[%s1 + $0xc] sm:$0x1]
        %v665 = vlaneseq
        %v666 = vshrl.u32 %v665, 7
        %v667 = vsub.s32 0, %v666
        %v668 = vrot.slane %v664, %v667
        %670 = vrot.lane.b32.xlu0 %v668, 16
        %v671 = vpop.permute.xlu0 %670
        %v673 = vmul.f32 %v640, %v671
        %675 = vrot.lane.b32.xlu0 %v673, 120
        %v676 = vpop.permute.xlu0 %675
        %v678 = vadd.f32 %v663, %v676
        %v679 = vld [vmem:[%s1 + $0xd] sm:$0x1]
        %v680 = vlaneseq
        %v681 = vshrl.u32 %v680, 7
        %v682 = vsub.s32 0, %v681
        %v683 = vrot.slane %v679, %v682
        %685 = vrot.lane.b32.xlu0 %v683, 16
        %v686 = vpop.permute.xlu0 %685
        %v688 = vmul.f32 %v652, %v686
        %690 = vrot.lane.b32.xlu0 %v688, 120
        %v691 = vpop.permute.xlu0 %690
        %v693 = vadd.f32 %v678, %v691
        %v694 = vld [vmem:[%s1 + $0xe] sm:$0x1]
        %v695 = vlaneseq
        %v696 = vshrl.u32 %v695, 7
        %v697 = vsub.s32 0, %v696
        %v698 = vrot.slane %v694, %v697
        %700 = vrot.lane.b32.xlu0 %v698, 24
        %v701 = vpop.permute.xlu0 %700
        %v703 = vmul.f32 %v640, %v701
        %705 = vrot.lane.b32.xlu0 %v703, 112
        %v706 = vpop.permute.xlu0 %705
        %v708 = vadd.f32 %v693, %v706
        %v709 = vld [vmem:[%s329 + $0x2] sm:$0xff]
        %v710 = vld [vmem:[%s1 + $0xf] sm:$0x1]
        %v711 = vlaneseq
        %v712 = vshrl.u32 %v711, 7
        %v713 = vsub.s32 0, %v712
        %v714 = vrot.slane %v710, %v713
        %716 = vrot.lane.b32.xlu0 %v714, 8
        %v717 = vpop.permute.xlu0 %716
        %v719 = vmul.f32 %v709, %v717
        %v720 = vadd.f32 %v708, %v719
        %v721 = vld [vmem:[%s331 + $0x2] sm:$0xff]
        %v722 = vld [vmem:[%s1 + $0x10] sm:$0x1]
        %v723 = vlaneseq
        %v724 = vshrl.u32 %v723, 7
        %v725 = vsub.s32 0, %v724
        %v726 = vrot.slane %v722, %v725
        %728 = vrot.lane.b32.xlu0 %v726, 8
        %v729 = vpop.permute.xlu0 %728
        %v731 = vmul.f32 %v721, %v729
        %v732 = vadd.f32 %v720, %v731
        %v733 = vld [vmem:[%s1 + $0x11] sm:$0x1]
        %v734 = vlaneseq
        %v735 = vshrl.u32 %v734, 7
        %v736 = vsub.s32 0, %v735
        %v737 = vrot.slane %v733, %v736
        %739 = vrot.lane.b32.xlu0 %v737, 16
        %v740 = vpop.permute.xlu0 %739
        %v742 = vmul.f32 %v709, %v740
        %744 = vrot.lane.b32.xlu0 %v742, 120
        %v745 = vpop.permute.xlu0 %744
        %v747 = vadd.f32 %v732, %v745
        %v748 = vld [vmem:[%s1 + $0x12] sm:$0x1]
        %v749 = vlaneseq
        %v750 = vshrl.u32 %v749, 7
        %v751 = vsub.s32 0, %v750
        %v752 = vrot.slane %v748, %v751
        %754 = vrot.lane.b32.xlu0 %v752, 16
        %v755 = vpop.permute.xlu0 %754
        %v757 = vmul.f32 %v721, %v755
        %759 = vrot.lane.b32.xlu0 %v757, 120
        %v760 = vpop.permute.xlu0 %759
        %v762 = vadd.f32 %v747, %v760
        %v763 = vld [vmem:[%s1 + $0x13] sm:$0x1]
        %v764 = vlaneseq
        %v765 = vshrl.u32 %v764, 7
        %v766 = vsub.s32 0, %v765
        %v767 = vrot.slane %v763, %v766
        %769 = vrot.lane.b32.xlu0 %v767, 24
        %v770 = vpop.permute.xlu0 %769
        %v772 = vmul.f32 %v709, %v770
        %774 = vrot.lane.b32.xlu0 %v772, 112
        %v775 = vpop.permute.xlu0 %774
        %v777 = vadd.f32 %v762, %v775
        %v778 = vld [vmem:[#allocation2 + $0x3] sm:$0xff]
        %v779 = vld [vmem:[%s1 + $0x14] sm:$0x1]
        %v780 = vlaneseq
        %v781 = vshrl.u32 %v780, 7
        %v782 = vsub.s32 0, %v781
        %v783 = vrot.slane %v779, %v782
        %785 = vrot.lane.b32.xlu0 %v783, 8
        %v786 = vpop.permute.xlu0 %785
        %v788 = vmul.f32 %v778, %v786
        %v789 = vadd.f32 %v777, %v788
        %v790 = vld [vmem:[%s327 + $0x3] sm:$0xff]
        %v791 = vld [vmem:[%s1 + $0x15] sm:$0x1]
        %v792 = vlaneseq
        %v793 = vshrl.u32 %v792, 7
        %v794 = vsub.s32 0, %v793
        %v795 = vrot.slane %v791, %v794
        %797 = vrot.lane.b32.xlu0 %v795, 8
        %v798 = vpop.permute.xlu0 %797
        %v800 = vmul.f32 %v790, %v798
        %v801 = vadd.f32 %v789, %v800
        %v802 = vld [vmem:[%s1 + $0x16] sm:$0x1]
        %v803 = vlaneseq
        %v804 = vshrl.u32 %v803, 7
        %v805 = vsub.s32 0, %v804
        %v806 = vrot.slane %v802, %v805
        %808 = vrot.lane.b32.xlu0 %v806, 16
        %v809 = vpop.permute.xlu0 %808
        %v811 = vmul.f32 %v778, %v809
        %813 = vrot.lane.b32.xlu0 %v811, 120
        %v814 = vpop.permute.xlu0 %813
        %v816 = vadd.f32 %v801, %v814
        %v817 = vld [vmem:[%s1 + $0x17] sm:$0x1]
        %v818 = vlaneseq
        %v819 = vshrl.u32 %v818, 7
        %v820 = vsub.s32 0, %v819
        %v821 = vrot.slane %v817, %v820
        %823 = vrot.lane.b32.xlu0 %v821, 16
        %v824 = vpop.permute.xlu0 %823
        %v826 = vmul.f32 %v790, %v824
        %828 = vrot.lane.b32.xlu0 %v826, 120
        %v829 = vpop.permute.xlu0 %828
        %v831 = vadd.f32 %v816, %v829
        %v832 = vld [vmem:[%s1 + $0x18] sm:$0x1]
        %v833 = vlaneseq
        %v834 = vshrl.u32 %v833, 7
        %v835 = vsub.s32 0, %v834
        %v836 = vrot.slane %v832, %v835
        %838 = vrot.lane.b32.xlu0 %v836, 24
        %v839 = vpop.permute.xlu0 %838
        %v841 = vmul.f32 %v778, %v839
        %843 = vrot.lane.b32.xlu0 %v841, 112
        %v844 = vpop.permute.xlu0 %843
        %v846 = vadd.f32 %v831, %v844
        %s847 = scalar_lea.vmem %s2, 192
        %v848 = vld [vmem:[%s847] sm:$0xff]
        %v849 = vld [vmem:[%s847 + $0x8] sm:$0xff]
        %v850 = vld [vmem:[%s847 + $0x10] sm:$0xff]
        %v851 = vld [vmem:[%s847 + $0x18] sm:$0xff]
        %v852 = vld [vmem:[%s847 + $0x20] sm:$0xff]
        %v853 = vld [vmem:[%s847 + $0x28] sm:$0xff]
        %v854 = vld [vmem:[%s847 + $0x30] sm:$0xff]
        %v855 = vld [vmem:[%s847 + $0x38] sm:$0xff]
        %v856 = vld [vmem:[%s3 + $0x3] sm:$0x1]
        %v857 = vlaneseq
        %v858 = vshrl.u32 %v857, 7
        %v859 = vsub.s32 0, %v858
        %v860 = vrot.slane %v856, %v859
        %862 = vrot.lane.b32.xlu0 %v846, 120
        %v863 = vpop.permute.xlu0 %862
        %v864 = vsel %vm358, %v863, 0
        %866 = vmatprep.subr.mxu0 0.0
        %867 = vmatpush1.msra.mxu0 %v848
        %868 = vmatprep.subr.mxu0 0.0
        %869 = vmatpush1.msra.mxu0 %v849
        %870 = vmatprep.subr.mxu0 0.0
        %871 = vmatpush1.msra.mxu0 %v850
        %872 = vmatprep.subr.mxu0 0.0
        %873 = vmatpush1.msra.mxu0 %v851
        %874 = vmatprep.subr.mxu0 0.0
        %875 = vmatpush1.msra.mxu0 %v852
        %876 = vmatprep.subr.mxu0 0.0
        %877 = vmatpush1.msra.mxu0 %v853
        %878 = vmatprep.subr.mxu0 0.0
        %879 = vmatpush1.msra.mxu0 %v854
        %880 = vmatprep.subr.mxu0 0.0
        %881 = vmatpush1.msra.mxu0 %v855
        %882 = vmatprep.subr.mxu0 0.0
        %883 = vmatpush1.msra.mxu0 0.0
        %884 = vmatprep.subr.mxu0 0.0
        %885 = vmatpush1.msra.mxu0 0.0
        %886 = vmatprep.subr.mxu0 0.0
        %887 = vmatpush1.msra.mxu0 0.0
        %888 = vmatprep.subr.mxu0 0.0
        %889 = vmatpush1.msra.mxu0 0.0
        %890 = vmatprep.subr.mxu0 0.0
        %891 = vmatpush1.msra.mxu0 0.0
        %892 = vmatprep.subr.mxu0 0.0
        %893 = vmatpush1.msra.mxu0 0.0
        %894 = vmatprep.subr.mxu0 0.0
        %895 = vmatpush1.msra.mxu0 0.0
        %896 = vmatprep.subr.mxu0 0.0
        %897 = vmatpush1.msra.mxu0 0.0
        %898 = vmatprep.subr.mxu0 0.0
        %899 = vmatpush1.msra.mxu0 0.0
        %900 = vmatprep.subr.mxu0 0.0
        %901 = vmatpush1.msra.mxu0 0.0
        %902 = vmatprep.subr.mxu0 0.0
        %903 = vmatpush1.msra.mxu0 0.0
        %904 = vmatprep.subr.mxu0 0.0
        %905 = vmatpush1.msra.mxu0 0.0
        %906 = vmatprep.subr.mxu0 0.0
        %907 = vmatpush1.msra.mxu0 0.0
        %908 = vmatprep.subr.mxu0 0.0
        %909 = vmatpush1.msra.mxu0 0.0
        %910 = vmatprep.subr.mxu0 0.0
        %911 = vmatpush1.msra.mxu0 0.0
        %912 = vmatprep.subr.mxu0 0.0
        %913 = vmatpush1.msra.mxu0 0.0
        %914 = vmatprep.subr.mxu0 0.0
        %915 = vmatpush1.msra.mxu0 0.0
        %916 = vmatprep.subr.mxu0 0.0
        %917 = vmatpush1.msra.mxu0 0.0
        %918 = vmatprep.subr.mxu0 0.0
        %919 = vmatpush1.msra.mxu0 0.0
        %920 = vmatprep.subr.mxu0 0.0
        %921 = vmatpush1.msra.mxu0 0.0
        %922 = vmatprep.subr.mxu0 0.0
        %923 = vmatpush1.msra.mxu0 0.0
        %924 = vmatprep.subr.mxu0 0.0
        %925 = vmatpush1.msra.mxu0 0.0
        %926 = vmatprep.subr.mxu0 0.0
        %927 = vmatpush1.msra.mxu0 0.0
        %928 = vmatprep.subr.mxu0 0.0
        %929 = vmatpush1.msra.mxu0 0.0
        %930 = vmatprep.mubr.f32.mxu0 0.0
        %931 = vmatmul.mubr.f32.gmra.mrb[0].mxu0 %v864
        %v932 = vpop.f32.mrb[0].mxu0
        %v933 = vadd.f32 %v860, %v932
        %v934 = vpop.f32.mrb[0].mxu0
        %935 = vdwg.mxu0
        %v936 = vmax.f32 %v933, 0.0
        %938 = vrot.lane.b32.xlu0 %v936, 24
        %v939 = vpop.permute.xlu0 %938
        %vm941 = vcmask 720064
        %942 = vst.msk [vmem:[#allocation5 + $0x3] sm:$0xff] %vm941, %v939
        %v943 = vld [vmem:[#allocation5 + $0x1] sm:$0xff]
        %v944 = vld [vmem:[%s1 + $0x19] sm:$0x1]
        %v945 = vlaneseq
        %v946 = vshrl.u32 %v945, 7
        %v947 = vsub.s32 0, %v946
        %v948 = vrot.slane %v944, %v947
        %950 = vrot.lane.b32.xlu0 %v948, 8
        %v951 = vpop.permute.xlu0 %950
        %v953 = vmul.f32 %v943, %v951
        %v954 = vld [vmem:[%s1 + $0x1a] sm:$0x1]
        %v955 = vlaneseq
        %v956 = vshrl.u32 %v955, 7
        %v957 = vsub.s32 0, %v956
        %v958 = vrot.slane %v954, %v957
        %960 = vrot.lane.b32.xlu0 %v958, 16
        %v961 = vpop.permute.xlu0 %960
        %v963 = vmul.f32 %v943, %v961
        %965 = vrot.lane.b32.xlu0 %v963, 120
        %v966 = vpop.permute.xlu0 %965
        %v968 = vadd.f32 %v953, %v966
        %v969 = vld [vmem:[%s1 + $0x1b] sm:$0x1]
        %v970 = vlaneseq
        %v971 = vshrl.u32 %v970, 7
        %v972 = vsub.s32 0, %v971
        %v973 = vrot.slane %v969, %v972
        %975 = vrot.lane.b32.xlu0 %v973, 24
        %v976 = vpop.permute.xlu0 %975
        %v978 = vmul.f32 %v943, %v976
        %980 = vrot.lane.b32.xlu0 %v978, 112
        %v981 = vpop.permute.xlu0 %980
        %v983 = vadd.f32 %v968, %v981
        %v984 = vld [vmem:[%s1 + $0x1c] sm:$0x1]
        %v985 = vlaneseq
        %v986 = vshrl.u32 %v985, 7
        %v987 = vsub.s32 0, %v986
        %v988 = vrot.slane %v984, %v987
        %990 = vrot.lane.b32.xlu0 %v988, 32
        %v991 = vpop.permute.xlu0 %990
        %v993 = vmul.f32 %v943, %v991
        %995 = vrot.lane.b32.xlu0 %v993, 104
        %v996 = vpop.permute.xlu0 %995
        %v998 = vadd.f32 %v983, %v996
        %v999 = vld [vmem:[%s1 + $0x1d] sm:$0x1]
        %v1000 = vlaneseq
        %v1001 = vshrl.u32 %v1000, 7
        %v1002 = vsub.s32 0, %v1001
        %v1003 = vrot.slane %v999, %v1002
        %1005 = vrot.lane.b32.xlu0 %v1003, 40
        %v1006 = vpop.permute.xlu0 %1005
        %v1008 = vmul.f32 %v943, %v1006
        %1010 = vrot.lane.b32.xlu0 %v1008, 96
        %v1011 = vpop.permute.xlu0 %1010
        %v1013 = vadd.f32 %v998, %v1011
        %v1014 = vld [vmem:[#allocation5 + $0x2] sm:$0xff]
        %v1015 = vld [vmem:[%s1 + $0x1e] sm:$0x1]
        %v1016 = vlaneseq
        %v1017 = vshrl.u32 %v1016, 7
        %v1018 = vsub.s32 0, %v1017
        %v1019 = vrot.slane %v1015, %v1018
        %1021 = vrot.lane.b32.xlu0 %v1019, 8
        %v1022 = vpop.permute.xlu0 %1021
        %v1024 = vmul.f32 %v1014, %v1022
        %v1025 = vadd.f32 %v1013, %v1024
        %v1026 = vld [vmem:[%s1 + $0x1f] sm:$0x1]
        %v1027 = vlaneseq
        %v1028 = vshrl.u32 %v1027, 7
        %v1029 = vsub.s32 0, %v1028
        %v1030 = vrot.slane %v1026, %v1029
        %1032 = vrot.lane.b32.xlu0 %v1030, 16
        %v1033 = vpop.permute.xlu0 %1032
        %v1035 = vmul.f32 %v1014, %v1033
        %1037 = vrot.lane.b32.xlu0 %v1035, 120
        %v1038 = vpop.permute.xlu0 %1037
        %v1040 = vadd.f32 %v1025, %v1038
        %v1041 = vld [vmem:[%s1 + $0x20] sm:$0x1]
        %v1042 = vlaneseq
        %v1043 = vshrl.u32 %v1042, 7
        %v1044 = vsub.s32 0, %v1043
        %v1045 = vrot.slane %v1041, %v1044
        %1047 = vrot.lane.b32.xlu0 %v1045, 24
        %v1048 = vpop.permute.xlu0 %1047
        %v1050 = vmul.f32 %v1014, %v1048
        %1052 = vrot.lane.b32.xlu0 %v1050, 112
        %v1053 = vpop.permute.xlu0 %1052
        %v1055 = vadd.f32 %v1040, %v1053
        %v1056 = vld [vmem:[%s1 + $0x21] sm:$0x1]
        %v1057 = vlaneseq
        %v1058 = vshrl.u32 %v1057, 7
        %v1059 = vsub.s32 0, %v1058
        %v1060 = vrot.slane %v1056, %v1059
        %1062 = vrot.lane.b32.xlu0 %v1060, 32
        %v1063 = vpop.permute.xlu0 %1062
        %v1065 = vmul.f32 %v1014, %v1063
        %1067 = vrot.lane.b32.xlu0 %v1065, 104
        %v1068 = vpop.permute.xlu0 %1067
        %v1070 = vadd.f32 %v1055, %v1068
        %v1071 = vld [vmem:[%s1 + $0x22] sm:$0x1]
        %v1072 = vlaneseq
        %v1073 = vshrl.u32 %v1072, 7
        %v1074 = vsub.s32 0, %v1073
        %v1075 = vrot.slane %v1071, %v1074
        %1077 = vrot.lane.b32.xlu0 %v1075, 40
        %v1078 = vpop.permute.xlu0 %1077
        %v1080 = vmul.f32 %v1014, %v1078
        %1082 = vrot.lane.b32.xlu0 %v1080, 96
        %v1083 = vpop.permute.xlu0 %1082
        %v1085 = vadd.f32 %v1070, %v1083
        %v1086 = vld [vmem:[#allocation5 + $0x3] sm:$0xff]
        %v1087 = vld [vmem:[%s1 + $0x23] sm:$0x1]
        %v1088 = vlaneseq
        %v1089 = vshrl.u32 %v1088, 7
        %v1090 = vsub.s32 0, %v1089
        %v1091 = vrot.slane %v1087, %v1090
        %1093 = vrot.lane.b32.xlu0 %v1091, 8
        %v1094 = vpop.permute.xlu0 %1093
        %v1096 = vmul.f32 %v1086, %v1094
        %v1097 = vadd.f32 %v1085, %v1096
        %v1098 = vld [vmem:[%s1 + $0x24] sm:$0x1]
        %v1099 = vlaneseq
        %v1100 = vshrl.u32 %v1099, 7
        %v1101 = vsub.s32 0, %v1100
        %v1102 = vrot.slane %v1098, %v1101
        %1104 = vrot.lane.b32.xlu0 %v1102, 16
        %v1105 = vpop.permute.xlu0 %1104
        %v1107 = vmul.f32 %v1086, %v1105
        %1109 = vrot.lane.b32.xlu0 %v1107, 120
        %v1110 = vpop.permute.xlu0 %1109
        %v1112 = vadd.f32 %v1097, %v1110
        %v1113 = vld [vmem:[%s1 + $0x25] sm:$0x1]
        %v1114 = vlaneseq
        %v1115 = vshrl.u32 %v1114, 7
        %v1116 = vsub.s32 0, %v1115
        %v1117 = vrot.slane %v1113, %v1116
        %1119 = vrot.lane.b32.xlu0 %v1117, 24
        %v1120 = vpop.permute.xlu0 %1119
        %v1122 = vmul.f32 %v1086, %v1120
        %1124 = vrot.lane.b32.xlu0 %v1122, 112
        %v1125 = vpop.permute.xlu0 %1124
        %v1127 = vadd.f32 %v1112, %v1125
        %v1128 = vld [vmem:[%s1 + $0x26] sm:$0x1]
        %v1129 = vlaneseq
        %v1130 = vshrl.u32 %v1129, 7
        %v1131 = vsub.s32 0, %v1130
        %v1132 = vrot.slane %v1128, %v1131
        %1134 = vrot.lane.b32.xlu0 %v1132, 32
        %v1135 = vpop.permute.xlu0 %1134
        %v1137 = vmul.f32 %v1086, %v1135
        %1139 = vrot.lane.b32.xlu0 %v1137, 104
        %v1140 = vpop.permute.xlu0 %1139
        %v1142 = vadd.f32 %v1127, %v1140
        %v1143 = vld [vmem:[%s1 + $0x27] sm:$0x1]
        %v1144 = vlaneseq
        %v1145 = vshrl.u32 %v1144, 7
        %v1146 = vsub.s32 0, %v1145
        %v1147 = vrot.slane %v1143, %v1146
        %1149 = vrot.lane.b32.xlu0 %v1147, 40
        %v1150 = vpop.permute.xlu0 %1149
        %v1152 = vmul.f32 %v1086, %v1150
        %1154 = vrot.lane.b32.xlu0 %v1152, 96
        %v1155 = vpop.permute.xlu0 %1154
        %v1157 = vadd.f32 %v1142, %v1155
        %v1158 = vld [vmem:[#allocation5 + $0x4] sm:$0xff]
        %v1159 = vld [vmem:[%s1 + $0x28] sm:$0x1]
        %v1160 = vlaneseq
        %v1161 = vshrl.u32 %v1160, 7
        %v1162 = vsub.s32 0, %v1161
        %v1163 = vrot.slane %v1159, %v1162
        %1165 = vrot.lane.b32.xlu0 %v1163, 8
        %v1166 = vpop.permute.xlu0 %1165
        %v1168 = vmul.f32 %v1158, %v1166
        %v1169 = vadd.f32 %v1157, %v1168
        %v1170 = vld [vmem:[%s1 + $0x29] sm:$0x1]
        %v1171 = vlaneseq
        %v1172 = vshrl.u32 %v1171, 7
        %v1173 = vsub.s32 0, %v1172
        %v1174 = vrot.slane %v1170, %v1173
        %1176 = vrot.lane.b32.xlu0 %v1174, 16
        %v1177 = vpop.permute.xlu0 %1176
        %v1179 = vmul.f32 %v1158, %v1177
        %1181 = vrot.lane.b32.xlu0 %v1179, 120
        %v1182 = vpop.permute.xlu0 %1181
        %v1184 = vadd.f32 %v1169, %v1182
        %v1185 = vld [vmem:[%s1 + $0x2a] sm:$0x1]
        %v1186 = vlaneseq
        %v1187 = vshrl.u32 %v1186, 7
        %v1188 = vsub.s32 0, %v1187
        %v1189 = vrot.slane %v1185, %v1188
        %1191 = vrot.lane.b32.xlu0 %v1189, 24
        %v1192 = vpop.permute.xlu0 %1191
        %v1194 = vmul.f32 %v1158, %v1192
        %1196 = vrot.lane.b32.xlu0 %v1194, 112
        %v1197 = vpop.permute.xlu0 %1196
        %v1199 = vadd.f32 %v1184, %v1197
        %v1200 = vld [vmem:[%s1 + $0x2b] sm:$0x1]
        %v1201 = vlaneseq
        %v1202 = vshrl.u32 %v1201, 7
        %v1203 = vsub.s32 0, %v1202
        %v1204 = vrot.slane %v1200, %v1203
        %1206 = vrot.lane.b32.xlu0 %v1204, 32
        %v1207 = vpop.permute.xlu0 %1206
        %v1209 = vmul.f32 %v1158, %v1207
        %1211 = vrot.lane.b32.xlu0 %v1209, 104
        %v1212 = vpop.permute.xlu0 %1211
        %v1214 = vadd.f32 %v1199, %v1212
        %v1215 = vld [vmem:[%s1 + $0x2c] sm:$0x1]
        %v1216 = vlaneseq
        %v1217 = vshrl.u32 %v1216, 7
        %v1218 = vsub.s32 0, %v1217
        %v1219 = vrot.slane %v1215, %v1218
        %1221 = vrot.lane.b32.xlu0 %v1219, 40
        %v1222 = vpop.permute.xlu0 %1221
        %v1224 = vmul.f32 %v1158, %v1222
        %1226 = vrot.lane.b32.xlu0 %v1224, 96
        %v1227 = vpop.permute.xlu0 %1226
        %v1229 = vadd.f32 %v1214, %v1227
        %v1230 = vld [vmem:[#allocation5 + $0x5] sm:$0xff]
        %v1231 = vld [vmem:[%s1 + $0x2d] sm:$0x1]
        %v1232 = vlaneseq
        %v1233 = vshrl.u32 %v1232, 7
        %v1234 = vsub.s32 0, %v1233
        %v1235 = vrot.slane %v1231, %v1234
        %1237 = vrot.lane.b32.xlu0 %v1235, 8
        %v1238 = vpop.permute.xlu0 %1237
        %v1240 = vmul.f32 %v1230, %v1238
        %v1241 = vadd.f32 %v1229, %v1240
        %v1242 = vld [vmem:[%s1 + $0x2e] sm:$0x1]
        %v1243 = vlaneseq
        %v1244 = vshrl.u32 %v1243, 7
        %v1245 = vsub.s32 0, %v1244
        %v1246 = vrot.slane %v1242, %v1245
        %1248 = vrot.lane.b32.xlu0 %v1246, 16
        %v1249 = vpop.permute.xlu0 %1248
        %v1251 = vmul.f32 %v1230, %v1249
        %1253 = vrot.lane.b32.xlu0 %v1251, 120
        %v1254 = vpop.permute.xlu0 %1253
        %v1256 = vadd.f32 %v1241, %v1254
        %v1257 = vld [vmem:[%s1 + $0x2f] sm:$0x1]
        %v1258 = vlaneseq
        %v1259 = vshrl.u32 %v1258, 7
        %v1260 = vsub.s32 0, %v1259
        %v1261 = vrot.slane %v1257, %v1260
        %1263 = vrot.lane.b32.xlu0 %v1261, 24
        %v1264 = vpop.permute.xlu0 %1263
        %v1266 = vmul.f32 %v1230, %v1264
        %1268 = vrot.lane.b32.xlu0 %v1266, 112
        %v1269 = vpop.permute.xlu0 %1268
        %v1271 = vadd.f32 %v1256, %v1269
        %v1272 = vld [vmem:[%s1 + $0x30] sm:$0x1]
        %v1273 = vlaneseq
        %v1274 = vshrl.u32 %v1273, 7
        %v1275 = vsub.s32 0, %v1274
        %v1276 = vrot.slane %v1272, %v1275
        %1278 = vrot.lane.b32.xlu0 %v1276, 32
        %v1279 = vpop.permute.xlu0 %1278
        %v1281 = vmul.f32 %v1230, %v1279
        %1283 = vrot.lane.b32.xlu0 %v1281, 104
        %v1284 = vpop.permute.xlu0 %1283
        %v1286 = vadd.f32 %v1271, %v1284
        %v1287 = vld [vmem:[%s1 + $0x31] sm:$0x1]
        %v1288 = vlaneseq
        %v1289 = vshrl.u32 %v1288, 7
        %v1290 = vsub.s32 0, %v1289
        %v1291 = vrot.slane %v1287, %v1290
        %1293 = vrot.lane.b32.xlu0 %v1291, 40
        %v1294 = vpop.permute.xlu0 %1293
        %v1296 = vmul.f32 %v1230, %v1294
        %1298 = vrot.lane.b32.xlu0 %v1296, 96
        %v1299 = vpop.permute.xlu0 %1298
        %v1301 = vadd.f32 %v1286, %v1299
        %s1302 = scalar_lea.vmem %s2, 256
        %v1303 = vld [vmem:[%s1302] sm:$0xff]
        %v1304 = vld [vmem:[%s1302 + $0x8] sm:$0xff]
        %v1305 = vld [vmem:[%s1302 + $0x10] sm:$0xff]
        %v1306 = vld [vmem:[%s1302 + $0x18] sm:$0xff]
        %v1307 = vld [vmem:[%s1302 + $0x20] sm:$0xff]
        %v1308 = vld [vmem:[%s1302 + $0x28] sm:$0xff]
        %v1309 = vld [vmem:[%s1302 + $0x30] sm:$0xff]
        %v1310 = vld [vmem:[%s1302 + $0x38] sm:$0xff]
        %v1311 = vld [vmem:[%s3 + $0x4] sm:$0x1]
        %v1312 = vlaneseq
        %v1313 = vshrl.u32 %v1312, 7
        %v1314 = vsub.s32 0, %v1313
        %v1315 = vrot.slane %v1311, %v1314
        %1317 = vrot.lane.b32.xlu0 %v1301, 120
        %v1318 = vpop.permute.xlu0 %1317
        %v1319 = vsel %vm358, %v1318, 0
        %1321 = vmatprep.subr.mxu0 0.0
        %1322 = vmatpush1.msra.mxu0 %v1303
        %1323 = vmatprep.subr.mxu0 0.0
        %1324 = vmatpush1.msra.mxu0 %v1304
        %1325 = vmatprep.subr.mxu0 0.0
        %1326 = vmatpush1.msra.mxu0 %v1305
        %1327 = vmatprep.subr.mxu0 0.0
        %1328 = vmatpush1.msra.mxu0 %v1306
        %1329 = vmatprep.subr.mxu0 0.0
        %1330 = vmatpush1.msra.mxu0 %v1307
        %1331 = vmatprep.subr.mxu0 0.0
        %1332 = vmatpush1.msra.mxu0 %v1308
        %1333 = vmatprep.subr.mxu0 0.0
        %1334 = vmatpush1.msra.mxu0 %v1309
        %1335 = vmatprep.subr.mxu0 0.0
        %1336 = vmatpush1.msra.mxu0 %v1310
        %1337 = vmatprep.subr.mxu0 0.0
        %1338 = vmatpush1.msra.mxu0 0.0
        %1339 = vmatprep.subr.mxu0 0.0
        %1340 = vmatpush1.msra.mxu0 0.0
        %1341 = vmatprep.subr.mxu0 0.0
        %1342 = vmatpush1.msra.mxu0 0.0
        %1343 = vmatprep.subr.mxu0 0.0
        %1344 = vmatpush1.msra.mxu0 0.0
        %1345 = vmatprep.subr.mxu0 0.0
        %1346 = vmatpush1.msra.mxu0 0.0
        %1347 = vmatprep.subr.mxu0 0.0
        %1348 = vmatpush1.msra.mxu0 0.0
        %1349 = vmatprep.subr.mxu0 0.0
        %1350 = vmatpush1.msra.mxu0 0.0
        %1351 = vmatprep.subr.mxu0 0.0
        %1352 = vmatpush1.msra.mxu0 0.0
        %1353 = vmatprep.subr.mxu0 0.0
        %1354 = vmatpush1.msra.mxu0 0.0
        %1355 = vmatprep.subr.mxu0 0.0
        %1356 = vmatpush1.msra.mxu0 0.0
        %1357 = vmatprep.subr.mxu0 0.0
        %1358 = vmatpush1.msra.mxu0 0.0
        %1359 = vmatprep.subr.mxu0 0.0
        %1360 = vmatpush1.msra.mxu0 0.0
        %1361 = vmatprep.subr.mxu0 0.0
        %1362 = vmatpush1.msra.mxu0 0.0
        %1363 = vmatprep.subr.mxu0 0.0
        %1364 = vmatpush1.msra.mxu0 0.0
        %1365 = vmatprep.subr.mxu0 0.0
        %1366 = vmatpush1.msra.mxu0 0.0
        %1367 = vmatprep.subr.mxu0 0.0
        %1368 = vmatpush1.msra.mxu0 0.0
        %1369 = vmatprep.subr.mxu0 0.0
        %1370 = vmatpush1.msra.mxu0 0.0
        %1371 = vmatprep.subr.mxu0 0.0
        %1372 = vmatpush1.msra.mxu0 0.0
        %1373 = vmatprep.subr.mxu0 0.0
        %1374 = vmatpush1.msra.mxu0 0.0
        %1375 = vmatprep.subr.mxu0 0.0
        %1376 = vmatpush1.msra.mxu0 0.0
        %1377 = vmatprep.subr.mxu0 0.0
        %1378 = vmatpush1.msra.mxu0 0.0
        %1379 = vmatprep.subr.mxu0 0.0
        %1380 = vmatpush1.msra.mxu0 0.0
        %1381 = vmatprep.subr.mxu0 0.0
        %1382 = vmatpush1.msra.mxu0 0.0
        %1383 = vmatprep.subr.mxu0 0.0
        %1384 = vmatpush1.msra.mxu0 0.0
        %1385 = vmatprep.mubr.f32.mxu0 0.0
        %1386 = vmatmul.mubr.f32.gmra.mrb[0].mxu0 %v1319
        %v1387 = vpop.f32.mrb[0].mxu0
        %v1388 = vadd.f32 %v1315, %v1387
        %v1389 = vpop.f32.mrb[0].mxu0
        %1390 = vdwg.mxu0
        %s1391 = scalar_lea.vmem %s233, 48 [#allocation6]
        %v1392 = vld [vmem:[%s1391 + $0x1] sm:$0xff]
        %s1393 = scalar_lea.vmem %s233, 32 [#allocation6]
        %v1394 = vld [vmem:[%s1393 + $0x1] sm:$0xff]
        %1396 = vrot.lane.b32.xlu0 %v1394, 120
        %v1397 = vpop.permute.xlu0 %1396
        %v1399 = vmax.f32 %v1392, %v1397
        %1401 = vrot.lane.b32.xlu0 %v1392, 120
        %v1402 = vpop.permute.xlu0 %1401
        %v1404 = vmax.f32 %v1399, %v1402
        %s1405 = scalar_lea.vmem %s233, 16 [#allocation6]
        %v1406 = vld [vmem:[%s1405 + $0x2] sm:$0xff]
        %v1407 = vmax.f32 %v1404, %v1406
        %v1408 = vld [vmem:[%s233 + $0x2] sm:$0xff]
        %1410 = vrot.lane.b32.xlu0 %v1408, 120
        %v1411 = vpop.permute.xlu0 %1410
        %v1413 = vmax.f32 %v1407, %v1411
        %1415 = vrot.lane.b32.xlu0 %v1406, 120
        %v1416 = vpop.permute.xlu0 %1415
        %v1418 = vmax.f32 %v1413, %v1416
        %v1419 = vld [vmem:[%s1391 + $0x2] sm:$0xff]
        %v1420 = vmax.f32 %v1418, %v1419
        %v1421 = vld [vmem:[%s1393 + $0x2] sm:$0xff]
        %1423 = vrot.lane.b32.xlu0 %v1421, 120
        %v1424 = vpop.permute.xlu0 %1423
        %v1426 = vmax.f32 %v1420, %v1424
        %1428 = vrot.lane.b32.xlu0 %v1419, 120
        %v1429 = vpop.permute.xlu0 %1428
        %v1431 = vmax.f32 %v1426, %v1429
        %s1432 = scalar_lea.vmem %s2, 64
        %v1433 = vld [vmem:[%s1432] sm:$0xff]
        %v1434 = vld [vmem:[%s1432 + $0x8] sm:$0xff]
        %v1435 = vld [vmem:[%s1432 + $0x10] sm:$0xff]
        %v1436 = vld [vmem:[%s1432 + $0x18] sm:$0xff]
        %v1437 = vld [vmem:[%s1432 + $0x20] sm:$0xff]
        %v1438 = vld [vmem:[%s1432 + $0x28] sm:$0xff]
        %v1439 = vld [vmem:[%s1432 + $0x30] sm:$0xff]
        %v1440 = vld [vmem:[%s1432 + $0x38] sm:$0xff]
        %v1441 = vld [vmem:[%s3 + $0x1] sm:$0x1]
        %v1442 = vlaneseq
        %v1443 = vshrl.u32 %v1442, 7
        %v1444 = vsub.s32 0, %v1443
        %v1445 = vrot.slane %v1441, %v1444
        %1447 = vrot.lane.b32.xlu0 %v1431, 120
        %v1448 = vpop.permute.xlu0 %1447
        %v1449 = vsel %vm358, %v1448, 0
        %1451 = vmatprep.subr.mxu0 0.0
        %1452 = vmatpush1.msra.mxu0 %v1433
        %1453 = vmatprep.subr.mxu0 0.0
        %1454 = vmatpush1.msra.mxu0 %v1434
        %1455 = vmatprep.subr.mxu0 0.0
        %1456 = vmatpush1.msra.mxu0 %v1435
        %1457 = vmatprep.subr.mxu0 0.0
        %1458 = vmatpush1.msra.mxu0 %v1436
        %1459 = vmatprep.subr.mxu0 0.0
        %1460 = vmatpush1.msra.mxu0 %v1437
        %1461 = vmatprep.subr.mxu0 0.0
        %1462 = vmatpush1.msra.mxu0 %v1438
        %1463 = vmatprep.subr.mxu0 0.0
        %1464 = vmatpush1.msra.mxu0 %v1439
        %1465 = vmatprep.subr.mxu0 0.0
        %1466 = vmatpush1.msra.mxu0 %v1440
        %1467 = vmatprep.subr.mxu0 0.0
        %1468 = vmatpush1.msra.mxu0 0.0
        %1469 = vmatprep.subr.mxu0 0.0
        %1470 = vmatpush1.msra.mxu0 0.0
        %1471 = vmatprep.subr.mxu0 0.0
        %1472 = vmatpush1.msra.mxu0 0.0
        %1473 = vmatprep.subr.mxu0 0.0
        %1474 = vmatpush1.msra.mxu0 0.0
        %1475 = vmatprep.subr.mxu0 0.0
        %1476 = vmatpush1.msra.mxu0 0.0
        %1477 = vmatprep.subr.mxu0 0.0
        %1478 = vmatpush1.msra.mxu0 0.0
        %1479 = vmatprep.subr.mxu0 0.0
        %1480 = vmatpush1.msra.mxu0 0.0
        %1481 = vmatprep.subr.mxu0 0.0
        %1482 = vmatpush1.msra.mxu0 0.0
        %1483 = vmatprep.subr.mxu0 0.0
        %1484 = vmatpush1.msra.mxu0 0.0
        %1485 = vmatprep.subr.mxu0 0.0
        %1486 = vmatpush1.msra.mxu0 0.0
        %1487 = vmatprep.subr.mxu0 0.0
        %1488 = vmatpush1.msra.mxu0 0.0
        %1489 = vmatprep.subr.mxu0 0.0
        %1490 = vmatpush1.msra.mxu0 0.0
        %1491 = vmatprep.subr.mxu0 0.0
        %1492 = vmatpush1.msra.mxu0 0.0
        %1493 = vmatprep.subr.mxu0 0.0
        %1494 = vmatpush1.msra.mxu0 0.0
        %1495 = vmatprep.subr.mxu0 0.0
        %1496 = vmatpush1.msra.mxu0 0.0
        %1497 = vmatprep.subr.mxu0 0.0
        %1498 = vmatpush1.msra.mxu0 0.0
        %1499 = vmatprep.subr.mxu0 0.0
        %1500 = vmatpush1.msra.mxu0 0.0
        %1501 = vmatprep.subr.mxu0 0.0
        %1502 = vmatpush1.msra.mxu0 0.0
        %1503 = vmatprep.subr.mxu0 0.0
        %1504 = vmatpush1.msra.mxu0 0.0
        %1505 = vmatprep.subr.mxu0 0.0
        %1506 = vmatpush1.msra.mxu0 0.0
        %1507 = vmatprep.subr.mxu0 0.0
        %1508 = vmatpush1.msra.mxu0 0.0
        %1509 = vmatprep.subr.mxu0 0.0
        %1510 = vmatpush1.msra.mxu0 0.0
        %1511 = vmatprep.subr.mxu0 0.0
        %1512 = vmatpush1.msra.mxu0 0.0
        %1513 = vmatprep.subr.mxu0 0.0
        %1514 = vmatpush1.msra.mxu0 0.0
        %1515 = vmatprep.mubr.f32.mxu0 0.0
        %1516 = vmatmul.mubr.f32.gmra.mrb[0].mxu0 %v1449
        %v1517 = vpop.f32.mrb[0].mxu0
        %v1518 = vadd.f32 %v1445, %v1517
        %v1519 = vpop.f32.mrb[0].mxu0
        %1520 = vdwg.mxu0
        %v1521 = vadd.f32 %v1388, %v1518
        %v1522 = vld [vmem:[%s494 + $0x1] sm:$0xff]
        %v1523 = vld [vmem:[%s481 + $0x1] sm:$0xff]
        %1525 = vrot.lane.b32.xlu0 %v1523, 120
        %v1526 = vpop.permute.xlu0 %1525
        %v1528 = vmax.f32 %v1522, %v1526
        %1530 = vrot.lane.b32.xlu0 %v1522, 120
        %v1531 = vpop.permute.xlu0 %1530
        %v1533 = vmax.f32 %v1528, %v1531
        %v1534 = vld [vmem:[%s468 + $0x2] sm:$0xff]
        %v1535 = vmax.f32 %v1533, %v1534
        %v1536 = vld [vmem:[#allocation4 + $0x2] sm:$0xff]
        %1538 = vrot.lane.b32.xlu0 %v1536, 120
        %v1539 = vpop.permute.xlu0 %1538
        %v1541 = vmax.f32 %v1535, %v1539
        %1543 = vrot.lane.b32.xlu0 %v1534, 120
        %v1544 = vpop.permute.xlu0 %1543
        %v1546 = vmax.f32 %v1541, %v1544
        %v1547 = vld [vmem:[%s494 + $0x2] sm:$0xff]
        %v1548 = vmax.f32 %v1546, %v1547
        %v1549 = vld [vmem:[%s481 + $0x2] sm:$0xff]
        %1551 = vrot.lane.b32.xlu0 %v1549, 120
        %v1552 = vpop.permute.xlu0 %1551
        %v1554 = vmax.f32 %v1548, %v1552
        %1556 = vrot.lane.b32.xlu0 %v1547, 120
        %v1557 = vpop.permute.xlu0 %1556
        %v1559 = vmax.f32 %v1554, %v1557
        %v1560 = vld [vmem:[%s501] sm:$0xff]
        %v1561 = vld [vmem:[%s1 + $0x32] sm:$0x1]
        %v1562 = vlaneseq
        %v1563 = vshrl.u32 %v1562, 7
        %v1564 = vsub.s32 0, %v1563
        %v1565 = vrot.slane %v1561, %v1564
        %v1566 = vmul.f32 %v1560, %v1565
        %v1567 = vld [vmem:[%s488] sm:$0xff]
        %v1568 = vld [vmem:[%s1 + $0x33] sm:$0x1]
        %v1569 = vlaneseq
        %v1570 = vshrl.u32 %v1569, 7
        %v1571 = vsub.s32 0, %v1570
        %v1572 = vrot.slane %v1568, %v1571
        %1574 = vrot.lane.b32.xlu0 %v1572, 8
        %v1575 = vpop.permute.xlu0 %1574
        %v1577 = vmul.f32 %v1567, %v1575
        %1579 = vrot.lane.b32.xlu0 %v1577, 120
        %v1580 = vpop.permute.xlu0 %1579
        %v1582 = vadd.f32 %v1566, %v1580
        %v1583 = vld [vmem:[%s1 + $0x34] sm:$0x1]
        %v1584 = vlaneseq
        %v1585 = vshrl.u32 %v1584, 7
        %v1586 = vsub.s32 0, %v1585
        %v1587 = vrot.slane %v1583, %v1586
        %1589 = vrot.lane.b32.xlu0 %v1587, 8
        %v1590 = vpop.permute.xlu0 %1589
        %v1592 = vmul.f32 %v1560, %v1590
        %1594 = vrot.lane.b32.xlu0 %v1592, 120
        %v1595 = vpop.permute.xlu0 %1594
        %v1597 = vadd.f32 %v1582, %v1595
        %v1598 = vld [vmem:[%s1 + $0x35] sm:$0x1]
        %v1599 = vlaneseq
        %v1600 = vshrl.u32 %v1599, 7
        %v1601 = vsub.s32 0, %v1600
        %v1602 = vrot.slane %v1598, %v1601
        %1604 = vrot.lane.b32.xlu0 %v1602, 16
        %v1605 = vpop.permute.xlu0 %1604
        %v1607 = vmul.f32 %v1567, %v1605
        %1609 = vrot.lane.b32.xlu0 %v1607, 112
        %v1610 = vpop.permute.xlu0 %1609
        %v1612 = vadd.f32 %v1597, %v1610
        %v1613 = vld [vmem:[%s1 + $0x36] sm:$0x1]
        %v1614 = vlaneseq
        %v1615 = vshrl.u32 %v1614, 7
        %v1616 = vsub.s32 0, %v1615
        %v1617 = vrot.slane %v1613, %v1616
        %1619 = vrot.lane.b32.xlu0 %v1617, 16
        %v1620 = vpop.permute.xlu0 %1619
        %v1622 = vmul.f32 %v1560, %v1620
        %1624 = vrot.lane.b32.xlu0 %v1622, 112
        %v1625 = vpop.permute.xlu0 %1624
        %v1627 = vadd.f32 %v1612, %v1625
        %v1628 = vld [vmem:[%s1 + $0x37] sm:$0x1]
        %v1629 = vlaneseq
        %v1630 = vshrl.u32 %v1629, 7
        %v1631 = vsub.s32 0, %v1630
        %v1632 = vrot.slane %v1628, %v1631
        %1634 = vrot.lane.b32.xlu0 %v1632, 24
        %v1635 = vpop.permute.xlu0 %1634
        %v1637 = vmul.f32 %v1567, %v1635
        %1639 = vrot.lane.b32.xlu0 %v1637, 104
        %v1640 = vpop.permute.xlu0 %1639
        %v1642 = vadd.f32 %v1627, %v1640
        %v1643 = vld [vmem:[%s1 + $0x38] sm:$0x1]
        %v1644 = vlaneseq
        %v1645 = vshrl.u32 %v1644, 7
        %v1646 = vsub.s32 0, %v1645
        %v1647 = vrot.slane %v1643, %v1646
        %1649 = vrot.lane.b32.xlu0 %v1647, 24
        %v1650 = vpop.permute.xlu0 %1649
        %v1652 = vmul.f32 %v1560, %v1650
        %1654 = vrot.lane.b32.xlu0 %v1652, 104
        %v1655 = vpop.permute.xlu0 %1654
        %v1657 = vadd.f32 %v1642, %v1655
        %v1658 = vld [vmem:[%s475 + $0x1] sm:$0xff]
        %v1659 = vld [vmem:[%s1 + $0x39] sm:$0x1]
        %v1660 = vlaneseq
        %v1661 = vshrl.u32 %v1660, 7
        %v1662 = vsub.s32 0, %v1661
        %v1663 = vrot.slane %v1659, %v1662
        %v1664 = vmul.f32 %v1658, %v1663
        %v1665 = vadd.f32 %v1657, %v1664
        %v1666 = vld [vmem:[#allocation3 + $0x1] sm:$0xff]
        %v1667 = vld [vmem:[%s1 + $0x3a] sm:$0x1]
        %v1668 = vlaneseq
        %v1669 = vshrl.u32 %v1668, 7
        %v1670 = vsub.s32 0, %v1669
        %v1671 = vrot.slane %v1667, %v1670
        %1673 = vrot.lane.b32.xlu0 %v1671, 8
        %v1674 = vpop.permute.xlu0 %1673
        %v1676 = vmul.f32 %v1666, %v1674
        %1678 = vrot.lane.b32.xlu0 %v1676, 120
        %v1679 = vpop.permute.xlu0 %1678
        %v1681 = vadd.f32 %v1665, %v1679
        %v1682 = vld [vmem:[%s1 + $0x3b] sm:$0x1]
        %v1683 = vlaneseq
        %v1684 = vshrl.u32 %v1683, 7
        %v1685 = vsub.s32 0, %v1684
        %v1686 = vrot.slane %v1682, %v1685
        %1688 = vrot.lane.b32.xlu0 %v1686, 8
        %v1689 = vpop.permute.xlu0 %1688
        %v1691 = vmul.f32 %v1658, %v1689
        %1693 = vrot.lane.b32.xlu0 %v1691, 120
        %v1694 = vpop.permute.xlu0 %1693
        %v1696 = vadd.f32 %v1681, %v1694
        %v1697 = vld [vmem:[%s1 + $0x3c] sm:$0x1]
        %v1698 = vlaneseq
        %v1699 = vshrl.u32 %v1698, 7
        %v1700 = vsub.s32 0, %v1699
        %v1701 = vrot.slane %v1697, %v1700
        %1703 = vrot.lane.b32.xlu0 %v1701, 16
        %v1704 = vpop.permute.xlu0 %1703
        %v1706 = vmul.f32 %v1666, %v1704
        %1708 = vrot.lane.b32.xlu0 %v1706, 112
        %v1709 = vpop.permute.xlu0 %1708
        %v1711 = vadd.f32 %v1696, %v1709
        %v1712 = vld [vmem:[%s1 + $0x3d] sm:$0x1]
        %v1713 = vlaneseq
        %v1714 = vshrl.u32 %v1713, 7
        %v1715 = vsub.s32 0, %v1714
        %v1716 = vrot.slane %v1712, %v1715
        %1718 = vrot.lane.b32.xlu0 %v1716, 16
        %v1719 = vpop.permute.xlu0 %1718
        %v1721 = vmul.f32 %v1658, %v1719
        %1723 = vrot.lane.b32.xlu0 %v1721, 112
        %v1724 = vpop.permute.xlu0 %1723
        %v1726 = vadd.f32 %v1711, %v1724
        %v1727 = vld [vmem:[%s1 + $0x3e] sm:$0x1]
        %v1728 = vlaneseq
        %v1729 = vshrl.u32 %v1728, 7
        %v1730 = vsub.s32 0, %v1729
        %v1731 = vrot.slane %v1727, %v1730
        %1733 = vrot.lane.b32.xlu0 %v1731, 24
        %v1734 = vpop.permute.xlu0 %1733
        %v1736 = vmul.f32 %v1666, %v1734
        %1738 = vrot.lane.b32.xlu0 %v1736, 104
        %v1739 = vpop.permute.xlu0 %1738
        %v1741 = vadd.f32 %v1726, %v1739
        %v1742 = vld [vmem:[%s1 + $0x3f] sm:$0x1]
        %v1743 = vlaneseq
        %v1744 = vshrl.u32 %v1743, 7
        %v1745 = vsub.s32 0, %v1744
        %v1746 = vrot.slane %v1742, %v1745
        %1748 = vrot.lane.b32.xlu0 %v1746, 24
        %v1749 = vpop.permute.xlu0 %1748
        %v1751 = vmul.f32 %v1658, %v1749
        %1753 = vrot.lane.b32.xlu0 %v1751, 104
        %v1754 = vpop.permute.xlu0 %1753
        %v1756 = vadd.f32 %v1741, %v1754
        %v1757 = vld [vmem:[%s501 + $0x1] sm:$0xff]
        %v1758 = vld [vmem:[%s1 + $0x40] sm:$0x1]
        %v1759 = vlaneseq
        %v1760 = vshrl.u32 %v1759, 7
        %v1761 = vsub.s32 0, %v1760
        %v1762 = vrot.slane %v1758, %v1761
        %v1763 = vmul.f32 %v1757, %v1762
        %v1764 = vadd.f32 %v1756, %v1763
        %v1765 = vld [vmem:[%s488 + $0x1] sm:$0xff]
        %v1766 = vld [vmem:[%s1 + $0x41] sm:$0x1]
        %v1767 = vlaneseq
        %v1768 = vshrl.u32 %v1767, 7
        %v1769 = vsub.s32 0, %v1768
        %v1770 = vrot.slane %v1766, %v1769
        %1772 = vrot.lane.b32.xlu0 %v1770, 8
        %v1773 = vpop.permute.xlu0 %1772
        %v1775 = vmul.f32 %v1765, %v1773
        %1777 = vrot.lane.b32.xlu0 %v1775, 120
        %v1778 = vpop.permute.xlu0 %1777
        %v1780 = vadd.f32 %v1764, %v1778
        %v1781 = vld [vmem:[%s1 + $0x42] sm:$0x1]
        %v1782 = vlaneseq
        %v1783 = vshrl.u32 %v1782, 7
        %v1784 = vsub.s32 0, %v1783
        %v1785 = vrot.slane %v1781, %v1784
        %1787 = vrot.lane.b32.xlu0 %v1785, 8
        %v1788 = vpop.permute.xlu0 %1787
        %v1790 = vmul.f32 %v1757, %v1788
        %1792 = vrot.lane.b32.xlu0 %v1790, 120
        %v1793 = vpop.permute.xlu0 %1792
        %v1795 = vadd.f32 %v1780, %v1793
        %v1796 = vld [vmem:[%s1 + $0x43] sm:$0x1]
        %v1797 = vlaneseq
        %v1798 = vshrl.u32 %v1797, 7
        %v1799 = vsub.s32 0, %v1798
        %v1800 = vrot.slane %v1796, %v1799
        %1802 = vrot.lane.b32.xlu0 %v1800, 16
        %v1803 = vpop.permute.xlu0 %1802
        %v1805 = vmul.f32 %v1765, %v1803
        %1807 = vrot.lane.b32.xlu0 %v1805, 112
        %v1808 = vpop.permute.xlu0 %1807
        %v1810 = vadd.f32 %v1795, %v1808
        %v1811 = vld [vmem:[%s1 + $0x44] sm:$0x1]
        %v1812 = vlaneseq
        %v1813 = vshrl.u32 %v1812, 7
        %v1814 = vsub.s32 0, %v1813
        %v1815 = vrot.slane %v1811, %v1814
        %1817 = vrot.lane.b32.xlu0 %v1815, 16
        %v1818 = vpop.permute.xlu0 %1817
        %v1820 = vmul.f32 %v1757, %v1818
        %1822 = vrot.lane.b32.xlu0 %v1820, 112
        %v1823 = vpop.permute.xlu0 %1822
        %v1825 = vadd.f32 %v1810, %v1823
        %v1826 = vld [vmem:[%s1 + $0x45] sm:$0x1]
        %v1827 = vlaneseq
        %v1828 = vshrl.u32 %v1827, 7
        %v1829 = vsub.s32 0, %v1828
        %v1830 = vrot.slane %v1826, %v1829
        %1832 = vrot.lane.b32.xlu0 %v1830, 24
        %v1833 = vpop.permute.xlu0 %1832
        %v1835 = vmul.f32 %v1765, %v1833
        %1837 = vrot.lane.b32.xlu0 %v1835, 104
        %v1838 = vpop.permute.xlu0 %1837
        %v1840 = vadd.f32 %v1825, %v1838
        %v1841 = vld [vmem:[%s1 + $0x46] sm:$0x1]
        %v1842 = vlaneseq
        %v1843 = vshrl.u32 %v1842, 7
        %v1844 = vsub.s32 0, %v1843
        %v1845 = vrot.slane %v1841, %v1844
        %1847 = vrot.lane.b32.xlu0 %v1845, 24
        %v1848 = vpop.permute.xlu0 %1847
        %v1850 = vmul.f32 %v1757, %v1848
        %1852 = vrot.lane.b32.xlu0 %v1850, 104
        %v1853 = vpop.permute.xlu0 %1852
        %v1855 = vadd.f32 %v1840, %v1853
        %v1856 = vld [vmem:[%s475 + $0x2] sm:$0xff]
        %v1857 = vld [vmem:[%s1 + $0x47] sm:$0x1]
        %v1858 = vlaneseq
        %v1859 = vshrl.u32 %v1858, 7
        %v1860 = vsub.s32 0, %v1859
        %v1861 = vrot.slane %v1857, %v1860
        %v1862 = vmul.f32 %v1856, %v1861
        %v1863 = vadd.f32 %v1855, %v1862
        %v1864 = vld [vmem:[#allocation3 + $0x2] sm:$0xff]
        %v1865 = vld [vmem:[%s1 + $0x48] sm:$0x1]
        %v1866 = vlaneseq
        %v1867 = vshrl.u32 %v1866, 7
        %v1868 = vsub.s32 0, %v1867
        %v1869 = vrot.slane %v1865, %v1868
        %1871 = vrot.lane.b32.xlu0 %v1869, 8
        %v1872 = vpop.permute.xlu0 %1871
        %v1874 = vmul.f32 %v1864, %v1872
        %1876 = vrot.lane.b32.xlu0 %v1874, 120
        %v1877 = vpop.permute.xlu0 %1876
        %v1879 = vadd.f32 %v1863, %v1877
        %v1880 = vld [vmem:[%s1 + $0x49] sm:$0x1]
        %v1881 = vlaneseq
        %v1882 = vshrl.u32 %v1881, 7
        %v1883 = vsub.s32 0, %v1882
        %v1884 = vrot.slane %v1880, %v1883
        %1886 = vrot.lane.b32.xlu0 %v1884, 8
        %v1887 = vpop.permute.xlu0 %1886
        %v1889 = vmul.f32 %v1856, %v1887
        %1891 = vrot.lane.b32.xlu0 %v1889, 120
        %v1892 = vpop.permute.xlu0 %1891
        %v1894 = vadd.f32 %v1879, %v1892
        %v1895 = vld [vmem:[%s1 + $0x4a] sm:$0x1]
        %v1896 = vlaneseq
        %v1897 = vshrl.u32 %v1896, 7
        %v1898 = vsub.s32 0, %v1897
        %v1899 = vrot.slane %v1895, %v1898
        %1901 = vrot.lane.b32.xlu0 %v1899, 16
        %v1902 = vpop.permute.xlu0 %1901
        %v1904 = vmul.f32 %v1864, %v1902
        %1906 = vrot.lane.b32.xlu0 %v1904, 112
        %v1907 = vpop.permute.xlu0 %1906
        %v1909 = vadd.f32 %v1894, %v1907
        %v1910 = vld [vmem:[%s1 + $0x4b] sm:$0x1]
        %v1911 = vlaneseq
        %v1912 = vshrl.u32 %v1911, 7
        %v1913 = vsub.s32 0, %v1912
        %v1914 = vrot.slane %v1910, %v1913
        %1916 = vrot.lane.b32.xlu0 %v1914, 16
        %v1917 = vpop.permute.xlu0 %1916
        %v1919 = vmul.f32 %v1856, %v1917
        %1921 = vrot.lane.b32.xlu0 %v1919, 112
        %v1922 = vpop.permute.xlu0 %1921
        %v1924 = vadd.f32 %v1909, %v1922
        %v1925 = vld [vmem:[%s1 + $0x4c] sm:$0x1]
        %v1926 = vlaneseq
        %v1927 = vshrl.u32 %v1926, 7
        %v1928 = vsub.s32 0, %v1927
        %v1929 = vrot.slane %v1925, %v1928
        %1931 = vrot.lane.b32.xlu0 %v1929, 24
        %v1932 = vpop.permute.xlu0 %1931
        %v1934 = vmul.f32 %v1864, %v1932
        %1936 = vrot.lane.b32.xlu0 %v1934, 104
        %v1937 = vpop.permute.xlu0 %1936
        %v1939 = vadd.f32 %v1924, %v1937
        %v1940 = vld [vmem:[%s1 + $0x4d] sm:$0x1]
        %v1941 = vlaneseq
        %v1942 = vshrl.u32 %v1941, 7
        %v1943 = vsub.s32 0, %v1942
        %v1944 = vrot.slane %v1940, %v1943
        %1946 = vrot.lane.b32.xlu0 %v1944, 24
        %v1947 = vpop.permute.xlu0 %1946
        %v1949 = vmul.f32 %v1856, %v1947
        %1951 = vrot.lane.b32.xlu0 %v1949, 104
        %v1952 = vpop.permute.xlu0 %1951
        %v1954 = vadd.f32 %v1939, %v1952
        %v1955 = vld [vmem:[%s501 + $0x2] sm:$0xff]
        %v1956 = vld [vmem:[%s1 + $0x4e] sm:$0x1]
        %v1957 = vlaneseq
        %v1958 = vshrl.u32 %v1957, 7
        %v1959 = vsub.s32 0, %v1958
        %v1960 = vrot.slane %v1956, %v1959
        %v1961 = vmul.f32 %v1955, %v1960
        %v1962 = vadd.f32 %v1954, %v1961
        %v1963 = vld [vmem:[%s488 + $0x2] sm:$0xff]
        %v1964 = vld [vmem:[%s1 + $0x4f] sm:$0x1]
        %v1965 = vlaneseq
        %v1966 = vshrl.u32 %v1965, 7
        %v1967 = vsub.s32 0, %v1966
        %v1968 = vrot.slane %v1964, %v1967
        %1970 = vrot.lane.b32.xlu0 %v1968, 8
        %v1971 = vpop.permute.xlu0 %1970
        %v1973 = vmul.f32 %v1963, %v1971
        %1975 = vrot.lane.b32.xlu0 %v1973, 120
        %v1976 = vpop.permute.xlu0 %1975
        %v1978 = vadd.f32 %v1962, %v1976
        %v1979 = vld [vmem:[%s1 + $0x50] sm:$0x1]
        %v1980 = vlaneseq
        %v1981 = vshrl.u32 %v1980, 7
        %v1982 = vsub.s32 0, %v1981
        %v1983 = vrot.slane %v1979, %v1982
        %1985 = vrot.lane.b32.xlu0 %v1983, 8
        %v1986 = vpop.permute.xlu0 %1985
        %v1988 = vmul.f32 %v1955, %v1986
        %1990 = vrot.lane.b32.xlu0 %v1988, 120
        %v1991 = vpop.permute.xlu0 %1990
        %v1993 = vadd.f32 %v1978, %v1991
        %v1994 = vld [vmem:[%s1 + $0x51] sm:$0x1]
        %v1995 = vlaneseq
        %v1996 = vshrl.u32 %v1995, 7
        %v1997 = vsub.s32 0, %v1996
        %v1998 = vrot.slane %v1994, %v1997
        %2000 = vrot.lane.b32.xlu0 %v1998, 16
        %v2001 = vpop.permute.xlu0 %2000
        %v2003 = vmul.f32 %v1963, %v2001
        %2005 = vrot.lane.b32.xlu0 %v2003, 112
        %v2006 = vpop.permute.xlu0 %2005
        %v2008 = vadd.f32 %v1993, %v2006
        %v2009 = vld [vmem:[%s1 + $0x52] sm:$0x1]
        %v2010 = vlaneseq
        %v2011 = vshrl.u32 %v2010, 7
        %v2012 = vsub.s32 0, %v2011
        %v2013 = vrot.slane %v2009, %v2012
        %2015 = vrot.lane.b32.xlu0 %v2013, 16
        %v2016 = vpop.permute.xlu0 %2015
        %v2018 = vmul.f32 %v1955, %v2016
        %2020 = vrot.lane.b32.xlu0 %v2018, 112
        %v2021 = vpop.permute.xlu0 %2020
        %v2023 = vadd.f32 %v2008, %v2021
        %v2024 = vld [vmem:[%s1 + $0x53] sm:$0x1]
        %v2025 = vlaneseq
        %v2026 = vshrl.u32 %v2025, 7
        %v2027 = vsub.s32 0, %v2026
        %v2028 = vrot.slane %v2024, %v2027
        %2030 = vrot.lane.b32.xlu0 %v2028, 24
        %v2031 = vpop.permute.xlu0 %2030
        %v2033 = vmul.f32 %v1963, %v2031
        %2035 = vrot.lane.b32.xlu0 %v2033, 104
        %v2036 = vpop.permute.xlu0 %2035
        %v2038 = vadd.f32 %v2023, %v2036
        %v2039 = vld [vmem:[%s1 + $0x54] sm:$0x1]
        %v2040 = vlaneseq
        %v2041 = vshrl.u32 %v2040, 7
        %v2042 = vsub.s32 0, %v2041
        %v2043 = vrot.slane %v2039, %v2042
        %2045 = vrot.lane.b32.xlu0 %v2043, 24
        %v2046 = vpop.permute.xlu0 %2045
        %v2048 = vmul.f32 %v1955, %v2046
        %2050 = vrot.lane.b32.xlu0 %v2048, 104
        %v2051 = vpop.permute.xlu0 %2050
        %v2053 = vadd.f32 %v2038, %v2051
        %v2054 = vld [vmem:[%s475 + $0x3] sm:$0xff]
        %v2055 = vld [vmem:[%s1 + $0x55] sm:$0x1]
        %v2056 = vlaneseq
        %v2057 = vshrl.u32 %v2056, 7
        %v2058 = vsub.s32 0, %v2057
        %v2059 = vrot.slane %v2055, %v2058
        %v2060 = vmul.f32 %v2054, %v2059
        %v2061 = vadd.f32 %v2053, %v2060
        %v2062 = vld [vmem:[#allocation3 + $0x3] sm:$0xff]
        %v2063 = vld [vmem:[%s1 + $0x56] sm:$0x1]
        %v2064 = vlaneseq
        %v2065 = vshrl.u32 %v2064, 7
        %v2066 = vsub.s32 0, %v2065
        %v2067 = vrot.slane %v2063, %v2066
        %2069 = vrot.lane.b32.xlu0 %v2067, 8
        %v2070 = vpop.permute.xlu0 %2069
        %v2072 = vmul.f32 %v2062, %v2070
        %2074 = vrot.lane.b32.xlu0 %v2072, 120
        %v2075 = vpop.permute.xlu0 %2074
        %v2077 = vadd.f32 %v2061, %v2075
        %v2078 = vld [vmem:[%s1 + $0x57] sm:$0x1]
        %v2079 = vlaneseq
        %v2080 = vshrl.u32 %v2079, 7
        %v2081 = vsub.s32 0, %v2080
        %v2082 = vrot.slane %v2078, %v2081
        %2084 = vrot.lane.b32.xlu0 %v2082, 8
        %v2085 = vpop.permute.xlu0 %2084
        %v2087 = vmul.f32 %v2054, %v2085
        %2089 = vrot.lane.b32.xlu0 %v2087, 120
        %v2090 = vpop.permute.xlu0 %2089
        %v2092 = vadd.f32 %v2077, %v2090
        %v2093 = vld [vmem:[%s1 + $0x58] sm:$0x1]
        %v2094 = vlaneseq
        %v2095 = vshrl.u32 %v2094, 7
        %v2096 = vsub.s32 0, %v2095
        %v2097 = vrot.slane %v2093, %v2096
        %2099 = vrot.lane.b32.xlu0 %v2097, 16
        %v2100 = vpop.permute.xlu0 %2099
        %v2102 = vmul.f32 %v2062, %v2100
        %2104 = vrot.lane.b32.xlu0 %v2102, 112
        %v2105 = vpop.permute.xlu0 %2104
        %v2107 = vadd.f32 %v2092, %v2105
        %v2108 = vld [vmem:[%s1 + $0x59] sm:$0x1]
        %v2109 = vlaneseq
        %v2110 = vshrl.u32 %v2109, 7
        %v2111 = vsub.s32 0, %v2110
        %v2112 = vrot.slane %v2108, %v2111
        %2114 = vrot.lane.b32.xlu0 %v2112, 16
        %v2115 = vpop.permute.xlu0 %2114
        %v2117 = vmul.f32 %v2054, %v2115
        %2119 = vrot.lane.b32.xlu0 %v2117, 112
        %v2120 = vpop.permute.xlu0 %2119
        %v2122 = vadd.f32 %v2107, %v2120
        %v2123 = vld [vmem:[%s1 + $0x5a] sm:$0x1]
        %v2124 = vlaneseq
        %v2125 = vshrl.u32 %v2124, 7
        %v2126 = vsub.s32 0, %v2125
        %v2127 = vrot.slane %v2123, %v2126
        %2129 = vrot.lane.b32.xlu0 %v2127, 24
        %v2130 = vpop.permute.xlu0 %2129
        %v2132 = vmul.f32 %v2062, %v2130
        %2134 = vrot.lane.b32.xlu0 %v2132, 104
        %v2135 = vpop.permute.xlu0 %2134
        %v2137 = vadd.f32 %v2122, %v2135
        %v2138 = vld [vmem:[%s1 + $0x5b] sm:$0x1]
        %v2139 = vlaneseq
        %v2140 = vshrl.u32 %v2139, 7
        %v2141 = vsub.s32 0, %v2140
        %v2142 = vrot.slane %v2138, %v2141
        %2144 = vrot.lane.b32.xlu0 %v2142, 24
        %v2145 = vpop.permute.xlu0 %2144
        %v2147 = vmul.f32 %v2054, %v2145
        %2149 = vrot.lane.b32.xlu0 %v2147, 104
        %v2150 = vpop.permute.xlu0 %2149
        %v2152 = vadd.f32 %v2137, %v2150
        %v2153 = vld [vmem:[%s501 + $0x3] sm:$0xff]
        %v2154 = vld [vmem:[%s1 + $0x5c] sm:$0x1]
        %v2155 = vlaneseq
        %v2156 = vshrl.u32 %v2155, 7
        %v2157 = vsub.s32 0, %v2156
        %v2158 = vrot.slane %v2154, %v2157
        %v2159 = vmul.f32 %v2153, %v2158
        %v2160 = vadd.f32 %v2152, %v2159
        %v2161 = vld [vmem:[%s488 + $0x3] sm:$0xff]
        %v2162 = vld [vmem:[%s1 + $0x5d] sm:$0x1]
        %v2163 = vlaneseq
        %v2164 = vshrl.u32 %v2163, 7
        %v2165 = vsub.s32 0, %v2164
        %v2166 = vrot.slane %v2162, %v2165
        %2168 = vrot.lane.b32.xlu0 %v2166, 8
        %v2169 = vpop.permute.xlu0 %2168
        %v2171 = vmul.f32 %v2161, %v2169
        %2173 = vrot.lane.b32.xlu0 %v2171, 120
        %v2174 = vpop.permute.xlu0 %2173
        %v2176 = vadd.f32 %v2160, %v2174
        %v2177 = vld [vmem:[%s1 + $0x5e] sm:$0x1]
        %v2178 = vlaneseq
        %v2179 = vshrl.u32 %v2178, 7
        %v2180 = vsub.s32 0, %v2179
        %v2181 = vrot.slane %v2177, %v2180
        %2183 = vrot.lane.b32.xlu0 %v2181, 8
        %v2184 = vpop.permute.xlu0 %2183
        %v2186 = vmul.f32 %v2153, %v2184
        %2188 = vrot.lane.b32.xlu0 %v2186, 120
        %v2189 = vpop.permute.xlu0 %2188
        %v2191 = vadd.f32 %v2176, %v2189
        %v2192 = vld [vmem:[%s1 + $0x5f] sm:$0x1]
        %v2193 = vlaneseq
        %v2194 = vshrl.u32 %v2193, 7
        %v2195 = vsub.s32 0, %v2194
        %v2196 = vrot.slane %v2192, %v2195
        %2198 = vrot.lane.b32.xlu0 %v2196, 16
        %v2199 = vpop.permute.xlu0 %2198
        %v2201 = vmul.f32 %v2161, %v2199
        %2203 = vrot.lane.b32.xlu0 %v2201, 112
        %v2204 = vpop.permute.xlu0 %2203
        %v2206 = vadd.f32 %v2191, %v2204
        %v2207 = vld [vmem:[%s1 + $0x60] sm:$0x1]
        %v2208 = vlaneseq
        %v2209 = vshrl.u32 %v2208, 7
        %v2210 = vsub.s32 0, %v2209
        %v2211 = vrot.slane %v2207, %v2210
        %2213 = vrot.lane.b32.xlu0 %v2211, 16
        %v2214 = vpop.permute.xlu0 %2213
        %v2216 = vmul.f32 %v2153, %v2214
        %2218 = vrot.lane.b32.xlu0 %v2216, 112
        %v2219 = vpop.permute.xlu0 %2218
        %v2221 = vadd.f32 %v2206, %v2219
        %v2222 = vld [vmem:[%s1 + $0x61] sm:$0x1]
        %v2223 = vlaneseq
        %v2224 = vshrl.u32 %v2223, 7
        %v2225 = vsub.s32 0, %v2224
        %v2226 = vrot.slane %v2222, %v2225
        %2228 = vrot.lane.b32.xlu0 %v2226, 24
        %v2229 = vpop.permute.xlu0 %2228
        %v2231 = vmul.f32 %v2161, %v2229
        %2233 = vrot.lane.b32.xlu0 %v2231, 104
        %v2234 = vpop.permute.xlu0 %2233
        %v2236 = vadd.f32 %v2221, %v2234
        %v2237 = vld [vmem:[%s1 + $0x62] sm:$0x1]
        %v2238 = vlaneseq
        %v2239 = vshrl.u32 %v2238, 7
        %v2240 = vsub.s32 0, %v2239
        %v2241 = vrot.slane %v2237, %v2240
        %2243 = vrot.lane.b32.xlu0 %v2241, 24
        %v2244 = vpop.permute.xlu0 %2243
        %v2246 = vmul.f32 %v2153, %v2244
        %2248 = vrot.lane.b32.xlu0 %v2246, 104
        %v2249 = vpop.permute.xlu0 %2248
        %v2251 = vadd.f32 %v2236, %v2249
        %s2252 = scalar_lea.vmem %s2, 320
        %v2253 = vld [vmem:[%s2252] sm:$0xff]
        %v2254 = vld [vmem:[%s2252 + $0x8] sm:$0xff]
        %v2255 = vld [vmem:[%s2252 + $0x10] sm:$0xff]
        %v2256 = vld [vmem:[%s2252 + $0x18] sm:$0xff]
        %v2257 = vld [vmem:[%s2252 + $0x20] sm:$0xff]
        %v2258 = vld [vmem:[%s2252 + $0x28] sm:$0xff]
        %v2259 = vld [vmem:[%s2252 + $0x30] sm:$0xff]
        %v2260 = vld [vmem:[%s2252 + $0x38] sm:$0xff]
        %v2261 = vld [vmem:[%s3 + $0x5] sm:$0x1]
        %v2262 = vlaneseq
        %v2263 = vshrl.u32 %v2262, 7
        %v2264 = vsub.s32 0, %v2263
        %v2265 = vrot.slane %v2261, %v2264
        %v2267 = vsel %vm358, %v2251, 0
        %2269 = vmatprep.subr.mxu0 0.0
        %2270 = vmatpush1.msra.mxu0 %v2253
        %2271 = vmatprep.subr.mxu0 0.0
        %2272 = vmatpush1.msra.mxu0 %v2254
        %2273 = vmatprep.subr.mxu0 0.0
        %2274 = vmatpush1.msra.mxu0 %v2255
        %2275 = vmatprep.subr.mxu0 0.0
        %2276 = vmatpush1.msra.mxu0 %v2256
        %2277 = vmatprep.subr.mxu0 0.0
        %2278 = vmatpush1.msra.mxu0 %v2257
        %2279 = vmatprep.subr.mxu0 0.0
        %2280 = vmatpush1.msra.mxu0 %v2258
        %2281 = vmatprep.subr.mxu0 0.0
        %2282 = vmatpush1.msra.mxu0 %v2259
        %2283 = vmatprep.subr.mxu0 0.0
        %2284 = vmatpush1.msra.mxu0 %v2260
        %2285 = vmatprep.subr.mxu0 0.0
        %2286 = vmatpush1.msra.mxu0 0.0
        %2287 = vmatprep.subr.mxu0 0.0
        %2288 = vmatpush1.msra.mxu0 0.0
        %2289 = vmatprep.subr.mxu0 0.0
        %2290 = vmatpush1.msra.mxu0 0.0
        %2291 = vmatprep.subr.mxu0 0.0
        %2292 = vmatpush1.msra.mxu0 0.0
        %2293 = vmatprep.subr.mxu0 0.0
        %2294 = vmatpush1.msra.mxu0 0.0
        %2295 = vmatprep.subr.mxu0 0.0
        %2296 = vmatpush1.msra.mxu0 0.0
        %2297 = vmatprep.subr.mxu0 0.0
        %2298 = vmatpush1.msra.mxu0 0.0
        %2299 = vmatprep.subr.mxu0 0.0
        %2300 = vmatpush1.msra.mxu0 0.0
        %2301 = vmatprep.subr.mxu0 0.0
        %2302 = vmatpush1.msra.mxu0 0.0
        %2303 = vmatprep.subr.mxu0 0.0
        %2304 = vmatpush1.msra.mxu0 0.0
        %2305 = vmatprep.subr.mxu0 0.0
        %2306 = vmatpush1.msra.mxu0 0.0
        %2307 = vmatprep.subr.mxu0 0.0
        %2308 = vmatpush1.msra.mxu0 0.0
        %2309 = vmatprep.subr.mxu0 0.0
        %2310 = vmatpush1.msra.mxu0 0.0
        %2311 = vmatprep.subr.mxu0 0.0
        %2312 = vmatpush1.msra.mxu0 0.0
        %2313 = vmatprep.subr.mxu0 0.0
        %2314 = vmatpush1.msra.mxu0 0.0
        %2315 = vmatprep.subr.mxu0 0.0
        %2316 = vmatpush1.msra.mxu0 0.0
        %2317 = vmatprep.subr.mxu0 0.0
        %2318 = vmatpush1.msra.mxu0 0.0
        %2319 = vmatprep.subr.mxu0 0.0
        %2320 = vmatpush1.msra.mxu0 0.0
        %2321 = vmatprep.subr.mxu0 0.0
        %2322 = vmatpush1.msra.mxu0 0.0
        %2323 = vmatprep.subr.mxu0 0.0
        %2324 = vmatpush1.msra.mxu0 0.0
        %2325 = vmatprep.subr.mxu0 0.0
        %2326 = vmatpush1.msra.mxu0 0.0
        %2327 = vmatprep.subr.mxu0 0.0
        %2328 = vmatpush1.msra.mxu0 0.0
        %2329 = vmatprep.subr.mxu0 0.0
        %2330 = vmatpush1.msra.mxu0 0.0
        %2331 = vmatprep.subr.mxu0 0.0
        %2332 = vmatpush1.msra.mxu0 0.0
        %2333 = vmatprep.mubr.f32.mxu0 0.0
        %2334 = vmatmul.mubr.f32.gmra.mrb[0].mxu0 %v2267
        %v2335 = vpop.f32.mrb[0].mxu0
        %v2336 = vadd.f32 %v2265, %v2335
        %v2337 = vpop.f32.mrb[0].mxu0
        %2338 = vdwg.mxu0
        %v2339 = vmax.f32 %v2336, 0.0
        %2341 = vrot.lane.b32.xlu0 %v2339, 24
        %v2342 = vpop.permute.xlu0 %2341
        %2344 = vst.msk [vmem:[#allocation5 + $0x3] sm:$0xff] %vm941, %v2342
        %v2345 = vld [vmem:[#allocation5] sm:$0xff]
        %v2346 = vld [vmem:[%s1 + $0x63] sm:$0x1]
        %v2347 = vlaneseq
        %v2348 = vshrl.u32 %v2347, 7
        %v2349 = vsub.s32 0, %v2348
        %v2350 = vrot.slane %v2346, %v2349
        %v2351 = vmul.f32 %v2345, %v2350
        %v2352 = vld [vmem:[%s1 + $0x64] sm:$0x1]
        %v2353 = vlaneseq
        %v2354 = vshrl.u32 %v2353, 7
        %v2355 = vsub.s32 0, %v2354
        %v2356 = vrot.slane %v2352, %v2355
        %2358 = vrot.lane.b32.xlu0 %v2356, 8
        %v2359 = vpop.permute.xlu0 %2358
        %v2361 = vmul.f32 %v2345, %v2359
        %2363 = vrot.lane.b32.xlu0 %v2361, 120
        %v2364 = vpop.permute.xlu0 %2363
        %v2366 = vadd.f32 %v2351, %v2364
        %v2367 = vld [vmem:[%s1 + $0x65] sm:$0x1]
        %v2368 = vlaneseq
        %v2369 = vshrl.u32 %v2368, 7
        %v2370 = vsub.s32 0, %v2369
        %v2371 = vrot.slane %v2367, %v2370
        %2373 = vrot.lane.b32.xlu0 %v2371, 16
        %v2374 = vpop.permute.xlu0 %2373
        %v2376 = vmul.f32 %v2345, %v2374
        %2378 = vrot.lane.b32.xlu0 %v2376, 112
        %v2379 = vpop.permute.xlu0 %2378
        %v2381 = vadd.f32 %v2366, %v2379
        %v2382 = vld [vmem:[%s1 + $0x66] sm:$0x1]
        %v2383 = vlaneseq
        %v2384 = vshrl.u32 %v2383, 7
        %v2385 = vsub.s32 0, %v2384
        %v2386 = vrot.slane %v2382, %v2385
        %2388 = vrot.lane.b32.xlu0 %v2386, 24
        %v2389 = vpop.permute.xlu0 %2388
        %v2391 = vmul.f32 %v2345, %v2389
        %2393 = vrot.lane.b32.xlu0 %v2391, 104
        %v2394 = vpop.permute.xlu0 %2393
        %v2396 = vadd.f32 %v2381, %v2394
        %v2397 = vld [vmem:[%s1 + $0x67] sm:$0x1]
        %v2398 = vlaneseq
        %v2399 = vshrl.u32 %v2398, 7
        %v2400 = vsub.s32 0, %v2399
        %v2401 = vrot.slane %v2397, %v2400
        %2403 = vrot.lane.b32.xlu0 %v2401, 32
        %v2404 = vpop.permute.xlu0 %2403
        %v2406 = vmul.f32 %v2345, %v2404
        %2408 = vrot.lane.b32.xlu0 %v2406, 96
        %v2409 = vpop.permute.xlu0 %2408
        %v2411 = vadd.f32 %v2396, %v2409
        %v2412 = vld [vmem:[%s1 + $0x68] sm:$0x1]
        %v2413 = vlaneseq
        %v2414 = vshrl.u32 %v2413, 7
        %v2415 = vsub.s32 0, %v2414
        %v2416 = vrot.slane %v2412, %v2415
        %2418 = vrot.lane.b32.xlu0 %v2416, 40
        %v2419 = vpop.permute.xlu0 %2418
        %v2421 = vmul.f32 %v2345, %v2419
        %2423 = vrot.lane.b32.xlu0 %v2421, 88
        %v2424 = vpop.permute.xlu0 %2423
        %v2426 = vadd.f32 %v2411, %v2424
        %v2427 = vld [vmem:[%s1 + $0x69] sm:$0x1]
        %v2428 = vlaneseq
        %v2429 = vshrl.u32 %v2428, 7
        %v2430 = vsub.s32 0, %v2429
        %v2431 = vrot.slane %v2427, %v2430
        %2433 = vrot.lane.b32.xlu0 %v2431, 48
        %v2434 = vpop.permute.xlu0 %2433
        %v2436 = vmul.f32 %v2345, %v2434
        %2438 = vrot.lane.b32.xlu0 %v2436, 80
        %v2439 = vpop.permute.xlu0 %2438
        %v2441 = vadd.f32 %v2426, %v2439
        %v2442 = vld [vmem:[#allocation5 + $0x1] sm:$0xff]
        %v2443 = vld [vmem:[%s1 + $0x6a] sm:$0x1]
        %v2444 = vlaneseq
        %v2445 = vshrl.u32 %v2444, 7
        %v2446 = vsub.s32 0, %v2445
        %v2447 = vrot.slane %v2443, %v2446
        %v2448 = vmul.f32 %v2442, %v2447
        %v2449 = vadd.f32 %v2441, %v2448
        %v2450 = vld [vmem:[%s1 + $0x6b] sm:$0x1]
        %v2451 = vlaneseq
        %v2452 = vshrl.u32 %v2451, 7
        %v2453 = vsub.s32 0, %v2452
        %v2454 = vrot.slane %v2450, %v2453
        %2456 = vrot.lane.b32.xlu0 %v2454, 8
        %v2457 = vpop.permute.xlu0 %2456
        %v2459 = vmul.f32 %v2442, %v2457
        %2461 = vrot.lane.b32.xlu0 %v2459, 120
        %v2462 = vpop.permute.xlu0 %2461
        %v2464 = vadd.f32 %v2449, %v2462
        %v2465 = vld [vmem:[%s1 + $0x6c] sm:$0x1]
        %v2466 = vlaneseq
        %v2467 = vshrl.u32 %v2466, 7
        %v2468 = vsub.s32 0, %v2467
        %v2469 = vrot.slane %v2465, %v2468
        %2471 = vrot.lane.b32.xlu0 %v2469, 16
        %v2472 = vpop.permute.xlu0 %2471
        %v2474 = vmul.f32 %v2442, %v2472
        %2476 = vrot.lane.b32.xlu0 %v2474, 112
        %v2477 = vpop.permute.xlu0 %2476
        %v2479 = vadd.f32 %v2464, %v2477
        %v2480 = vld [vmem:[%s1 + $0x6d] sm:$0x1]
        %v2481 = vlaneseq
        %v2482 = vshrl.u32 %v2481, 7
        %v2483 = vsub.s32 0, %v2482
        %v2484 = vrot.slane %v2480, %v2483
        %2486 = vrot.lane.b32.xlu0 %v2484, 24
        %v2487 = vpop.permute.xlu0 %2486
        %v2489 = vmul.f32 %v2442, %v2487
        %2491 = vrot.lane.b32.xlu0 %v2489, 104
        %v2492 = vpop.permute.xlu0 %2491
        %v2494 = vadd.f32 %v2479, %v2492
        %v2495 = vld [vmem:[%s1 + $0x6e] sm:$0x1]
        %v2496 = vlaneseq
        %v2497 = vshrl.u32 %v2496, 7
        %v2498 = vsub.s32 0, %v2497
        %v2499 = vrot.slane %v2495, %v2498
        %2501 = vrot.lane.b32.xlu0 %v2499, 32
        %v2502 = vpop.permute.xlu0 %2501
        %v2504 = vmul.f32 %v2442, %v2502
        %2506 = vrot.lane.b32.xlu0 %v2504, 96
        %v2507 = vpop.permute.xlu0 %2506
        %v2509 = vadd.f32 %v2494, %v2507
        %v2510 = vld [vmem:[%s1 + $0x6f] sm:$0x1]
        %v2511 = vlaneseq
        %v2512 = vshrl.u32 %v2511, 7
        %v2513 = vsub.s32 0, %v2512
        %v2514 = vrot.slane %v2510, %v2513
        %2516 = vrot.lane.b32.xlu0 %v2514, 40
        %v2517 = vpop.permute.xlu0 %2516
        %v2519 = vmul.f32 %v2442, %v2517
        %2521 = vrot.lane.b32.xlu0 %v2519, 88
        %v2522 = vpop.permute.xlu0 %2521
        %v2524 = vadd.f32 %v2509, %v2522
        %v2525 = vld [vmem:[%s1 + $0x70] sm:$0x1]
        %v2526 = vlaneseq
        %v2527 = vshrl.u32 %v2526, 7
        %v2528 = vsub.s32 0, %v2527
        %v2529 = vrot.slane %v2525, %v2528
        %2531 = vrot.lane.b32.xlu0 %v2529, 48
        %v2532 = vpop.permute.xlu0 %2531
        %v2534 = vmul.f32 %v2442, %v2532
        %2536 = vrot.lane.b32.xlu0 %v2534, 80
        %v2537 = vpop.permute.xlu0 %2536
        %v2539 = vadd.f32 %v2524, %v2537
        %v2540 = vld [vmem:[#allocation5 + $0x2] sm:$0xff]
        %v2541 = vld [vmem:[%s1 + $0x71] sm:$0x1]
        %v2542 = vlaneseq
        %v2543 = vshrl.u32 %v2542, 7
        %v2544 = vsub.s32 0, %v2543
        %v2545 = vrot.slane %v2541, %v2544
        %v2546 = vmul.f32 %v2540, %v2545
        %v2547 = vadd.f32 %v2539, %v2546
        %v2548 = vld [vmem:[%s1 + $0x72] sm:$0x1]
        %v2549 = vlaneseq
        %v2550 = vshrl.u32 %v2549, 7
        %v2551 = vsub.s32 0, %v2550
        %v2552 = vrot.slane %v2548, %v2551
        %2554 = vrot.lane.b32.xlu0 %v2552, 8
        %v2555 = vpop.permute.xlu0 %2554
        %v2557 = vmul.f32 %v2540, %v2555
        %2559 = vrot.lane.b32.xlu0 %v2557, 120
        %v2560 = vpop.permute.xlu0 %2559
        %v2562 = vadd.f32 %v2547, %v2560
        %v2563 = vld [vmem:[%s1 + $0x73] sm:$0x1]
        %v2564 = vlaneseq
        %v2565 = vshrl.u32 %v2564, 7
        %v2566 = vsub.s32 0, %v2565
        %v2567 = vrot.slane %v2563, %v2566
        %2569 = vrot.lane.b32.xlu0 %v2567, 16
        %v2570 = vpop.permute.xlu0 %2569
        %v2572 = vmul.f32 %v2540, %v2570
        %2574 = vrot.lane.b32.xlu0 %v2572, 112
        %v2575 = vpop.permute.xlu0 %2574
        %v2577 = vadd.f32 %v2562, %v2575
        %v2578 = vld [vmem:[%s1 + $0x74] sm:$0x1]
        %v2579 = vlaneseq
        %v2580 = vshrl.u32 %v2579, 7
        %v2581 = vsub.s32 0, %v2580
        %v2582 = vrot.slane %v2578, %v2581
        %2584 = vrot.lane.b32.xlu0 %v2582, 24
        %v2585 = vpop.permute.xlu0 %2584
        %v2587 = vmul.f32 %v2540, %v2585
        %2589 = vrot.lane.b32.xlu0 %v2587, 104
        %v2590 = vpop.permute.xlu0 %2589
        %v2592 = vadd.f32 %v2577, %v2590
        %v2593 = vld [vmem:[%s1 + $0x75] sm:$0x1]
        %v2594 = vlaneseq
        %v2595 = vshrl.u32 %v2594, 7
        %v2596 = vsub.s32 0, %v2595
        %v2597 = vrot.slane %v2593, %v2596
        %2599 = vrot.lane.b32.xlu0 %v2597, 32
        %v2600 = vpop.permute.xlu0 %2599
        %v2602 = vmul.f32 %v2540, %v2600
        %2604 = vrot.lane.b32.xlu0 %v2602, 96
        %v2605 = vpop.permute.xlu0 %2604
        %v2607 = vadd.f32 %v2592, %v2605
        %v2608 = vld [vmem:[%s1 + $0x76] sm:$0x1]
        %v2609 = vlaneseq
        %v2610 = vshrl.u32 %v2609, 7
        %v2611 = vsub.s32 0, %v2610
        %v2612 = vrot.slane %v2608, %v2611
        %2614 = vrot.lane.b32.xlu0 %v2612, 40
        %v2615 = vpop.permute.xlu0 %2614
        %v2617 = vmul.f32 %v2540, %v2615
        %2619 = vrot.lane.b32.xlu0 %v2617, 88
        %v2620 = vpop.permute.xlu0 %2619
        %v2622 = vadd.f32 %v2607, %v2620
        %v2623 = vld [vmem:[%s1 + $0x77] sm:$0x1]
        %v2624 = vlaneseq
        %v2625 = vshrl.u32 %v2624, 7
        %v2626 = vsub.s32 0, %v2625
        %v2627 = vrot.slane %v2623, %v2626
        %2629 = vrot.lane.b32.xlu0 %v2627, 48
        %v2630 = vpop.permute.xlu0 %2629
        %v2632 = vmul.f32 %v2540, %v2630
        %2634 = vrot.lane.b32.xlu0 %v2632, 80
        %v2635 = vpop.permute.xlu0 %2634
        %v2637 = vadd.f32 %v2622, %v2635
        %v2638 = vld [vmem:[#allocation5 + $0x3] sm:$0xff]
        %v2639 = vld [vmem:[%s1 + $0x78] sm:$0x1]
        %v2640 = vlaneseq
        %v2641 = vshrl.u32 %v2640, 7
        %v2642 = vsub.s32 0, %v2641
        %v2643 = vrot.slane %v2639, %v2642
        %v2644 = vmul.f32 %v2638, %v2643
        %v2645 = vadd.f32 %v2637, %v2644
        %v2646 = vld [vmem:[%s1 + $0x79] sm:$0x1]
        %v2647 = vlaneseq
        %v2648 = vshrl.u32 %v2647, 7
        %v2649 = vsub.s32 0, %v2648
        %v2650 = vrot.slane %v2646, %v2649
        %2652 = vrot.lane.b32.xlu0 %v2650, 8
        %v2653 = vpop.permute.xlu0 %2652
        %v2655 = vmul.f32 %v2638, %v2653
        %2657 = vrot.lane.b32.xlu0 %v2655, 120
        %v2658 = vpop.permute.xlu0 %2657
        %v2660 = vadd.f32 %v2645, %v2658
        %v2661 = vld [vmem:[%s1 + $0x7a] sm:$0x1]
        %v2662 = vlaneseq
        %v2663 = vshrl.u32 %v2662, 7
        %v2664 = vsub.s32 0, %v2663
        %v2665 = vrot.slane %v2661, %v2664
        %2667 = vrot.lane.b32.xlu0 %v2665, 16
        %v2668 = vpop.permute.xlu0 %2667
        %v2670 = vmul.f32 %v2638, %v2668
        %2672 = vrot.lane.b32.xlu0 %v2670, 112
        %v2673 = vpop.permute.xlu0 %2672
        %v2675 = vadd.f32 %v2660, %v2673
        %v2676 = vld [vmem:[%s1 + $0x7b] sm:$0x1]
        %v2677 = vlaneseq
        %v2678 = vshrl.u32 %v2677, 7
        %v2679 = vsub.s32 0, %v2678
        %v2680 = vrot.slane %v2676, %v2679
        %2682 = vrot.lane.b32.xlu0 %v2680, 24
        %v2683 = vpop.permute.xlu0 %2682
        %v2685 = vmul.f32 %v2638, %v2683
        %2687 = vrot.lane.b32.xlu0 %v2685, 104
        %v2688 = vpop.permute.xlu0 %2687
        %v2690 = vadd.f32 %v2675, %v2688
        %v2691 = vld [vmem:[%s1 + $0x7c] sm:$0x1]
        %v2692 = vlaneseq
        %v2693 = vshrl.u32 %v2692, 7
        %v2694 = vsub.s32 0, %v2693
        %v2695 = vrot.slane %v2691, %v2694
        %2697 = vrot.lane.b32.xlu0 %v2695, 32
        %v2698 = vpop.permute.xlu0 %2697
        %v2700 = vmul.f32 %v2638, %v2698
        %2702 = vrot.lane.b32.xlu0 %v2700, 96
        %v2703 = vpop.permute.xlu0 %2702
        %v2705 = vadd.f32 %v2690, %v2703
        %v2706 = vld [vmem:[%s1 + $0x7d] sm:$0x1]
        %v2707 = vlaneseq
        %v2708 = vshrl.u32 %v2707, 7
        %v2709 = vsub.s32 0, %v2708
        %v2710 = vrot.slane %v2706, %v2709
        %2712 = vrot.lane.b32.xlu0 %v2710, 40
        %v2713 = vpop.permute.xlu0 %2712
        %v2715 = vmul.f32 %v2638, %v2713
        %2717 = vrot.lane.b32.xlu0 %v2715, 88
        %v2718 = vpop.permute.xlu0 %2717
        %v2720 = vadd.f32 %v2705, %v2718
        %v2721 = vld [vmem:[%s1 + $0x7e] sm:$0x1]
        %v2722 = vlaneseq
        %v2723 = vshrl.u32 %v2722, 7
        %v2724 = vsub.s32 0, %v2723
        %v2725 = vrot.slane %v2721, %v2724
        %2727 = vrot.lane.b32.xlu0 %v2725, 48
        %v2728 = vpop.permute.xlu0 %2727
        %v2730 = vmul.f32 %v2638, %v2728
        %2732 = vrot.lane.b32.xlu0 %v2730, 80
        %v2733 = vpop.permute.xlu0 %2732
        %v2735 = vadd.f32 %v2720, %v2733
        %v2736 = vld [vmem:[#allocation5 + $0x4] sm:$0xff]
        %v2737 = vld [vmem:[%s1 + $0x7f] sm:$0x1]
        %v2738 = vlaneseq
        %v2739 = vshrl.u32 %v2738, 7
        %v2740 = vsub.s32 0, %v2739
        %v2741 = vrot.slane %v2737, %v2740
        %v2742 = vmul.f32 %v2736, %v2741
        %v2743 = vadd.f32 %v2735, %v2742
        %v2744 = vld [vmem:[%s1 + $0x80] sm:$0x1]
        %v2745 = vlaneseq
        %v2746 = vshrl.u32 %v2745, 7
        %v2747 = vsub.s32 0, %v2746
        %v2748 = vrot.slane %v2744, %v2747
        %2750 = vrot.lane.b32.xlu0 %v2748, 8
        %v2751 = vpop.permute.xlu0 %2750
        %v2753 = vmul.f32 %v2736, %v2751
        %2755 = vrot.lane.b32.xlu0 %v2753, 120
        %v2756 = vpop.permute.xlu0 %2755
        %v2758 = vadd.f32 %v2743, %v2756
        %v2759 = vld [vmem:[%s1 + $0x81] sm:$0x1]
        %v2760 = vlaneseq
        %v2761 = vshrl.u32 %v2760, 7
        %v2762 = vsub.s32 0, %v2761
        %v2763 = vrot.slane %v2759, %v2762
        %2765 = vrot.lane.b32.xlu0 %v2763, 16
        %v2766 = vpop.permute.xlu0 %2765
        %v2768 = vmul.f32 %v2736, %v2766
        %2770 = vrot.lane.b32.xlu0 %v2768, 112
        %v2771 = vpop.permute.xlu0 %2770
        %v2773 = vadd.f32 %v2758, %v2771
        %v2774 = vld [vmem:[%s1 + $0x82] sm:$0x1]
        %v2775 = vlaneseq
        %v2776 = vshrl.u32 %v2775, 7
        %v2777 = vsub.s32 0, %v2776
        %v2778 = vrot.slane %v2774, %v2777
        %2780 = vrot.lane.b32.xlu0 %v2778, 24
        %v2781 = vpop.permute.xlu0 %2780
        %v2783 = vmul.f32 %v2736, %v2781
        %2785 = vrot.lane.b32.xlu0 %v2783, 104
        %v2786 = vpop.permute.xlu0 %2785
        %v2788 = vadd.f32 %v2773, %v2786
        %v2789 = vld [vmem:[%s1 + $0x83] sm:$0x1]
        %v2790 = vlaneseq
        %v2791 = vshrl.u32 %v2790, 7
        %v2792 = vsub.s32 0, %v2791
        %v2793 = vrot.slane %v2789, %v2792
        %2795 = vrot.lane.b32.xlu0 %v2793, 32
        %v2796 = vpop.permute.xlu0 %2795
        %v2798 = vmul.f32 %v2736, %v2796
        %2800 = vrot.lane.b32.xlu0 %v2798, 96
        %v2801 = vpop.permute.xlu0 %2800
        %v2803 = vadd.f32 %v2788, %v2801
        %v2804 = vld [vmem:[%s1 + $0x84] sm:$0x1]
        %v2805 = vlaneseq
        %v2806 = vshrl.u32 %v2805, 7
        %v2807 = vsub.s32 0, %v2806
        %v2808 = vrot.slane %v2804, %v2807
        %2810 = vrot.lane.b32.xlu0 %v2808, 40
        %v2811 = vpop.permute.xlu0 %2810
        %v2813 = vmul.f32 %v2736, %v2811
        %2815 = vrot.lane.b32.xlu0 %v2813, 88
        %v2816 = vpop.permute.xlu0 %2815
        %v2818 = vadd.f32 %v2803, %v2816
        %v2819 = vld [vmem:[%s1 + $0x85] sm:$0x1]
        %v2820 = vlaneseq
        %v2821 = vshrl.u32 %v2820, 7
        %v2822 = vsub.s32 0, %v2821
        %v2823 = vrot.slane %v2819, %v2822
        %2825 = vrot.lane.b32.xlu0 %v2823, 48
        %v2826 = vpop.permute.xlu0 %2825
        %v2828 = vmul.f32 %v2736, %v2826
        %2830 = vrot.lane.b32.xlu0 %v2828, 80
        %v2831 = vpop.permute.xlu0 %2830
        %v2833 = vadd.f32 %v2818, %v2831
        %v2834 = vld [vmem:[#allocation5 + $0x5] sm:$0xff]
        %v2835 = vld [vmem:[%s1 + $0x86] sm:$0x1]
        %v2836 = vlaneseq
        %v2837 = vshrl.u32 %v2836, 7
        %v2838 = vsub.s32 0, %v2837
        %v2839 = vrot.slane %v2835, %v2838
        %v2840 = vmul.f32 %v2834, %v2839
        %v2841 = vadd.f32 %v2833, %v2840
        %v2842 = vld [vmem:[%s1 + $0x87] sm:$0x1]
        %v2843 = vlaneseq
        %v2844 = vshrl.u32 %v2843, 7
        %v2845 = vsub.s32 0, %v2844
        %v2846 = vrot.slane %v2842, %v2845
        %2848 = vrot.lane.b32.xlu0 %v2846, 8
        %v2849 = vpop.permute.xlu0 %2848
        %v2851 = vmul.f32 %v2834, %v2849
        %2853 = vrot.lane.b32.xlu0 %v2851, 120
        %v2854 = vpop.permute.xlu0 %2853
        %v2856 = vadd.f32 %v2841, %v2854
        %v2857 = vld [vmem:[%s1 + $0x88] sm:$0x1]
        %v2858 = vlaneseq
        %v2859 = vshrl.u32 %v2858, 7
        %v2860 = vsub.s32 0, %v2859
        %v2861 = vrot.slane %v2857, %v2860
        %2863 = vrot.lane.b32.xlu0 %v2861, 16
        %v2864 = vpop.permute.xlu0 %2863
        %v2866 = vmul.f32 %v2834, %v2864
        %2868 = vrot.lane.b32.xlu0 %v2866, 112
        %v2869 = vpop.permute.xlu0 %2868
        %v2871 = vadd.f32 %v2856, %v2869
        %v2872 = vld [vmem:[%s1 + $0x89] sm:$0x1]
        %v2873 = vlaneseq
        %v2874 = vshrl.u32 %v2873, 7
        %v2875 = vsub.s32 0, %v2874
        %v2876 = vrot.slane %v2872, %v2875
        %2878 = vrot.lane.b32.xlu0 %v2876, 24
        %v2879 = vpop.permute.xlu0 %2878
        %v2881 = vmul.f32 %v2834, %v2879
        %2883 = vrot.lane.b32.xlu0 %v2881, 104
        %v2884 = vpop.permute.xlu0 %2883
        %v2886 = vadd.f32 %v2871, %v2884
        %v2887 = vld [vmem:[%s1 + $0x8a] sm:$0x1]
        %v2888 = vlaneseq
        %v2889 = vshrl.u32 %v2888, 7
        %v2890 = vsub.s32 0, %v2889
        %v2891 = vrot.slane %v2887, %v2890
        %2893 = vrot.lane.b32.xlu0 %v2891, 32
        %v2894 = vpop.permute.xlu0 %2893
        %v2896 = vmul.f32 %v2834, %v2894
        %2898 = vrot.lane.b32.xlu0 %v2896, 96
        %v2899 = vpop.permute.xlu0 %2898
        %v2901 = vadd.f32 %v2886, %v2899
        %v2902 = vld [vmem:[%s1 + $0x8b] sm:$0x1]
        %v2903 = vlaneseq
        %v2904 = vshrl.u32 %v2903, 7
        %v2905 = vsub.s32 0, %v2904
        %v2906 = vrot.slane %v2902, %v2905
        %2908 = vrot.lane.b32.xlu0 %v2906, 40
        %v2909 = vpop.permute.xlu0 %2908
        %v2911 = vmul.f32 %v2834, %v2909
        %2913 = vrot.lane.b32.xlu0 %v2911, 88
        %v2914 = vpop.permute.xlu0 %2913
        %v2916 = vadd.f32 %v2901, %v2914
        %v2917 = vld [vmem:[%s1 + $0x8c] sm:$0x1]
        %v2918 = vlaneseq
        %v2919 = vshrl.u32 %v2918, 7
        %v2920 = vsub.s32 0, %v2919
        %v2921 = vrot.slane %v2917, %v2920
        %2923 = vrot.lane.b32.xlu0 %v2921, 48
        %v2924 = vpop.permute.xlu0 %2923
        %v2926 = vmul.f32 %v2834, %v2924
        %2928 = vrot.lane.b32.xlu0 %v2926, 80
        %v2929 = vpop.permute.xlu0 %2928
        %v2931 = vadd.f32 %v2916, %v2929
        %v2932 = vld [vmem:[#allocation5 + $0x6] sm:$0xff]
        %v2933 = vld [vmem:[%s1 + $0x8d] sm:$0x1]
        %v2934 = vlaneseq
        %v2935 = vshrl.u32 %v2934, 7
        %v2936 = vsub.s32 0, %v2935
        %v2937 = vrot.slane %v2933, %v2936
        %v2938 = vmul.f32 %v2932, %v2937
        %v2939 = vadd.f32 %v2931, %v2938
        %v2940 = vld [vmem:[%s1 + $0x8e] sm:$0x1]
        %v2941 = vlaneseq
        %v2942 = vshrl.u32 %v2941, 7
        %v2943 = vsub.s32 0, %v2942
        %v2944 = vrot.slane %v2940, %v2943
        %2946 = vrot.lane.b32.xlu0 %v2944, 8
        %v2947 = vpop.permute.xlu0 %2946
        %v2949 = vmul.f32 %v2932, %v2947
        %2951 = vrot.lane.b32.xlu0 %v2949, 120
        %v2952 = vpop.permute.xlu0 %2951
        %v2954 = vadd.f32 %v2939, %v2952
        %v2955 = vld [vmem:[%s1 + $0x8f] sm:$0x1]
        %v2956 = vlaneseq
        %v2957 = vshrl.u32 %v2956, 7
        %v2958 = vsub.s32 0, %v2957
        %v2959 = vrot.slane %v2955, %v2958
        %2961 = vrot.lane.b32.xlu0 %v2959, 16
        %v2962 = vpop.permute.xlu0 %2961
        %v2964 = vmul.f32 %v2932, %v2962
        %2966 = vrot.lane.b32.xlu0 %v2964, 112
        %v2967 = vpop.permute.xlu0 %2966
        %v2969 = vadd.f32 %v2954, %v2967
        %v2970 = vld [vmem:[%s1 + $0x90] sm:$0x1]
        %v2971 = vlaneseq
        %v2972 = vshrl.u32 %v2971, 7
        %v2973 = vsub.s32 0, %v2972
        %v2974 = vrot.slane %v2970, %v2973
        %2976 = vrot.lane.b32.xlu0 %v2974, 24
        %v2977 = vpop.permute.xlu0 %2976
        %v2979 = vmul.f32 %v2932, %v2977
        %2981 = vrot.lane.b32.xlu0 %v2979, 104
        %v2982 = vpop.permute.xlu0 %2981
        %v2984 = vadd.f32 %v2969, %v2982
        %v2985 = vld [vmem:[%s1 + $0x91] sm:$0x1]
        %v2986 = vlaneseq
        %v2987 = vshrl.u32 %v2986, 7
        %v2988 = vsub.s32 0, %v2987
        %v2989 = vrot.slane %v2985, %v2988
        %2991 = vrot.lane.b32.xlu0 %v2989, 32
        %v2992 = vpop.permute.xlu0 %2991
        %v2994 = vmul.f32 %v2932, %v2992
        %2996 = vrot.lane.b32.xlu0 %v2994, 96
        %v2997 = vpop.permute.xlu0 %2996
        %v2999 = vadd.f32 %v2984, %v2997
        %v3000 = vld [vmem:[%s1 + $0x92] sm:$0x1]
        %v3001 = vlaneseq
        %v3002 = vshrl.u32 %v3001, 7
        %v3003 = vsub.s32 0, %v3002
        %v3004 = vrot.slane %v3000, %v3003
        %3006 = vrot.lane.b32.xlu0 %v3004, 40
        %v3007 = vpop.permute.xlu0 %3006
        %v3009 = vmul.f32 %v2932, %v3007
        %3011 = vrot.lane.b32.xlu0 %v3009, 88
        %v3012 = vpop.permute.xlu0 %3011
        %v3014 = vadd.f32 %v2999, %v3012
        %v3015 = vld [vmem:[%s1 + $0x93] sm:$0x1]
        %v3016 = vlaneseq
        %v3017 = vshrl.u32 %v3016, 7
        %v3018 = vsub.s32 0, %v3017
        %v3019 = vrot.slane %v3015, %v3018
        %3021 = vrot.lane.b32.xlu0 %v3019, 48
        %v3022 = vpop.permute.xlu0 %3021
        %v3024 = vmul.f32 %v2932, %v3022
        %3026 = vrot.lane.b32.xlu0 %v3024, 80
        %v3027 = vpop.permute.xlu0 %3026
        %v3029 = vadd.f32 %v3014, %v3027
        %s3030 = scalar_lea.vmem %s2, 384
        %v3031 = vld [vmem:[%s3030] sm:$0xff]
        %v3032 = vld [vmem:[%s3030 + $0x8] sm:$0xff]
        %v3033 = vld [vmem:[%s3030 + $0x10] sm:$0xff]
        %v3034 = vld [vmem:[%s3030 + $0x18] sm:$0xff]
        %v3035 = vld [vmem:[%s3030 + $0x20] sm:$0xff]
        %v3036 = vld [vmem:[%s3030 + $0x28] sm:$0xff]
        %v3037 = vld [vmem:[%s3030 + $0x30] sm:$0xff]
        %v3038 = vld [vmem:[%s3030 + $0x38] sm:$0xff]
        %v3039 = vld [vmem:[%s3 + $0x6] sm:$0x1]
        %v3040 = vlaneseq
        %v3041 = vshrl.u32 %v3040, 7
        %v3042 = vsub.s32 0, %v3041
        %v3043 = vrot.slane %v3039, %v3042
        %v3045 = vsel %vm358, %v3029, 0
        %3047 = vmatprep.subr.mxu0 0.0
        %3048 = vmatpush1.msra.mxu0 %v3031
        %3049 = vmatprep.subr.mxu0 0.0
        %3050 = vmatpush1.msra.mxu0 %v3032
        %3051 = vmatprep.subr.mxu0 0.0
        %3052 = vmatpush1.msra.mxu0 %v3033
        %3053 = vmatprep.subr.mxu0 0.0
        %3054 = vmatpush1.msra.mxu0 %v3034
        %3055 = vmatprep.subr.mxu0 0.0
        %3056 = vmatpush1.msra.mxu0 %v3035
        %3057 = vmatprep.subr.mxu0 0.0
        %3058 = vmatpush1.msra.mxu0 %v3036
        %3059 = vmatprep.subr.mxu0 0.0
        %3060 = vmatpush1.msra.mxu0 %v3037
        %3061 = vmatprep.subr.mxu0 0.0
        %3062 = vmatpush1.msra.mxu0 %v3038
        %3063 = vmatprep.subr.mxu0 0.0
        %3064 = vmatpush1.msra.mxu0 0.0
        %3065 = vmatprep.subr.mxu0 0.0
        %3066 = vmatpush1.msra.mxu0 0.0
        %3067 = vmatprep.subr.mxu0 0.0
        %3068 = vmatpush1.msra.mxu0 0.0
        %3069 = vmatprep.subr.mxu0 0.0
        %3070 = vmatpush1.msra.mxu0 0.0
        %3071 = vmatprep.subr.mxu0 0.0
        %3072 = vmatpush1.msra.mxu0 0.0
        %3073 = vmatprep.subr.mxu0 0.0
        %3074 = vmatpush1.msra.mxu0 0.0
        %3075 = vmatprep.subr.mxu0 0.0
        %3076 = vmatpush1.msra.mxu0 0.0
        %3077 = vmatprep.subr.mxu0 0.0
        %3078 = vmatpush1.msra.mxu0 0.0
        %3079 = vmatprep.subr.mxu0 0.0
        %3080 = vmatpush1.msra.mxu0 0.0
        %3081 = vmatprep.subr.mxu0 0.0
        %3082 = vmatpush1.msra.mxu0 0.0
        %3083 = vmatprep.subr.mxu0 0.0
        %3084 = vmatpush1.msra.mxu0 0.0
        %3085 = vmatprep.subr.mxu0 0.0
        %3086 = vmatpush1.msra.mxu0 0.0
        %3087 = vmatprep.subr.mxu0 0.0
        %3088 = vmatpush1.msra.mxu0 0.0
        %3089 = vmatprep.subr.mxu0 0.0
        %3090 = vmatpush1.msra.mxu0 0.0
        %3091 = vmatprep.subr.mxu0 0.0
        %3092 = vmatpush1.msra.mxu0 0.0
        %3093 = vmatprep.subr.mxu0 0.0
        %3094 = vmatpush1.msra.mxu0 0.0
        %3095 = vmatprep.subr.mxu0 0.0
        %3096 = vmatpush1.msra.mxu0 0.0
        %3097 = vmatprep.subr.mxu0 0.0
        %3098 = vmatpush1.msra.mxu0 0.0
        %3099 = vmatprep.subr.mxu0 0.0
        %3100 = vmatpush1.msra.mxu0 0.0
        %3101 = vmatprep.subr.mxu0 0.0
        %3102 = vmatpush1.msra.mxu0 0.0
        %3103 = vmatprep.subr.mxu0 0.0
        %3104 = vmatpush1.msra.mxu0 0.0
        %3105 = vmatprep.subr.mxu0 0.0
        %3106 = vmatpush1.msra.mxu0 0.0
        %3107 = vmatprep.subr.mxu0 0.0
        %3108 = vmatpush1.msra.mxu0 0.0
        %3109 = vmatprep.subr.mxu0 0.0
        %3110 = vmatpush1.msra.mxu0 0.0
        %3111 = vmatprep.mubr.f32.mxu0 0.0
        %3112 = vmatmul.mubr.f32.gmra.mrb[0].mxu0 %v3045
        %v3113 = vpop.f32.mrb[0].mxu0
        %v3114 = vadd.f32 %v3043, %v3113
        %v3115 = vpop.f32.mrb[0].mxu0
        %3116 = vdwg.mxu0
        %3118 = vrot.lane.b32.xlu0 %v1559, 120
        %v3119 = vpop.permute.xlu0 %3118
        %v3121 = vadd.f32 %v3114, %v3119
        %v3122 = vld [vmem:[#allocation3 + $0x1] sm:$0xff]
        %v3123 = vld [vmem:[%s1 + $0x94] sm:$0x1]
        %v3124 = vlaneseq
        %v3125 = vshrl.u32 %v3124, 7
        %v3126 = vsub.s32 0, %v3125
        %v3127 = vrot.slane %v3123, %v3126
        %3129 = vrot.lane.b32.xlu0 %v3127, 8
        %v3130 = vpop.permute.xlu0 %3129
        %v3132 = vmul.f32 %v3122, %v3130
        %v3133 = vld [vmem:[%s475 + $0x1] sm:$0xff]
        %v3134 = vld [vmem:[%s1 + $0x95] sm:$0x1]
        %v3135 = vlaneseq
        %v3136 = vshrl.u32 %v3135, 7
        %v3137 = vsub.s32 0, %v3136
        %v3138 = vrot.slane %v3134, %v3137
        %3140 = vrot.lane.b32.xlu0 %v3138, 8
        %v3141 = vpop.permute.xlu0 %3140
        %v3143 = vmul.f32 %v3133, %v3141
        %v3144 = vadd.f32 %v3132, %v3143
        %v3145 = vld [vmem:[%s1 + $0x96] sm:$0x1]
        %v3146 = vlaneseq
        %v3147 = vshrl.u32 %v3146, 7
        %v3148 = vsub.s32 0, %v3147
        %v3149 = vrot.slane %v3145, %v3148
        %3151 = vrot.lane.b32.xlu0 %v3149, 16
        %v3152 = vpop.permute.xlu0 %3151
        %v3154 = vmul.f32 %v3122, %v3152
        %3156 = vrot.lane.b32.xlu0 %v3154, 120
        %v3157 = vpop.permute.xlu0 %3156
        %v3159 = vadd.f32 %v3144, %v3157
        %v3160 = vld [vmem:[%s1 + $0x97] sm:$0x1]
        %v3161 = vlaneseq
        %v3162 = vshrl.u32 %v3161, 7
        %v3163 = vsub.s32 0, %v3162
        %v3164 = vrot.slane %v3160, %v3163
        %3166 = vrot.lane.b32.xlu0 %v3164, 16
        %v3167 = vpop.permute.xlu0 %3166
        %v3169 = vmul.f32 %v3133, %v3167
        %3171 = vrot.lane.b32.xlu0 %v3169, 120
        %v3172 = vpop.permute.xlu0 %3171
        %v3174 = vadd.f32 %v3159, %v3172
        %v3175 = vld [vmem:[%s1 + $0x98] sm:$0x1]
        %v3176 = vlaneseq
        %v3177 = vshrl.u32 %v3176, 7
        %v3178 = vsub.s32 0, %v3177
        %v3179 = vrot.slane %v3175, %v3178
        %3181 = vrot.lane.b32.xlu0 %v3179, 24
        %v3182 = vpop.permute.xlu0 %3181
        %v3184 = vmul.f32 %v3122, %v3182
        %3186 = vrot.lane.b32.xlu0 %v3184, 112
        %v3187 = vpop.permute.xlu0 %3186
        %v3189 = vadd.f32 %v3174, %v3187
        %v3190 = vld [vmem:[%s488 + $0x1] sm:$0xff]
        %v3191 = vld [vmem:[%s1 + $0x99] sm:$0x1]
        %v3192 = vlaneseq
        %v3193 = vshrl.u32 %v3192, 7
        %v3194 = vsub.s32 0, %v3193
        %v3195 = vrot.slane %v3191, %v3194
        %3197 = vrot.lane.b32.xlu0 %v3195, 8
        %v3198 = vpop.permute.xlu0 %3197
        %v3200 = vmul.f32 %v3190, %v3198
        %v3201 = vadd.f32 %v3189, %v3200
        %v3202 = vld [vmem:[%s501 + $0x1] sm:$0xff]
        %v3203 = vld [vmem:[%s1 + $0x9a] sm:$0x1]
        %v3204 = vlaneseq
        %v3205 = vshrl.u32 %v3204, 7
        %v3206 = vsub.s32 0, %v3205
        %v3207 = vrot.slane %v3203, %v3206
        %3209 = vrot.lane.b32.xlu0 %v3207, 8
        %v3210 = vpop.permute.xlu0 %3209
        %v3212 = vmul.f32 %v3202, %v3210
        %v3213 = vadd.f32 %v3201, %v3212
        %v3214 = vld [vmem:[%s1 + $0x9b] sm:$0x1]
        %v3215 = vlaneseq
        %v3216 = vshrl.u32 %v3215, 7
        %v3217 = vsub.s32 0, %v3216
        %v3218 = vrot.slane %v3214, %v3217
        %3220 = vrot.lane.b32.xlu0 %v3218, 16
        %v3221 = vpop.permute.xlu0 %3220
        %v3223 = vmul.f32 %v3190, %v3221
        %3225 = vrot.lane.b32.xlu0 %v3223, 120
        %v3226 = vpop.permute.xlu0 %3225
        %v3228 = vadd.f32 %v3213, %v3226
        %v3229 = vld [vmem:[%s1 + $0x9c] sm:$0x1]
        %v3230 = vlaneseq
        %v3231 = vshrl.u32 %v3230, 7
        %v3232 = vsub.s32 0, %v3231
        %v3233 = vrot.slane %v3229, %v3232
        %3235 = vrot.lane.b32.xlu0 %v3233, 16
        %v3236 = vpop.permute.xlu0 %3235
        %v3238 = vmul.f32 %v3202, %v3236
        %3240 = vrot.lane.b32.xlu0 %v3238, 120
        %v3241 = vpop.permute.xlu0 %3240
        %v3243 = vadd.f32 %v3228, %v3241
        %v3244 = vld [vmem:[%s1 + $0x9d] sm:$0x1]
        %v3245 = vlaneseq
        %v3246 = vshrl.u32 %v3245, 7
        %v3247 = vsub.s32 0, %v3246
        %v3248 = vrot.slane %v3244, %v3247
        %3250 = vrot.lane.b32.xlu0 %v3248, 24
        %v3251 = vpop.permute.xlu0 %3250
        %v3253 = vmul.f32 %v3190, %v3251
        %3255 = vrot.lane.b32.xlu0 %v3253, 112
        %v3256 = vpop.permute.xlu0 %3255
        %v3258 = vadd.f32 %v3243, %v3256
        %v3259 = vld [vmem:[#allocation3 + $0x2] sm:$0xff]
        %v3260 = vld [vmem:[%s1 + $0x9e] sm:$0x1]
        %v3261 = vlaneseq
        %v3262 = vshrl.u32 %v3261, 7
        %v3263 = vsub.s32 0, %v3262
        %v3264 = vrot.slane %v3260, %v3263
        %3266 = vrot.lane.b32.xlu0 %v3264, 8
        %v3267 = vpop.permute.xlu0 %3266
        %v3269 = vmul.f32 %v3259, %v3267
        %v3270 = vadd.f32 %v3258, %v3269
        %v3271 = vld [vmem:[%s475 + $0x2] sm:$0xff]
        %v3272 = vld [vmem:[%s1 + $0x9f] sm:$0x1]
        %v3273 = vlaneseq
        %v3274 = vshrl.u32 %v3273, 7
        %v3275 = vsub.s32 0, %v3274
        %v3276 = vrot.slane %v3272, %v3275
        %3278 = vrot.lane.b32.xlu0 %v3276, 8
        %v3279 = vpop.permute.xlu0 %3278
        %v3281 = vmul.f32 %v3271, %v3279
        %v3282 = vadd.f32 %v3270, %v3281
        %v3283 = vld [vmem:[%s1 + $0xa0] sm:$0x1]
        %v3284 = vlaneseq
        %v3285 = vshrl.u32 %v3284, 7
        %v3286 = vsub.s32 0, %v3285
        %v3287 = vrot.slane %v3283, %v3286
        %3289 = vrot.lane.b32.xlu0 %v3287, 16
        %v3290 = vpop.permute.xlu0 %3289
        %v3292 = vmul.f32 %v3259, %v3290
        %3294 = vrot.lane.b32.xlu0 %v3292, 120
        %v3295 = vpop.permute.xlu0 %3294
        %v3297 = vadd.f32 %v3282, %v3295
        %v3298 = vld [vmem:[%s1 + $0xa1] sm:$0x1]
        %v3299 = vlaneseq
        %v3300 = vshrl.u32 %v3299, 7
        %v3301 = vsub.s32 0, %v3300
        %v3302 = vrot.slane %v3298, %v3301
        %3304 = vrot.lane.b32.xlu0 %v3302, 16
        %v3305 = vpop.permute.xlu0 %3304
        %v3307 = vmul.f32 %v3271, %v3305
        %3309 = vrot.lane.b32.xlu0 %v3307, 120
        %v3310 = vpop.permute.xlu0 %3309
        %v3312 = vadd.f32 %v3297, %v3310
        %v3313 = vld [vmem:[%s1 + $0xa2] sm:$0x1]
        %v3314 = vlaneseq
        %v3315 = vshrl.u32 %v3314, 7
        %v3316 = vsub.s32 0, %v3315
        %v3317 = vrot.slane %v3313, %v3316
        %3319 = vrot.lane.b32.xlu0 %v3317, 24
        %v3320 = vpop.permute.xlu0 %3319
        %v3322 = vmul.f32 %v3259, %v3320
        %3324 = vrot.lane.b32.xlu0 %v3322, 112
        %v3325 = vpop.permute.xlu0 %3324
        %v3327 = vadd.f32 %v3312, %v3325
        %v3328 = vld [vmem:[%s488 + $0x2] sm:$0xff]
        %v3329 = vld [vmem:[%s1 + $0xa3] sm:$0x1]
        %v3330 = vlaneseq
        %v3331 = vshrl.u32 %v3330, 7
        %v3332 = vsub.s32 0, %v3331
        %v3333 = vrot.slane %v3329, %v3332
        %3335 = vrot.lane.b32.xlu0 %v3333, 8
        %v3336 = vpop.permute.xlu0 %3335
        %v3338 = vmul.f32 %v3328, %v3336
        %v3339 = vadd.f32 %v3327, %v3338
        %v3340 = vld [vmem:[%s501 + $0x2] sm:$0xff]
        %v3341 = vld [vmem:[%s1 + $0xa4] sm:$0x1]
        %v3342 = vlaneseq
        %v3343 = vshrl.u32 %v3342, 7
        %v3344 = vsub.s32 0, %v3343
        %v3345 = vrot.slane %v3341, %v3344
        %3347 = vrot.lane.b32.xlu0 %v3345, 8
        %v3348 = vpop.permute.xlu0 %3347
        %v3350 = vmul.f32 %v3340, %v3348
        %v3351 = vadd.f32 %v3339, %v3350
        %v3352 = vld [vmem:[%s1 + $0xa5] sm:$0x1]
        %v3353 = vlaneseq
        %v3354 = vshrl.u32 %v3353, 7
        %v3355 = vsub.s32 0, %v3354
        %v3356 = vrot.slane %v3352, %v3355
        %3358 = vrot.lane.b32.xlu0 %v3356, 16
        %v3359 = vpop.permute.xlu0 %3358
        %v3361 = vmul.f32 %v3328, %v3359
        %3363 = vrot.lane.b32.xlu0 %v3361, 120
        %v3364 = vpop.permute.xlu0 %3363
        %v3366 = vadd.f32 %v3351, %v3364
        %v3367 = vld [vmem:[%s1 + $0xa6] sm:$0x1]
        %v3368 = vlaneseq
        %v3369 = vshrl.u32 %v3368, 7
        %v3370 = vsub.s32 0, %v3369
        %v3371 = vrot.slane %v3367, %v3370
        %3373 = vrot.lane.b32.xlu0 %v3371, 16
        %v3374 = vpop.permute.xlu0 %3373
        %v3376 = vmul.f32 %v3340, %v3374
        %3378 = vrot.lane.b32.xlu0 %v3376, 120
        %v3379 = vpop.permute.xlu0 %3378
        %v3381 = vadd.f32 %v3366, %v3379
        %v3382 = vld [vmem:[%s1 + $0xa7] sm:$0x1]
        %v3383 = vlaneseq
        %v3384 = vshrl.u32 %v3383, 7
        %v3385 = vsub.s32 0, %v3384
        %v3386 = vrot.slane %v3382, %v3385
        %3388 = vrot.lane.b32.xlu0 %v3386, 24
        %v3389 = vpop.permute.xlu0 %3388
        %v3391 = vmul.f32 %v3328, %v3389
        %3393 = vrot.lane.b32.xlu0 %v3391, 112
        %v3394 = vpop.permute.xlu0 %3393
        %v3396 = vadd.f32 %v3381, %v3394
        %v3397 = vld [vmem:[#allocation3 + $0x3] sm:$0xff]
        %v3398 = vld [vmem:[%s1 + $0xa8] sm:$0x1]
        %v3399 = vlaneseq
        %v3400 = vshrl.u32 %v3399, 7
        %v3401 = vsub.s32 0, %v3400
        %v3402 = vrot.slane %v3398, %v3401
        %3404 = vrot.lane.b32.xlu0 %v3402, 8
        %v3405 = vpop.permute.xlu0 %3404
        %v3407 = vmul.f32 %v3397, %v3405
        %v3408 = vadd.f32 %v3396, %v3407
        %v3409 = vld [vmem:[%s475 + $0x3] sm:$0xff]
        %v3410 = vld [vmem:[%s1 + $0xa9] sm:$0x1]
        %v3411 = vlaneseq
        %v3412 = vshrl.u32 %v3411, 7
        %v3413 = vsub.s32 0, %v3412
        %v3414 = vrot.slane %v3410, %v3413
        %3416 = vrot.lane.b32.xlu0 %v3414, 8
        %v3417 = vpop.permute.xlu0 %3416
        %v3419 = vmul.f32 %v3409, %v3417
        %v3420 = vadd.f32 %v3408, %v3419
        %v3421 = vld [vmem:[%s1 + $0xaa] sm:$0x1]
        %v3422 = vlaneseq
        %v3423 = vshrl.u32 %v3422, 7
        %v3424 = vsub.s32 0, %v3423
        %v3425 = vrot.slane %v3421, %v3424
        %3427 = vrot.lane.b32.xlu0 %v3425, 16
        %v3428 = vpop.permute.xlu0 %3427
        %v3430 = vmul.f32 %v3397, %v3428
        %3432 = vrot.lane.b32.xlu0 %v3430, 120
        %v3433 = vpop.permute.xlu0 %3432
        %v3435 = vadd.f32 %v3420, %v3433
        %v3436 = vld [vmem:[%s1 + $0xab] sm:$0x1]
        %v3437 = vlaneseq
        %v3438 = vshrl.u32 %v3437, 7
        %v3439 = vsub.s32 0, %v3438
        %v3440 = vrot.slane %v3436, %v3439
        %3442 = vrot.lane.b32.xlu0 %v3440, 16
        %v3443 = vpop.permute.xlu0 %3442
        %v3445 = vmul.f32 %v3409, %v3443
        %3447 = vrot.lane.b32.xlu0 %v3445, 120
        %v3448 = vpop.permute.xlu0 %3447
        %v3450 = vadd.f32 %v3435, %v3448
        %v3451 = vld [vmem:[%s1 + $0xac] sm:$0x1]
        %v3452 = vlaneseq
        %v3453 = vshrl.u32 %v3452, 7
        %v3454 = vsub.s32 0, %v3453
        %v3455 = vrot.slane %v3451, %v3454
        %3457 = vrot.lane.b32.xlu0 %v3455, 24
        %v3458 = vpop.permute.xlu0 %3457
        %v3460 = vmul.f32 %v3397, %v3458
        %3462 = vrot.lane.b32.xlu0 %v3460, 112
        %v3463 = vpop.permute.xlu0 %3462
        %v3465 = vadd.f32 %v3450, %v3463
        %s3466 = scalar_lea.vmem %s2, 448
        %v3467 = vld [vmem:[%s3466] sm:$0xff]
        %v3468 = vld [vmem:[%s3466 + $0x8] sm:$0xff]
        %v3469 = vld [vmem:[%s3466 + $0x10] sm:$0xff]
        %v3470 = vld [vmem:[%s3466 + $0x18] sm:$0xff]
        %v3471 = vld [vmem:[%s3466 + $0x20] sm:$0xff]
        %v3472 = vld [vmem:[%s3466 + $0x28] sm:$0xff]
        %v3473 = vld [vmem:[%s3466 + $0x30] sm:$0xff]
        %v3474 = vld [vmem:[%s3466 + $0x38] sm:$0xff]
        %v3475 = vld [vmem:[%s3 + $0x7] sm:$0x1]
        %v3476 = vlaneseq
        %v3477 = vshrl.u32 %v3476, 7
        %v3478 = vsub.s32 0, %v3477
        %v3479 = vrot.slane %v3475, %v3478
        %3481 = vrot.lane.b32.xlu0 %v3465, 120
        %v3482 = vpop.permute.xlu0 %3481
        %v3483 = vsel %vm358, %v3482, 0
        %3485 = vmatprep.subr.mxu0 0.0
        %3486 = vmatpush1.msra.mxu0 %v3467
        %3487 = vmatprep.subr.mxu0 0.0
        %3488 = vmatpush1.msra.mxu0 %v3468
        %3489 = vmatprep.subr.mxu0 0.0
        %3490 = vmatpush1.msra.mxu0 %v3469
        %3491 = vmatprep.subr.mxu0 0.0
        %3492 = vmatpush1.msra.mxu0 %v3470
        %3493 = vmatprep.subr.mxu0 0.0
        %3494 = vmatpush1.msra.mxu0 %v3471
        %3495 = vmatprep.subr.mxu0 0.0
        %3496 = vmatpush1.msra.mxu0 %v3472
        %3497 = vmatprep.subr.mxu0 0.0
        %3498 = vmatpush1.msra.mxu0 %v3473
        %3499 = vmatprep.subr.mxu0 0.0
        %3500 = vmatpush1.msra.mxu0 %v3474
        %3501 = vmatprep.subr.mxu0 0.0
        %3502 = vmatpush1.msra.mxu0 0.0
        %3503 = vmatprep.subr.mxu0 0.0
        %3504 = vmatpush1.msra.mxu0 0.0
        %3505 = vmatprep.subr.mxu0 0.0
        %3506 = vmatpush1.msra.mxu0 0.0
        %3507 = vmatprep.subr.mxu0 0.0
        %3508 = vmatpush1.msra.mxu0 0.0
        %3509 = vmatprep.subr.mxu0 0.0
        %3510 = vmatpush1.msra.mxu0 0.0
        %3511 = vmatprep.subr.mxu0 0.0
        %3512 = vmatpush1.msra.mxu0 0.0
        %3513 = vmatprep.subr.mxu0 0.0
        %3514 = vmatpush1.msra.mxu0 0.0
        %3515 = vmatprep.subr.mxu0 0.0
        %3516 = vmatpush1.msra.mxu0 0.0
        %3517 = vmatprep.subr.mxu0 0.0
        %3518 = vmatpush1.msra.mxu0 0.0
        %3519 = vmatprep.subr.mxu0 0.0
        %3520 = vmatpush1.msra.mxu0 0.0
        %3521 = vmatprep.subr.mxu0 0.0
        %3522 = vmatpush1.msra.mxu0 0.0
        %3523 = vmatprep.subr.mxu0 0.0
        %3524 = vmatpush1.msra.mxu0 0.0
        %3525 = vmatprep.subr.mxu0 0.0
        %3526 = vmatpush1.msra.mxu0 0.0
        %3527 = vmatprep.subr.mxu0 0.0
        %3528 = vmatpush1.msra.mxu0 0.0
        %3529 = vmatprep.subr.mxu0 0.0
        %3530 = vmatpush1.msra.mxu0 0.0
        %3531 = vmatprep.subr.mxu0 0.0
        %3532 = vmatpush1.msra.mxu0 0.0
        %3533 = vmatprep.subr.mxu0 0.0
        %3534 = vmatpush1.msra.mxu0 0.0
        %3535 = vmatprep.subr.mxu0 0.0
        %3536 = vmatpush1.msra.mxu0 0.0
        %3537 = vmatprep.subr.mxu0 0.0
        %3538 = vmatpush1.msra.mxu0 0.0
        %3539 = vmatprep.subr.mxu0 0.0
        %3540 = vmatpush1.msra.mxu0 0.0
        %3541 = vmatprep.subr.mxu0 0.0
        %3542 = vmatpush1.msra.mxu0 0.0
        %3543 = vmatprep.subr.mxu0 0.0
        %3544 = vmatpush1.msra.mxu0 0.0
        %3545 = vmatprep.subr.mxu0 0.0
        %3546 = vmatpush1.msra.mxu0 0.0
        %3547 = vmatprep.subr.mxu0 0.0
        %3548 = vmatpush1.msra.mxu0 0.0
        %3549 = vmatprep.mubr.f32.mxu0 0.0
        %3550 = vmatmul.mubr.f32.gmra.mrb[0].mxu0 %v3483
        %v3551 = vpop.f32.mrb[0].mxu0
        %v3552 = vadd.f32 %v3479, %v3551
        %v3553 = vpop.f32.mrb[0].mxu0
        %3554 = vdwg.mxu0
        %v3555 = vmax.f32 %v3552, 0.0
        %3557 = vrot.lane.b32.xlu0 %v3555, 24
        %v3558 = vpop.permute.xlu0 %3557
        %3560 = vst.msk [vmem:[#allocation5 + $0x3] sm:$0xff] %vm941, %v3558
        %v3561 = vld [vmem:[#allocation5 + $0x1] sm:$0xff]
        %v3562 = vld [vmem:[%s1 + $0xad] sm:$0x1]
        %v3563 = vlaneseq
        %v3564 = vshrl.u32 %v3563, 7
        %v3565 = vsub.s32 0, %v3564
        %v3566 = vrot.slane %v3562, %v3565
        %3568 = vrot.lane.b32.xlu0 %v3566, 8
        %v3569 = vpop.permute.xlu0 %3568
        %v3571 = vmul.f32 %v3561, %v3569
        %v3572 = vld [vmem:[%s1 + $0xae] sm:$0x1]
        %v3573 = vlaneseq
        %v3574 = vshrl.u32 %v3573, 7
        %v3575 = vsub.s32 0, %v3574
        %v3576 = vrot.slane %v3572, %v3575
        %3578 = vrot.lane.b32.xlu0 %v3576, 16
        %v3579 = vpop.permute.xlu0 %3578
        %v3581 = vmul.f32 %v3561, %v3579
        %3583 = vrot.lane.b32.xlu0 %v3581, 120
        %v3584 = vpop.permute.xlu0 %3583
        %v3586 = vadd.f32 %v3571, %v3584
        %v3587 = vld [vmem:[%s1 + $0xaf] sm:$0x1]
        %v3588 = vlaneseq
        %v3589 = vshrl.u32 %v3588, 7
        %v3590 = vsub.s32 0, %v3589
        %v3591 = vrot.slane %v3587, %v3590
        %3593 = vrot.lane.b32.xlu0 %v3591, 24
        %v3594 = vpop.permute.xlu0 %3593
        %v3596 = vmul.f32 %v3561, %v3594
        %3598 = vrot.lane.b32.xlu0 %v3596, 112
        %v3599 = vpop.permute.xlu0 %3598
        %v3601 = vadd.f32 %v3586, %v3599
        %v3602 = vld [vmem:[%s1 + $0xb0] sm:$0x1]
        %v3603 = vlaneseq
        %v3604 = vshrl.u32 %v3603, 7
        %v3605 = vsub.s32 0, %v3604
        %v3606 = vrot.slane %v3602, %v3605
        %3608 = vrot.lane.b32.xlu0 %v3606, 32
        %v3609 = vpop.permute.xlu0 %3608
        %v3611 = vmul.f32 %v3561, %v3609
        %3613 = vrot.lane.b32.xlu0 %v3611, 104
        %v3614 = vpop.permute.xlu0 %3613
        %v3616 = vadd.f32 %v3601, %v3614
        %v3617 = vld [vmem:[%s1 + $0xb1] sm:$0x1]
        %v3618 = vlaneseq
        %v3619 = vshrl.u32 %v3618, 7
        %v3620 = vsub.s32 0, %v3619
        %v3621 = vrot.slane %v3617, %v3620
        %3623 = vrot.lane.b32.xlu0 %v3621, 40
        %v3624 = vpop.permute.xlu0 %3623
        %v3626 = vmul.f32 %v3561, %v3624
        %3628 = vrot.lane.b32.xlu0 %v3626, 96
        %v3629 = vpop.permute.xlu0 %3628
        %v3631 = vadd.f32 %v3616, %v3629
        %v3632 = vld [vmem:[#allocation5 + $0x2] sm:$0xff]
        %v3633 = vld [vmem:[%s1 + $0xb2] sm:$0x1]
        %v3634 = vlaneseq
        %v3635 = vshrl.u32 %v3634, 7
        %v3636 = vsub.s32 0, %v3635
        %v3637 = vrot.slane %v3633, %v3636
        %3639 = vrot.lane.b32.xlu0 %v3637, 8
        %v3640 = vpop.permute.xlu0 %3639
        %v3642 = vmul.f32 %v3632, %v3640
        %v3643 = vadd.f32 %v3631, %v3642
        %v3644 = vld [vmem:[%s1 + $0xb3] sm:$0x1]
        %v3645 = vlaneseq
        %v3646 = vshrl.u32 %v3645, 7
        %v3647 = vsub.s32 0, %v3646
        %v3648 = vrot.slane %v3644, %v3647
        %3650 = vrot.lane.b32.xlu0 %v3648, 16
        %v3651 = vpop.permute.xlu0 %3650
        %v3653 = vmul.f32 %v3632, %v3651
        %3655 = vrot.lane.b32.xlu0 %v3653, 120
        %v3656 = vpop.permute.xlu0 %3655
        %v3658 = vadd.f32 %v3643, %v3656
        %v3659 = vld [vmem:[%s1 + $0xb4] sm:$0x1]
        %v3660 = vlaneseq
        %v3661 = vshrl.u32 %v3660, 7
        %v3662 = vsub.s32 0, %v3661
        %v3663 = vrot.slane %v3659, %v3662
        %3665 = vrot.lane.b32.xlu0 %v3663, 24
        %v3666 = vpop.permute.xlu0 %3665
        %v3668 = vmul.f32 %v3632, %v3666
        %3670 = vrot.lane.b32.xlu0 %v3668, 112
        %v3671 = vpop.permute.xlu0 %3670
        %v3673 = vadd.f32 %v3658, %v3671
        %v3674 = vld [vmem:[%s1 + $0xb5] sm:$0x1]
        %v3675 = vlaneseq
        %v3676 = vshrl.u32 %v3675, 7
        %v3677 = vsub.s32 0, %v3676
        %v3678 = vrot.slane %v3674, %v3677
        %3680 = vrot.lane.b32.xlu0 %v3678, 32
        %v3681 = vpop.permute.xlu0 %3680
        %v3683 = vmul.f32 %v3632, %v3681
        %3685 = vrot.lane.b32.xlu0 %v3683, 104
        %v3686 = vpop.permute.xlu0 %3685
        %v3688 = vadd.f32 %v3673, %v3686
        %v3689 = vld [vmem:[%s1 + $0xb6] sm:$0x1]
        %v3690 = vlaneseq
        %v3691 = vshrl.u32 %v3690, 7
        %v3692 = vsub.s32 0, %v3691
        %v3693 = vrot.slane %v3689, %v3692
        %3695 = vrot.lane.b32.xlu0 %v3693, 40
        %v3696 = vpop.permute.xlu0 %3695
        %v3698 = vmul.f32 %v3632, %v3696
        %3700 = vrot.lane.b32.xlu0 %v3698, 96
        %v3701 = vpop.permute.xlu0 %3700
        %v3703 = vadd.f32 %v3688, %v3701
        %v3704 = vld [vmem:[#allocation5 + $0x3] sm:$0xff]
        %v3705 = vld [vmem:[%s1 + $0xb7] sm:$0x1]
        %v3706 = vlaneseq
        %v3707 = vshrl.u32 %v3706, 7
        %v3708 = vsub.s32 0, %v3707
        %v3709 = vrot.slane %v3705, %v3708
        %3711 = vrot.lane.b32.xlu0 %v3709, 8
        %v3712 = vpop.permute.xlu0 %3711
        %v3714 = vmul.f32 %v3704, %v3712
        %v3715 = vadd.f32 %v3703, %v3714
        %v3716 = vld [vmem:[%s1 + $0xb8] sm:$0x1]
        %v3717 = vlaneseq
        %v3718 = vshrl.u32 %v3717, 7
        %v3719 = vsub.s32 0, %v3718
        %v3720 = vrot.slane %v3716, %v3719
        %3722 = vrot.lane.b32.xlu0 %v3720, 16
        %v3723 = vpop.permute.xlu0 %3722
        %v3725 = vmul.f32 %v3704, %v3723
        %3727 = vrot.lane.b32.xlu0 %v3725, 120
        %v3728 = vpop.permute.xlu0 %3727
        %v3730 = vadd.f32 %v3715, %v3728
        %v3731 = vld [vmem:[%s1 + $0xb9] sm:$0x1]
        %v3732 = vlaneseq
        %v3733 = vshrl.u32 %v3732, 7
        %v3734 = vsub.s32 0, %v3733
        %v3735 = vrot.slane %v3731, %v3734
        %3737 = vrot.lane.b32.xlu0 %v3735, 24
        %v3738 = vpop.permute.xlu0 %3737
        %v3740 = vmul.f32 %v3704, %v3738
        %3742 = vrot.lane.b32.xlu0 %v3740, 112
        %v3743 = vpop.permute.xlu0 %3742
        %v3745 = vadd.f32 %v3730, %v3743
        %v3746 = vld [vmem:[%s1 + $0xba] sm:$0x1]
        %v3747 = vlaneseq
        %v3748 = vshrl.u32 %v3747, 7
        %v3749 = vsub.s32 0, %v3748
        %v3750 = vrot.slane %v3746, %v3749
        %3752 = vrot.lane.b32.xlu0 %v3750, 32
        %v3753 = vpop.permute.xlu0 %3752
        %v3755 = vmul.f32 %v3704, %v3753
        %3757 = vrot.lane.b32.xlu0 %v3755, 104
        %v3758 = vpop.permute.xlu0 %3757
        %v3760 = vadd.f32 %v3745, %v3758
        %v3761 = vld [vmem:[%s1 + $0xbb] sm:$0x1]
        %v3762 = vlaneseq
        %v3763 = vshrl.u32 %v3762, 7
        %v3764 = vsub.s32 0, %v3763
        %v3765 = vrot.slane %v3761, %v3764
        %3767 = vrot.lane.b32.xlu0 %v3765, 40
        %v3768 = vpop.permute.xlu0 %3767
        %v3770 = vmul.f32 %v3704, %v3768
        %3772 = vrot.lane.b32.xlu0 %v3770, 96
        %v3773 = vpop.permute.xlu0 %3772
        %v3775 = vadd.f32 %v3760, %v3773
        %v3776 = vld [vmem:[#allocation5 + $0x4] sm:$0xff]
        %v3777 = vld [vmem:[%s1 + $0xbc] sm:$0x1]
        %v3778 = vlaneseq
        %v3779 = vshrl.u32 %v3778, 7
        %v3780 = vsub.s32 0, %v3779
        %v3781 = vrot.slane %v3777, %v3780
        %3783 = vrot.lane.b32.xlu0 %v3781, 8
        %v3784 = vpop.permute.xlu0 %3783
        %v3786 = vmul.f32 %v3776, %v3784
        %v3787 = vadd.f32 %v3775, %v3786
        %v3788 = vld [vmem:[%s1 + $0xbd] sm:$0x1]
        %v3789 = vlaneseq
        %v3790 = vshrl.u32 %v3789, 7
        %v3791 = vsub.s32 0, %v3790
        %v3792 = vrot.slane %v3788, %v3791
        %3794 = vrot.lane.b32.xlu0 %v3792, 16
        %v3795 = vpop.permute.xlu0 %3794
        %v3797 = vmul.f32 %v3776, %v3795
        %3799 = vrot.lane.b32.xlu0 %v3797, 120
        %v3800 = vpop.permute.xlu0 %3799
        %v3802 = vadd.f32 %v3787, %v3800
        %v3803 = vld [vmem:[%s1 + $0xbe] sm:$0x1]
        %v3804 = vlaneseq
        %v3805 = vshrl.u32 %v3804, 7
        %v3806 = vsub.s32 0, %v3805
        %v3807 = vrot.slane %v3803, %v3806
        %3809 = vrot.lane.b32.xlu0 %v3807, 24
        %v3810 = vpop.permute.xlu0 %3809
        %v3812 = vmul.f32 %v3776, %v3810
        %3814 = vrot.lane.b32.xlu0 %v3812, 112
        %v3815 = vpop.permute.xlu0 %3814
        %v3817 = vadd.f32 %v3802, %v3815
        %v3818 = vld [vmem:[%s1 + $0xbf] sm:$0x1]
        %v3819 = vlaneseq
        %v3820 = vshrl.u32 %v3819, 7
        %v3821 = vsub.s32 0, %v3820
        %v3822 = vrot.slane %v3818, %v3821
        %3824 = vrot.lane.b32.xlu0 %v3822, 32
        %v3825 = vpop.permute.xlu0 %3824
        %v3827 = vmul.f32 %v3776, %v3825
        %3829 = vrot.lane.b32.xlu0 %v3827, 104
        %v3830 = vpop.permute.xlu0 %3829
        %v3832 = vadd.f32 %v3817, %v3830
        %v3833 = vld [vmem:[%s1 + $0xc0] sm:$0x1]
        %v3834 = vlaneseq
        %v3835 = vshrl.u32 %v3834, 7
        %v3836 = vsub.s32 0, %v3835
        %v3837 = vrot.slane %v3833, %v3836
        %3839 = vrot.lane.b32.xlu0 %v3837, 40
        %v3840 = vpop.permute.xlu0 %3839
        %v3842 = vmul.f32 %v3776, %v3840
        %3844 = vrot.lane.b32.xlu0 %v3842, 96
        %v3845 = vpop.permute.xlu0 %3844
        %v3847 = vadd.f32 %v3832, %v3845
        %v3848 = vld [vmem:[#allocation5 + $0x5] sm:$0xff]
        %v3849 = vld [vmem:[%s1 + $0xc1] sm:$0x1]
        %v3850 = vlaneseq
        %v3851 = vshrl.u32 %v3850, 7
        %v3852 = vsub.s32 0, %v3851
        %v3853 = vrot.slane %v3849, %v3852
        %3855 = vrot.lane.b32.xlu0 %v3853, 8
        %v3856 = vpop.permute.xlu0 %3855
        %v3858 = vmul.f32 %v3848, %v3856
        %v3859 = vadd.f32 %v3847, %v3858
        %v3860 = vld [vmem:[%s1 + $0xc2] sm:$0x1]
        %v3861 = vlaneseq
        %v3862 = vshrl.u32 %v3861, 7
        %v3863 = vsub.s32 0, %v3862
        %v3864 = vrot.slane %v3860, %v3863
        %3866 = vrot.lane.b32.xlu0 %v3864, 16
        %v3867 = vpop.permute.xlu0 %3866
        %v3869 = vmul.f32 %v3848, %v3867
        %3871 = vrot.lane.b32.xlu0 %v3869, 120
        %v3872 = vpop.permute.xlu0 %3871
        %v3874 = vadd.f32 %v3859, %v3872
        %v3875 = vld [vmem:[%s1 + $0xc3] sm:$0x1]
        %v3876 = vlaneseq
        %v3877 = vshrl.u32 %v3876, 7
        %v3878 = vsub.s32 0, %v3877
        %v3879 = vrot.slane %v3875, %v3878
        %3881 = vrot.lane.b32.xlu0 %v3879, 24
        %v3882 = vpop.permute.xlu0 %3881
        %v3884 = vmul.f32 %v3848, %v3882
        %3886 = vrot.lane.b32.xlu0 %v3884, 112
        %v3887 = vpop.permute.xlu0 %3886
        %v3889 = vadd.f32 %v3874, %v3887
        %v3890 = vld [vmem:[%s1 + $0xc4] sm:$0x1]
        %v3891 = vlaneseq
        %v3892 = vshrl.u32 %v3891, 7
        %v3893 = vsub.s32 0, %v3892
        %v3894 = vrot.slane %v3890, %v3893
        %3896 = vrot.lane.b32.xlu0 %v3894, 32
        %v3897 = vpop.permute.xlu0 %3896
        %v3899 = vmul.f32 %v3848, %v3897
        %3901 = vrot.lane.b32.xlu0 %v3899, 104
        %v3902 = vpop.permute.xlu0 %3901
        %v3904 = vadd.f32 %v3889, %v3902
        %v3905 = vld [vmem:[%s1 + $0xc5] sm:$0x1]
        %v3906 = vlaneseq
        %v3907 = vshrl.u32 %v3906, 7
        %v3908 = vsub.s32 0, %v3907
        %v3909 = vrot.slane %v3905, %v3908
        %3911 = vrot.lane.b32.xlu0 %v3909, 40
        %v3912 = vpop.permute.xlu0 %3911
        %v3914 = vmul.f32 %v3848, %v3912
        %3916 = vrot.lane.b32.xlu0 %v3914, 96
        %v3917 = vpop.permute.xlu0 %3916
        %v3919 = vadd.f32 %v3904, %v3917
        %s3920 = scalar_lea.vmem %s2, 512
        %v3921 = vld [vmem:[%s3920] sm:$0xff]
        %v3922 = vld [vmem:[%s3920 + $0x8] sm:$0xff]
        %v3923 = vld [vmem:[%s3920 + $0x10] sm:$0xff]
        %v3924 = vld [vmem:[%s3920 + $0x18] sm:$0xff]
        %v3925 = vld [vmem:[%s3920 + $0x20] sm:$0xff]
        %v3926 = vld [vmem:[%s3920 + $0x28] sm:$0xff]
        %v3927 = vld [vmem:[%s3920 + $0x30] sm:$0xff]
        %v3928 = vld [vmem:[%s3920 + $0x38] sm:$0xff]
        %v3929 = vld [vmem:[%s3 + $0x8] sm:$0x1]
        %v3930 = vlaneseq
        %v3931 = vshrl.u32 %v3930, 7
        %v3932 = vsub.s32 0, %v3931
        %v3933 = vrot.slane %v3929, %v3932
        %3935 = vrot.lane.b32.xlu0 %v3919, 120
        %v3936 = vpop.permute.xlu0 %3935
        %v3937 = vsel %vm358, %v3936, 0
        %3939 = vmatprep.subr.mxu0 0.0
        %3940 = vmatpush1.msra.mxu0 %v3921
        %3941 = vmatprep.subr.mxu0 0.0
        %3942 = vmatpush1.msra.mxu0 %v3922
        %3943 = vmatprep.subr.mxu0 0.0
        %3944 = vmatpush1.msra.mxu0 %v3923
        %3945 = vmatprep.subr.mxu0 0.0
        %3946 = vmatpush1.msra.mxu0 %v3924
        %3947 = vmatprep.subr.mxu0 0.0
        %3948 = vmatpush1.msra.mxu0 %v3925
        %3949 = vmatprep.subr.mxu0 0.0
        %3950 = vmatpush1.msra.mxu0 %v3926
        %3951 = vmatprep.subr.mxu0 0.0
        %3952 = vmatpush1.msra.mxu0 %v3927
        %3953 = vmatprep.subr.mxu0 0.0
        %3954 = vmatpush1.msra.mxu0 %v3928
        %3955 = vmatprep.subr.mxu0 0.0
        %3956 = vmatpush1.msra.mxu0 0.0
        %3957 = vmatprep.subr.mxu0 0.0
        %3958 = vmatpush1.msra.mxu0 0.0
        %3959 = vmatprep.subr.mxu0 0.0
        %3960 = vmatpush1.msra.mxu0 0.0
        %3961 = vmatprep.subr.mxu0 0.0
        %3962 = vmatpush1.msra.mxu0 0.0
        %3963 = vmatprep.subr.mxu0 0.0
        %3964 = vmatpush1.msra.mxu0 0.0
        %3965 = vmatprep.subr.mxu0 0.0
        %3966 = vmatpush1.msra.mxu0 0.0
        %3967 = vmatprep.subr.mxu0 0.0
        %3968 = vmatpush1.msra.mxu0 0.0
        %3969 = vmatprep.subr.mxu0 0.0
        %3970 = vmatpush1.msra.mxu0 0.0
        %3971 = vmatprep.subr.mxu0 0.0
        %3972 = vmatpush1.msra.mxu0 0.0
        %3973 = vmatprep.subr.mxu0 0.0
        %3974 = vmatpush1.msra.mxu0 0.0
        %3975 = vmatprep.subr.mxu0 0.0
        %3976 = vmatpush1.msra.mxu0 0.0
        %3977 = vmatprep.subr.mxu0 0.0
        %3978 = vmatpush1.msra.mxu0 0.0
        %3979 = vmatprep.subr.mxu0 0.0
        %3980 = vmatpush1.msra.mxu0 0.0
        %3981 = vmatprep.subr.mxu0 0.0
        %3982 = vmatpush1.msra.mxu0 0.0
        %3983 = vmatprep.subr.mxu0 0.0
        %3984 = vmatpush1.msra.mxu0 0.0
        %3985 = vmatprep.subr.mxu0 0.0
        %3986 = vmatpush1.msra.mxu0 0.0
        %3987 = vmatprep.subr.mxu0 0.0
        %3988 = vmatpush1.msra.mxu0 0.0
        %3989 = vmatprep.subr.mxu0 0.0
        %3990 = vmatpush1.msra.mxu0 0.0
        %3991 = vmatprep.subr.mxu0 0.0
        %3992 = vmatpush1.msra.mxu0 0.0
        %3993 = vmatprep.subr.mxu0 0.0
        %3994 = vmatpush1.msra.mxu0 0.0
        %3995 = vmatprep.subr.mxu0 0.0
        %3996 = vmatpush1.msra.mxu0 0.0
        %3997 = vmatprep.subr.mxu0 0.0
        %3998 = vmatpush1.msra.mxu0 0.0
        %3999 = vmatprep.subr.mxu0 0.0
        %4000 = vmatpush1.msra.mxu0 0.0
        %4001 = vmatprep.subr.mxu0 0.0
        %4002 = vmatpush1.msra.mxu0 0.0
        %4003 = vmatprep.mubr.f32.mxu0 0.0
        %4004 = vmatmul.mubr.f32.gmra.mrb[0].mxu0 %v3937
        %v4005 = vpop.f32.mrb[0].mxu0
        %v4006 = vadd.f32 %v3933, %v4005
        %v4007 = vpop.f32.mrb[0].mxu0
        %4008 = vdwg.mxu0
        %v4009 = vld [vmem:[%s501 + $0x1] sm:$0xff]
        %v4010 = vld [vmem:[%s1 + $0xc6] sm:$0x1]
        %v4011 = vlaneseq
        %v4012 = vshrl.u32 %v4011, 7
        %v4013 = vsub.s32 0, %v4012
        %v4014 = vrot.slane %v4010, %v4013
        %4016 = vrot.lane.b32.xlu0 %v4014, 8
        %v4017 = vpop.permute.xlu0 %4016
        %v4019 = vmul.f32 %v4009, %v4017
        %v4020 = vld [vmem:[%s488 + $0x1] sm:$0xff]
        %v4021 = vld [vmem:[%s1 + $0xc7] sm:$0x1]
        %v4022 = vlaneseq
        %v4023 = vshrl.u32 %v4022, 7
        %v4024 = vsub.s32 0, %v4023
        %v4025 = vrot.slane %v4021, %v4024
        %4027 = vrot.lane.b32.xlu0 %v4025, 16
        %v4028 = vpop.permute.xlu0 %4027
        %v4030 = vmul.f32 %v4020, %v4028
        %4032 = vrot.lane.b32.xlu0 %v4030, 120
        %v4033 = vpop.permute.xlu0 %4032
        %v4035 = vadd.f32 %v4019, %v4033
        %v4036 = vld [vmem:[%s1 + $0xc8] sm:$0x1]
        %v4037 = vlaneseq
        %v4038 = vshrl.u32 %v4037, 7
        %v4039 = vsub.s32 0, %v4038
        %v4040 = vrot.slane %v4036, %v4039
        %4042 = vrot.lane.b32.xlu0 %v4040, 16
        %v4043 = vpop.permute.xlu0 %4042
        %v4045 = vmul.f32 %v4009, %v4043
        %4047 = vrot.lane.b32.xlu0 %v4045, 120
        %v4048 = vpop.permute.xlu0 %4047
        %v4050 = vadd.f32 %v4035, %v4048
        %v4051 = vld [vmem:[%s475 + $0x2] sm:$0xff]
        %v4052 = vld [vmem:[%s1 + $0xc9] sm:$0x1]
        %v4053 = vlaneseq
        %v4054 = vshrl.u32 %v4053, 7
        %v4055 = vsub.s32 0, %v4054
        %v4056 = vrot.slane %v4052, %v4055
        %4058 = vrot.lane.b32.xlu0 %v4056, 8
        %v4059 = vpop.permute.xlu0 %4058
        %v4061 = vmul.f32 %v4051, %v4059
        %v4062 = vadd.f32 %v4050, %v4061
        %v4063 = vld [vmem:[#allocation3 + $0x2] sm:$0xff]
        %v4064 = vld [vmem:[%s1 + $0xca] sm:$0x1]
        %v4065 = vlaneseq
        %v4066 = vshrl.u32 %v4065, 7
        %v4067 = vsub.s32 0, %v4066
        %v4068 = vrot.slane %v4064, %v4067
        %4070 = vrot.lane.b32.xlu0 %v4068, 16
        %v4071 = vpop.permute.xlu0 %4070
        %v4073 = vmul.f32 %v4063, %v4071
        %4075 = vrot.lane.b32.xlu0 %v4073, 120
        %v4076 = vpop.permute.xlu0 %4075
        %v4078 = vadd.f32 %v4062, %v4076
        %v4079 = vld [vmem:[%s1 + $0xcb] sm:$0x1]
        %v4080 = vlaneseq
        %v4081 = vshrl.u32 %v4080, 7
        %v4082 = vsub.s32 0, %v4081
        %v4083 = vrot.slane %v4079, %v4082
        %4085 = vrot.lane.b32.xlu0 %v4083, 16
        %v4086 = vpop.permute.xlu0 %4085
        %v4088 = vmul.f32 %v4051, %v4086
        %4090 = vrot.lane.b32.xlu0 %v4088, 120
        %v4091 = vpop.permute.xlu0 %4090
        %v4093 = vadd.f32 %v4078, %v4091
        %v4094 = vld [vmem:[%s501 + $0x2] sm:$0xff]
        %v4095 = vld [vmem:[%s1 + $0xcc] sm:$0x1]
        %v4096 = vlaneseq
        %v4097 = vshrl.u32 %v4096, 7
        %v4098 = vsub.s32 0, %v4097
        %v4099 = vrot.slane %v4095, %v4098
        %4101 = vrot.lane.b32.xlu0 %v4099, 8
        %v4102 = vpop.permute.xlu0 %4101
        %v4104 = vmul.f32 %v4094, %v4102
        %v4105 = vadd.f32 %v4093, %v4104
        %v4106 = vld [vmem:[%s488 + $0x2] sm:$0xff]
        %v4107 = vld [vmem:[%s1 + $0xcd] sm:$0x1]
        %v4108 = vlaneseq
        %v4109 = vshrl.u32 %v4108, 7
        %v4110 = vsub.s32 0, %v4109
        %v4111 = vrot.slane %v4107, %v4110
        %4113 = vrot.lane.b32.xlu0 %v4111, 16
        %v4114 = vpop.permute.xlu0 %4113
        %v4116 = vmul.f32 %v4106, %v4114
        %4118 = vrot.lane.b32.xlu0 %v4116, 120
        %v4119 = vpop.permute.xlu0 %4118
        %v4121 = vadd.f32 %v4105, %v4119
        %v4122 = vld [vmem:[%s1 + $0xce] sm:$0x1]
        %v4123 = vlaneseq
        %v4124 = vshrl.u32 %v4123, 7
        %v4125 = vsub.s32 0, %v4124
        %v4126 = vrot.slane %v4122, %v4125
        %4128 = vrot.lane.b32.xlu0 %v4126, 16
        %v4129 = vpop.permute.xlu0 %4128
        %v4131 = vmul.f32 %v4094, %v4129
        %4133 = vrot.lane.b32.xlu0 %v4131, 120
        %v4134 = vpop.permute.xlu0 %4133
        %v4136 = vadd.f32 %v4121, %v4134
        %s4137 = scalar_lea.vmem %s2, 576
        %v4138 = vld [vmem:[%s4137] sm:$0xff]
        %v4139 = vld [vmem:[%s4137 + $0x8] sm:$0xff]
        %v4140 = vld [vmem:[%s4137 + $0x10] sm:$0xff]
        %v4141 = vld [vmem:[%s4137 + $0x18] sm:$0xff]
        %v4142 = vld [vmem:[%s4137 + $0x20] sm:$0xff]
        %v4143 = vld [vmem:[%s4137 + $0x28] sm:$0xff]
        %v4144 = vld [vmem:[%s4137 + $0x30] sm:$0xff]
        %v4145 = vld [vmem:[%s4137 + $0x38] sm:$0xff]
        %v4146 = vld [vmem:[%s3 + $0x9] sm:$0x1]
        %v4147 = vlaneseq
        %v4148 = vshrl.u32 %v4147, 7
        %v4149 = vsub.s32 0, %v4148
        %v4150 = vrot.slane %v4146, %v4149
        %4152 = vrot.lane.b32.xlu0 %v4136, 120
        %v4153 = vpop.permute.xlu0 %4152
        %v4154 = vsel %vm358, %v4153, 0
        %4156 = vmatprep.subr.mxu0 0.0
        %4157 = vmatpush1.msra.mxu0 %v4138
        %4158 = vmatprep.subr.mxu0 0.0
        %4159 = vmatpush1.msra.mxu0 %v4139
        %4160 = vmatprep.subr.mxu0 0.0
        %4161 = vmatpush1.msra.mxu0 %v4140
        %4162 = vmatprep.subr.mxu0 0.0
        %4163 = vmatpush1.msra.mxu0 %v4141
        %4164 = vmatprep.subr.mxu0 0.0
        %4165 = vmatpush1.msra.mxu0 %v4142
        %4166 = vmatprep.subr.mxu0 0.0
        %4167 = vmatpush1.msra.mxu0 %v4143
        %4168 = vmatprep.subr.mxu0 0.0
        %4169 = vmatpush1.msra.mxu0 %v4144
        %4170 = vmatprep.subr.mxu0 0.0
        %4171 = vmatpush1.msra.mxu0 %v4145
        %4172 = vmatprep.subr.mxu0 0.0
        %4173 = vmatpush1.msra.mxu0 0.0
        %4174 = vmatprep.subr.mxu0 0.0
        %4175 = vmatpush1.msra.mxu0 0.0
        %4176 = vmatprep.subr.mxu0 0.0
        %4177 = vmatpush1.msra.mxu0 0.0
        %4178 = vmatprep.subr.mxu0 0.0
        %4179 = vmatpush1.msra.mxu0 0.0
        %4180 = vmatprep.subr.mxu0 0.0
        %4181 = vmatpush1.msra.mxu0 0.0
        %4182 = vmatprep.subr.mxu0 0.0
        %4183 = vmatpush1.msra.mxu0 0.0
        %4184 = vmatprep.subr.mxu0 0.0
        %4185 = vmatpush1.msra.mxu0 0.0
        %4186 = vmatprep.subr.mxu0 0.0
        %4187 = vmatpush1.msra.mxu0 0.0
        %4188 = vmatprep.subr.mxu0 0.0
        %4189 = vmatpush1.msra.mxu0 0.0
        %4190 = vmatprep.subr.mxu0 0.0
        %4191 = vmatpush1.msra.mxu0 0.0
        %4192 = vmatprep.subr.mxu0 0.0
        %4193 = vmatpush1.msra.mxu0 0.0
        %4194 = vmatprep.subr.mxu0 0.0
        %4195 = vmatpush1.msra.mxu0 0.0
        %4196 = vmatprep.subr.mxu0 0.0
        %4197 = vmatpush1.msra.mxu0 0.0
        %4198 = vmatprep.subr.mxu0 0.0
        %4199 = vmatpush1.msra.mxu0 0.0
        %4200 = vmatprep.subr.mxu0 0.0
        %4201 = vmatpush1.msra.mxu0 0.0
        %4202 = vmatprep.subr.mxu0 0.0
        %4203 = vmatpush1.msra.mxu0 0.0
        %4204 = vmatprep.subr.mxu0 0.0
        %4205 = vmatpush1.msra.mxu0 0.0
        %4206 = vmatprep.subr.mxu0 0.0
        %4207 = vmatpush1.msra.mxu0 0.0
        %4208 = vmatprep.subr.mxu0 0.0
        %4209 = vmatpush1.msra.mxu0 0.0
        %4210 = vmatprep.subr.mxu0 0.0
        %4211 = vmatpush1.msra.mxu0 0.0
        %4212 = vmatprep.subr.mxu0 0.0
        %4213 = vmatpush1.msra.mxu0 0.0
        %4214 = vmatprep.subr.mxu0 0.0
        %4215 = vmatpush1.msra.mxu0 0.0
        %4216 = vmatprep.subr.mxu0 0.0
        %4217 = vmatpush1.msra.mxu0 0.0
        %4218 = vmatprep.subr.mxu0 0.0
        %4219 = vmatpush1.msra.mxu0 0.0
        %4220 = vmatprep.mubr.f32.mxu0 0.0
        %4221 = vmatmul.mubr.f32.gmra.mrb[0].mxu0 %v4154
        %v4222 = vpop.f32.mrb[0].mxu0
        %v4223 = vadd.f32 %v4150, %v4222
        %v4224 = vpop.f32.mrb[0].mxu0
        %4225 = vdwg.mxu0
        %v4226 = vmax.f32 %v4223, 0.0
        %4228 = vrot.lane.b32.xlu0 %v4226, 24
        %v4229 = vpop.permute.xlu0 %4228
        %4231 = vst.msk [vmem:[#allocation5 + $0x3] sm:$0xff] %vm941, %v4229
        %v4232 = vld [vmem:[#allocation5 + $0x2] sm:$0xff]
        %v4233 = vld [vmem:[%s1 + $0xcf] sm:$0x1]
        %v4234 = vlaneseq
        %v4235 = vshrl.u32 %v4234, 7
        %v4236 = vsub.s32 0, %v4235
        %v4237 = vrot.slane %v4233, %v4236
        %4239 = vrot.lane.b32.xlu0 %v4237, 16
        %v4240 = vpop.permute.xlu0 %4239
        %v4242 = vmul.f32 %v4232, %v4240
        %v4243 = vld [vmem:[%s1 + $0xd0] sm:$0x1]
        %v4244 = vlaneseq
        %v4245 = vshrl.u32 %v4244, 7
        %v4246 = vsub.s32 0, %v4245
        %v4247 = vrot.slane %v4243, %v4246
        %4249 = vrot.lane.b32.xlu0 %v4247, 24
        %v4250 = vpop.permute.xlu0 %4249
        %v4252 = vmul.f32 %v4232, %v4250
        %4254 = vrot.lane.b32.xlu0 %v4252, 120
        %v4255 = vpop.permute.xlu0 %4254
        %v4257 = vadd.f32 %v4242, %v4255
        %v4258 = vld [vmem:[%s1 + $0xd1] sm:$0x1]
        %v4259 = vlaneseq
        %v4260 = vshrl.u32 %v4259, 7
        %v4261 = vsub.s32 0, %v4260
        %v4262 = vrot.slane %v4258, %v4261
        %4264 = vrot.lane.b32.xlu0 %v4262, 32
        %v4265 = vpop.permute.xlu0 %4264
        %v4267 = vmul.f32 %v4232, %v4265
        %4269 = vrot.lane.b32.xlu0 %v4267, 112
        %v4270 = vpop.permute.xlu0 %4269
        %v4272 = vadd.f32 %v4257, %v4270
        %v4273 = vld [vmem:[#allocation5 + $0x3] sm:$0xff]
        %v4274 = vld [vmem:[%s1 + $0xd2] sm:$0x1]
        %v4275 = vlaneseq
        %v4276 = vshrl.u32 %v4275, 7
        %v4277 = vsub.s32 0, %v4276
        %v4278 = vrot.slane %v4274, %v4277
        %4280 = vrot.lane.b32.xlu0 %v4278, 16
        %v4281 = vpop.permute.xlu0 %4280
        %v4283 = vmul.f32 %v4273, %v4281
        %v4284 = vadd.f32 %v4272, %v4283
        %v4285 = vld [vmem:[%s1 + $0xd3] sm:$0x1]
        %v4286 = vlaneseq
        %v4287 = vshrl.u32 %v4286, 7
        %v4288 = vsub.s32 0, %v4287
        %v4289 = vrot.slane %v4285, %v4288
        %4291 = vrot.lane.b32.xlu0 %v4289, 24
        %v4292 = vpop.permute.xlu0 %4291
        %v4294 = vmul.f32 %v4273, %v4292
        %4296 = vrot.lane.b32.xlu0 %v4294, 120
        %v4297 = vpop.permute.xlu0 %4296
        %v4299 = vadd.f32 %v4284, %v4297
        %v4300 = vld [vmem:[%s1 + $0xd4] sm:$0x1]
        %v4301 = vlaneseq
        %v4302 = vshrl.u32 %v4301, 7
        %v4303 = vsub.s32 0, %v4302
        %v4304 = vrot.slane %v4300, %v4303
        %4306 = vrot.lane.b32.xlu0 %v4304, 32
        %v4307 = vpop.permute.xlu0 %4306
        %v4309 = vmul.f32 %v4273, %v4307
        %4311 = vrot.lane.b32.xlu0 %v4309, 112
        %v4312 = vpop.permute.xlu0 %4311
        %v4314 = vadd.f32 %v4299, %v4312
        %v4315 = vld [vmem:[#allocation5 + $0x4] sm:$0xff]
        %v4316 = vld [vmem:[%s1 + $0xd5] sm:$0x1]
        %v4317 = vlaneseq
        %v4318 = vshrl.u32 %v4317, 7
        %v4319 = vsub.s32 0, %v4318
        %v4320 = vrot.slane %v4316, %v4319
        %4322 = vrot.lane.b32.xlu0 %v4320, 16
        %v4323 = vpop.permute.xlu0 %4322
        %v4325 = vmul.f32 %v4315, %v4323
        %v4326 = vadd.f32 %v4314, %v4325
        %v4327 = vld [vmem:[%s1 + $0xd6] sm:$0x1]
        %v4328 = vlaneseq
        %v4329 = vshrl.u32 %v4328, 7
        %v4330 = vsub.s32 0, %v4329
        %v4331 = vrot.slane %v4327, %v4330
        %4333 = vrot.lane.b32.xlu0 %v4331, 24
        %v4334 = vpop.permute.xlu0 %4333
        %v4336 = vmul.f32 %v4315, %v4334
        %4338 = vrot.lane.b32.xlu0 %v4336, 120
        %v4339 = vpop.permute.xlu0 %4338
        %v4341 = vadd.f32 %v4326, %v4339
        %v4342 = vld [vmem:[%s1 + $0xd7] sm:$0x1]
        %v4343 = vlaneseq
        %v4344 = vshrl.u32 %v4343, 7
        %v4345 = vsub.s32 0, %v4344
        %v4346 = vrot.slane %v4342, %v4345
        %4348 = vrot.lane.b32.xlu0 %v4346, 32
        %v4349 = vpop.permute.xlu0 %4348
        %v4351 = vmul.f32 %v4315, %v4349
        %4353 = vrot.lane.b32.xlu0 %v4351, 112
        %v4354 = vpop.permute.xlu0 %4353
        %v4356 = vadd.f32 %v4341, %v4354
        %s4357 = scalar_lea.vmem %s2, 640
        %v4358 = vld [vmem:[%s4357] sm:$0xff]
        %v4359 = vld [vmem:[%s4357 + $0x8] sm:$0xff]
        %v4360 = vld [vmem:[%s4357 + $0x10] sm:$0xff]
        %v4361 = vld [vmem:[%s4357 + $0x18] sm:$0xff]
        %v4362 = vld [vmem:[%s4357 + $0x20] sm:$0xff]
        %v4363 = vld [vmem:[%s4357 + $0x28] sm:$0xff]
        %v4364 = vld [vmem:[%s4357 + $0x30] sm:$0xff]
        %v4365 = vld [vmem:[%s4357 + $0x38] sm:$0xff]
        %v4366 = vld [vmem:[%s3 + $0xa] sm:$0x1]
        %v4367 = vlaneseq
        %v4368 = vshrl.u32 %v4367, 7
        %v4369 = vsub.s32 0, %v4368
        %v4370 = vrot.slane %v4366, %v4369
        %4372 = vrot.lane.b32.xlu0 %v4356, 112
        %v4373 = vpop.permute.xlu0 %4372
        %v4374 = vsel %vm358, %v4373, 0
        %4376 = vmatprep.subr.mxu0 0.0
        %4377 = vmatpush1.msra.mxu0 %v4358
        %4378 = vmatprep.subr.mxu0 0.0
        %4379 = vmatpush1.msra.mxu0 %v4359
        %4380 = vmatprep.subr.mxu0 0.0
        %4381 = vmatpush1.msra.mxu0 %v4360
        %4382 = vmatprep.subr.mxu0 0.0
        %4383 = vmatpush1.msra.mxu0 %v4361
        %4384 = vmatprep.subr.mxu0 0.0
        %4385 = vmatpush1.msra.mxu0 %v4362
        %4386 = vmatprep.subr.mxu0 0.0
        %4387 = vmatpush1.msra.mxu0 %v4363
        %4388 = vmatprep.subr.mxu0 0.0
        %4389 = vmatpush1.msra.mxu0 %v4364
        %4390 = vmatprep.subr.mxu0 0.0
        %4391 = vmatpush1.msra.mxu0 %v4365
        %4392 = vmatprep.subr.mxu0 0.0
        %4393 = vmatpush1.msra.mxu0 0.0
        %4394 = vmatprep.subr.mxu0 0.0
        %4395 = vmatpush1.msra.mxu0 0.0
        %4396 = vmatprep.subr.mxu0 0.0
        %4397 = vmatpush1.msra.mxu0 0.0
        %4398 = vmatprep.subr.mxu0 0.0
        %4399 = vmatpush1.msra.mxu0 0.0
        %4400 = vmatprep.subr.mxu0 0.0
        %4401 = vmatpush1.msra.mxu0 0.0
        %4402 = vmatprep.subr.mxu0 0.0
        %4403 = vmatpush1.msra.mxu0 0.0
        %4404 = vmatprep.subr.mxu0 0.0
        %4405 = vmatpush1.msra.mxu0 0.0
        %4406 = vmatprep.subr.mxu0 0.0
        %4407 = vmatpush1.msra.mxu0 0.0
        %4408 = vmatprep.subr.mxu0 0.0
        %4409 = vmatpush1.msra.mxu0 0.0
        %4410 = vmatprep.subr.mxu0 0.0
        %4411 = vmatpush1.msra.mxu0 0.0
        %4412 = vmatprep.subr.mxu0 0.0
        %4413 = vmatpush1.msra.mxu0 0.0
        %4414 = vmatprep.subr.mxu0 0.0
        %4415 = vmatpush1.msra.mxu0 0.0
        %4416 = vmatprep.subr.mxu0 0.0
        %4417 = vmatpush1.msra.mxu0 0.0
        %4418 = vmatprep.subr.mxu0 0.0
        %4419 = vmatpush1.msra.mxu0 0.0
        %4420 = vmatprep.subr.mxu0 0.0
        %4421 = vmatpush1.msra.mxu0 0.0
        %4422 = vmatprep.subr.mxu0 0.0
        %4423 = vmatpush1.msra.mxu0 0.0
        %4424 = vmatprep.subr.mxu0 0.0
        %4425 = vmatpush1.msra.mxu0 0.0
        %4426 = vmatprep.subr.mxu0 0.0
        %4427 = vmatpush1.msra.mxu0 0.0
        %4428 = vmatprep.subr.mxu0 0.0
        %4429 = vmatpush1.msra.mxu0 0.0
        %4430 = vmatprep.subr.mxu0 0.0
        %4431 = vmatpush1.msra.mxu0 0.0
        %4432 = vmatprep.subr.mxu0 0.0
        %4433 = vmatpush1.msra.mxu0 0.0
        %4434 = vmatprep.subr.mxu0 0.0
        %4435 = vmatpush1.msra.mxu0 0.0
        %4436 = vmatprep.subr.mxu0 0.0
        %4437 = vmatpush1.msra.mxu0 0.0
        %4438 = vmatprep.subr.mxu0 0.0
        %4439 = vmatpush1.msra.mxu0 0.0
        %4440 = vmatprep.mubr.f32.mxu0 0.0
        %4441 = vmatmul.mubr.f32.gmra.mrb[0].mxu0 %v4374
        %v4442 = vpop.f32.mrb[0].mxu0
        %v4443 = vadd.f32 %v4370, %v4442
        %v4444 = vpop.f32.mrb[0].mxu0
        %4445 = vdwg.mxu0
        %v4446 = vadd.f32 %v4006, %v4443
        %v4447 = vmax.f32 %v4446, 0.0
        %4449 = vrot.lane.b32.xlu0 %v4447, 24
        %v4450 = vpop.permute.xlu0 %4449
        %4452 = vst.msk [vmem:[#allocation5 + $0x3] sm:$0xff] %vm941, %v4450
        %v4453 = vld [vmem:[#allocation5 + $0x2] sm:$0xff]
        %v4454 = vld [vmem:[%s1 + $0xd8] sm:$0x1]
        %v4455 = vlaneseq
        %v4456 = vshrl.u32 %v4455, 7
        %v4457 = vsub.s32 0, %v4456
        %v4458 = vrot.slane %v4454, %v4457
        %4460 = vrot.lane.b32.xlu0 %v4458, 16
        %v4461 = vpop.permute.xlu0 %4460
        %v4463 = vmul.f32 %v4453, %v4461
        %v4464 = vld [vmem:[%s1 + $0xd9] sm:$0x1]
        %v4465 = vlaneseq
        %v4466 = vshrl.u32 %v4465, 7
        %v4467 = vsub.s32 0, %v4466
        %v4468 = vrot.slane %v4464, %v4467
        %4470 = vrot.lane.b32.xlu0 %v4468, 24
        %v4471 = vpop.permute.xlu0 %4470
        %v4473 = vmul.f32 %v4453, %v4471
        %4475 = vrot.lane.b32.xlu0 %v4473, 120
        %v4476 = vpop.permute.xlu0 %4475
        %v4478 = vadd.f32 %v4463, %v4476
        %v4479 = vld [vmem:[%s1 + $0xda] sm:$0x1]
        %v4480 = vlaneseq
        %v4481 = vshrl.u32 %v4480, 7
        %v4482 = vsub.s32 0, %v4481
        %v4483 = vrot.slane %v4479, %v4482
        %4485 = vrot.lane.b32.xlu0 %v4483, 32
        %v4486 = vpop.permute.xlu0 %4485
        %v4488 = vmul.f32 %v4453, %v4486
        %4490 = vrot.lane.b32.xlu0 %v4488, 112
        %v4491 = vpop.permute.xlu0 %4490
        %v4493 = vadd.f32 %v4478, %v4491
        %v4494 = vld [vmem:[#allocation5 + $0x3] sm:$0xff]
        %v4495 = vld [vmem:[%s1 + $0xdb] sm:$0x1]
        %v4496 = vlaneseq
        %v4497 = vshrl.u32 %v4496, 7
        %v4498 = vsub.s32 0, %v4497
        %v4499 = vrot.slane %v4495, %v4498
        %4501 = vrot.lane.b32.xlu0 %v4499, 16
        %v4502 = vpop.permute.xlu0 %4501
        %v4504 = vmul.f32 %v4494, %v4502
        %v4505 = vadd.f32 %v4493, %v4504
        %v4506 = vld [vmem:[%s1 + $0xdc] sm:$0x1]
        %v4507 = vlaneseq
        %v4508 = vshrl.u32 %v4507, 7
        %v4509 = vsub.s32 0, %v4508
        %v4510 = vrot.slane %v4506, %v4509
        %4512 = vrot.lane.b32.xlu0 %v4510, 24
        %v4513 = vpop.permute.xlu0 %4512
        %v4515 = vmul.f32 %v4494, %v4513
        %4517 = vrot.lane.b32.xlu0 %v4515, 120
        %v4518 = vpop.permute.xlu0 %4517
        %v4520 = vadd.f32 %v4505, %v4518
        %v4521 = vld [vmem:[%s1 + $0xdd] sm:$0x1]
        %v4522 = vlaneseq
        %v4523 = vshrl.u32 %v4522, 7
        %v4524 = vsub.s32 0, %v4523
        %v4525 = vrot.slane %v4521, %v4524
        %4527 = vrot.lane.b32.xlu0 %v4525, 32
        %v4528 = vpop.permute.xlu0 %4527
        %v4530 = vmul.f32 %v4494, %v4528
        %4532 = vrot.lane.b32.xlu0 %v4530, 112
        %v4533 = vpop.permute.xlu0 %4532
        %v4535 = vadd.f32 %v4520, %v4533
        %v4536 = vld [vmem:[#allocation5 + $0x4] sm:$0xff]
        %v4537 = vld [vmem:[%s1 + $0xde] sm:$0x1]
        %v4538 = vlaneseq
        %v4539 = vshrl.u32 %v4538, 7
        %v4540 = vsub.s32 0, %v4539
        %v4541 = vrot.slane %v4537, %v4540
        %4543 = vrot.lane.b32.xlu0 %v4541, 16
        %v4544 = vpop.permute.xlu0 %4543
        %v4546 = vmul.f32 %v4536, %v4544
        %v4547 = vadd.f32 %v4535, %v4546
        %v4548 = vld [vmem:[%s1 + $0xdf] sm:$0x1]
        %v4549 = vlaneseq
        %v4550 = vshrl.u32 %v4549, 7
        %v4551 = vsub.s32 0, %v4550
        %v4552 = vrot.slane %v4548, %v4551
        %4554 = vrot.lane.b32.xlu0 %v4552, 24
        %v4555 = vpop.permute.xlu0 %4554
        %v4557 = vmul.f32 %v4536, %v4555
        %4559 = vrot.lane.b32.xlu0 %v4557, 120
        %v4560 = vpop.permute.xlu0 %4559
        %v4562 = vadd.f32 %v4547, %v4560
        %v4563 = vld [vmem:[%s1 + $0xe0] sm:$0x1]
        %v4564 = vlaneseq
        %v4565 = vshrl.u32 %v4564, 7
        %v4566 = vsub.s32 0, %v4565
        %v4567 = vrot.slane %v4563, %v4566
        %4569 = vrot.lane.b32.xlu0 %v4567, 32
        %v4570 = vpop.permute.xlu0 %4569
        %v4572 = vmul.f32 %v4536, %v4570
        %4574 = vrot.lane.b32.xlu0 %v4572, 112
        %v4575 = vpop.permute.xlu0 %4574
        %v4577 = vadd.f32 %v4562, %v4575
        %s4578 = scalar_lea.vmem %s2, 704
        %v4579 = vld [vmem:[%s4578] sm:$0xff]
        %v4580 = vld [vmem:[%s4578 + $0x8] sm:$0xff]
        %v4581 = vld [vmem:[%s4578 + $0x10] sm:$0xff]
        %v4582 = vld [vmem:[%s4578 + $0x18] sm:$0xff]
        %v4583 = vld [vmem:[%s4578 + $0x20] sm:$0xff]
        %v4584 = vld [vmem:[%s4578 + $0x28] sm:$0xff]
        %v4585 = vld [vmem:[%s4578 + $0x30] sm:$0xff]
        %v4586 = vld [vmem:[%s4578 + $0x38] sm:$0xff]
        %v4587 = vld [vmem:[%s3 + $0xb] sm:$0x1]
        %v4588 = vlaneseq
        %v4589 = vshrl.u32 %v4588, 7
        %v4590 = vsub.s32 0, %v4589
        %v4591 = vrot.slane %v4587, %v4590
        %4593 = vrot.lane.b32.xlu0 %v4577, 112
        %v4594 = vpop.permute.xlu0 %4593
        %v4595 = vsel %vm358, %v4594, 0
        %4597 = vmatprep.subr.mxu0 0.0
        %4598 = vmatpush1.msra.mxu0 %v4579
        %4599 = vmatprep.subr.mxu0 0.0
        %4600 = vmatpush1.msra.mxu0 %v4580
        %4601 = vmatprep.subr.mxu0 0.0
        %4602 = vmatpush1.msra.mxu0 %v4581
        %4603 = vmatprep.subr.mxu0 0.0
        %4604 = vmatpush1.msra.mxu0 %v4582
        %4605 = vmatprep.subr.mxu0 0.0
        %4606 = vmatpush1.msra.mxu0 %v4583
        %4607 = vmatprep.subr.mxu0 0.0
        %4608 = vmatpush1.msra.mxu0 %v4584
        %4609 = vmatprep.subr.mxu0 0.0
        %4610 = vmatpush1.msra.mxu0 %v4585
        %4611 = vmatprep.subr.mxu0 0.0
        %4612 = vmatpush1.msra.mxu0 %v4586
        %4613 = vmatprep.subr.mxu0 0.0
        %4614 = vmatpush1.msra.mxu0 0.0
        %4615 = vmatprep.subr.mxu0 0.0
        %4616 = vmatpush1.msra.mxu0 0.0
        %4617 = vmatprep.subr.mxu0 0.0
        %4618 = vmatpush1.msra.mxu0 0.0
        %4619 = vmatprep.subr.mxu0 0.0
        %4620 = vmatpush1.msra.mxu0 0.0
        %4621 = vmatprep.subr.mxu0 0.0
        %4622 = vmatpush1.msra.mxu0 0.0
        %4623 = vmatprep.subr.mxu0 0.0
        %4624 = vmatpush1.msra.mxu0 0.0
        %4625 = vmatprep.subr.mxu0 0.0
        %4626 = vmatpush1.msra.mxu0 0.0
        %4627 = vmatprep.subr.mxu0 0.0
        %4628 = vmatpush1.msra.mxu0 0.0
        %4629 = vmatprep.subr.mxu0 0.0
        %4630 = vmatpush1.msra.mxu0 0.0
        %4631 = vmatprep.subr.mxu0 0.0
        %4632 = vmatpush1.msra.mxu0 0.0
        %4633 = vmatprep.subr.mxu0 0.0
        %4634 = vmatpush1.msra.mxu0 0.0
        %4635 = vmatprep.subr.mxu0 0.0
        %4636 = vmatpush1.msra.mxu0 0.0
        %4637 = vmatprep.subr.mxu0 0.0
        %4638 = vmatpush1.msra.mxu0 0.0
        %4639 = vmatprep.subr.mxu0 0.0
        %4640 = vmatpush1.msra.mxu0 0.0
        %4641 = vmatprep.subr.mxu0 0.0
        %4642 = vmatpush1.msra.mxu0 0.0
        %4643 = vmatprep.subr.mxu0 0.0
        %4644 = vmatpush1.msra.mxu0 0.0
        %4645 = vmatprep.subr.mxu0 0.0
        %4646 = vmatpush1.msra.mxu0 0.0
        %4647 = vmatprep.subr.mxu0 0.0
        %4648 = vmatpush1.msra.mxu0 0.0
        %4649 = vmatprep.subr.mxu0 0.0
        %4650 = vmatpush1.msra.mxu0 0.0
        %4651 = vmatprep.subr.mxu0 0.0
        %4652 = vmatpush1.msra.mxu0 0.0
        %4653 = vmatprep.subr.mxu0 0.0
        %4654 = vmatpush1.msra.mxu0 0.0
        %4655 = vmatprep.subr.mxu0 0.0
        %4656 = vmatpush1.msra.mxu0 0.0
        %4657 = vmatprep.subr.mxu0 0.0
        %4658 = vmatpush1.msra.mxu0 0.0
        %4659 = vmatprep.subr.mxu0 0.0
        %4660 = vmatpush1.msra.mxu0 0.0
        %4661 = vmatprep.mubr.f32.mxu0 0.0
        %4662 = vmatmul.mubr.f32.gmra.mrb[0].mxu0 %v4595
        %v4663 = vpop.f32.mrb[0].mxu0
        %v4664 = vadd.f32 %v4591, %v4663
        %v4665 = vpop.f32.mrb[0].mxu0
        %4666 = vdwg.mxu0
        %v4667 = vmax.f32 %v4664, 0.0
        %4669 = vrot.lane.b32.xlu0 %v4667, 24
        %v4670 = vpop.permute.xlu0 %4669
        %4672 = vst.msk [vmem:[#allocation5 + $0x3] sm:$0xff] %vm941, %v4670
        %v4673 = vld [vmem:[#allocation5 + $0x2] sm:$0xff]
        %v4674 = vld [vmem:[%s1 + $0xe1] sm:$0x1]
        %v4675 = vlaneseq
        %v4676 = vshrl.u32 %v4675, 7
        %v4677 = vsub.s32 0, %v4676
        %v4678 = vrot.slane %v4674, %v4677
        %4680 = vrot.lane.b32.xlu0 %v4678, 16
        %v4681 = vpop.permute.xlu0 %4680
        %v4683 = vmul.f32 %v4673, %v4681
        %v4684 = vld [vmem:[%s1 + $0xe2] sm:$0x1]
        %v4685 = vlaneseq
        %v4686 = vshrl.u32 %v4685, 7
        %v4687 = vsub.s32 0, %v4686
        %v4688 = vrot.slane %v4684, %v4687
        %4690 = vrot.lane.b32.xlu0 %v4688, 24
        %v4691 = vpop.permute.xlu0 %4690
        %v4693 = vmul.f32 %v4673, %v4691
        %4695 = vrot.lane.b32.xlu0 %v4693, 120
        %v4696 = vpop.permute.xlu0 %4695
        %v4698 = vadd.f32 %v4683, %v4696
        %v4699 = vld [vmem:[%s1 + $0xe3] sm:$0x1]
        %v4700 = vlaneseq
        %v4701 = vshrl.u32 %v4700, 7
        %v4702 = vsub.s32 0, %v4701
        %v4703 = vrot.slane %v4699, %v4702
        %4705 = vrot.lane.b32.xlu0 %v4703, 32
        %v4706 = vpop.permute.xlu0 %4705
        %v4708 = vmul.f32 %v4673, %v4706
        %4710 = vrot.lane.b32.xlu0 %v4708, 112
        %v4711 = vpop.permute.xlu0 %4710
        %v4713 = vadd.f32 %v4698, %v4711
        %v4714 = vld [vmem:[#allocation5 + $0x3] sm:$0xff]
        %v4715 = vld [vmem:[%s1 + $0xe4] sm:$0x1]
        %v4716 = vlaneseq
        %v4717 = vshrl.u32 %v4716, 7
        %v4718 = vsub.s32 0, %v4717
        %v4719 = vrot.slane %v4715, %v4718
        %4721 = vrot.lane.b32.xlu0 %v4719, 16
        %v4722 = vpop.permute.xlu0 %4721
        %v4724 = vmul.f32 %v4714, %v4722
        %v4725 = vadd.f32 %v4713, %v4724
        %v4726 = vld [vmem:[%s1 + $0xe5] sm:$0x1]
        %v4727 = vlaneseq
        %v4728 = vshrl.u32 %v4727, 7
        %v4729 = vsub.s32 0, %v4728
        %v4730 = vrot.slane %v4726, %v4729
        %4732 = vrot.lane.b32.xlu0 %v4730, 24
        %v4733 = vpop.permute.xlu0 %4732
        %v4735 = vmul.f32 %v4714, %v4733
        %4737 = vrot.lane.b32.xlu0 %v4735, 120
        %v4738 = vpop.permute.xlu0 %4737
        %v4740 = vadd.f32 %v4725, %v4738
        %v4741 = vld [vmem:[%s1 + $0xe6] sm:$0x1]
        %v4742 = vlaneseq
        %v4743 = vshrl.u32 %v4742, 7
        %v4744 = vsub.s32 0, %v4743
        %v4745 = vrot.slane %v4741, %v4744
        %4747 = vrot.lane.b32.xlu0 %v4745, 32
        %v4748 = vpop.permute.xlu0 %4747
        %v4750 = vmul.f32 %v4714, %v4748
        %4752 = vrot.lane.b32.xlu0 %v4750, 112
        %v4753 = vpop.permute.xlu0 %4752
        %v4755 = vadd.f32 %v4740, %v4753
        %v4756 = vld [vmem:[#allocation5 + $0x4] sm:$0xff]
        %v4757 = vld [vmem:[%s1 + $0xe7] sm:$0x1]
        %v4758 = vlaneseq
        %v4759 = vshrl.u32 %v4758, 7
        %v4760 = vsub.s32 0, %v4759
        %v4761 = vrot.slane %v4757, %v4760
        %4763 = vrot.lane.b32.xlu0 %v4761, 16
        %v4764 = vpop.permute.xlu0 %4763
        %v4766 = vmul.f32 %v4756, %v4764
        %v4767 = vadd.f32 %v4755, %v4766
        %v4768 = vld [vmem:[%s1 + $0xe8] sm:$0x1]
        %v4769 = vlaneseq
        %v4770 = vshrl.u32 %v4769, 7
        %v4771 = vsub.s32 0, %v4770
        %v4772 = vrot.slane %v4768, %v4771
        %4774 = vrot.lane.b32.xlu0 %v4772, 24
        %v4775 = vpop.permute.xlu0 %4774
        %v4777 = vmul.f32 %v4756, %v4775
        %4779 = vrot.lane.b32.xlu0 %v4777, 120
        %v4780 = vpop.permute.xlu0 %4779
        %v4782 = vadd.f32 %v4767, %v4780
        %v4783 = vld [vmem:[%s1 + $0xe9] sm:$0x1]
        %v4784 = vlaneseq
        %v4785 = vshrl.u32 %v4784, 7
        %v4786 = vsub.s32 0, %v4785
        %v4787 = vrot.slane %v4783, %v4786
        %4789 = vrot.lane.b32.xlu0 %v4787, 32
        %v4790 = vpop.permute.xlu0 %4789
        %v4792 = vmul.f32 %v4756, %v4790
        %4794 = vrot.lane.b32.xlu0 %v4792, 112
        %v4795 = vpop.permute.xlu0 %4794
        %v4797 = vadd.f32 %v4782, %v4795
        %s4798 = scalar_lea.vmem %s2, 768
        %v4799 = vld [vmem:[%s4798] sm:$0xff]
        %v4800 = vld [vmem:[%s4798 + $0x8] sm:$0xff]
        %v4801 = vld [vmem:[%s4798 + $0x10] sm:$0xff]
        %v4802 = vld [vmem:[%s4798 + $0x18] sm:$0xff]
        %v4803 = vld [vmem:[%s4798 + $0x20] sm:$0xff]
        %v4804 = vld [vmem:[%s4798 + $0x28] sm:$0xff]
        %v4805 = vld [vmem:[%s4798 + $0x30] sm:$0xff]
        %v4806 = vld [vmem:[%s4798 + $0x38] sm:$0xff]
        %v4807 = vld [vmem:[%s3 + $0xc] sm:$0x1]
        %v4808 = vlaneseq
        %v4809 = vshrl.u32 %v4808, 7
        %v4810 = vsub.s32 0, %v4809
        %v4811 = vrot.slane %v4807, %v4810
        %4813 = vrot.lane.b32.xlu0 %v4797, 112
        %v4814 = vpop.permute.xlu0 %4813
        %v4815 = vsel %vm358, %v4814, 0
        %4817 = vmatprep.subr.mxu0 0.0
        %4818 = vmatpush1.msra.mxu0 %v4799
        %4819 = vmatprep.subr.mxu0 0.0
        %4820 = vmatpush1.msra.mxu0 %v4800
        %4821 = vmatprep.subr.mxu0 0.0
        %4822 = vmatpush1.msra.mxu0 %v4801
        %4823 = vmatprep.subr.mxu0 0.0
        %4824 = vmatpush1.msra.mxu0 %v4802
        %4825 = vmatprep.subr.mxu0 0.0
        %4826 = vmatpush1.msra.mxu0 %v4803
        %4827 = vmatprep.subr.mxu0 0.0
        %4828 = vmatpush1.msra.mxu0 %v4804
        %4829 = vmatprep.subr.mxu0 0.0
        %4830 = vmatpush1.msra.mxu0 %v4805
        %4831 = vmatprep.subr.mxu0 0.0
        %4832 = vmatpush1.msra.mxu0 %v4806
        %4833 = vmatprep.subr.mxu0 0.0
        %4834 = vmatpush1.msra.mxu0 0.0
        %4835 = vmatprep.subr.mxu0 0.0
        %4836 = vmatpush1.msra.mxu0 0.0
        %4837 = vmatprep.subr.mxu0 0.0
        %4838 = vmatpush1.msra.mxu0 0.0
        %4839 = vmatprep.subr.mxu0 0.0
        %4840 = vmatpush1.msra.mxu0 0.0
        %4841 = vmatprep.subr.mxu0 0.0
        %4842 = vmatpush1.msra.mxu0 0.0
        %4843 = vmatprep.subr.mxu0 0.0
        %4844 = vmatpush1.msra.mxu0 0.0
        %4845 = vmatprep.subr.mxu0 0.0
        %4846 = vmatpush1.msra.mxu0 0.0
        %4847 = vmatprep.subr.mxu0 0.0
        %4848 = vmatpush1.msra.mxu0 0.0
        %4849 = vmatprep.subr.mxu0 0.0
        %4850 = vmatpush1.msra.mxu0 0.0
        %4851 = vmatprep.subr.mxu0 0.0
        %4852 = vmatpush1.msra.mxu0 0.0
        %4853 = vmatprep.subr.mxu0 0.0
        %4854 = vmatpush1.msra.mxu0 0.0
        %4855 = vmatprep.subr.mxu0 0.0
        %4856 = vmatpush1.msra.mxu0 0.0
        %4857 = vmatprep.subr.mxu0 0.0
        %4858 = vmatpush1.msra.mxu0 0.0
        %4859 = vmatprep.subr.mxu0 0.0
        %4860 = vmatpush1.msra.mxu0 0.0
        %4861 = vmatprep.subr.mxu0 0.0
        %4862 = vmatpush1.msra.mxu0 0.0
        %4863 = vmatprep.subr.mxu0 0.0
        %4864 = vmatpush1.msra.mxu0 0.0
        %4865 = vmatprep.subr.mxu0 0.0
        %4866 = vmatpush1.msra.mxu0 0.0
        %4867 = vmatprep.subr.mxu0 0.0
        %4868 = vmatpush1.msra.mxu0 0.0
        %4869 = vmatprep.subr.mxu0 0.0
        %4870 = vmatpush1.msra.mxu0 0.0
        %4871 = vmatprep.subr.mxu0 0.0
        %4872 = vmatpush1.msra.mxu0 0.0
        %4873 = vmatprep.subr.mxu0 0.0
        %4874 = vmatpush1.msra.mxu0 0.0
        %4875 = vmatprep.subr.mxu0 0.0
        %4876 = vmatpush1.msra.mxu0 0.0
        %4877 = vmatprep.subr.mxu0 0.0
        %4878 = vmatpush1.msra.mxu0 0.0
        %4879 = vmatprep.subr.mxu0 0.0
        %4880 = vmatpush1.msra.mxu0 0.0
        %4881 = vmatprep.mubr.f32.mxu0 0.0
        %4882 = vmatmul.mubr.f32.gmra.mrb[0].mxu0 %v4815
        %v4883 = vpop.f32.mrb[0].mxu0
        %v4884 = vadd.f32 %v4811, %v4883
        %v4885 = vpop.f32.mrb[0].mxu0
        %4886 = vdwg.mxu0
        %v4887 = vadd.f32 %v4884, %v3119
        %s4888 = scalar_lea.vmem %s2, 128
        %v4889 = vld [vmem:[%s4888] sm:$0xff]
        %v4890 = vld [vmem:[%s4888 + $0x8] sm:$0xff]
        %v4891 = vld [vmem:[%s4888 + $0x10] sm:$0xff]
        %v4892 = vld [vmem:[%s4888 + $0x18] sm:$0xff]
        %v4893 = vld [vmem:[%s4888 + $0x20] sm:$0xff]
        %v4894 = vld [vmem:[%s4888 + $0x28] sm:$0xff]
        %v4895 = vld [vmem:[%s4888 + $0x30] sm:$0xff]
        %v4896 = vld [vmem:[%s4888 + $0x38] sm:$0xff]
        %v4897 = vld [vmem:[%s3 + $0x2] sm:$0x1]
        %v4898 = vlaneseq
        %v4899 = vshrl.u32 %v4898, 7
        %v4900 = vsub.s32 0, %v4899
        %v4901 = vrot.slane %v4897, %v4900
        %v4902 = vsel %vm358, %v458, 0
        %4904 = vmatprep.subr.mxu0 0.0
        %4905 = vmatpush1.msra.mxu0 %v4889
        %4906 = vmatprep.subr.mxu0 0.0
        %4907 = vmatpush1.msra.mxu0 %v4890
        %4908 = vmatprep.subr.mxu0 0.0
        %4909 = vmatpush1.msra.mxu0 %v4891
        %4910 = vmatprep.subr.mxu0 0.0
        %4911 = vmatpush1.msra.mxu0 %v4892
        %4912 = vmatprep.subr.mxu0 0.0
        %4913 = vmatpush1.msra.mxu0 %v4893
        %4914 = vmatprep.subr.mxu0 0.0
        %4915 = vmatpush1.msra.mxu0 %v4894
        %4916 = vmatprep.subr.mxu0 0.0
        %4917 = vmatpush1.msra.mxu0 %v4895
        %4918 = vmatprep.subr.mxu0 0.0
        %4919 = vmatpush1.msra.mxu0 %v4896
        %4920 = vmatprep.subr.mxu0 0.0
        %4921 = vmatpush1.msra.mxu0 0.0
        %4922 = vmatprep.subr.mxu0 0.0
        %4923 = vmatpush1.msra.mxu0 0.0
        %4924 = vmatprep.subr.mxu0 0.0
        %4925 = vmatpush1.msra.mxu0 0.0
        %4926 = vmatprep.subr.mxu0 0.0
        %4927 = vmatpush1.msra.mxu0 0.0
        %4928 = vmatprep.subr.mxu0 0.0
        %4929 = vmatpush1.msra.mxu0 0.0
        %4930 = vmatprep.subr.mxu0 0.0
        %4931 = vmatpush1.msra.mxu0 0.0
        %4932 = vmatprep.subr.mxu0 0.0
        %4933 = vmatpush1.msra.mxu0 0.0
        %4934 = vmatprep.subr.mxu0 0.0
        %4935 = vmatpush1.msra.mxu0 0.0
        %4936 = vmatprep.subr.mxu0 0.0
        %4937 = vmatpush1.msra.mxu0 0.0
        %4938 = vmatprep.subr.mxu0 0.0
        %4939 = vmatpush1.msra.mxu0 0.0
        %4940 = vmatprep.subr.mxu0 0.0
        %4941 = vmatpush1.msra.mxu0 0.0
        %4942 = vmatprep.subr.mxu0 0.0
        %4943 = vmatpush1.msra.mxu0 0.0
        %4944 = vmatprep.subr.mxu0 0.0
        %4945 = vmatpush1.msra.mxu0 0.0
        %4946 = vmatprep.subr.mxu0 0.0
        %4947 = vmatpush1.msra.mxu0 0.0
        %4948 = vmatprep.subr.mxu0 0.0
        %4949 = vmatpush1.msra.mxu0 0.0
        %4950 = vmatprep.subr.mxu0 0.0
        %4951 = vmatpush1.msra.mxu0 0.0
        %4952 = vmatprep.subr.mxu0 0.0
        %4953 = vmatpush1.msra.mxu0 0.0
        %4954 = vmatprep.subr.mxu0 0.0
        %4955 = vmatpush1.msra.mxu0 0.0
        %4956 = vmatprep.subr.mxu0 0.0
        %4957 = vmatpush1.msra.mxu0 0.0
        %4958 = vmatprep.subr.mxu0 0.0
        %4959 = vmatpush1.msra.mxu0 0.0
        %4960 = vmatprep.subr.mxu0 0.0
        %4961 = vmatpush1.msra.mxu0 0.0
        %4962 = vmatprep.subr.mxu0 0.0
        %4963 = vmatpush1.msra.mxu0 0.0
        %4964 = vmatprep.subr.mxu0 0.0
        %4965 = vmatpush1.msra.mxu0 0.0
        %4966 = vmatprep.subr.mxu0 0.0
        %4967 = vmatpush1.msra.mxu0 0.0
        %4968 = vmatprep.mubr.f32.mxu0 0.0
        %4969 = vmatmul.mubr.f32.gmra.mrb[0].mxu0 %v4902
        %v4970 = vpop.f32.mrb[0].mxu0
        %v4971 = vadd.f32 %v4901, %v4970
        %v4972 = vpop.f32.mrb[0].mxu0
        %4973 = vdwg.mxu0
        %v4974 = vld [vmem:[%s331 + $0x1] sm:$0xff]
        %v4975 = vld [vmem:[%s1 + $0xea] sm:$0x1]
        %v4976 = vlaneseq
        %v4977 = vshrl.u32 %v4976, 7
        %v4978 = vsub.s32 0, %v4977
        %v4979 = vrot.slane %v4975, %v4978
        %4981 = vrot.lane.b32.xlu0 %v4979, 8
        %v4982 = vpop.permute.xlu0 %4981
        %v4984 = vmul.f32 %v4974, %v4982
        %v4985 = vld [vmem:[%s329 + $0x1] sm:$0xff]
        %v4986 = vld [vmem:[%s1 + $0xeb] sm:$0x1]
        %v4987 = vlaneseq
        %v4988 = vshrl.u32 %v4987, 7
        %v4989 = vsub.s32 0, %v4988
        %v4990 = vrot.slane %v4986, %v4989
        %4992 = vrot.lane.b32.xlu0 %v4990, 16
        %v4993 = vpop.permute.xlu0 %4992
        %v4995 = vmul.f32 %v4985, %v4993
        %4997 = vrot.lane.b32.xlu0 %v4995, 120
        %v4998 = vpop.permute.xlu0 %4997
        %v5000 = vadd.f32 %v4984, %v4998
        %v5001 = vld [vmem:[%s1 + $0xec] sm:$0x1]
        %v5002 = vlaneseq
        %v5003 = vshrl.u32 %v5002, 7
        %v5004 = vsub.s32 0, %v5003
        %v5005 = vrot.slane %v5001, %v5004
        %5007 = vrot.lane.b32.xlu0 %v5005, 16
        %v5008 = vpop.permute.xlu0 %5007
        %v5010 = vmul.f32 %v4974, %v5008
        %5012 = vrot.lane.b32.xlu0 %v5010, 120
        %v5013 = vpop.permute.xlu0 %5012
        %v5015 = vadd.f32 %v5000, %v5013
        %v5016 = vld [vmem:[%s327 + $0x2] sm:$0xff]
        %v5017 = vld [vmem:[%s1 + $0xed] sm:$0x1]
        %v5018 = vlaneseq
        %v5019 = vshrl.u32 %v5018, 7
        %v5020 = vsub.s32 0, %v5019
        %v5021 = vrot.slane %v5017, %v5020
        %5023 = vrot.lane.b32.xlu0 %v5021, 8
        %v5024 = vpop.permute.xlu0 %5023
        %v5026 = vmul.f32 %v5016, %v5024
        %v5027 = vadd.f32 %v5015, %v5026
        %v5028 = vld [vmem:[#allocation2 + $0x2] sm:$0xff]
        %v5029 = vld [vmem:[%s1 + $0xee] sm:$0x1]
        %v5030 = vlaneseq
        %v5031 = vshrl.u32 %v5030, 7
        %v5032 = vsub.s32 0, %v5031
        %v5033 = vrot.slane %v5029, %v5032
        %5035 = vrot.lane.b32.xlu0 %v5033, 16
        %v5036 = vpop.permute.xlu0 %5035
        %v5038 = vmul.f32 %v5028, %v5036
        %5040 = vrot.lane.b32.xlu0 %v5038, 120
        %v5041 = vpop.permute.xlu0 %5040
        %v5043 = vadd.f32 %v5027, %v5041
        %v5044 = vld [vmem:[%s1 + $0xef] sm:$0x1]
        %v5045 = vlaneseq
        %v5046 = vshrl.u32 %v5045, 7
        %v5047 = vsub.s32 0, %v5046
        %v5048 = vrot.slane %v5044, %v5047
        %5050 = vrot.lane.b32.xlu0 %v5048, 16
        %v5051 = vpop.permute.xlu0 %5050
        %v5053 = vmul.f32 %v5016, %v5051
        %5055 = vrot.lane.b32.xlu0 %v5053, 120
        %v5056 = vpop.permute.xlu0 %5055
        %v5058 = vadd.f32 %v5043, %v5056
        %v5059 = vld [vmem:[%s331 + $0x2] sm:$0xff]
        %v5060 = vld [vmem:[%s1 + $0xf0] sm:$0x1]
        %v5061 = vlaneseq
        %v5062 = vshrl.u32 %v5061, 7
        %v5063 = vsub.s32 0, %v5062
        %v5064 = vrot.slane %v5060, %v5063
        %5066 = vrot.lane.b32.xlu0 %v5064, 8
        %v5067 = vpop.permute.xlu0 %5066
        %v5069 = vmul.f32 %v5059, %v5067
        %v5070 = vadd.f32 %v5058, %v5069
        %v5071 = vld [vmem:[%s329 + $0x2] sm:$0xff]
        %v5072 = vld [vmem:[%s1 + $0xf1] sm:$0x1]
        %v5073 = vlaneseq
        %v5074 = vshrl.u32 %v5073, 7
        %v5075 = vsub.s32 0, %v5074
        %v5076 = vrot.slane %v5072, %v5075
        %5078 = vrot.lane.b32.xlu0 %v5076, 16
        %v5079 = vpop.permute.xlu0 %5078
        %v5081 = vmul.f32 %v5071, %v5079
        %5083 = vrot.lane.b32.xlu0 %v5081, 120
        %v5084 = vpop.permute.xlu0 %5083
        %v5086 = vadd.f32 %v5070, %v5084
        %v5087 = vld [vmem:[%s1 + $0xf2] sm:$0x1]
        %v5088 = vlaneseq
        %v5089 = vshrl.u32 %v5088, 7
        %v5090 = vsub.s32 0, %v5089
        %v5091 = vrot.slane %v5087, %v5090
        %5093 = vrot.lane.b32.xlu0 %v5091, 16
        %v5094 = vpop.permute.xlu0 %5093
        %v5096 = vmul.f32 %v5059, %v5094
        %5098 = vrot.lane.b32.xlu0 %v5096, 120
        %v5099 = vpop.permute.xlu0 %5098
        %v5101 = vadd.f32 %v5086, %v5099
        %s5102 = scalar_lea.vmem %s2, 832
        %v5103 = vld [vmem:[%s5102] sm:$0xff]
        %v5104 = vld [vmem:[%s5102 + $0x8] sm:$0xff]
        %v5105 = vld [vmem:[%s5102 + $0x10] sm:$0xff]
        %v5106 = vld [vmem:[%s5102 + $0x18] sm:$0xff]
        %v5107 = vld [vmem:[%s5102 + $0x20] sm:$0xff]
        %v5108 = vld [vmem:[%s5102 + $0x28] sm:$0xff]
        %v5109 = vld [vmem:[%s5102 + $0x30] sm:$0xff]
        %v5110 = vld [vmem:[%s5102 + $0x38] sm:$0xff]
        %v5111 = vld [vmem:[%s3 + $0xd] sm:$0x1]
        %v5112 = vlaneseq
        %v5113 = vshrl.u32 %v5112, 7
        %v5114 = vsub.s32 0, %v5113
        %v5115 = vrot.slane %v5111, %v5114
        %5117 = vrot.lane.b32.xlu0 %v5101, 120
        %v5118 = vpop.permute.xlu0 %5117
        %v5119 = vsel %vm358, %v5118, 0
        %5121 = vmatprep.subr.mxu0 0.0
        %5122 = vmatpush1.msra.mxu0 %v5103
        %5123 = vmatprep.subr.mxu0 0.0
        %5124 = vmatpush1.msra.mxu0 %v5104
        %5125 = vmatprep.subr.mxu0 0.0
        %5126 = vmatpush1.msra.mxu0 %v5105
        %5127 = vmatprep.subr.mxu0 0.0
        %5128 = vmatpush1.msra.mxu0 %v5106
        %5129 = vmatprep.subr.mxu0 0.0
        %5130 = vmatpush1.msra.mxu0 %v5107
        %5131 = vmatprep.subr.mxu0 0.0
        %5132 = vmatpush1.msra.mxu0 %v5108
        %5133 = vmatprep.subr.mxu0 0.0
        %5134 = vmatpush1.msra.mxu0 %v5109
        %5135 = vmatprep.subr.mxu0 0.0
        %5136 = vmatpush1.msra.mxu0 %v5110
        %5137 = vmatprep.subr.mxu0 0.0
        %5138 = vmatpush1.msra.mxu0 0.0
        %5139 = vmatprep.subr.mxu0 0.0
        %5140 = vmatpush1.msra.mxu0 0.0
        %5141 = vmatprep.subr.mxu0 0.0
        %5142 = vmatpush1.msra.mxu0 0.0
        %5143 = vmatprep.subr.mxu0 0.0
        %5144 = vmatpush1.msra.mxu0 0.0
        %5145 = vmatprep.subr.mxu0 0.0
        %5146 = vmatpush1.msra.mxu0 0.0
        %5147 = vmatprep.subr.mxu0 0.0
        %5148 = vmatpush1.msra.mxu0 0.0
        %5149 = vmatprep.subr.mxu0 0.0
        %5150 = vmatpush1.msra.mxu0 0.0
        %5151 = vmatprep.subr.mxu0 0.0
        %5152 = vmatpush1.msra.mxu0 0.0
        %5153 = vmatprep.subr.mxu0 0.0
        %5154 = vmatpush1.msra.mxu0 0.0
        %5155 = vmatprep.subr.mxu0 0.0
        %5156 = vmatpush1.msra.mxu0 0.0
        %5157 = vmatprep.subr.mxu0 0.0
        %5158 = vmatpush1.msra.mxu0 0.0
        %5159 = vmatprep.subr.mxu0 0.0
        %5160 = vmatpush1.msra.mxu0 0.0
        %5161 = vmatprep.subr.mxu0 0.0
        %5162 = vmatpush1.msra.mxu0 0.0
        %5163 = vmatprep.subr.mxu0 0.0
        %5164 = vmatpush1.msra.mxu0 0.0
        %5165 = vmatprep.subr.mxu0 0.0
        %5166 = vmatpush1.msra.mxu0 0.0
        %5167 = vmatprep.subr.mxu0 0.0
        %5168 = vmatpush1.msra.mxu0 0.0
        %5169 = vmatprep.subr.mxu0 0.0
        %5170 = vmatpush1.msra.mxu0 0.0
        %5171 = vmatprep.subr.mxu0 0.0
        %5172 = vmatpush1.msra.mxu0 0.0
        %5173 = vmatprep.subr.mxu0 0.0
        %5174 = vmatpush1.msra.mxu0 0.0
        %5175 = vmatprep.subr.mxu0 0.0
        %5176 = vmatpush1.msra.mxu0 0.0
        %5177 = vmatprep.subr.mxu0 0.0
        %5178 = vmatpush1.msra.mxu0 0.0
        %5179 = vmatprep.subr.mxu0 0.0
        %5180 = vmatpush1.msra.mxu0 0.0
        %5181 = vmatprep.subr.mxu0 0.0
        %5182 = vmatpush1.msra.mxu0 0.0
        %5183 = vmatprep.subr.mxu0 0.0
        %5184 = vmatpush1.msra.mxu0 0.0
        %5185 = vmatprep.mubr.f32.mxu0 0.0
        %5186 = vmatmul.mubr.f32.gmra.mrb[0].mxu0 %v5119
        %v5187 = vpop.f32.mrb[0].mxu0
        %v5188 = vadd.f32 %v5115, %v5187
        %v5189 = vpop.f32.mrb[0].mxu0
        %5190 = vdwg.mxu0
        %v5191 = vmax.f32 %v5188, 0.0
        %5193 = vrot.lane.b32.xlu0 %v5191, 24
        %v5194 = vpop.permute.xlu0 %5193
        %5196 = vst.msk [vmem:[#allocation5 + $0x3] sm:$0xff] %vm941, %v5194
        %v5197 = vld [vmem:[#allocation5 + $0x2] sm:$0xff]
        %v5198 = vld [vmem:[%s1 + $0xf3] sm:$0x1]
        %v5199 = vlaneseq
        %v5200 = vshrl.u32 %v5199, 7
        %v5201 = vsub.s32 0, %v5200
        %v5202 = vrot.slane %v5198, %v5201
        %5204 = vrot.lane.b32.xlu0 %v5202, 16
        %v5205 = vpop.permute.xlu0 %5204
        %v5207 = vmul.f32 %v5197, %v5205
        %v5208 = vld [vmem:[%s1 + $0xf4] sm:$0x1]
        %v5209 = vlaneseq
        %v5210 = vshrl.u32 %v5209, 7
        %v5211 = vsub.s32 0, %v5210
        %v5212 = vrot.slane %v5208, %v5211
        %5214 = vrot.lane.b32.xlu0 %v5212, 24
        %v5215 = vpop.permute.xlu0 %5214
        %v5217 = vmul.f32 %v5197, %v5215
        %5219 = vrot.lane.b32.xlu0 %v5217, 120
        %v5220 = vpop.permute.xlu0 %5219
        %v5222 = vadd.f32 %v5207, %v5220
        %v5223 = vld [vmem:[%s1 + $0xf5] sm:$0x1]
        %v5224 = vlaneseq
        %v5225 = vshrl.u32 %v5224, 7
        %v5226 = vsub.s32 0, %v5225
        %v5227 = vrot.slane %v5223, %v5226
        %5229 = vrot.lane.b32.xlu0 %v5227, 32
        %v5230 = vpop.permute.xlu0 %5229
        %v5232 = vmul.f32 %v5197, %v5230
        %5234 = vrot.lane.b32.xlu0 %v5232, 112
        %v5235 = vpop.permute.xlu0 %5234
        %v5237 = vadd.f32 %v5222, %v5235
        %v5238 = vld [vmem:[#allocation5 + $0x3] sm:$0xff]
        %v5239 = vld [vmem:[%s1 + $0xf6] sm:$0x1]
        %v5240 = vlaneseq
        %v5241 = vshrl.u32 %v5240, 7
        %v5242 = vsub.s32 0, %v5241
        %v5243 = vrot.slane %v5239, %v5242
        %5245 = vrot.lane.b32.xlu0 %v5243, 16
        %v5246 = vpop.permute.xlu0 %5245
        %v5248 = vmul.f32 %v5238, %v5246
        %v5249 = vadd.f32 %v5237, %v5248
        %v5250 = vld [vmem:[%s1 + $0xf7] sm:$0x1]
        %v5251 = vlaneseq
        %v5252 = vshrl.u32 %v5251, 7
        %v5253 = vsub.s32 0, %v5252
        %v5254 = vrot.slane %v5250, %v5253
        %5256 = vrot.lane.b32.xlu0 %v5254, 24
        %v5257 = vpop.permute.xlu0 %5256
        %v5259 = vmul.f32 %v5238, %v5257
        %5261 = vrot.lane.b32.xlu0 %v5259, 120
        %v5262 = vpop.permute.xlu0 %5261
        %v5264 = vadd.f32 %v5249, %v5262
        %v5265 = vld [vmem:[%s1 + $0xf8] sm:$0x1]
        %v5266 = vlaneseq
        %v5267 = vshrl.u32 %v5266, 7
        %v5268 = vsub.s32 0, %v5267
        %v5269 = vrot.slane %v5265, %v5268
        %5271 = vrot.lane.b32.xlu0 %v5269, 32
        %v5272 = vpop.permute.xlu0 %5271
        %v5274 = vmul.f32 %v5238, %v5272
        %5276 = vrot.lane.b32.xlu0 %v5274, 112
        %v5277 = vpop.permute.xlu0 %5276
        %v5279 = vadd.f32 %v5264, %v5277
        %v5280 = vld [vmem:[#allocation5 + $0x4] sm:$0xff]
        %v5281 = vld [vmem:[%s1 + $0xf9] sm:$0x1]
        %v5282 = vlaneseq
        %v5283 = vshrl.u32 %v5282, 7
        %v5284 = vsub.s32 0, %v5283
        %v5285 = vrot.slane %v5281, %v5284
        %5287 = vrot.lane.b32.xlu0 %v5285, 16
        %v5288 = vpop.permute.xlu0 %5287
        %v5290 = vmul.f32 %v5280, %v5288
        %v5291 = vadd.f32 %v5279, %v5290
        %v5292 = vld [vmem:[%s1 + $0xfa] sm:$0x1]
        %v5293 = vlaneseq
        %v5294 = vshrl.u32 %v5293, 7
        %v5295 = vsub.s32 0, %v5294
        %v5296 = vrot.slane %v5292, %v5295
        %5298 = vrot.lane.b32.xlu0 %v5296, 24
        %v5299 = vpop.permute.xlu0 %5298
        %v5301 = vmul.f32 %v5280, %v5299
        %5303 = vrot.lane.b32.xlu0 %v5301, 120
        %v5304 = vpop.permute.xlu0 %5303
        %v5306 = vadd.f32 %v5291, %v5304
        %v5307 = vld [vmem:[%s1 + $0xfb] sm:$0x1]
        %v5308 = vlaneseq
        %v5309 = vshrl.u32 %v5308, 7
        %v5310 = vsub.s32 0, %v5309
        %v5311 = vrot.slane %v5307, %v5310
        %5313 = vrot.lane.b32.xlu0 %v5311, 32
        %v5314 = vpop.permute.xlu0 %5313
        %v5316 = vmul.f32 %v5280, %v5314
        %5318 = vrot.lane.b32.xlu0 %v5316, 112
        %v5319 = vpop.permute.xlu0 %5318
        %v5321 = vadd.f32 %v5306, %v5319
        %s5322 = scalar_lea.vmem %s2, 896
        %v5323 = vld [vmem:[%s5322] sm:$0xff]
        %v5324 = vld [vmem:[%s5322 + $0x8] sm:$0xff]
        %v5325 = vld [vmem:[%s5322 + $0x10] sm:$0xff]
        %v5326 = vld [vmem:[%s5322 + $0x18] sm:$0xff]
        %v5327 = vld [vmem:[%s5322 + $0x20] sm:$0xff]
        %v5328 = vld [vmem:[%s5322 + $0x28] sm:$0xff]
        %v5329 = vld [vmem:[%s5322 + $0x30] sm:$0xff]
        %v5330 = vld [vmem:[%s5322 + $0x38] sm:$0xff]
        %v5331 = vld [vmem:[%s3 + $0xe] sm:$0x1]
        %v5332 = vlaneseq
        %v5333 = vshrl.u32 %v5332, 7
        %v5334 = vsub.s32 0, %v5333
        %v5335 = vrot.slane %v5331, %v5334
        %5337 = vrot.lane.b32.xlu0 %v5321, 112
        %v5338 = vpop.permute.xlu0 %5337
        %v5339 = vsel %vm358, %v5338, 0
        %5341 = vmatprep.subr.mxu0 0.0
        %5342 = vmatpush1.msra.mxu0 %v5323
        %5343 = vmatprep.subr.mxu0 0.0
        %5344 = vmatpush1.msra.mxu0 %v5324
        %5345 = vmatprep.subr.mxu0 0.0
        %5346 = vmatpush1.msra.mxu0 %v5325
        %5347 = vmatprep.subr.mxu0 0.0
        %5348 = vmatpush1.msra.mxu0 %v5326
        %5349 = vmatprep.subr.mxu0 0.0
        %5350 = vmatpush1.msra.mxu0 %v5327
        %5351 = vmatprep.subr.mxu0 0.0
        %5352 = vmatpush1.msra.mxu0 %v5328
        %5353 = vmatprep.subr.mxu0 0.0
        %5354 = vmatpush1.msra.mxu0 %v5329
        %5355 = vmatprep.subr.mxu0 0.0
        %5356 = vmatpush1.msra.mxu0 %v5330
        %5357 = vmatprep.subr.mxu0 0.0
        %5358 = vmatpush1.msra.mxu0 0.0
        %5359 = vmatprep.subr.mxu0 0.0
        %5360 = vmatpush1.msra.mxu0 0.0
        %5361 = vmatprep.subr.mxu0 0.0
        %5362 = vmatpush1.msra.mxu0 0.0
        %5363 = vmatprep.subr.mxu0 0.0
        %5364 = vmatpush1.msra.mxu0 0.0
        %5365 = vmatprep.subr.mxu0 0.0
        %5366 = vmatpush1.msra.mxu0 0.0
        %5367 = vmatprep.subr.mxu0 0.0
        %5368 = vmatpush1.msra.mxu0 0.0
        %5369 = vmatprep.subr.mxu0 0.0
        %5370 = vmatpush1.msra.mxu0 0.0
        %5371 = vmatprep.subr.mxu0 0.0
        %5372 = vmatpush1.msra.mxu0 0.0
        %5373 = vmatprep.subr.mxu0 0.0
        %5374 = vmatpush1.msra.mxu0 0.0
        %5375 = vmatprep.subr.mxu0 0.0
        %5376 = vmatpush1.msra.mxu0 0.0
        %5377 = vmatprep.subr.mxu0 0.0
        %5378 = vmatpush1.msra.mxu0 0.0
        %5379 = vmatprep.subr.mxu0 0.0
        %5380 = vmatpush1.msra.mxu0 0.0
        %5381 = vmatprep.subr.mxu0 0.0
        %5382 = vmatpush1.msra.mxu0 0.0
        %5383 = vmatprep.subr.mxu0 0.0
        %5384 = vmatpush1.msra.mxu0 0.0
        %5385 = vmatprep.subr.mxu0 0.0
        %5386 = vmatpush1.msra.mxu0 0.0
        %5387 = vmatprep.subr.mxu0 0.0
        %5388 = vmatpush1.msra.mxu0 0.0
        %5389 = vmatprep.subr.mxu0 0.0
        %5390 = vmatpush1.msra.mxu0 0.0
        %5391 = vmatprep.subr.mxu0 0.0
        %5392 = vmatpush1.msra.mxu0 0.0
        %5393 = vmatprep.subr.mxu0 0.0
        %5394 = vmatpush1.msra.mxu0 0.0
        %5395 = vmatprep.subr.mxu0 0.0
        %5396 = vmatpush1.msra.mxu0 0.0
        %5397 = vmatprep.subr.mxu0 0.0
        %5398 = vmatpush1.msra.mxu0 0.0
        %5399 = vmatprep.subr.mxu0 0.0
        %5400 = vmatpush1.msra.mxu0 0.0
        %5401 = vmatprep.subr.mxu0 0.0
        %5402 = vmatpush1.msra.mxu0 0.0
        %5403 = vmatprep.subr.mxu0 0.0
        %5404 = vmatpush1.msra.mxu0 0.0
        %5405 = vmatprep.mubr.f32.mxu0 0.0
        %5406 = vmatmul.mubr.f32.gmra.mrb[0].mxu0 %v5339
        %v5407 = vpop.f32.mrb[0].mxu0
        %v5408 = vadd.f32 %v5335, %v5407
        %v5409 = vpop.f32.mrb[0].mxu0
        %5410 = vdwg.mxu0
        %v5411 = vadd.f32 %v5408, %v4971
        %5413 = vrot.lane.b32.xlu0 %v3121, 64
        %v5414 = vpop.permute.xlu0 %5413
        %5417 = vrot.lane.b32.xlu0 %v4887, 64
        %v5418 = vpop.permute.xlu0 %5417
        %v5420 = vsel %vm358, %v1521, %v5414
        %v5421 = vsel %vm358, %v4446, %v5418
        %5422 = vst [vmem:[%s260] sm:$0xff] %v5420
        %5423 = vst [vmem:[%s260 + $0x8] sm:$0xff] %v5421
        %5424 = vst.msk [vmem:[%s260 + $0x10] sm:$0xff] %vm358, %v5411
        %p5425 = scmp.lt.s32.totalorder %s15, 1
        %s5426 = scalar_select %p5425, %s15, 1
        %s5427 = smul.addr %s5426, 3
        %s5428 = smul.addr %s5427, 8
        %s5429 = scalar_lea.vmem %s4, %s5428
        // Predicated region
        $region75: #{cell_stem0_forward.1} parent=69 // pred_check
          %p5430 = pneg %p122
        $region76: #{cell_stem0_forward.1} parent=69 // pred_check_branch
          %5432 = sbr.rel (%p5430) target = $region78
        $region77: #{cell_stem0_forward.1} parent=69 // pred_region
          _
        $region78: #{cell_stem0_forward.1} parent=69 // pred_fallthru
          _
      $region70: #{cell_stem0_forward.1} parent=5 // pred_fallthru
        _
      %p5433 = scmp.le.s32.totalorder 2, %s10
      // Predicated region
      $region79: #{cell_stem0_forward.1} parent=5 // pred_check
        %p5434 = pneg %p5433
      $region80: #{cell_stem0_forward.1} parent=5 // pred_check_branch
        %5436 = sbr.rel (%p5434) target = $region82
      $region81: #{cell_stem0_forward.1} parent=5 // pred_region
        %s5437 = ssub.s32 %s10, 2
        // Predicated region
        $region83: #{cell_stem0_forward.1} parent=81 // pred_check
          %p5438 = pneg %p128
        $region84: #{cell_stem0_forward.1} parent=81 // pred_check_branch
          %5440 = sbr.rel (%p5438) target = $region86
        $region85: #{cell_stem0_forward.1} parent=81 // pred_region
          %p5441 = scmp.lt.s32.totalorder %s16, 1
          %s5442 = scalar_select %p5441, %s16, 1
          %s5443 = smul.addr %s5442, 3
          %s5444 = smul.addr %s5443, 8
          %s5445 = scalar_lea.vmem %s4, %s5444
        $region86: #{cell_stem0_forward.1} parent=81 // pred_fallthru
          _
      $region82: #{cell_stem0_forward.1} parent=5 // pred_fallthru
        _
    $region6: #{cell_stem0_forward.1} parent=1 // loop_footer
      %s14 = sadd.s32 1, %s10
    $region7: #{cell_stem0_forward.1} parent=1 // loop_footer_branch
      %9 = sbr.rel target = $region3
    $region8: #{cell_stem0_forward.1} parent=1 // loop_exit
      _

</llo_original>
